<compile_context>
chip_gen: v7x
topology: tpu7x:2x2x1
jax: 0.10.0
libtpu: 0.0.40
codegen_flags: <defaults>
</compile_context>

<pallas_src>
import functools

import jax
import jax.numpy as jnp
from jax import lax
from jax.experimental import pallas as pl
from jax.experimental.pallas import tpu as pltpu

# Use true-f32 matmuls everywhere (both the in-kernel dots and the pure-JAX reference)
# so the correctness comparison is tight.
jax.config.update("jax_default_matmul_precision", "highest")


# ------------------------------- fused kernel --------------------------------
def _block6_kernel(x_ref, wq_ref, wk_ref, wv_ref, wo_ref, bo_ref,
                   w1_ref, b1_ref, w2_ref, b2_ref, o_ref, *, h, dk, dv):
    # x_ref : (1, T, dm)   one batch element
    # wq_ref/wk_ref : (dm, h*dk)   per-head query/key weights stacked along lanes
    # wv_ref: (dm, h*dv)
    # wo_ref: (h*dv, dm), bo_ref: (1, dm)
    # w1_ref: (dm, 4*dm), b1_ref: (1, 4*dm)
    # w2_ref: (4*dm, dm), b2_ref: (1, dm)
    # o_ref : (1, T, dm)
    x = x_ref[0]                                           # (T, dm) f32
    T = x.shape[0]

    # ---- RMSNorm 1 (matches PyTorch: x / sqrt(mean(x^2, -1))) ----
    n1 = x / jnp.sqrt(jnp.mean(x * x, axis=-1, keepdims=True))

    # ---- fused QKV for all heads ----
    q = jnp.maximum(jnp.dot(n1, wq_ref[...], preferred_element_type=jnp.float32), 0.0)
    k = jnp.maximum(jnp.dot(n1, wk_ref[...], preferred_element_type=jnp.float32), 0.0)
    v = jnp.dot(n1, wv_ref[...], preferred_element_type=jnp.float32)

    # fold the 1/sqrt(dk) score scale into q (cheaper than scaling each (T,T) score matrix)
    q = q * (jnp.float32(dk) ** -0.5)

    # causal mask (shared across heads)
    row = lax.broadcasted_iota(jnp.int32, (T, T), 0)
    col = lax.broadcasted_iota(jnp.int32, (T, T), 1)
    causal = row >= col

    head_outs = []
    for hd in range(h):                                    # static, small loop over heads
        qh = q[:, hd * dk:(hd + 1) * dk]                   # (T, dk)
        kh = k[:, hd * dk:(hd + 1) * dk]
        vh = v[:, hd * dv:(hd + 1) * dv]
        # 'log' attention == q @ k^T for non-negative q, k; contract last dims, no k.T
        s = lax.dot_general(qh, kh, (((1,), (1,)), ((), ())),
                            preferred_element_type=jnp.float32)   # (T, T)
        s = jnp.where(causal, s, -jnp.inf)
        m = jnp.max(s, axis=-1, keepdims=True)
        e = jnp.exp(s - m)
        p = e / jnp.sum(e, axis=-1, keepdims=True)
        head_outs.append(jnp.dot(p, vh, preferred_element_type=jnp.float32))

    concat = jnp.concatenate(head_outs, axis=-1)           # (T, h*dv)

    # ---- output projection + residual ----
    attn = jnp.dot(concat, wo_ref[...], preferred_element_type=jnp.float32) + bo_ref[...]
    x2 = x + attn

    # ---- RMSNorm 2 + FFN + residual ----
    n2 = x2 / jnp.sqrt(jnp.mean(x2 * x2, axis=-1, keepdims=True))
    hdn = jnp.maximum(
        jnp.dot(n2, w1_ref[...], preferred_element_type=jnp.float32) + b1_ref[...], 0.0)
    ff = jnp.dot(hdn, w2_ref[...], preferred_element_type=jnp.float32) + b2_ref[...]

    o_ref[0] = (x2 + ff).astype(o_ref.dtype)


# --------------------------------- wrapper ------------------------------------
@functools.partial(jax.jit, static_argnames=("h",))
def block6_forward(x, wq_all, wk_all, wv_all, wo_t, bo, w1_t, b1, w2_t, b2, *, h):
    """Forward of Block6 (eval mode: dropout = identity).

    x      : (B, T, dm)
    wq_all, wk_all : (dm, h*dk)   per-head Linear weights (transposed), stacked by head
    wv_all : (dm, h*dv)
    wo_t   : (h*dv, dm)           W_o weight, pre-transposed at setup
    bo     : (1, dm)
    w1_t   : (dm, 4*dm), b1 : (1, 4*dm)
    w2_t   : (4*dm, dm), b2 : (1, dm)
    """
    B, T, dm = x.shape
    dk = wq_all.shape[-1] // h
    dv = wv_all.shape[-1] // h
    dh = w1_t.shape[-1]

    kernel = functools.partial(_block6_kernel, h=h, dk=dk, dv=dv)
    return pl.pallas_call(
        kernel,
        out_shape=jax.ShapeDtypeStruct((B, T, dm), jnp.float32),
        grid_spec=pltpu.PrefetchScalarGridSpec(
            num_scalar_prefetch=0,
            grid=(B,),
            in_specs=[
                pl.BlockSpec((1, T, dm), lambda b: (b, 0, 0)),       # x
                pl.BlockSpec((dm, h * dk), lambda b: (0, 0)),        # Wq (stacked heads)
                pl.BlockSpec((dm, h * dk), lambda b: (0, 0)),        # Wk
                pl.BlockSpec((dm, h * dv), lambda b: (0, 0)),        # Wv
                pl.BlockSpec((h * dv, dm), lambda b: (0, 0)),        # Wo^T
                pl.BlockSpec((1, dm), lambda b: (0, 0)),             # bo
                pl.BlockSpec((dm, dh), lambda b: (0, 0)),            # W1^T
                pl.BlockSpec((1, dh), lambda b: (0, 0)),             # b1
                pl.BlockSpec((dh, dm), lambda b: (0, 0)),            # W2^T
                pl.BlockSpec((1, dm), lambda b: (0, 0)),             # b2
            ],
            out_specs=pl.BlockSpec((1, T, dm), lambda b: (b, 0, 0)),
        ),
        compiler_params=pltpu.CompilerParams(
            dimension_semantics=("parallel",),   # batch axis shards across v7x's 2 TCs
        ),
    )(x, wq_all, wk_all, wv_all, wo_t, bo, w1_t, b1, w2_t, b2)


# ------------------------- pure-JAX reference (literal) -----------------------
def _reference(x, wq_all, wk_all, wv_all, wo_t, bo, w1_t, b1, w2_t, b2, *, h, dk, dv):
    B, T, dm = x.shape

    def rms(y):
        return y / jnp.sqrt(jnp.mean(y ** 2, axis=-1, keepdims=True))

    n1 = rms(x)
    q = jax.nn.relu(n1 @ wq_all)          # (B, T, h*dk)
    k = jax.nn.relu(n1 @ wk_all)
    v = n1 @ wv_all
    mask = jnp.tril(jnp.ones((T, T), bool))

    outs = []
    for hd in range(h):
        qh = q[..., hd * dk:(hd + 1) * dk]
        kh = k[..., hd * dk:(hd + 1) * dk]
        vh = v[..., hd * dv:(hd + 1) * dv]
        # literal 'log' attention formula from SelfAttentionHead2
        qe = jnp.log(qh)[..., :, None, :]                  # (B, T, 1, dk)
        ke = jnp.log(kh)[..., None, :, :]                  # (B, 1, T, dk)
        wei = jnp.sum(jnp.exp(qe + ke), axis=-1) * (dk ** -0.5)
        wei = jnp.where(mask, wei, -jnp.inf)
        wei = jax.nn.softmax(wei, axis=-1)
        outs.append(wei @ vh)

    attn = jnp.concatenate(outs, axis=-1) @ wo_t + bo
    x2 = x + attn
    n2 = rms(x2)
    ff = jax.nn.relu(n2 @ w1_t + b1) @ w2_t + b2
    return x2 + ff


if __name__ == "__main__":
    # Small shapes consistent with Block6(dm, h): dk = dv = dm // h.
    # dm = 128 keeps the kernel's output last dim exactly one 128-lane vreg wide.
    B, T, dm, h = 2, 8, 128, 4
    dk = dv = dm // h
    dh = 4 * dm

    key = jax.random.PRNGKey(0)
    ks = jax.random.split(key, 10)

    x = jax.random.normal(ks[0], (B, T, dm), dtype=jnp.float32)
    # Parameter layouts prepared once at setup (transposed Linear weights, (1, d) biases).
    wq_all = jax.random.normal(ks[1], (dm, h * dk), dtype=jnp.float32) * (dm ** -0.5)
    wk_all = jax.random.normal(ks[2], (dm, h * dk), dtype=jnp.float32) * (dm ** -0.5)
    wv_all = jax.random.normal(ks[3], (dm, h * dv), dtype=jnp.float32) * (dm ** -0.5)
    wo_t = jax.random.normal(ks[4], (h * dv, dm), dtype=jnp.float32) * ((h * dv) ** -0.5)
    bo = jax.random.normal(ks[5], (1, dm), dtype=jnp.float32) * 0.01
    w1_t = jax.random.normal(ks[6], (dm, dh), dtype=jnp.float32) * (dm ** -0.5)
    b1 = jax.random.normal(ks[7], (1, dh), dtype=jnp.float32) * 0.01
    w2_t = jax.random.normal(ks[8], (dh, dm), dtype=jnp.float32) * (dh ** -0.5)
    b2 = jax.random.normal(ks[9], (1, dm), dtype=jnp.float32) * 0.01

    out = block6_forward(x, wq_all, wk_all, wv_all, wo_t, bo, w1_t, b1, w2_t, b2, h=h)
    out = jax.block_until_ready(out)

    ref = _reference(x, wq_all, wk_all, wv_all, wo_t, bo, w1_t, b1, w2_t, b2,
                     h=h, dk=dk, dv=dv)
    assert out.shape == (B, T, dm)
    assert jnp.allclose(out, ref, atol=1e-3, rtol=1e-3), "mismatch vs reference"

    print("KERNEL_OK")
</pallas_src>

<mosaic_0001>
module attributes {stable_mosaic.version = 11 : i64} {
  func.func @_block6_kernel(%arg0: i32, %arg1: memref<1x8x128xf32, #tpu.memory_space<vmem>>, %arg2: memref<128x128xf32, #tpu.memory_space<vmem>>, %arg3: memref<128x128xf32, #tpu.memory_space<vmem>>, %arg4: memref<128x128xf32, #tpu.memory_space<vmem>>, %arg5: memref<128x128xf32, #tpu.memory_space<vmem>>, %arg6: memref<1x128xf32, #tpu.memory_space<vmem>>, %arg7: memref<128x512xf32, #tpu.memory_space<vmem>>, %arg8: memref<1x512xf32, #tpu.memory_space<vmem>>, %arg9: memref<512x128xf32, #tpu.memory_space<vmem>>, %arg10: memref<1x128xf32, #tpu.memory_space<vmem>>, %arg11: memref<1x8x128xf32, #tpu.memory_space<vmem>>) attributes {dimension_semantics = [#tpu.dimension_semantics<parallel>], iteration_bounds = array<i64: 2>, scalar_prefetch = 0 : i64, scratch_operands = 0 : i64, tpu.core_type = #tpu.core_type<tc>, window_params = [{transform_indices = @transform_0, window_bounds = array<i64: 1, 8, 128>}, {pipeline_mode = #tpu.pipeline_mode<synchronous>, transform_indices = @transform_1, window_bounds = array<i64: 128, 128>}, {pipeline_mode = #tpu.pipeline_mode<synchronous>, transform_indices = @transform_2, window_bounds = array<i64: 128, 128>}, {pipeline_mode = #tpu.pipeline_mode<synchronous>, transform_indices = @transform_3, window_bounds = array<i64: 128, 128>}, {pipeline_mode = #tpu.pipeline_mode<synchronous>, transform_indices = @transform_4, window_bounds = array<i64: 128, 128>}, {pipeline_mode = #tpu.pipeline_mode<synchronous>, transform_indices = @transform_5, window_bounds = array<i64: 1, 128>}, {pipeline_mode = #tpu.pipeline_mode<synchronous>, transform_indices = @transform_6, window_bounds = array<i64: 128, 512>}, {pipeline_mode = #tpu.pipeline_mode<synchronous>, transform_indices = @transform_7, window_bounds = array<i64: 1, 512>}, {pipeline_mode = #tpu.pipeline_mode<synchronous>, transform_indices = @transform_8, window_bounds = array<i64: 512, 128>}, {pipeline_mode = #tpu.pipeline_mode<synchronous>, transform_indices = @transform_9, window_bounds = array<i64: 1, 128>}, {transform_indices = @transform_10, window_bounds = array<i64: 1, 8, 128>}]} {
    %c0 = arith.constant 0 : index
    %c0_0 = arith.constant 0 : index
    %c0_1 = arith.constant 0 : index
    %0 = vector.load %arg1[%c0, %c0_0, %c0_1] : memref<1x8x128xf32, #tpu.memory_space<vmem>>, vector<1x8x128xf32>
    %1 = vector.shape_cast %0 : vector<1x8x128xf32> to vector<8x128xf32>
    %2 = arith.mulf %1, %1 : vector<8x128xf32>
    %cst = arith.constant dense<0.000000e+00> : vector<8xf32>
    %3 = vector.multi_reduction <add>, %2, %cst [1] : vector<8x128xf32> to vector<8xf32>
    %4 = vector.shape_cast %3 : vector<8xf32> to vector<8x1xf32>
    %cst_2 = arith.constant 1.280000e+02 : f32
    %5 = vector.broadcast %cst_2 : f32 to vector<8x1xf32>
    %6 = arith.divf %4, %5 : vector<8x1xf32>
    %7 = math.sqrt %6 : vector<8x1xf32>
    %8 = vector.broadcast %7 : vector<8x1xf32> to vector<8x128xf32>
    %9 = arith.divf %1, %8 : vector<8x128xf32>
    %c0_3 = arith.constant 0 : index
    %c0_4 = arith.constant 0 : index
    %10 = vector.load %arg2[%c0_3, %c0_4] : memref<128x128xf32, #tpu.memory_space<vmem>>, vector<128x128xf32>
    %cst_5 = arith.constant dense<0.000000e+00> : vector<8x128xf32>
    %11 = tpu.matmul %9, %10, %cst_5 {dimension_numbers = #tpu.dot_dimension_numbers<[1], [0], [0], [1], [0, 0, 1, 1], [], []>, precision = #tpu.contract_precision<fp32>} : vector<8x128xf32>, vector<128x128xf32>, vector<8x128xf32> -> vector<8x128xf32>
    %cst_6 = arith.constant 0.000000e+00 : f32
    %12 = vector.broadcast %cst_6 : f32 to vector<8x128xf32>
    %13 = arith.maximumf %11, %12 : vector<8x128xf32>
    %c0_7 = arith.constant 0 : index
    %c0_8 = arith.constant 0 : index
    %14 = vector.load %arg3[%c0_7, %c0_8] : memref<128x128xf32, #tpu.memory_space<vmem>>, vector<128x128xf32>
    %cst_9 = arith.constant dense<0.000000e+00> : vector<8x128xf32>
    %15 = tpu.matmul %9, %14, %cst_9 {dimension_numbers = #tpu.dot_dimension_numbers<[1], [0], [0], [1], [0, 0, 1, 1], [], []>, precision = #tpu.contract_precision<fp32>} : vector<8x128xf32>, vector<128x128xf32>, vector<8x128xf32> -> vector<8x128xf32>
    %cst_10 = arith.constant 0.000000e+00 : f32
    %16 = vector.broadcast %cst_10 : f32 to vector<8x128xf32>
    %17 = arith.maximumf %15, %16 : vector<8x128xf32>
    %c0_11 = arith.constant 0 : index
    %c0_12 = arith.constant 0 : index
    %18 = vector.load %arg4[%c0_11, %c0_12] : memref<128x128xf32, #tpu.memory_space<vmem>>, vector<128x128xf32>
    %cst_13 = arith.constant dense<0.000000e+00> : vector<8x128xf32>
    %19 = tpu.matmul %9, %18, %cst_13 {dimension_numbers = #tpu.dot_dimension_numbers<[1], [0], [0], [1], [0, 0, 1, 1], [], []>, precision = #tpu.contract_precision<fp32>} : vector<8x128xf32>, vector<128x128xf32>, vector<8x128xf32> -> vector<8x128xf32>
    %cst_14 = arith.constant 3.200000e+01 : f32
    %cst_15 = arith.constant -5.000000e-01 : f32
    %20 = math.powf %cst_14, %cst_15 : f32
    %21 = vector.broadcast %20 : f32 to vector<8x128xf32>
    %22 = arith.mulf %13, %21 : vector<8x128xf32>
    %23 = tpu.iota {dimensions = array<i32: 0>} : vector<8x8xi32>
    %24 = tpu.iota {dimensions = array<i32: 1>} : vector<8x8xi32>
    %25 = arith.cmpi sge, %23, %24 : vector<8x8xi32>
    %26 = vector.extract_strided_slice %22 {offsets = [0, 0], sizes = [8, 32], strides = [1, 1]} : vector<8x128xf32> to vector<8x32xf32>
    %27 = vector.extract_strided_slice %17 {offsets = [0, 0], sizes = [8, 32], strides = [1, 1]} : vector<8x128xf32> to vector<8x32xf32>
    %28 = vector.extract_strided_slice %19 {offsets = [0, 0], sizes = [8, 32], strides = [1, 1]} : vector<8x128xf32> to vector<8x32xf32>
    %cst_16 = arith.constant dense<0.000000e+00> : vector<8x8xf32>
    %29 = tpu.matmul %26, %27, %cst_16 {dimension_numbers = #tpu.dot_dimension_numbers<[1], [1], [0], [0], [0, 0, 1, 0], [], []>, precision = #tpu.contract_precision<fp32>} : vector<8x32xf32>, vector<8x32xf32>, vector<8x8xf32> -> vector<8x8xf32>
    %cst_17 = arith.constant 0xFF800000 : f32
    %30 = vector.broadcast %cst_17 : f32 to vector<8x8xf32>
    %31 = arith.select %25, %29, %30 : vector<8x8xi1>, vector<8x8xf32>
    %cst_18 = arith.constant dense<0xFF800000> : vector<8xf32>
    %32 = vector.multi_reduction <maximumf>, %31, %cst_18 [1] : vector<8x8xf32> to vector<8xf32>
    %33 = vector.shape_cast %32 : vector<8xf32> to vector<8x1xf32>
    %34 = vector.broadcast %33 : vector<8x1xf32> to vector<8x8xf32>
    %35 = arith.subf %31, %34 : vector<8x8xf32>
    %36 = math.exp %35 : vector<8x8xf32>
    %cst_19 = arith.constant dense<0.000000e+00> : vector<8xf32>
    %37 = vector.multi_reduction <add>, %36, %cst_19 [1] : vector<8x8xf32> to vector<8xf32>
    %38 = vector.shape_cast %37 : vector<8xf32> to vector<8x1xf32>
    %39 = vector.broadcast %38 : vector<8x1xf32> to vector<8x8xf32>
    %40 = arith.divf %36, %39 : vector<8x8xf32>
    %cst_20 = arith.constant dense<0.000000e+00> : vector<8x32xf32>
    %41 = tpu.matmul %40, %28, %cst_20 {dimension_numbers = #tpu.dot_dimension_numbers<[1], [0], [0], [1], [0, 0, 1, 1], [], []>, precision = #tpu.contract_precision<fp32>} : vector<8x8xf32>, vector<8x32xf32>, vector<8x32xf32> -> vector<8x32xf32>
    %42 = vector.extract_strided_slice %22 {offsets = [0, 32], sizes = [8, 32], strides = [1, 1]} : vector<8x128xf32> to vector<8x32xf32>
    %43 = vector.extract_strided_slice %17 {offsets = [0, 32], sizes = [8, 32], strides = [1, 1]} : vector<8x128xf32> to vector<8x32xf32>
    %44 = vector.extract_strided_slice %19 {offsets = [0, 32], sizes = [8, 32], strides = [1, 1]} : vector<8x128xf32> to vector<8x32xf32>
    %cst_21 = arith.constant dense<0.000000e+00> : vector<8x8xf32>
    %45 = tpu.matmul %42, %43, %cst_21 {dimension_numbers = #tpu.dot_dimension_numbers<[1], [1], [0], [0], [0, 0, 1, 0], [], []>, precision = #tpu.contract_precision<fp32>} : vector<8x32xf32>, vector<8x32xf32>, vector<8x8xf32> -> vector<8x8xf32>
    %cst_22 = arith.constant 0xFF800000 : f32
    %46 = vector.broadcast %cst_22 : f32 to vector<8x8xf32>
    %47 = arith.select %25, %45, %46 : vector<8x8xi1>, vector<8x8xf32>
    %cst_23 = arith.constant dense<0xFF800000> : vector<8xf32>
    %48 = vector.multi_reduction <maximumf>, %47, %cst_23 [1] : vector<8x8xf32> to vector<8xf32>
    %49 = vector.shape_cast %48 : vector<8xf32> to vector<8x1xf32>
    %50 = vector.broadcast %49 : vector<8x1xf32> to vector<8x8xf32>
    %51 = arith.subf %47, %50 : vector<8x8xf32>
    %52 = math.exp %51 : vector<8x8xf32>
    %cst_24 = arith.constant dense<0.000000e+00> : vector<8xf32>
    %53 = vector.multi_reduction <add>, %52, %cst_24 [1] : vector<8x8xf32> to vector<8xf32>
    %54 = vector.shape_cast %53 : vector<8xf32> to vector<8x1xf32>
    %55 = vector.broadcast %54 : vector<8x1xf32> to vector<8x8xf32>
    %56 = arith.divf %52, %55 : vector<8x8xf32>
    %cst_25 = arith.constant dense<0.000000e+00> : vector<8x32xf32>
    %57 = tpu.matmul %56, %44, %cst_25 {dimension_numbers = #tpu.dot_dimension_numbers<[1], [0], [0], [1], [0, 0, 1, 1], [], []>, precision = #tpu.contract_precision<fp32>} : vector<8x8xf32>, vector<8x32xf32>, vector<8x32xf32> -> vector<8x32xf32>
    %58 = vector.extract_strided_slice %22 {offsets = [0, 64], sizes = [8, 32], strides = [1, 1]} : vector<8x128xf32> to vector<8x32xf32>
    %59 = vector.extract_strided_slice %17 {offsets = [0, 64], sizes = [8, 32], strides = [1, 1]} : vector<8x128xf32> to vector<8x32xf32>
    %60 = vector.extract_strided_slice %19 {offsets = [0, 64], sizes = [8, 32], strides = [1, 1]} : vector<8x128xf32> to vector<8x32xf32>
    %cst_26 = arith.constant dense<0.000000e+00> : vector<8x8xf32>
    %61 = tpu.matmul %58, %59, %cst_26 {dimension_numbers = #tpu.dot_dimension_numbers<[1], [1], [0], [0], [0, 0, 1, 0], [], []>, precision = #tpu.contract_precision<fp32>} : vector<8x32xf32>, vector<8x32xf32>, vector<8x8xf32> -> vector<8x8xf32>
    %cst_27 = arith.constant 0xFF800000 : f32
    %62 = vector.broadcast %cst_27 : f32 to vector<8x8xf32>
    %63 = arith.select %25, %61, %62 : vector<8x8xi1>, vector<8x8xf32>
    %cst_28 = arith.constant dense<0xFF800000> : vector<8xf32>
    %64 = vector.multi_reduction <maximumf>, %63, %cst_28 [1] : vector<8x8xf32> to vector<8xf32>
    %65 = vector.shape_cast %64 : vector<8xf32> to vector<8x1xf32>
    %66 = vector.broadcast %65 : vector<8x1xf32> to vector<8x8xf32>
    %67 = arith.subf %63, %66 : vector<8x8xf32>
    %68 = math.exp %67 : vector<8x8xf32>
    %cst_29 = arith.constant dense<0.000000e+00> : vector<8xf32>
    %69 = vector.multi_reduction <add>, %68, %cst_29 [1] : vector<8x8xf32> to vector<8xf32>
    %70 = vector.shape_cast %69 : vector<8xf32> to vector<8x1xf32>
    %71 = vector.broadcast %70 : vector<8x1xf32> to vector<8x8xf32>
    %72 = arith.divf %68, %71 : vector<8x8xf32>
    %cst_30 = arith.constant dense<0.000000e+00> : vector<8x32xf32>
    %73 = tpu.matmul %72, %60, %cst_30 {dimension_numbers = #tpu.dot_dimension_numbers<[1], [0], [0], [1], [0, 0, 1, 1], [], []>, precision = #tpu.contract_precision<fp32>} : vector<8x8xf32>, vector<8x32xf32>, vector<8x32xf32> -> vector<8x32xf32>
    %74 = vector.extract_strided_slice %22 {offsets = [0, 96], sizes = [8, 32], strides = [1, 1]} : vector<8x128xf32> to vector<8x32xf32>
    %75 = vector.extract_strided_slice %17 {offsets = [0, 96], sizes = [8, 32], strides = [1, 1]} : vector<8x128xf32> to vector<8x32xf32>
    %76 = vector.extract_strided_slice %19 {offsets = [0, 96], sizes = [8, 32], strides = [1, 1]} : vector<8x128xf32> to vector<8x32xf32>
    %cst_31 = arith.constant dense<0.000000e+00> : vector<8x8xf32>
    %77 = tpu.matmul %74, %75, %cst_31 {dimension_numbers = #tpu.dot_dimension_numbers<[1], [1], [0], [0], [0, 0, 1, 0], [], []>, precision = #tpu.contract_precision<fp32>} : vector<8x32xf32>, vector<8x32xf32>, vector<8x8xf32> -> vector<8x8xf32>
    %cst_32 = arith.constant 0xFF800000 : f32
    %78 = vector.broadcast %cst_32 : f32 to vector<8x8xf32>
    %79 = arith.select %25, %77, %78 : vector<8x8xi1>, vector<8x8xf32>
    %cst_33 = arith.constant dense<0xFF800000> : vector<8xf32>
    %80 = vector.multi_reduction <maximumf>, %79, %cst_33 [1] : vector<8x8xf32> to vector<8xf32>
    %81 = vector.shape_cast %80 : vector<8xf32> to vector<8x1xf32>
    %82 = vector.broadcast %81 : vector<8x1xf32> to vector<8x8xf32>
    %83 = arith.subf %79, %82 : vector<8x8xf32>
    %84 = math.exp %83 : vector<8x8xf32>
    %cst_34 = arith.constant dense<0.000000e+00> : vector<8xf32>
    %85 = vector.multi_reduction <add>, %84, %cst_34 [1] : vector<8x8xf32> to vector<8xf32>
    %86 = vector.shape_cast %85 : vector<8xf32> to vector<8x1xf32>
    %87 = vector.broadcast %86 : vector<8x1xf32> to vector<8x8xf32>
    %88 = arith.divf %84, %87 : vector<8x8xf32>
    %cst_35 = arith.constant dense<0.000000e+00> : vector<8x32xf32>
    %89 = tpu.matmul %88, %76, %cst_35 {dimension_numbers = #tpu.dot_dimension_numbers<[1], [0], [0], [1], [0, 0, 1, 1], [], []>, precision = #tpu.contract_precision<fp32>} : vector<8x8xf32>, vector<8x32xf32>, vector<8x32xf32> -> vector<8x32xf32>
    %90 = tpu.concatenate %41, %57, %73, %89 in 1 : vector<8x32xf32>, vector<8x32xf32>, vector<8x32xf32>, vector<8x32xf32> -> vector<8x128xf32>
    %c0_36 = arith.constant 0 : index
    %c0_37 = arith.constant 0 : index
    %91 = vector.load %arg5[%c0_36, %c0_37] : memref<128x128xf32, #tpu.memory_space<vmem>>, vector<128x128xf32>
    %cst_38 = arith.constant dense<0.000000e+00> : vector<8x128xf32>
    %92 = tpu.matmul %90, %91, %cst_38 {dimension_numbers = #tpu.dot_dimension_numbers<[1], [0], [0], [1], [0, 0, 1, 1], [], []>, precision = #tpu.contract_precision<fp32>} : vector<8x128xf32>, vector<128x128xf32>, vector<8x128xf32> -> vector<8x128xf32>
    %c0_39 = arith.constant 0 : index
    %c0_40 = arith.constant 0 : index
    %93 = vector.load %arg6[%c0_39, %c0_40] : memref<1x128xf32, #tpu.memory_space<vmem>>, vector<1x128xf32>
    %94 = vector.broadcast %93 : vector<1x128xf32> to vector<8x128xf32>
    %95 = arith.addf %92, %94 : vector<8x128xf32>
    %96 = arith.addf %1, %95 : vector<8x128xf32>
    %97 = arith.mulf %96, %96 : vector<8x128xf32>
    %cst_41 = arith.constant dense<0.000000e+00> : vector<8xf32>
    %98 = vector.multi_reduction <add>, %97, %cst_41 [1] : vector<8x128xf32> to vector<8xf32>
    %99 = vector.shape_cast %98 : vector<8xf32> to vector<8x1xf32>
    %cst_42 = arith.constant 1.280000e+02 : f32
    %100 = vector.broadcast %cst_42 : f32 to vector<8x1xf32>
    %101 = arith.divf %99, %100 : vector<8x1xf32>
    %102 = math.sqrt %101 : vector<8x1xf32>
    %103 = vector.broadcast %102 : vector<8x1xf32> to vector<8x128xf32>
    %104 = arith.divf %96, %103 : vector<8x128xf32>
    %c0_43 = arith.constant 0 : index
    %c0_44 = arith.constant 0 : index
    %105 = vector.load %arg7[%c0_43, %c0_44] : memref<128x512xf32, #tpu.memory_space<vmem>>, vector<128x512xf32>
    %cst_45 = arith.constant dense<0.000000e+00> : vector<8x512xf32>
    %106 = tpu.matmul %104, %105, %cst_45 {dimension_numbers = #tpu.dot_dimension_numbers<[1], [0], [0], [1], [0, 0, 1, 1], [], []>, precision = #tpu.contract_precision<fp32>} : vector<8x128xf32>, vector<128x512xf32>, vector<8x512xf32> -> vector<8x512xf32>
    %c0_46 = arith.constant 0 : index
    %c0_47 = arith.constant 0 : index
    %107 = vector.load %arg8[%c0_46, %c0_47] : memref<1x512xf32, #tpu.memory_space<vmem>>, vector<1x512xf32>
    %108 = vector.broadcast %107 : vector<1x512xf32> to vector<8x512xf32>
    %109 = arith.addf %106, %108 : vector<8x512xf32>
    %cst_48 = arith.constant 0.000000e+00 : f32
    %110 = vector.broadcast %cst_48 : f32 to vector<8x512xf32>
    %111 = arith.maximumf %109, %110 : vector<8x512xf32>
    %c0_49 = arith.constant 0 : index
    %c0_50 = arith.constant 0 : index
    %112 = vector.load %arg9[%c0_49, %c0_50] : memref<512x128xf32, #tpu.memory_space<vmem>>, vector<512x128xf32>
    %cst_51 = arith.constant dense<0.000000e+00> : vector<8x128xf32>
    %113 = tpu.matmul %111, %112, %cst_51 {dimension_numbers = #tpu.dot_dimension_numbers<[1], [0], [0], [1], [0, 0, 1, 1], [], []>, precision = #tpu.contract_precision<fp32>} : vector<8x512xf32>, vector<512x128xf32>, vector<8x128xf32> -> vector<8x128xf32>
    %c0_52 = arith.constant 0 : index
    %c0_53 = arith.constant 0 : index
    %114 = vector.load %arg10[%c0_52, %c0_53] : memref<1x128xf32, #tpu.memory_space<vmem>>, vector<1x128xf32>
    %115 = vector.broadcast %114 : vector<1x128xf32> to vector<8x128xf32>
    %116 = arith.addf %113, %115 : vector<8x128xf32>
    %117 = arith.addf %96, %116 : vector<8x128xf32>
    %c0_54 = arith.constant 0 : index
    %c0_55 = arith.constant 0 : index
    %c0_56 = arith.constant 0 : index
    %118 = vector.load %arg11[%c0_54, %c0_55, %c0_56] : memref<1x8x128xf32, #tpu.memory_space<vmem>>, vector<1x8x128xf32>
    %119 = vector.shape_cast %118 : vector<1x8x128xf32> to vector<8x128xf32>
    %120 = vector.shape_cast %117 : vector<8x128xf32> to vector<1x8x128xf32>
    tpu.vector_store %arg11[%c0_54, %c0_55, %c0_56], %120 {strides = array<i32>} : memref<1x8x128xf32, #tpu.memory_space<vmem>>, vector<1x8x128xf32>,
    return
  }
  func.func @transform_0(%arg0: i32) -> (i32, i32, i32) {
    %c0_i32 = arith.constant 0 : i32
    %c0_i32_0 = arith.constant 0 : i32
    %c0_i32_1 = arith.constant 0 : i32
    return %arg0, %c0_i32, %c0_i32_0 : i32, i32, i32
  }
  func.func @transform_1(%arg0: i32) -> (i32, i32) {
    %c0_i32 = arith.constant 0 : i32
    %c0_i32_0 = arith.constant 0 : i32
    %c0_i32_1 = arith.constant 0 : i32
    return %c0_i32, %c0_i32_0 : i32, i32
  }
  func.func @transform_2(%arg0: i32) -> (i32, i32) {
    %c0_i32 = arith.constant 0 : i32
    %c0_i32_0 = arith.constant 0 : i32
    %c0_i32_1 = arith.constant 0 : i32
    return %c0_i32, %c0_i32_0 : i32, i32
  }
  func.func @transform_3(%arg0: i32) -> (i32, i32) {
    %c0_i32 = arith.constant 0 : i32
    %c0_i32_0 = arith.constant 0 : i32
    %c0_i32_1 = arith.constant 0 : i32
    return %c0_i32, %c0_i32_0 : i32, i32
  }
  func.func @transform_4(%arg0: i32) -> (i32, i32) {
    %c0_i32 = arith.constant 0 : i32
    %c0_i32_0 = arith.constant 0 : i32
    %c0_i32_1 = arith.constant 0 : i32
    return %c0_i32, %c0_i32_0 : i32, i32
  }
  func.func @transform_5(%arg0: i32) -> (i32, i32) {
    %c0_i32 = arith.constant 0 : i32
    %c0_i32_0 = arith.constant 0 : i32
    %c0_i32_1 = arith.constant 0 : i32
    return %c0_i32, %c0_i32_0 : i32, i32
  }
  func.func @transform_6(%arg0: i32) -> (i32, i32) {
    %c0_i32 = arith.constant 0 : i32
    %c0_i32_0 = arith.constant 0 : i32
    %c0_i32_1 = arith.constant 0 : i32
    return %c0_i32, %c0_i32_0 : i32, i32
  }
  func.func @transform_7(%arg0: i32) -> (i32, i32) {
    %c0_i32 = arith.constant 0 : i32
    %c0_i32_0 = arith.constant 0 : i32
    %c0_i32_1 = arith.constant 0 : i32
    return %c0_i32, %c0_i32_0 : i32, i32
  }
  func.func @transform_8(%arg0: i32) -> (i32, i32) {
    %c0_i32 = arith.constant 0 : i32
    %c0_i32_0 = arith.constant 0 : i32
    %c0_i32_1 = arith.constant 0 : i32
    return %c0_i32, %c0_i32_0 : i32, i32
  }
  func.func @transform_9(%arg0: i32) -> (i32, i32) {
    %c0_i32 = arith.constant 0 : i32
    %c0_i32_0 = arith.constant 0 : i32
    %c0_i32_1 = arith.constant 0 : i32
    return %c0_i32, %c0_i32_0 : i32, i32
  }
  func.func @transform_10(%arg0: i32) -> (i32, i32, i32) {
    %c0_i32 = arith.constant 0 : i32
    %c0_i32_0 = arith.constant 0 : i32
    %c0_i32_1 = arith.constant 0 : i32
    return %arg0, %c0_i32, %c0_i32_0 : i32, i32, i32
  }
}

</mosaic_0001>

<llo_original>
// kernel: block6_forward.1
$region0: #{block6_forward.1}
  #allocation0 [shape = 'u32[]', space=smem, size = 0x4, offset = 0x4, fixed_abs, tag = 'smem constant byte address 0x4 - core index']
  #allocation1 [shape = 'u32[144,128]{1,0:T(1,128)}', space=vmem, size = 0x12000, scoped, tag = 'internal scratch']
  %s0 = inlined_call_operand.hbm [shape: f32[2,8,128], index: 0, kind: input, shape index: {}]
  %s1 = inlined_call_operand.hbm [shape: f32[128,128], index: 1, kind: input, shape index: {}]
  %s2 = inlined_call_operand.hbm [shape: f32[128,128], index: 2, kind: input, shape index: {}]
  %s3 = inlined_call_operand.hbm [shape: f32[128,128], index: 3, kind: input, shape index: {}]
  %s4 = inlined_call_operand.hbm [shape: f32[128,128], index: 4, kind: input, shape index: {}]
  %s5 = inlined_call_operand.vmem [shape: f32[1,128], index: 5, kind: input, shape index: {}]
  %s6 = inlined_call_operand.hbm [shape: f32[128,512], index: 6, kind: input, shape index: {}]
  %s7 = inlined_call_operand.vmem [shape: f32[1,512], index: 7, kind: input, shape index: {}]
  %s8 = inlined_call_operand.hbm [shape: f32[512,128], index: 8, kind: input, shape index: {}]
  %s9 = inlined_call_operand.vmem [shape: f32[1,128], index: 9, kind: input, shape index: {}]
  %s10 = inlined_call_operand.hbm [shape: f32[2,8,128], index: 10, kind: output, shape index: {}]
  %s11 = sld [smem:[#allocation0]]
  $region101: #{block6_forward.1} parent=0
    _
  %s13 = ssub.s32 1, %s11
  %s14 = scalar_select 0, %s13, %s11
  $region1: #{block6_forward.1} parent=0
    #allocation2 [shape = 'u8[8192]{0}', space=vmem, size = 0x2000, scoped, tag = 'input window, operand 0']
    #allocation3 [shape = 's32[2]{0}', space=sflag, size = 0x8, scoped, tag = 'scoped memory for block6_forward.1']
    #allocation4 [shape = 's32[2]{0}', space=sflag, size = 0x8, scoped, tag = 'scoped memory for block6_forward.1']
    #allocation5 [shape = 'u8[65536]{0}', space=vmem, size = 0x10000, scoped, tag = 'input window, operand 1, single buffered']
    #allocation6 [shape = 's32[1]{0}', space=sflag, size = 0x4, scoped, tag = 'scoped memory for block6_forward.1']
    #allocation7 [shape = 'u8[65536]{0}', space=vmem, size = 0x10000, scoped, tag = 'input window, operand 2, single buffered']
    #allocation8 [shape = 'u8[65536]{0}', space=vmem, size = 0x10000, scoped, tag = 'input window, operand 3, single buffered']
    #allocation9 [shape = 's32[1]{0}', space=sflag, size = 0x4, scoped, tag = 'scoped memory for block6_forward.1']
    #allocation10 [shape = 'u8[65536]{0}', space=vmem, size = 0x10000, scoped, tag = 'input window, operand 4, single buffered']
    #allocation11 [shape = 'u8[262144]{0}', space=vmem, size = 0x40000, scoped, tag = 'input window, operand 6, single buffered']
    #allocation12 [shape = 's32[1]{0}', space=sflag, size = 0x4, scoped, tag = 'scoped memory for block6_forward.1']
    #allocation13 [shape = 'u8[262144]{0}', space=vmem, size = 0x40000, scoped, tag = 'input window, operand 8, single buffered']
    #allocation14 [shape = 'u8[8192]{0}', space=vmem, size = 0x2000, scoped, tag = 'output window, operand 0']
    %15 = vsyncpa [#allocation3], 0
    %s16 = scalar_lea.sflag [#allocation3], 1
    %17 = vsyncpa %s16, 0
    %18 = vsyncpa [#allocation6], 0
    %19 = vsyncpa [#allocation9], 0
    %20 = vsyncpa [#allocation12], 0
    %21 = vsyncpa [#allocation4], 0
    %s22 = scalar_lea.sflag [#allocation4], 1
    %23 = vsyncpa %s22, 0
    loop: start=0, step=1, limit=4
    $region2: #{block6_forward.1} parent=1 // loop_pre_header
      _
    $region3: #{block6_forward.1} parent=1 // loop_header
      %s25 = sphi 0, %s29
      %p26 = scmp.ge.s32.totalorder %s25, 4
      %s35 = sphi 0, %s37
      %s38 = sphi 0, %s35
      %s39 = sphi 0, %s38
      %s55 = sphi 0, %s39
      %s59 = sphi 0, %s59
      %s61 = sphi 0, %s59
      %s62 = sphi 0, %s61
      %s76 = sphi 0, %s62
      %s80 = sphi 0, %s80
      %s82 = sphi 0, %s80
      %s83 = sphi 0, %s82
      %s97 = sphi 0, %s83
      %s101 = sphi 0, %s101
      %s103 = sphi 0, %s101
      %s104 = sphi 0, %s103
      %s118 = sphi 0, %s104
      %s122 = sphi 0, %s122
      %s124 = sphi 0, %s122
      %s125 = sphi 0, %s124
      %s139 = sphi 0, %s125
      %s143 = sphi 0, %s143
      %s145 = sphi 0, %s143
      %s146 = sphi 0, %s145
      %s160 = sphi 0, %s146
      %s164 = sphi 0, %s164
      %s166 = sphi 0, %s164
      %s167 = sphi 0, %s166
      %s181 = sphi 0, %s167
      %s185 = sphi 0, %s185
      %s187 = sphi 0, %s185
      %s188 = sphi 0, %s187
      %s202 = sphi 0, %s188
      %s206 = sphi 0, %s206
      %s208 = sphi 0, %s206
      %s209 = sphi 0, %s208
      %s223 = sphi 0, %s209
      %s227 = sphi 0, %s227
      %s229 = sphi 0, %s227
      %s230 = sphi 0, %s229
      %s244 = sphi 0, %s230
      %s250 = sphi 0, %s252
      %s253 = sphi 0, %s250
      %s254 = sphi 0, %s253
      %s270 = sphi 0, %s254
    $region4: #{block6_forward.1} parent=1 // loop_header_branch
      %28 = sbr.rel (%p26) target = $region8
    $region5: #{block6_forward.1} parent=1 // loop_body
      %s30 = ssub.s32 %s25, 1
      %s31 = ssub.s32 %s25, 2
      %s32 = sadd.s32 %s25, 1
      %s33 = ssub.s32 %s25, %s32
      %p34 = scmp.eq.s32.totalorder %s33, 0
      %s36 = sadd.s32 %s35, 1
      %s37 = scalar_select %p34, %s35, %s36
      %p40 = pneg %p34
      %p41 = scmp.eq.s32.totalorder %s25, 1
      %p42 = por %p40, %p41
      %p43 = scmp.ne.s32.totalorder %s35, %s38
      %p44 = scmp.eq.s32.totalorder %s25, 0
      %p45 = por %p43, %p44
      %p46 = scmp.ne.s32.totalorder %s35, %s38
      %p47 = scmp.eq.s32.totalorder %s30, 1
      %p48 = por %p46, %p47
      %p49 = scmp.ne.s32.totalorder %s38, %s39
      %p50 = scmp.eq.s32.totalorder %s30, 0
      %p51 = por %p49, %p50
      %p52 = scmp.ne.s32.totalorder %s38, %s39
      %p53 = scmp.eq.s32.totalorder %s31, 1
      %p54 = por %p52, %p53
      %p56 = scmp.ne.s32.totalorder %s39, %s55
      %p57 = scmp.eq.s32.totalorder %s31, 0
      %p58 = por %p56, %p57
      %s60 = sadd.s32 %s59, 1
      %p63 = scmp.eq.s32.totalorder %s25, 1
      %p64 = scmp.ne.s32.totalorder %s59, %s61
      %p65 = scmp.eq.s32.totalorder %s25, 0
      %p66 = por %p64, %p65
      %p67 = scmp.ne.s32.totalorder %s59, %s61
      %p68 = scmp.eq.s32.totalorder %s30, 1
      %p69 = por %p67, %p68
      %p70 = scmp.ne.s32.totalorder %s61, %s62
      %p71 = scmp.eq.s32.totalorder %s30, 0
      %p72 = por %p70, %p71
      %p73 = scmp.ne.s32.totalorder %s61, %s62
      %p74 = scmp.eq.s32.totalorder %s31, 1
      %p75 = por %p73, %p74
      %p77 = scmp.ne.s32.totalorder %s62, %s76
      %p78 = scmp.eq.s32.totalorder %s31, 0
      %p79 = por %p77, %p78
      %s81 = sadd.s32 %s80, 1
      %p84 = scmp.eq.s32.totalorder %s25, 1
      %p85 = scmp.ne.s32.totalorder %s80, %s82
      %p86 = scmp.eq.s32.totalorder %s25, 0
      %p87 = por %p85, %p86
      %p88 = scmp.ne.s32.totalorder %s80, %s82
      %p89 = scmp.eq.s32.totalorder %s30, 1
      %p90 = por %p88, %p89
      %p91 = scmp.ne.s32.totalorder %s82, %s83
      %p92 = scmp.eq.s32.totalorder %s30, 0
      %p93 = por %p91, %p92
      %p94 = scmp.ne.s32.totalorder %s82, %s83
      %p95 = scmp.eq.s32.totalorder %s31, 1
      %p96 = por %p94, %p95
      %p98 = scmp.ne.s32.totalorder %s83, %s97
      %p99 = scmp.eq.s32.totalorder %s31, 0
      %p100 = por %p98, %p99
      %s102 = sadd.s32 %s101, 1
      %p105 = scmp.eq.s32.totalorder %s25, 1
      %p106 = scmp.ne.s32.totalorder %s101, %s103
      %p107 = scmp.eq.s32.totalorder %s25, 0
      %p108 = por %p106, %p107
      %p109 = scmp.ne.s32.totalorder %s101, %s103
      %p110 = scmp.eq.s32.totalorder %s30, 1
      %p111 = por %p109, %p110
      %p112 = scmp.ne.s32.totalorder %s103, %s104
      %p113 = scmp.eq.s32.totalorder %s30, 0
      %p114 = por %p112, %p113
      %p115 = scmp.ne.s32.totalorder %s103, %s104
      %p116 = scmp.eq.s32.totalorder %s31, 1
      %p117 = por %p115, %p116
      %p119 = scmp.ne.s32.totalorder %s104, %s118
      %p120 = scmp.eq.s32.totalorder %s31, 0
      %p121 = por %p119, %p120
      %s123 = sadd.s32 %s122, 1
      %p126 = scmp.eq.s32.totalorder %s25, 1
      %p127 = scmp.ne.s32.totalorder %s122, %s124
      %p128 = scmp.eq.s32.totalorder %s25, 0
      %p129 = por %p127, %p128
      %p130 = scmp.ne.s32.totalorder %s122, %s124
      %p131 = scmp.eq.s32.totalorder %s30, 1
      %p132 = por %p130, %p131
      %p133 = scmp.ne.s32.totalorder %s124, %s125
      %p134 = scmp.eq.s32.totalorder %s30, 0
      %p135 = por %p133, %p134
      %p136 = scmp.ne.s32.totalorder %s124, %s125
      %p137 = scmp.eq.s32.totalorder %s31, 1
      %p138 = por %p136, %p137
      %p140 = scmp.ne.s32.totalorder %s125, %s139
      %p141 = scmp.eq.s32.totalorder %s31, 0
      %p142 = por %p140, %p141
      %s144 = sadd.s32 %s143, 1
      %p147 = scmp.eq.s32.totalorder %s25, 1
      %p148 = scmp.ne.s32.totalorder %s143, %s145
      %p149 = scmp.eq.s32.totalorder %s25, 0
      %p150 = por %p148, %p149
      %p151 = scmp.ne.s32.totalorder %s143, %s145
      %p152 = scmp.eq.s32.totalorder %s30, 1
      %p153 = por %p151, %p152
      %p154 = scmp.ne.s32.totalorder %s145, %s146
      %p155 = scmp.eq.s32.totalorder %s30, 0
      %p156 = por %p154, %p155
      %p157 = scmp.ne.s32.totalorder %s145, %s146
      %p158 = scmp.eq.s32.totalorder %s31, 1
      %p159 = por %p157, %p158
      %p161 = scmp.ne.s32.totalorder %s146, %s160
      %p162 = scmp.eq.s32.totalorder %s31, 0
      %p163 = por %p161, %p162
      %s165 = sadd.s32 %s164, 1
      %p168 = scmp.eq.s32.totalorder %s25, 1
      %p169 = scmp.ne.s32.totalorder %s164, %s166
      %p170 = scmp.eq.s32.totalorder %s25, 0
      %p171 = por %p169, %p170
      %p172 = scmp.ne.s32.totalorder %s164, %s166
      %p173 = scmp.eq.s32.totalorder %s30, 1
      %p174 = por %p172, %p173
      %p175 = scmp.ne.s32.totalorder %s166, %s167
      %p176 = scmp.eq.s32.totalorder %s30, 0
      %p177 = por %p175, %p176
      %p178 = scmp.ne.s32.totalorder %s166, %s167
      %p179 = scmp.eq.s32.totalorder %s31, 1
      %p180 = por %p178, %p179
      %p182 = scmp.ne.s32.totalorder %s167, %s181
      %p183 = scmp.eq.s32.totalorder %s31, 0
      %p184 = por %p182, %p183
      %s186 = sadd.s32 %s185, 1
      %p189 = scmp.eq.s32.totalorder %s25, 1
      %p190 = scmp.ne.s32.totalorder %s185, %s187
      %p191 = scmp.eq.s32.totalorder %s25, 0
      %p192 = por %p190, %p191
      %p193 = scmp.ne.s32.totalorder %s185, %s187
      %p194 = scmp.eq.s32.totalorder %s30, 1
      %p195 = por %p193, %p194
      %p196 = scmp.ne.s32.totalorder %s187, %s188
      %p197 = scmp.eq.s32.totalorder %s30, 0
      %p198 = por %p196, %p197
      %p199 = scmp.ne.s32.totalorder %s187, %s188
      %p200 = scmp.eq.s32.totalorder %s31, 1
      %p201 = por %p199, %p200
      %p203 = scmp.ne.s32.totalorder %s188, %s202
      %p204 = scmp.eq.s32.totalorder %s31, 0
      %p205 = por %p203, %p204
      %s207 = sadd.s32 %s206, 1
      %p210 = scmp.eq.s32.totalorder %s25, 1
      %p211 = scmp.ne.s32.totalorder %s206, %s208
      %p212 = scmp.eq.s32.totalorder %s25, 0
      %p213 = por %p211, %p212
      %p214 = scmp.ne.s32.totalorder %s206, %s208
      %p215 = scmp.eq.s32.totalorder %s30, 1
      %p216 = por %p214, %p215
      %p217 = scmp.ne.s32.totalorder %s208, %s209
      %p218 = scmp.eq.s32.totalorder %s30, 0
      %p219 = por %p217, %p218
      %p220 = scmp.ne.s32.totalorder %s208, %s209
      %p221 = scmp.eq.s32.totalorder %s31, 1
      %p222 = por %p220, %p221
      %p224 = scmp.ne.s32.totalorder %s209, %s223
      %p225 = scmp.eq.s32.totalorder %s31, 0
      %p226 = por %p224, %p225
      %s228 = sadd.s32 %s227, 1
      %p231 = scmp.eq.s32.totalorder %s25, 1
      %p232 = scmp.ne.s32.totalorder %s227, %s229
      %p233 = scmp.eq.s32.totalorder %s25, 0
      %p234 = por %p232, %p233
      %p235 = scmp.ne.s32.totalorder %s227, %s229
      %p236 = scmp.eq.s32.totalorder %s30, 1
      %p237 = por %p235, %p236
      %p238 = scmp.ne.s32.totalorder %s229, %s230
      %p239 = scmp.eq.s32.totalorder %s30, 0
      %p240 = por %p238, %p239
      %p241 = scmp.ne.s32.totalorder %s229, %s230
      %p242 = scmp.eq.s32.totalorder %s31, 1
      %p243 = por %p241, %p242
      %p245 = scmp.ne.s32.totalorder %s230, %s244
      %p246 = scmp.eq.s32.totalorder %s31, 0
      %p247 = por %p245, %p246
      %s248 = ssub.s32 %s25, %s32
      %p249 = scmp.eq.s32.totalorder %s248, 0
      %s251 = sadd.s32 %s250, 1
      %s252 = scalar_select %p249, %s250, %s251
      %p255 = pneg %p249
      %p256 = scmp.eq.s32.totalorder %s25, 1
      %p257 = por %p255, %p256
      %p258 = scmp.ne.s32.totalorder %s250, %s253
      %p259 = scmp.eq.s32.totalorder %s25, 0
      %p260 = por %p258, %p259
      %p261 = scmp.ne.s32.totalorder %s250, %s253
      %p262 = scmp.eq.s32.totalorder %s30, 1
      %p263 = por %p261, %p262
      %p264 = scmp.ne.s32.totalorder %s253, %s254
      %p265 = scmp.eq.s32.totalorder %s30, 0
      %p266 = por %p264, %p265
      %p267 = scmp.ne.s32.totalorder %s253, %s254
      %p268 = scmp.eq.s32.totalorder %s31, 1
      %p269 = por %p267, %p268
      %p271 = scmp.ne.s32.totalorder %s254, %s270
      %p272 = scmp.eq.s32.totalorder %s31, 0
      %p273 = por %p271, %p272
      %p274 = scmp.le.s32.totalorder 1, %s25
      %p275 = scmp.lt.s32.totalorder %s25, 3
      %p276 = pnand %p274, %p275
      %p277 = pneg %p276
      // Predicated region
      $region9: #{block6_forward.1} parent=5 // pred_check
        _
      $region10: #{block6_forward.1} parent=5 // pred_check_branch
        %279 = sbr.rel (%p276) target = $region12
      $region11: #{block6_forward.1} parent=5 // pred_region
        %s280 = ssub.s32 %s25, 1
        // Predicated region
        $region13: #{block6_forward.1} parent=11 // pred_check
          %p281 = pneg %p72
        $region14: #{block6_forward.1} parent=11 // pred_check_branch
          %283 = sbr.rel (%p281) target = $region16
        $region15: #{block6_forward.1} parent=11 // pred_region
          %s285 = ssub.s32 2048, 2048
          %286 = vsyncadd [#allocation6], %s285
          %s287 = sshll.u32 [#allocation5], 4
          %s288 = int_to_ptr.vmem [resolvable:$true] %s287
          %293 = dma.hbm_to_vmem [thread:$0]  %s1, 2048, %s288, [#allocation6], 128, 128, 8
        $region16: #{block6_forward.1} parent=11 // pred_fallthru
          _
        // Predicated region
        $region17: #{block6_forward.1} parent=11 // pred_check
          %p294 = pneg %p93
        $region18: #{block6_forward.1} parent=11 // pred_check_branch
          %296 = sbr.rel (%p294) target = $region20
        $region19: #{block6_forward.1} parent=11 // pred_region
          %s298 = ssub.s32 2048, 2048
          %299 = vsyncadd [#allocation6], %s298
          %s300 = sshll.u32 [#allocation7], 4
          %s301 = int_to_ptr.vmem [resolvable:$true] %s300
          %306 = dma.hbm_to_vmem [thread:$0]  %s2, 2048, %s301, [#allocation6], 128, 128, 8
        $region20: #{block6_forward.1} parent=11 // pred_fallthru
          _
        // Predicated region
        $region21: #{block6_forward.1} parent=11 // pred_check
          %p307 = pneg %p114
        $region22: #{block6_forward.1} parent=11 // pred_check_branch
          %309 = sbr.rel (%p307) target = $region24
        $region23: #{block6_forward.1} parent=11 // pred_region
          %s311 = ssub.s32 2048, 2048
          %312 = vsyncadd [#allocation9], %s311
          %s313 = sshll.u32 [#allocation8], 4
          %s314 = int_to_ptr.vmem [resolvable:$true] %s313
          %319 = dma.hbm_to_vmem [thread:$0]  %s3, 2048, %s314, [#allocation9], 128, 128, 8
        $region24: #{block6_forward.1} parent=11 // pred_fallthru
          _
        // Predicated region
        $region25: #{block6_forward.1} parent=11 // pred_check
          %p320 = pneg %p135
        $region26: #{block6_forward.1} parent=11 // pred_check_branch
          %322 = sbr.rel (%p320) target = $region28
        $region27: #{block6_forward.1} parent=11 // pred_region
          %s324 = ssub.s32 2048, 2048
          %325 = vsyncadd [#allocation9], %s324
          %s326 = sshll.u32 [#allocation10], 4
          %s327 = int_to_ptr.vmem [resolvable:$true] %s326
          %332 = dma.hbm_to_vmem [thread:$0]  %s4, 2048, %s327, [#allocation9], 128, 128, 8
        $region28: #{block6_forward.1} parent=11 // pred_fallthru
          _
        // Predicated region
        $region29: #{block6_forward.1} parent=11 // pred_check
          %p333 = pneg %p156
        $region30: #{block6_forward.1} parent=11 // pred_check_branch
          %335 = sbr.rel (%p333) target = $region32
        $region31: #{block6_forward.1} parent=11 // pred_region
          _
        $region32: #{block6_forward.1} parent=11 // pred_fallthru
          _
        // Predicated region
        $region33: #{block6_forward.1} parent=11 // pred_check
          %p336 = pneg %p177
        $region34: #{block6_forward.1} parent=11 // pred_check_branch
          %338 = sbr.rel (%p336) target = $region36
        $region35: #{block6_forward.1} parent=11 // pred_region
          %s340 = ssub.s32 8192, 8192
          %341 = vsyncadd [#allocation12], %s340
          %s342 = sshll.u32 [#allocation11], 4
          %s343 = int_to_ptr.vmem [resolvable:$true] %s342
          %348 = dma.hbm_to_vmem [thread:$0]  %s6, 8192, %s343, [#allocation12], 512, 512, 32
        $region36: #{block6_forward.1} parent=11 // pred_fallthru
          _
        // Predicated region
        $region37: #{block6_forward.1} parent=11 // pred_check
          %p349 = pneg %p198
        $region38: #{block6_forward.1} parent=11 // pred_check_branch
          %351 = sbr.rel (%p349) target = $region40
        $region39: #{block6_forward.1} parent=11 // pred_region
          _
        $region40: #{block6_forward.1} parent=11 // pred_fallthru
          _
        // Predicated region
        $region41: #{block6_forward.1} parent=11 // pred_check
          %p352 = pneg %p219
        $region42: #{block6_forward.1} parent=11 // pred_check_branch
          %354 = sbr.rel (%p352) target = $region44
        $region43: #{block6_forward.1} parent=11 // pred_region
          %s356 = ssub.s32 8192, 8192
          %357 = vsyncadd [#allocation12], %s356
          %s358 = sshll.u32 [#allocation13], 4
          %s359 = int_to_ptr.vmem [resolvable:$true] %s358
          %364 = dma.hbm_to_vmem [thread:$0]  %s8, 8192, %s359, [#allocation12], 128, 128, 8
        $region44: #{block6_forward.1} parent=11 // pred_fallthru
          _
        // Predicated region
        $region45: #{block6_forward.1} parent=11 // pred_check
          %p365 = pneg %p240
        $region46: #{block6_forward.1} parent=11 // pred_check_branch
          %367 = sbr.rel (%p365) target = $region48
        $region47: #{block6_forward.1} parent=11 // pred_region
          _
        $region48: #{block6_forward.1} parent=11 // pred_fallthru
          _
      $region12: #{block6_forward.1} parent=5 // pred_fallthru
        _
      %p368 = scmp.lt.s32.totalorder %s25, 2
      // Predicated region
      $region49: #{block6_forward.1} parent=5 // pred_check
        %p369 = pneg %p368
      $region50: #{block6_forward.1} parent=5 // pred_check_branch
        %371 = sbr.rel (%p369) target = $region52
      $region51: #{block6_forward.1} parent=5 // pred_region
        // Predicated region
        $region53: #{block6_forward.1} parent=51 // pred_check
          %p372 = pneg %p45
        $region54: #{block6_forward.1} parent=51 // pred_check_branch
          %374 = sbr.rel (%p372) target = $region56
        $region55: #{block6_forward.1} parent=51 // pred_region
          %s375 = sand.u32 %s35, 1
          %s376 = scalar_lea.sflag [#allocation3], %s375
          %s377 = sand.u32 %s35, 1
          %s378 = smul.addr %s377, 8
          %s379 = scalar_lea.vmem [#allocation2], %s378
          %s381 = ssub.s32 128, 128
          %382 = vsyncadd %s376, %s381
          %s383 = smul.addr %s25, 128
          %s384 = scalar_lea.hbm %s0, %s383
          %s386 = sshll.u32 %s379, 4
          %s387 = int_to_ptr.vmem [resolvable:$true] %s386
          %389 = dma.hbm_to_vmem [thread:$0]  %s384, 128, %s387, %s376
        $region56: #{block6_forward.1} parent=51 // pred_fallthru
          _
      $region52: #{block6_forward.1} parent=5 // pred_fallthru
        _
      %p390 = scmp.le.s32.totalorder 1, %s25
      %p391 = scmp.lt.s32.totalorder %s25, 3
      %p392 = pnand %p390, %p391
      %p393 = pneg %p392
      // Predicated region
      $region57: #{block6_forward.1} parent=5 // pred_check
        _
      $region58: #{block6_forward.1} parent=5 // pred_check_branch
        %395 = sbr.rel (%p392) target = $region60
      $region59: #{block6_forward.1} parent=5 // pred_region
        %s396 = ssub.s32 %s25, 1
        %s397 = sand.u32 %s38, 1
        %s398 = scalar_lea.sflag [#allocation3], %s397
        %s399 = sand.u32 %s38, 1
        %s400 = smul.addr %s399, 8
        %s401 = scalar_lea.vmem [#allocation2], %s400
        // Predicated region
        $region61: #{block6_forward.1} parent=59 // pred_check
          %p402 = pneg %p51
        $region62: #{block6_forward.1} parent=59 // pred_check_branch
          %404 = sbr.rel (%p402) target = $region64
        $region63: #{block6_forward.1} parent=59 // pred_region
          %405 = dma.done %s398, 128
        $region64: #{block6_forward.1} parent=59 // pred_fallthru
          _
        // Predicated region
        $region65: #{block6_forward.1} parent=59 // pred_check
          %p406 = pneg %p72
        $region66: #{block6_forward.1} parent=59 // pred_check_branch
          %408 = sbr.rel (%p406) target = $region68
        $region67: #{block6_forward.1} parent=59 // pred_region
          %409 = dma.done [#allocation6], 2048
        $region68: #{block6_forward.1} parent=59 // pred_fallthru
          _
        // Predicated region
        $region69: #{block6_forward.1} parent=59 // pred_check
          %p410 = pneg %p93
        $region70: #{block6_forward.1} parent=59 // pred_check_branch
          %412 = sbr.rel (%p410) target = $region72
        $region71: #{block6_forward.1} parent=59 // pred_region
          %413 = dma.done [#allocation6], 2048
        $region72: #{block6_forward.1} parent=59 // pred_fallthru
          _
        // Predicated region
        $region73: #{block6_forward.1} parent=59 // pred_check
          %p414 = pneg %p114
        $region74: #{block6_forward.1} parent=59 // pred_check_branch
          %416 = sbr.rel (%p414) target = $region76
        $region75: #{block6_forward.1} parent=59 // pred_region
          %417 = dma.done [#allocation9], 2048
        $region76: #{block6_forward.1} parent=59 // pred_fallthru
          _
        // Predicated region
        $region77: #{block6_forward.1} parent=59 // pred_check
          %p418 = pneg %p135
        $region78: #{block6_forward.1} parent=59 // pred_check_branch
          %420 = sbr.rel (%p418) target = $region80
        $region79: #{block6_forward.1} parent=59 // pred_region
          %421 = dma.done [#allocation9], 2048
        $region80: #{block6_forward.1} parent=59 // pred_fallthru
          _
        // Predicated region
        $region81: #{block6_forward.1} parent=59 // pred_check
          %p422 = pneg %p177
        $region82: #{block6_forward.1} parent=59 // pred_check_branch
          %424 = sbr.rel (%p422) target = $region84
        $region83: #{block6_forward.1} parent=59 // pred_region
          %425 = dma.done [#allocation12], 8192
        $region84: #{block6_forward.1} parent=59 // pred_fallthru
          _
        // Predicated region
        $region85: #{block6_forward.1} parent=59 // pred_check
          %p426 = pneg %p219
        $region86: #{block6_forward.1} parent=59 // pred_check_branch
          %428 = sbr.rel (%p426) target = $region88
        $region87: #{block6_forward.1} parent=59 // pred_region
          %429 = dma.done [#allocation12], 8192
        $region88: #{block6_forward.1} parent=59 // pred_fallthru
          _
        %s430 = sand.u32 %s38, 1
        %s431 = scalar_lea.sflag [#allocation3], %s430
        %s432 = sand.u32 %s38, 1
        %s433 = smul.addr %s432, 8
        %s434 = scalar_lea.vmem [#allocation2], %s433
        %p435 = pneg %p51
        %p436 = pneg %p48
        %p437 = pneg %p72
        %p438 = pneg %p69
        %p439 = pneg %p93
        %p440 = pneg %p90
        %p441 = pneg %p114
        %p442 = pneg %p111
        %p443 = pneg %p135
        %p444 = pneg %p132
        %p445 = pneg %p156
        %p446 = pneg %p153
        %p447 = pneg %p177
        %p448 = pneg %p174
        %p449 = pneg %p198
        %p450 = pneg %p195
        %p451 = pneg %p219
        %p452 = pneg %p216
        %p453 = pneg %p240
        %p454 = pneg %p237
        %p455 = pneg %p266
        %p456 = pneg %p263
        %s457 = sand.u32 %s253, 1
        %s458 = scalar_lea.sflag [#allocation4], %s457
        %s459 = sand.u32 %s253, 1
        %s460 = smul.addr %s459, 8
        %s461 = scalar_lea.vmem [#allocation14], %s460
        %v462 = vld [vmem:[%s401] sm:$0xff]
        %v463 = vmul.f32 %v462, %v462
        %464 = vadd.xlane.f32.xlu0 %v463
        %v465 = vpop.xlane.xlu0 %464
        %v466 = vrcp.pop 128.0
        %v467 = vmul.f32 %v465, %v466
        %v468 = vrsqrt.pop %v467
        %v469 = vmul.f32 %v467, %v468
        %vm470 = vcmp.eq.f32.partialorder %v467, inf
        %v471 = vsel %vm470, %v467, %v469
        %vm472 = vcmp.eq.f32.partialorder %v467, 0.0
        %v473 = vand.u32 %v467, 2147483648
        %v474 = vsel %vm472, %v473, %v471
        %v475 = vrcp.pop %v474
        %v476 = vmul.f32 %v462, %v475
        %v477 = vld [vmem:[#allocation5] sm:$0xff]
        %v478 = vld [vmem:[#allocation5 + $0x8] sm:$0xff]
        %v479 = vld [vmem:[#allocation5 + $0x10] sm:$0xff]
        %v480 = vld [vmem:[#allocation5 + $0x18] sm:$0xff]
        %v481 = vld [vmem:[#allocation5 + $0x20] sm:$0xff]
        %v482 = vld [vmem:[#allocation5 + $0x28] sm:$0xff]
        %v483 = vld [vmem:[#allocation5 + $0x30] sm:$0xff]
        %v484 = vld [vmem:[#allocation5 + $0x38] sm:$0xff]
        %v485 = vld [vmem:[#allocation5 + $0x40] sm:$0xff]
        %v486 = vld [vmem:[#allocation5 + $0x48] sm:$0xff]
        %v487 = vld [vmem:[#allocation5 + $0x50] sm:$0xff]
        %v488 = vld [vmem:[#allocation5 + $0x58] sm:$0xff]
        %v489 = vld [vmem:[#allocation5 + $0x60] sm:$0xff]
        %v490 = vld [vmem:[#allocation5 + $0x68] sm:$0xff]
        %v491 = vld [vmem:[#allocation5 + $0x70] sm:$0xff]
        %v492 = vld [vmem:[#allocation5 + $0x78] sm:$0xff]
        %493 = vmatprep.subr.mxu0 0.0
        %v494 = vand.u32 %v477, 4294901760
        %495 = vmatpush1.msra.mxu0 %v494
        %496 = vmatprep.subr.mxu0 0.0
        %v497 = vand.u32 %v478, 4294901760
        %498 = vmatpush1.msra.mxu0 %v497
        %499 = vmatprep.subr.mxu0 0.0
        %v500 = vand.u32 %v479, 4294901760
        %501 = vmatpush1.msra.mxu0 %v500
        %502 = vmatprep.subr.mxu0 0.0
        %v503 = vand.u32 %v480, 4294901760
        %504 = vmatpush1.msra.mxu0 %v503
        %505 = vmatprep.subr.mxu0 0.0
        %v506 = vand.u32 %v481, 4294901760
        %507 = vmatpush1.msra.mxu0 %v506
        %508 = vmatprep.subr.mxu0 0.0
        %v509 = vand.u32 %v482, 4294901760
        %510 = vmatpush1.msra.mxu0 %v509
        %511 = vmatprep.subr.mxu0 0.0
        %v512 = vand.u32 %v483, 4294901760
        %513 = vmatpush1.msra.mxu0 %v512
        %514 = vmatprep.subr.mxu0 0.0
        %v515 = vand.u32 %v484, 4294901760
        %516 = vmatpush1.msra.mxu0 %v515
        %517 = vmatprep.subr.mxu0 0.0
        %v518 = vand.u32 %v485, 4294901760
        %519 = vmatpush1.msra.mxu0 %v518
        %520 = vmatprep.subr.mxu0 0.0
        %v521 = vand.u32 %v486, 4294901760
        %522 = vmatpush1.msra.mxu0 %v521
        %523 = vmatprep.subr.mxu0 0.0
        %v524 = vand.u32 %v487, 4294901760
        %525 = vmatpush1.msra.mxu0 %v524
        %526 = vmatprep.subr.mxu0 0.0
        %v527 = vand.u32 %v488, 4294901760
        %528 = vmatpush1.msra.mxu0 %v527
        %529 = vmatprep.subr.mxu0 0.0
        %v530 = vand.u32 %v489, 4294901760
        %531 = vmatpush1.msra.mxu0 %v530
        %532 = vmatprep.subr.mxu0 0.0
        %v533 = vand.u32 %v490, 4294901760
        %534 = vmatpush1.msra.mxu0 %v533
        %535 = vmatprep.subr.mxu0 0.0
        %v536 = vand.u32 %v491, 4294901760
        %537 = vmatpush1.msra.mxu0 %v536
        %538 = vmatprep.subr.mxu0 0.0
        %v539 = vand.u32 %v492, 4294901760
        %540 = vmatpush1.msra.mxu0 %v539
        %541 = vmatprep.subr.mxu0 0.0
        %542 = vmatpush1.msra.mxu0 0.0
        %543 = vmatprep.subr.mxu0 0.0
        %544 = vmatpush1.msra.mxu0 0.0
        %545 = vmatprep.subr.mxu0 0.0
        %546 = vmatpush1.msra.mxu0 0.0
        %547 = vmatprep.subr.mxu0 0.0
        %548 = vmatpush1.msra.mxu0 0.0
        %549 = vmatprep.subr.mxu0 0.0
        %550 = vmatpush1.msra.mxu0 0.0
        %551 = vmatprep.subr.mxu0 0.0
        %552 = vmatpush1.msra.mxu0 0.0
        %553 = vmatprep.subr.mxu0 0.0
        %554 = vmatpush1.msra.mxu0 0.0
        %555 = vmatprep.subr.mxu0 0.0
        %556 = vmatpush1.msra.mxu0 0.0
        %557 = vmatprep.subr.mxu0 0.0
        %558 = vmatpush1.msra.mxu0 0.0
        %559 = vmatprep.subr.mxu0 0.0
        %560 = vmatpush1.msra.mxu0 0.0
        %561 = vmatprep.subr.mxu0 0.0
        %562 = vmatpush1.msra.mxu0 0.0
        %563 = vmatprep.subr.mxu0 0.0
        %564 = vmatpush1.msra.mxu0 0.0
        %565 = vmatprep.subr.mxu0 0.0
        %566 = vmatpush1.msra.mxu0 0.0
        %567 = vmatprep.subr.mxu0 0.0
        %568 = vmatpush1.msra.mxu0 0.0
        %569 = vmatprep.subr.mxu0 0.0
        %570 = vmatpush1.msra.mxu0 0.0
        %571 = vmatprep.subr.mxu0 0.0
        %572 = vmatpush1.msra.mxu0 0.0
        %573 = vmatprep.mubr.f32.mxu0 0.0
        %v574 = vand.u32 %v476, 4294901760
        %v575 = vsub.f32 %v476, %v574
        %v576 = vand.u32 %v575, 4294901760
        %v577 = vsub.f32 %v575, %v576
        %v578 = vand.u32 %v577, 4294901760
        %579 = vmatmul.mubr.f32.gmra.mrb[0].mxu0 %v578
        %v580 = vpop.f32.mrb[0].mxu0
        %v581 = vadd.f32 0.0, %v580
        %v582 = vpop.f32.mrb[0].mxu0
        %583 = vdwg.mxu0
        %584 = vmatprep.subr.mxu0 0.0
        %v585 = vand.u32 %v477, 4294901760
        %v586 = vsub.f32 %v477, %v585
        %v587 = vand.u32 %v586, 4294901760
        %v588 = vsub.f32 %v586, %v587
        %v589 = vand.u32 %v588, 4294901760
        %590 = vmatpush1.msra.mxu0 %v589
        %591 = vmatprep.subr.mxu0 0.0
        %v592 = vand.u32 %v478, 4294901760
        %v593 = vsub.f32 %v478, %v592
        %v594 = vand.u32 %v593, 4294901760
        %v595 = vsub.f32 %v593, %v594
        %v596 = vand.u32 %v595, 4294901760
        %597 = vmatpush1.msra.mxu0 %v596
        %598 = vmatprep.subr.mxu0 0.0
        %v599 = vand.u32 %v479, 4294901760
        %v600 = vsub.f32 %v479, %v599
        %v601 = vand.u32 %v600, 4294901760
        %v602 = vsub.f32 %v600, %v601
        %v603 = vand.u32 %v602, 4294901760
        %604 = vmatpush1.msra.mxu0 %v603
        %605 = vmatprep.subr.mxu0 0.0
        %v606 = vand.u32 %v480, 4294901760
        %v607 = vsub.f32 %v480, %v606
        %v608 = vand.u32 %v607, 4294901760
        %v609 = vsub.f32 %v607, %v608
        %v610 = vand.u32 %v609, 4294901760
        %611 = vmatpush1.msra.mxu0 %v610
        %612 = vmatprep.subr.mxu0 0.0
        %v613 = vand.u32 %v481, 4294901760
        %v614 = vsub.f32 %v481, %v613
        %v615 = vand.u32 %v614, 4294901760
        %v616 = vsub.f32 %v614, %v615
        %v617 = vand.u32 %v616, 4294901760
        %618 = vmatpush1.msra.mxu0 %v617
        %619 = vmatprep.subr.mxu0 0.0
        %v620 = vand.u32 %v482, 4294901760
        %v621 = vsub.f32 %v482, %v620
        %v622 = vand.u32 %v621, 4294901760
        %v623 = vsub.f32 %v621, %v622
        %v624 = vand.u32 %v623, 4294901760
        %625 = vmatpush1.msra.mxu0 %v624
        %626 = vmatprep.subr.mxu0 0.0
        %v627 = vand.u32 %v483, 4294901760
        %v628 = vsub.f32 %v483, %v627
        %v629 = vand.u32 %v628, 4294901760
        %v630 = vsub.f32 %v628, %v629
        %v631 = vand.u32 %v630, 4294901760
        %632 = vmatpush1.msra.mxu0 %v631
        %633 = vmatprep.subr.mxu0 0.0
        %v634 = vand.u32 %v484, 4294901760
        %v635 = vsub.f32 %v484, %v634
        %v636 = vand.u32 %v635, 4294901760
        %v637 = vsub.f32 %v635, %v636
        %v638 = vand.u32 %v637, 4294901760
        %639 = vmatpush1.msra.mxu0 %v638
        %640 = vmatprep.subr.mxu0 0.0
        %v641 = vand.u32 %v485, 4294901760
        %v642 = vsub.f32 %v485, %v641
        %v643 = vand.u32 %v642, 4294901760
        %v644 = vsub.f32 %v642, %v643
        %v645 = vand.u32 %v644, 4294901760
        %646 = vmatpush1.msra.mxu0 %v645
        %647 = vmatprep.subr.mxu0 0.0
        %v648 = vand.u32 %v486, 4294901760
        %v649 = vsub.f32 %v486, %v648
        %v650 = vand.u32 %v649, 4294901760
        %v651 = vsub.f32 %v649, %v650
        %v652 = vand.u32 %v651, 4294901760
        %653 = vmatpush1.msra.mxu0 %v652
        %654 = vmatprep.subr.mxu0 0.0
        %v655 = vand.u32 %v487, 4294901760
        %v656 = vsub.f32 %v487, %v655
        %v657 = vand.u32 %v656, 4294901760
        %v658 = vsub.f32 %v656, %v657
        %v659 = vand.u32 %v658, 4294901760
        %660 = vmatpush1.msra.mxu0 %v659
        %661 = vmatprep.subr.mxu0 0.0
        %v662 = vand.u32 %v488, 4294901760
        %v663 = vsub.f32 %v488, %v662
        %v664 = vand.u32 %v663, 4294901760
        %v665 = vsub.f32 %v663, %v664
        %v666 = vand.u32 %v665, 4294901760
        %667 = vmatpush1.msra.mxu0 %v666
        %668 = vmatprep.subr.mxu0 0.0
        %v669 = vand.u32 %v489, 4294901760
        %v670 = vsub.f32 %v489, %v669
        %v671 = vand.u32 %v670, 4294901760
        %v672 = vsub.f32 %v670, %v671
        %v673 = vand.u32 %v672, 4294901760
        %674 = vmatpush1.msra.mxu0 %v673
        %675 = vmatprep.subr.mxu0 0.0
        %v676 = vand.u32 %v490, 4294901760
        %v677 = vsub.f32 %v490, %v676
        %v678 = vand.u32 %v677, 4294901760
        %v679 = vsub.f32 %v677, %v678
        %v680 = vand.u32 %v679, 4294901760
        %681 = vmatpush1.msra.mxu0 %v680
        %682 = vmatprep.subr.mxu0 0.0
        %v683 = vand.u32 %v491, 4294901760
        %v684 = vsub.f32 %v491, %v683
        %v685 = vand.u32 %v684, 4294901760
        %v686 = vsub.f32 %v684, %v685
        %v687 = vand.u32 %v686, 4294901760
        %688 = vmatpush1.msra.mxu0 %v687
        %689 = vmatprep.subr.mxu0 0.0
        %v690 = vand.u32 %v492, 4294901760
        %v691 = vsub.f32 %v492, %v690
        %v692 = vand.u32 %v691, 4294901760
        %v693 = vsub.f32 %v691, %v692
        %v694 = vand.u32 %v693, 4294901760
        %695 = vmatpush1.msra.mxu0 %v694
        %696 = vmatprep.subr.mxu0 0.0
        %697 = vmatpush1.msra.mxu0 0.0
        %698 = vmatprep.subr.mxu0 0.0
        %699 = vmatpush1.msra.mxu0 0.0
        %700 = vmatprep.subr.mxu0 0.0
        %701 = vmatpush1.msra.mxu0 0.0
        %702 = vmatprep.subr.mxu0 0.0
        %703 = vmatpush1.msra.mxu0 0.0
        %704 = vmatprep.subr.mxu0 0.0
        %705 = vmatpush1.msra.mxu0 0.0
        %706 = vmatprep.subr.mxu0 0.0
        %707 = vmatpush1.msra.mxu0 0.0
        %708 = vmatprep.subr.mxu0 0.0
        %709 = vmatpush1.msra.mxu0 0.0
        %710 = vmatprep.subr.mxu0 0.0
        %711 = vmatpush1.msra.mxu0 0.0
        %712 = vmatprep.subr.mxu0 0.0
        %713 = vmatpush1.msra.mxu0 0.0
        %714 = vmatprep.subr.mxu0 0.0
        %715 = vmatpush1.msra.mxu0 0.0
        %716 = vmatprep.subr.mxu0 0.0
        %717 = vmatpush1.msra.mxu0 0.0
        %718 = vmatprep.subr.mxu0 0.0
        %719 = vmatpush1.msra.mxu0 0.0
        %720 = vmatprep.subr.mxu0 0.0
        %721 = vmatpush1.msra.mxu0 0.0
        %722 = vmatprep.subr.mxu0 0.0
        %723 = vmatpush1.msra.mxu0 0.0
        %724 = vmatprep.subr.mxu0 0.0
        %725 = vmatpush1.msra.mxu0 0.0
        %726 = vmatprep.subr.mxu0 0.0
        %727 = vmatpush1.msra.mxu0 0.0
        %728 = vmatprep.mubr.f32.mxu0 0.0
        %v729 = vand.u32 %v476, 4294901760
        %730 = vmatmul.mubr.f32.gmra.mrb[0].mxu0 %v729
        %v731 = vpop.f32.mrb[0].mxu0
        %v732 = vadd.f32 %v581, %v731
        %v733 = vpop.f32.mrb[0].mxu0
        %734 = vdwg.mxu0
        %735 = vmatprep.subr.mxu0 0.0
        %v736 = vand.u32 %v477, 4294901760
        %v737 = vsub.f32 %v477, %v736
        %738 = vmatpush1.msra.mxu0 %v737
        %739 = vmatprep.subr.mxu0 0.0
        %v740 = vand.u32 %v478, 4294901760
        %v741 = vsub.f32 %v478, %v740
        %742 = vmatpush1.msra.mxu0 %v741
        %743 = vmatprep.subr.mxu0 0.0
        %v744 = vand.u32 %v479, 4294901760
        %v745 = vsub.f32 %v479, %v744
        %746 = vmatpush1.msra.mxu0 %v745
        %747 = vmatprep.subr.mxu0 0.0
        %v748 = vand.u32 %v480, 4294901760
        %v749 = vsub.f32 %v480, %v748
        %750 = vmatpush1.msra.mxu0 %v749
        %751 = vmatprep.subr.mxu0 0.0
        %v752 = vand.u32 %v481, 4294901760
        %v753 = vsub.f32 %v481, %v752
        %754 = vmatpush1.msra.mxu0 %v753
        %755 = vmatprep.subr.mxu0 0.0
        %v756 = vand.u32 %v482, 4294901760
        %v757 = vsub.f32 %v482, %v756
        %758 = vmatpush1.msra.mxu0 %v757
        %759 = vmatprep.subr.mxu0 0.0
        %v760 = vand.u32 %v483, 4294901760
        %v761 = vsub.f32 %v483, %v760
        %762 = vmatpush1.msra.mxu0 %v761
        %763 = vmatprep.subr.mxu0 0.0
        %v764 = vand.u32 %v484, 4294901760
        %v765 = vsub.f32 %v484, %v764
        %766 = vmatpush1.msra.mxu0 %v765
        %767 = vmatprep.subr.mxu0 0.0
        %v768 = vand.u32 %v485, 4294901760
        %v769 = vsub.f32 %v485, %v768
        %770 = vmatpush1.msra.mxu0 %v769
        %771 = vmatprep.subr.mxu0 0.0
        %v772 = vand.u32 %v486, 4294901760
        %v773 = vsub.f32 %v486, %v772
        %774 = vmatpush1.msra.mxu0 %v773
        %775 = vmatprep.subr.mxu0 0.0
        %v776 = vand.u32 %v487, 4294901760
        %v777 = vsub.f32 %v487, %v776
        %778 = vmatpush1.msra.mxu0 %v777
        %779 = vmatprep.subr.mxu0 0.0
        %v780 = vand.u32 %v488, 4294901760
        %v781 = vsub.f32 %v488, %v780
        %782 = vmatpush1.msra.mxu0 %v781
        %783 = vmatprep.subr.mxu0 0.0
        %v784 = vand.u32 %v489, 4294901760
        %v785 = vsub.f32 %v489, %v784
        %786 = vmatpush1.msra.mxu0 %v785
        %787 = vmatprep.subr.mxu0 0.0
        %v788 = vand.u32 %v490, 4294901760
        %v789 = vsub.f32 %v490, %v788
        %790 = vmatpush1.msra.mxu0 %v789
        %791 = vmatprep.subr.mxu0 0.0
        %v792 = vand.u32 %v491, 4294901760
        %v793 = vsub.f32 %v491, %v792
        %794 = vmatpush1.msra.mxu0 %v793
        %795 = vmatprep.subr.mxu0 0.0
        %v796 = vand.u32 %v492, 4294901760
        %v797 = vsub.f32 %v492, %v796
        %798 = vmatpush1.msra.mxu0 %v797
        %799 = vmatprep.subr.mxu0 0.0
        %800 = vmatpush1.msra.mxu0 0.0
        %801 = vmatprep.subr.mxu0 0.0
        %802 = vmatpush1.msra.mxu0 0.0
        %803 = vmatprep.subr.mxu0 0.0
        %804 = vmatpush1.msra.mxu0 0.0
        %805 = vmatprep.subr.mxu0 0.0
        %806 = vmatpush1.msra.mxu0 0.0
        %807 = vmatprep.subr.mxu0 0.0
        %808 = vmatpush1.msra.mxu0 0.0
        %809 = vmatprep.subr.mxu0 0.0
        %810 = vmatpush1.msra.mxu0 0.0
        %811 = vmatprep.subr.mxu0 0.0
        %812 = vmatpush1.msra.mxu0 0.0
        %813 = vmatprep.subr.mxu0 0.0
        %814 = vmatpush1.msra.mxu0 0.0
        %815 = vmatprep.subr.mxu0 0.0
        %816 = vmatpush1.msra.mxu0 0.0
        %817 = vmatprep.subr.mxu0 0.0
        %818 = vmatpush1.msra.mxu0 0.0
        %819 = vmatprep.subr.mxu0 0.0
        %820 = vmatpush1.msra.mxu0 0.0
        %821 = vmatprep.subr.mxu0 0.0
        %822 = vmatpush1.msra.mxu0 0.0
        %823 = vmatprep.subr.mxu0 0.0
        %824 = vmatpush1.msra.mxu0 0.0
        %825 = vmatprep.subr.mxu0 0.0
        %826 = vmatpush1.msra.mxu0 0.0
        %827 = vmatprep.subr.mxu0 0.0
        %828 = vmatpush1.msra.mxu0 0.0
        %829 = vmatprep.subr.mxu0 0.0
        %830 = vmatpush1.msra.mxu0 0.0
        %831 = vmatprep.mubr.f32.mxu0 0.0
        %v832 = vand.u32 %v476, 4294901760
        %v833 = vsub.f32 %v476, %v832
        %834 = vmatmul.mubr.f32.gmra.mrb[0].mxu0 %v833
        %v835 = vpop.f32.mrb[0].mxu0
        %v836 = vadd.f32 %v732, %v835
        %v837 = vpop.f32.mrb[0].mxu0
        %838 = vdwg.mxu0
        %839 = vmatprep.subr.mxu0 0.0
        %v840 = vand.u32 %v477, 4294901760
        %841 = vmatpush1.msra.mxu0 %v840
        %842 = vmatprep.subr.mxu0 0.0
        %v843 = vand.u32 %v478, 4294901760
        %844 = vmatpush1.msra.mxu0 %v843
        %845 = vmatprep.subr.mxu0 0.0
        %v846 = vand.u32 %v479, 4294901760
        %847 = vmatpush1.msra.mxu0 %v846
        %848 = vmatprep.subr.mxu0 0.0
        %v849 = vand.u32 %v480, 4294901760
        %850 = vmatpush1.msra.mxu0 %v849
        %851 = vmatprep.subr.mxu0 0.0
        %v852 = vand.u32 %v481, 4294901760
        %853 = vmatpush1.msra.mxu0 %v852
        %854 = vmatprep.subr.mxu0 0.0
        %v855 = vand.u32 %v482, 4294901760
        %856 = vmatpush1.msra.mxu0 %v855
        %857 = vmatprep.subr.mxu0 0.0
        %v858 = vand.u32 %v483, 4294901760
        %859 = vmatpush1.msra.mxu0 %v858
        %860 = vmatprep.subr.mxu0 0.0
        %v861 = vand.u32 %v484, 4294901760
        %862 = vmatpush1.msra.mxu0 %v861
        %863 = vmatprep.subr.mxu0 0.0
        %v864 = vand.u32 %v485, 4294901760
        %865 = vmatpush1.msra.mxu0 %v864
        %866 = vmatprep.subr.mxu0 0.0
        %v867 = vand.u32 %v486, 4294901760
        %868 = vmatpush1.msra.mxu0 %v867
        %869 = vmatprep.subr.mxu0 0.0
        %v870 = vand.u32 %v487, 4294901760
        %871 = vmatpush1.msra.mxu0 %v870
        %872 = vmatprep.subr.mxu0 0.0
        %v873 = vand.u32 %v488, 4294901760
        %874 = vmatpush1.msra.mxu0 %v873
        %875 = vmatprep.subr.mxu0 0.0
        %v876 = vand.u32 %v489, 4294901760
        %877 = vmatpush1.msra.mxu0 %v876
        %878 = vmatprep.subr.mxu0 0.0
        %v879 = vand.u32 %v490, 4294901760
        %880 = vmatpush1.msra.mxu0 %v879
        %881 = vmatprep.subr.mxu0 0.0
        %v882 = vand.u32 %v491, 4294901760
        %883 = vmatpush1.msra.mxu0 %v882
        %884 = vmatprep.subr.mxu0 0.0
        %v885 = vand.u32 %v492, 4294901760
        %886 = vmatpush1.msra.mxu0 %v885
        %887 = vmatprep.subr.mxu0 0.0
        %888 = vmatpush1.msra.mxu0 0.0
        %889 = vmatprep.subr.mxu0 0.0
        %890 = vmatpush1.msra.mxu0 0.0
        %891 = vmatprep.subr.mxu0 0.0
        %892 = vmatpush1.msra.mxu0 0.0
        %893 = vmatprep.subr.mxu0 0.0
        %894 = vmatpush1.msra.mxu0 0.0
        %895 = vmatprep.subr.mxu0 0.0
        %896 = vmatpush1.msra.mxu0 0.0
        %897 = vmatprep.subr.mxu0 0.0
        %898 = vmatpush1.msra.mxu0 0.0
        %899 = vmatprep.subr.mxu0 0.0
        %900 = vmatpush1.msra.mxu0 0.0
        %901 = vmatprep.subr.mxu0 0.0
        %902 = vmatpush1.msra.mxu0 0.0
        %903 = vmatprep.subr.mxu0 0.0
        %904 = vmatpush1.msra.mxu0 0.0
        %905 = vmatprep.subr.mxu0 0.0
        %906 = vmatpush1.msra.mxu0 0.0
        %907 = vmatprep.subr.mxu0 0.0
        %908 = vmatpush1.msra.mxu0 0.0
        %909 = vmatprep.subr.mxu0 0.0
        %910 = vmatpush1.msra.mxu0 0.0
        %911 = vmatprep.subr.mxu0 0.0
        %912 = vmatpush1.msra.mxu0 0.0
        %913 = vmatprep.subr.mxu0 0.0
        %914 = vmatpush1.msra.mxu0 0.0
        %915 = vmatprep.subr.mxu0 0.0
        %916 = vmatpush1.msra.mxu0 0.0
        %917 = vmatprep.subr.mxu0 0.0
        %918 = vmatpush1.msra.mxu0 0.0
        %919 = vmatprep.mubr.f32.mxu0 0.0
        %v920 = vand.u32 %v476, 4294901760
        %v921 = vsub.f32 %v476, %v920
        %v922 = vand.u32 %v921, 4294901760
        %923 = vmatmul.mubr.f32.gmra.mrb[0].mxu0 %v922
        %v924 = vpop.f32.mrb[0].mxu0
        %v925 = vadd.f32 %v836, %v924
        %v926 = vpop.f32.mrb[0].mxu0
        %927 = vdwg.mxu0
        %928 = vmatprep.subr.mxu0 0.0
        %v929 = vand.u32 %v477, 4294901760
        %v930 = vsub.f32 %v477, %v929
        %v931 = vand.u32 %v930, 4294901760
        %932 = vmatpush1.msra.mxu0 %v931
        %933 = vmatprep.subr.mxu0 0.0
        %v934 = vand.u32 %v478, 4294901760
        %v935 = vsub.f32 %v478, %v934
        %v936 = vand.u32 %v935, 4294901760
        %937 = vmatpush1.msra.mxu0 %v936
        %938 = vmatprep.subr.mxu0 0.0
        %v939 = vand.u32 %v479, 4294901760
        %v940 = vsub.f32 %v479, %v939
        %v941 = vand.u32 %v940, 4294901760
        %942 = vmatpush1.msra.mxu0 %v941
        %943 = vmatprep.subr.mxu0 0.0
        %v944 = vand.u32 %v480, 4294901760
        %v945 = vsub.f32 %v480, %v944
        %v946 = vand.u32 %v945, 4294901760
        %947 = vmatpush1.msra.mxu0 %v946
        %948 = vmatprep.subr.mxu0 0.0
        %v949 = vand.u32 %v481, 4294901760
        %v950 = vsub.f32 %v481, %v949
        %v951 = vand.u32 %v950, 4294901760
        %952 = vmatpush1.msra.mxu0 %v951
        %953 = vmatprep.subr.mxu0 0.0
        %v954 = vand.u32 %v482, 4294901760
        %v955 = vsub.f32 %v482, %v954
        %v956 = vand.u32 %v955, 4294901760
        %957 = vmatpush1.msra.mxu0 %v956
        %958 = vmatprep.subr.mxu0 0.0
        %v959 = vand.u32 %v483, 4294901760
        %v960 = vsub.f32 %v483, %v959
        %v961 = vand.u32 %v960, 4294901760
        %962 = vmatpush1.msra.mxu0 %v961
        %963 = vmatprep.subr.mxu0 0.0
        %v964 = vand.u32 %v484, 4294901760
        %v965 = vsub.f32 %v484, %v964
        %v966 = vand.u32 %v965, 4294901760
        %967 = vmatpush1.msra.mxu0 %v966
        %968 = vmatprep.subr.mxu0 0.0
        %v969 = vand.u32 %v485, 4294901760
        %v970 = vsub.f32 %v485, %v969
        %v971 = vand.u32 %v970, 4294901760
        %972 = vmatpush1.msra.mxu0 %v971
        %973 = vmatprep.subr.mxu0 0.0
        %v974 = vand.u32 %v486, 4294901760
        %v975 = vsub.f32 %v486, %v974
        %v976 = vand.u32 %v975, 4294901760
        %977 = vmatpush1.msra.mxu0 %v976
        %978 = vmatprep.subr.mxu0 0.0
        %v979 = vand.u32 %v487, 4294901760
        %v980 = vsub.f32 %v487, %v979
        %v981 = vand.u32 %v980, 4294901760
        %982 = vmatpush1.msra.mxu0 %v981
        %983 = vmatprep.subr.mxu0 0.0
        %v984 = vand.u32 %v488, 4294901760
        %v985 = vsub.f32 %v488, %v984
        %v986 = vand.u32 %v985, 4294901760
        %987 = vmatpush1.msra.mxu0 %v986
        %988 = vmatprep.subr.mxu0 0.0
        %v989 = vand.u32 %v489, 4294901760
        %v990 = vsub.f32 %v489, %v989
        %v991 = vand.u32 %v990, 4294901760
        %992 = vmatpush1.msra.mxu0 %v991
        %993 = vmatprep.subr.mxu0 0.0
        %v994 = vand.u32 %v490, 4294901760
        %v995 = vsub.f32 %v490, %v994
        %v996 = vand.u32 %v995, 4294901760
        %997 = vmatpush1.msra.mxu0 %v996
        %998 = vmatprep.subr.mxu0 0.0
        %v999 = vand.u32 %v491, 4294901760
        %v1000 = vsub.f32 %v491, %v999
        %v1001 = vand.u32 %v1000, 4294901760
        %1002 = vmatpush1.msra.mxu0 %v1001
        %1003 = vmatprep.subr.mxu0 0.0
        %v1004 = vand.u32 %v492, 4294901760
        %v1005 = vsub.f32 %v492, %v1004
        %v1006 = vand.u32 %v1005, 4294901760
        %1007 = vmatpush1.msra.mxu0 %v1006
        %1008 = vmatprep.subr.mxu0 0.0
        %1009 = vmatpush1.msra.mxu0 0.0
        %1010 = vmatprep.subr.mxu0 0.0
        %1011 = vmatpush1.msra.mxu0 0.0
        %1012 = vmatprep.subr.mxu0 0.0
        %1013 = vmatpush1.msra.mxu0 0.0
        %1014 = vmatprep.subr.mxu0 0.0
        %1015 = vmatpush1.msra.mxu0 0.0
        %1016 = vmatprep.subr.mxu0 0.0
        %1017 = vmatpush1.msra.mxu0 0.0
        %1018 = vmatprep.subr.mxu0 0.0
        %1019 = vmatpush1.msra.mxu0 0.0
        %1020 = vmatprep.subr.mxu0 0.0
        %1021 = vmatpush1.msra.mxu0 0.0
        %1022 = vmatprep.subr.mxu0 0.0
        %1023 = vmatpush1.msra.mxu0 0.0
        %1024 = vmatprep.subr.mxu0 0.0
        %1025 = vmatpush1.msra.mxu0 0.0
        %1026 = vmatprep.subr.mxu0 0.0
        %1027 = vmatpush1.msra.mxu0 0.0
        %1028 = vmatprep.subr.mxu0 0.0
        %1029 = vmatpush1.msra.mxu0 0.0
        %1030 = vmatprep.subr.mxu0 0.0
        %1031 = vmatpush1.msra.mxu0 0.0
        %1032 = vmatprep.subr.mxu0 0.0
        %1033 = vmatpush1.msra.mxu0 0.0
        %1034 = vmatprep.subr.mxu0 0.0
        %1035 = vmatpush1.msra.mxu0 0.0
        %1036 = vmatprep.subr.mxu0 0.0
        %1037 = vmatpush1.msra.mxu0 0.0
        %1038 = vmatprep.subr.mxu0 0.0
        %1039 = vmatpush1.msra.mxu0 0.0
        %1040 = vmatprep.mubr.f32.mxu0 0.0
        %v1041 = vand.u32 %v476, 4294901760
        %1042 = vmatmul.mubr.f32.gmra.mrb[0].mxu0 %v1041
        %v1043 = vpop.f32.mrb[0].mxu0
        %v1044 = vadd.f32 %v925, %v1043
        %v1045 = vpop.f32.mrb[0].mxu0
        %1046 = vdwg.mxu0
        %1047 = vmatprep.subr.mxu0 0.0
        %v1048 = vand.u32 %v477, 4294901760
        %1049 = vmatpush1.msra.mxu0 %v1048
        %1050 = vmatprep.subr.mxu0 0.0
        %v1051 = vand.u32 %v478, 4294901760
        %1052 = vmatpush1.msra.mxu0 %v1051
        %1053 = vmatprep.subr.mxu0 0.0
        %v1054 = vand.u32 %v479, 4294901760
        %1055 = vmatpush1.msra.mxu0 %v1054
        %1056 = vmatprep.subr.mxu0 0.0
        %v1057 = vand.u32 %v480, 4294901760
        %1058 = vmatpush1.msra.mxu0 %v1057
        %1059 = vmatprep.subr.mxu0 0.0
        %v1060 = vand.u32 %v481, 4294901760
        %1061 = vmatpush1.msra.mxu0 %v1060
        %1062 = vmatprep.subr.mxu0 0.0
        %v1063 = vand.u32 %v482, 4294901760
        %1064 = vmatpush1.msra.mxu0 %v1063
        %1065 = vmatprep.subr.mxu0 0.0
        %v1066 = vand.u32 %v483, 4294901760
        %1067 = vmatpush1.msra.mxu0 %v1066
        %1068 = vmatprep.subr.mxu0 0.0
        %v1069 = vand.u32 %v484, 4294901760
        %1070 = vmatpush1.msra.mxu0 %v1069
        %1071 = vmatprep.subr.mxu0 0.0
        %v1072 = vand.u32 %v485, 4294901760
        %1073 = vmatpush1.msra.mxu0 %v1072
        %1074 = vmatprep.subr.mxu0 0.0
        %v1075 = vand.u32 %v486, 4294901760
        %1076 = vmatpush1.msra.mxu0 %v1075
        %1077 = vmatprep.subr.mxu0 0.0
        %v1078 = vand.u32 %v487, 4294901760
        %1079 = vmatpush1.msra.mxu0 %v1078
        %1080 = vmatprep.subr.mxu0 0.0
        %v1081 = vand.u32 %v488, 4294901760
        %1082 = vmatpush1.msra.mxu0 %v1081
        %1083 = vmatprep.subr.mxu0 0.0
        %v1084 = vand.u32 %v489, 4294901760
        %1085 = vmatpush1.msra.mxu0 %v1084
        %1086 = vmatprep.subr.mxu0 0.0
        %v1087 = vand.u32 %v490, 4294901760
        %1088 = vmatpush1.msra.mxu0 %v1087
        %1089 = vmatprep.subr.mxu0 0.0
        %v1090 = vand.u32 %v491, 4294901760
        %1091 = vmatpush1.msra.mxu0 %v1090
        %1092 = vmatprep.subr.mxu0 0.0
        %v1093 = vand.u32 %v492, 4294901760
        %1094 = vmatpush1.msra.mxu0 %v1093
        %1095 = vmatprep.subr.mxu0 0.0
        %1096 = vmatpush1.msra.mxu0 0.0
        %1097 = vmatprep.subr.mxu0 0.0
        %1098 = vmatpush1.msra.mxu0 0.0
        %1099 = vmatprep.subr.mxu0 0.0
        %1100 = vmatpush1.msra.mxu0 0.0
        %1101 = vmatprep.subr.mxu0 0.0
        %1102 = vmatpush1.msra.mxu0 0.0
        %1103 = vmatprep.subr.mxu0 0.0
        %1104 = vmatpush1.msra.mxu0 0.0
        %1105 = vmatprep.subr.mxu0 0.0
        %1106 = vmatpush1.msra.mxu0 0.0
        %1107 = vmatprep.subr.mxu0 0.0
        %1108 = vmatpush1.msra.mxu0 0.0
        %1109 = vmatprep.subr.mxu0 0.0
        %1110 = vmatpush1.msra.mxu0 0.0
        %1111 = vmatprep.subr.mxu0 0.0
        %1112 = vmatpush1.msra.mxu0 0.0
        %1113 = vmatprep.subr.mxu0 0.0
        %1114 = vmatpush1.msra.mxu0 0.0
        %1115 = vmatprep.subr.mxu0 0.0
        %1116 = vmatpush1.msra.mxu0 0.0
        %1117 = vmatprep.subr.mxu0 0.0
        %1118 = vmatpush1.msra.mxu0 0.0
        %1119 = vmatprep.subr.mxu0 0.0
        %1120 = vmatpush1.msra.mxu0 0.0
        %1121 = vmatprep.subr.mxu0 0.0
        %1122 = vmatpush1.msra.mxu0 0.0
        %1123 = vmatprep.subr.mxu0 0.0
        %1124 = vmatpush1.msra.mxu0 0.0
        %1125 = vmatprep.subr.mxu0 0.0
        %1126 = vmatpush1.msra.mxu0 0.0
        %1127 = vmatprep.mubr.f32.mxu0 0.0
        %v1128 = vand.u32 %v476, 4294901760
        %1129 = vmatmul.mubr.f32.gmra.mrb[0].mxu0 %v1128
        %v1130 = vpop.f32.mrb[0].mxu0
        %v1131 = vadd.f32 %v1044, %v1130
        %v1132 = vpop.f32.mrb[0].mxu0
        %1133 = vdwg.mxu0
        %v1134 = vmax.f32 %v1131, 0.0
        %v1135 = vld [vmem:[#allocation7] sm:$0xff]
        %v1136 = vld [vmem:[#allocation7 + $0x8] sm:$0xff]
        %v1137 = vld [vmem:[#allocation7 + $0x10] sm:$0xff]
        %v1138 = vld [vmem:[#allocation7 + $0x18] sm:$0xff]
        %v1139 = vld [vmem:[#allocation7 + $0x20] sm:$0xff]
        %v1140 = vld [vmem:[#allocation7 + $0x28] sm:$0xff]
        %v1141 = vld [vmem:[#allocation7 + $0x30] sm:$0xff]
        %v1142 = vld [vmem:[#allocation7 + $0x38] sm:$0xff]
        %v1143 = vld [vmem:[#allocation7 + $0x40] sm:$0xff]
        %v1144 = vld [vmem:[#allocation7 + $0x48] sm:$0xff]
        %v1145 = vld [vmem:[#allocation7 + $0x50] sm:$0xff]
        %v1146 = vld [vmem:[#allocation7 + $0x58] sm:$0xff]
        %v1147 = vld [vmem:[#allocation7 + $0x60] sm:$0xff]
        %v1148 = vld [vmem:[#allocation7 + $0x68] sm:$0xff]
        %v1149 = vld [vmem:[#allocation7 + $0x70] sm:$0xff]
        %v1150 = vld [vmem:[#allocation7 + $0x78] sm:$0xff]
        %1151 = vmatprep.subr.mxu0 0.0
        %v1152 = vand.u32 %v1135, 4294901760
        %1153 = vmatpush1.msra.mxu0 %v1152
        %1154 = vmatprep.subr.mxu0 0.0
        %v1155 = vand.u32 %v1136, 4294901760
        %1156 = vmatpush1.msra.mxu0 %v1155
        %1157 = vmatprep.subr.mxu0 0.0
        %v1158 = vand.u32 %v1137, 4294901760
        %1159 = vmatpush1.msra.mxu0 %v1158
        %1160 = vmatprep.subr.mxu0 0.0
        %v1161 = vand.u32 %v1138, 4294901760
        %1162 = vmatpush1.msra.mxu0 %v1161
        %1163 = vmatprep.subr.mxu0 0.0
        %v1164 = vand.u32 %v1139, 4294901760
        %1165 = vmatpush1.msra.mxu0 %v1164
        %1166 = vmatprep.subr.mxu0 0.0
        %v1167 = vand.u32 %v1140, 4294901760
        %1168 = vmatpush1.msra.mxu0 %v1167
        %1169 = vmatprep.subr.mxu0 0.0
        %v1170 = vand.u32 %v1141, 4294901760
        %1171 = vmatpush1.msra.mxu0 %v1170
        %1172 = vmatprep.subr.mxu0 0.0
        %v1173 = vand.u32 %v1142, 4294901760
        %1174 = vmatpush1.msra.mxu0 %v1173
        %1175 = vmatprep.subr.mxu0 0.0
        %v1176 = vand.u32 %v1143, 4294901760
        %1177 = vmatpush1.msra.mxu0 %v1176
        %1178 = vmatprep.subr.mxu0 0.0
        %v1179 = vand.u32 %v1144, 4294901760
        %1180 = vmatpush1.msra.mxu0 %v1179
        %1181 = vmatprep.subr.mxu0 0.0
        %v1182 = vand.u32 %v1145, 4294901760
        %1183 = vmatpush1.msra.mxu0 %v1182
        %1184 = vmatprep.subr.mxu0 0.0
        %v1185 = vand.u32 %v1146, 4294901760
        %1186 = vmatpush1.msra.mxu0 %v1185
        %1187 = vmatprep.subr.mxu0 0.0
        %v1188 = vand.u32 %v1147, 4294901760
        %1189 = vmatpush1.msra.mxu0 %v1188
        %1190 = vmatprep.subr.mxu0 0.0
        %v1191 = vand.u32 %v1148, 4294901760
        %1192 = vmatpush1.msra.mxu0 %v1191
        %1193 = vmatprep.subr.mxu0 0.0
        %v1194 = vand.u32 %v1149, 4294901760
        %1195 = vmatpush1.msra.mxu0 %v1194
        %1196 = vmatprep.subr.mxu0 0.0
        %v1197 = vand.u32 %v1150, 4294901760
        %1198 = vmatpush1.msra.mxu0 %v1197
        %1199 = vmatprep.subr.mxu0 0.0
        %1200 = vmatpush1.msra.mxu0 0.0
        %1201 = vmatprep.subr.mxu0 0.0
        %1202 = vmatpush1.msra.mxu0 0.0
        %1203 = vmatprep.subr.mxu0 0.0
        %1204 = vmatpush1.msra.mxu0 0.0
        %1205 = vmatprep.subr.mxu0 0.0
        %1206 = vmatpush1.msra.mxu0 0.0
        %1207 = vmatprep.subr.mxu0 0.0
        %1208 = vmatpush1.msra.mxu0 0.0
        %1209 = vmatprep.subr.mxu0 0.0
        %1210 = vmatpush1.msra.mxu0 0.0
        %1211 = vmatprep.subr.mxu0 0.0
        %1212 = vmatpush1.msra.mxu0 0.0
        %1213 = vmatprep.subr.mxu0 0.0
        %1214 = vmatpush1.msra.mxu0 0.0
        %1215 = vmatprep.subr.mxu0 0.0
        %1216 = vmatpush1.msra.mxu0 0.0
        %1217 = vmatprep.subr.mxu0 0.0
        %1218 = vmatpush1.msra.mxu0 0.0
        %1219 = vmatprep.subr.mxu0 0.0
        %1220 = vmatpush1.msra.mxu0 0.0
        %1221 = vmatprep.subr.mxu0 0.0
        %1222 = vmatpush1.msra.mxu0 0.0
        %1223 = vmatprep.subr.mxu0 0.0
        %1224 = vmatpush1.msra.mxu0 0.0
        %1225 = vmatprep.subr.mxu0 0.0
        %1226 = vmatpush1.msra.mxu0 0.0
        %1227 = vmatprep.subr.mxu0 0.0
        %1228 = vmatpush1.msra.mxu0 0.0
        %1229 = vmatprep.subr.mxu0 0.0
        %1230 = vmatpush1.msra.mxu0 0.0
        %1231 = vmatprep.mubr.f32.mxu0 0.0
        %v1232 = vand.u32 %v476, 4294901760
        %v1233 = vsub.f32 %v476, %v1232
        %v1234 = vand.u32 %v1233, 4294901760
        %v1235 = vsub.f32 %v1233, %v1234
        %v1236 = vand.u32 %v1235, 4294901760
        %1237 = vmatmul.mubr.f32.gmra.mrb[0].mxu0 %v1236
        %v1238 = vpop.f32.mrb[0].mxu0
        %v1239 = vadd.f32 0.0, %v1238
        %v1240 = vpop.f32.mrb[0].mxu0
        %1241 = vdwg.mxu0
        %1242 = vmatprep.subr.mxu0 0.0
        %v1243 = vand.u32 %v1135, 4294901760
        %v1244 = vsub.f32 %v1135, %v1243
        %v1245 = vand.u32 %v1244, 4294901760
        %v1246 = vsub.f32 %v1244, %v1245
        %v1247 = vand.u32 %v1246, 4294901760
        %1248 = vmatpush1.msra.mxu0 %v1247
        %1249 = vmatprep.subr.mxu0 0.0
        %v1250 = vand.u32 %v1136, 4294901760
        %v1251 = vsub.f32 %v1136, %v1250
        %v1252 = vand.u32 %v1251, 4294901760
        %v1253 = vsub.f32 %v1251, %v1252
        %v1254 = vand.u32 %v1253, 4294901760
        %1255 = vmatpush1.msra.mxu0 %v1254
        %1256 = vmatprep.subr.mxu0 0.0
        %v1257 = vand.u32 %v1137, 4294901760
        %v1258 = vsub.f32 %v1137, %v1257
        %v1259 = vand.u32 %v1258, 4294901760
        %v1260 = vsub.f32 %v1258, %v1259
        %v1261 = vand.u32 %v1260, 4294901760
        %1262 = vmatpush1.msra.mxu0 %v1261
        %1263 = vmatprep.subr.mxu0 0.0
        %v1264 = vand.u32 %v1138, 4294901760
        %v1265 = vsub.f32 %v1138, %v1264
        %v1266 = vand.u32 %v1265, 4294901760
        %v1267 = vsub.f32 %v1265, %v1266
        %v1268 = vand.u32 %v1267, 4294901760
        %1269 = vmatpush1.msra.mxu0 %v1268
        %1270 = vmatprep.subr.mxu0 0.0
        %v1271 = vand.u32 %v1139, 4294901760
        %v1272 = vsub.f32 %v1139, %v1271
        %v1273 = vand.u32 %v1272, 4294901760
        %v1274 = vsub.f32 %v1272, %v1273
        %v1275 = vand.u32 %v1274, 4294901760
        %1276 = vmatpush1.msra.mxu0 %v1275
        %1277 = vmatprep.subr.mxu0 0.0
        %v1278 = vand.u32 %v1140, 4294901760
        %v1279 = vsub.f32 %v1140, %v1278
        %v1280 = vand.u32 %v1279, 4294901760
        %v1281 = vsub.f32 %v1279, %v1280
        %v1282 = vand.u32 %v1281, 4294901760
        %1283 = vmatpush1.msra.mxu0 %v1282
        %1284 = vmatprep.subr.mxu0 0.0
        %v1285 = vand.u32 %v1141, 4294901760
        %v1286 = vsub.f32 %v1141, %v1285
        %v1287 = vand.u32 %v1286, 4294901760
        %v1288 = vsub.f32 %v1286, %v1287
        %v1289 = vand.u32 %v1288, 4294901760
        %1290 = vmatpush1.msra.mxu0 %v1289
        %1291 = vmatprep.subr.mxu0 0.0
        %v1292 = vand.u32 %v1142, 4294901760
        %v1293 = vsub.f32 %v1142, %v1292
        %v1294 = vand.u32 %v1293, 4294901760
        %v1295 = vsub.f32 %v1293, %v1294
        %v1296 = vand.u32 %v1295, 4294901760
        %1297 = vmatpush1.msra.mxu0 %v1296
        %1298 = vmatprep.subr.mxu0 0.0
        %v1299 = vand.u32 %v1143, 4294901760
        %v1300 = vsub.f32 %v1143, %v1299
        %v1301 = vand.u32 %v1300, 4294901760
        %v1302 = vsub.f32 %v1300, %v1301
        %v1303 = vand.u32 %v1302, 4294901760
        %1304 = vmatpush1.msra.mxu0 %v1303
        %1305 = vmatprep.subr.mxu0 0.0
        %v1306 = vand.u32 %v1144, 4294901760
        %v1307 = vsub.f32 %v1144, %v1306
        %v1308 = vand.u32 %v1307, 4294901760
        %v1309 = vsub.f32 %v1307, %v1308
        %v1310 = vand.u32 %v1309, 4294901760
        %1311 = vmatpush1.msra.mxu0 %v1310
        %1312 = vmatprep.subr.mxu0 0.0
        %v1313 = vand.u32 %v1145, 4294901760
        %v1314 = vsub.f32 %v1145, %v1313
        %v1315 = vand.u32 %v1314, 4294901760
        %v1316 = vsub.f32 %v1314, %v1315
        %v1317 = vand.u32 %v1316, 4294901760
        %1318 = vmatpush1.msra.mxu0 %v1317
        %1319 = vmatprep.subr.mxu0 0.0
        %v1320 = vand.u32 %v1146, 4294901760
        %v1321 = vsub.f32 %v1146, %v1320
        %v1322 = vand.u32 %v1321, 4294901760
        %v1323 = vsub.f32 %v1321, %v1322
        %v1324 = vand.u32 %v1323, 4294901760
        %1325 = vmatpush1.msra.mxu0 %v1324
        %1326 = vmatprep.subr.mxu0 0.0
        %v1327 = vand.u32 %v1147, 4294901760
        %v1328 = vsub.f32 %v1147, %v1327
        %v1329 = vand.u32 %v1328, 4294901760
        %v1330 = vsub.f32 %v1328, %v1329
        %v1331 = vand.u32 %v1330, 4294901760
        %1332 = vmatpush1.msra.mxu0 %v1331
        %1333 = vmatprep.subr.mxu0 0.0
        %v1334 = vand.u32 %v1148, 4294901760
        %v1335 = vsub.f32 %v1148, %v1334
        %v1336 = vand.u32 %v1335, 4294901760
        %v1337 = vsub.f32 %v1335, %v1336
        %v1338 = vand.u32 %v1337, 4294901760
        %1339 = vmatpush1.msra.mxu0 %v1338
        %1340 = vmatprep.subr.mxu0 0.0
        %v1341 = vand.u32 %v1149, 4294901760
        %v1342 = vsub.f32 %v1149, %v1341
        %v1343 = vand.u32 %v1342, 4294901760
        %v1344 = vsub.f32 %v1342, %v1343
        %v1345 = vand.u32 %v1344, 4294901760
        %1346 = vmatpush1.msra.mxu0 %v1345
        %1347 = vmatprep.subr.mxu0 0.0
        %v1348 = vand.u32 %v1150, 4294901760
        %v1349 = vsub.f32 %v1150, %v1348
        %v1350 = vand.u32 %v1349, 4294901760
        %v1351 = vsub.f32 %v1349, %v1350
        %v1352 = vand.u32 %v1351, 4294901760
        %1353 = vmatpush1.msra.mxu0 %v1352
        %1354 = vmatprep.subr.mxu0 0.0
        %1355 = vmatpush1.msra.mxu0 0.0
        %1356 = vmatprep.subr.mxu0 0.0
        %1357 = vmatpush1.msra.mxu0 0.0
        %1358 = vmatprep.subr.mxu0 0.0
        %1359 = vmatpush1.msra.mxu0 0.0
        %1360 = vmatprep.subr.mxu0 0.0
        %1361 = vmatpush1.msra.mxu0 0.0
        %1362 = vmatprep.subr.mxu0 0.0
        %1363 = vmatpush1.msra.mxu0 0.0
        %1364 = vmatprep.subr.mxu0 0.0
        %1365 = vmatpush1.msra.mxu0 0.0
        %1366 = vmatprep.subr.mxu0 0.0
        %1367 = vmatpush1.msra.mxu0 0.0
        %1368 = vmatprep.subr.mxu0 0.0
        %1369 = vmatpush1.msra.mxu0 0.0
        %1370 = vmatprep.subr.mxu0 0.0
        %1371 = vmatpush1.msra.mxu0 0.0
        %1372 = vmatprep.subr.mxu0 0.0
        %1373 = vmatpush1.msra.mxu0 0.0
        %1374 = vmatprep.subr.mxu0 0.0
        %1375 = vmatpush1.msra.mxu0 0.0
        %1376 = vmatprep.subr.mxu0 0.0
        %1377 = vmatpush1.msra.mxu0 0.0
        %1378 = vmatprep.subr.mxu0 0.0
        %1379 = vmatpush1.msra.mxu0 0.0
        %1380 = vmatprep.subr.mxu0 0.0
        %1381 = vmatpush1.msra.mxu0 0.0
        %1382 = vmatprep.subr.mxu0 0.0
        %1383 = vmatpush1.msra.mxu0 0.0
        %1384 = vmatprep.subr.mxu0 0.0
        %1385 = vmatpush1.msra.mxu0 0.0
        %1386 = vmatprep.mubr.f32.mxu0 0.0
        %v1387 = vand.u32 %v476, 4294901760
        %1388 = vmatmul.mubr.f32.gmra.mrb[0].mxu0 %v1387
        %v1389 = vpop.f32.mrb[0].mxu0
        %v1390 = vadd.f32 %v1239, %v1389
        %v1391 = vpop.f32.mrb[0].mxu0
        %1392 = vdwg.mxu0
        %1393 = vmatprep.subr.mxu0 0.0
        %v1394 = vand.u32 %v1135, 4294901760
        %v1395 = vsub.f32 %v1135, %v1394
        %1396 = vmatpush1.msra.mxu0 %v1395
        %1397 = vmatprep.subr.mxu0 0.0
        %v1398 = vand.u32 %v1136, 4294901760
        %v1399 = vsub.f32 %v1136, %v1398
        %1400 = vmatpush1.msra.mxu0 %v1399
        %1401 = vmatprep.subr.mxu0 0.0
        %v1402 = vand.u32 %v1137, 4294901760
        %v1403 = vsub.f32 %v1137, %v1402
        %1404 = vmatpush1.msra.mxu0 %v1403
        %1405 = vmatprep.subr.mxu0 0.0
        %v1406 = vand.u32 %v1138, 4294901760
        %v1407 = vsub.f32 %v1138, %v1406
        %1408 = vmatpush1.msra.mxu0 %v1407
        %1409 = vmatprep.subr.mxu0 0.0
        %v1410 = vand.u32 %v1139, 4294901760
        %v1411 = vsub.f32 %v1139, %v1410
        %1412 = vmatpush1.msra.mxu0 %v1411
        %1413 = vmatprep.subr.mxu0 0.0
        %v1414 = vand.u32 %v1140, 4294901760
        %v1415 = vsub.f32 %v1140, %v1414
        %1416 = vmatpush1.msra.mxu0 %v1415
        %1417 = vmatprep.subr.mxu0 0.0
        %v1418 = vand.u32 %v1141, 4294901760
        %v1419 = vsub.f32 %v1141, %v1418
        %1420 = vmatpush1.msra.mxu0 %v1419
        %1421 = vmatprep.subr.mxu0 0.0
        %v1422 = vand.u32 %v1142, 4294901760
        %v1423 = vsub.f32 %v1142, %v1422
        %1424 = vmatpush1.msra.mxu0 %v1423
        %1425 = vmatprep.subr.mxu0 0.0
        %v1426 = vand.u32 %v1143, 4294901760
        %v1427 = vsub.f32 %v1143, %v1426
        %1428 = vmatpush1.msra.mxu0 %v1427
        %1429 = vmatprep.subr.mxu0 0.0
        %v1430 = vand.u32 %v1144, 4294901760
        %v1431 = vsub.f32 %v1144, %v1430
        %1432 = vmatpush1.msra.mxu0 %v1431
        %1433 = vmatprep.subr.mxu0 0.0
        %v1434 = vand.u32 %v1145, 4294901760
        %v1435 = vsub.f32 %v1145, %v1434
        %1436 = vmatpush1.msra.mxu0 %v1435
        %1437 = vmatprep.subr.mxu0 0.0
        %v1438 = vand.u32 %v1146, 4294901760
        %v1439 = vsub.f32 %v1146, %v1438
        %1440 = vmatpush1.msra.mxu0 %v1439
        %1441 = vmatprep.subr.mxu0 0.0
        %v1442 = vand.u32 %v1147, 4294901760
        %v1443 = vsub.f32 %v1147, %v1442
        %1444 = vmatpush1.msra.mxu0 %v1443
        %1445 = vmatprep.subr.mxu0 0.0
        %v1446 = vand.u32 %v1148, 4294901760
        %v1447 = vsub.f32 %v1148, %v1446
        %1448 = vmatpush1.msra.mxu0 %v1447
        %1449 = vmatprep.subr.mxu0 0.0
        %v1450 = vand.u32 %v1149, 4294901760
        %v1451 = vsub.f32 %v1149, %v1450
        %1452 = vmatpush1.msra.mxu0 %v1451
        %1453 = vmatprep.subr.mxu0 0.0
        %v1454 = vand.u32 %v1150, 4294901760
        %v1455 = vsub.f32 %v1150, %v1454
        %1456 = vmatpush1.msra.mxu0 %v1455
        %1457 = vmatprep.subr.mxu0 0.0
        %1458 = vmatpush1.msra.mxu0 0.0
        %1459 = vmatprep.subr.mxu0 0.0
        %1460 = vmatpush1.msra.mxu0 0.0
        %1461 = vmatprep.subr.mxu0 0.0
        %1462 = vmatpush1.msra.mxu0 0.0
        %1463 = vmatprep.subr.mxu0 0.0
        %1464 = vmatpush1.msra.mxu0 0.0
        %1465 = vmatprep.subr.mxu0 0.0
        %1466 = vmatpush1.msra.mxu0 0.0
        %1467 = vmatprep.subr.mxu0 0.0
        %1468 = vmatpush1.msra.mxu0 0.0
        %1469 = vmatprep.subr.mxu0 0.0
        %1470 = vmatpush1.msra.mxu0 0.0
        %1471 = vmatprep.subr.mxu0 0.0
        %1472 = vmatpush1.msra.mxu0 0.0
        %1473 = vmatprep.subr.mxu0 0.0
        %1474 = vmatpush1.msra.mxu0 0.0
        %1475 = vmatprep.subr.mxu0 0.0
        %1476 = vmatpush1.msra.mxu0 0.0
        %1477 = vmatprep.subr.mxu0 0.0
        %1478 = vmatpush1.msra.mxu0 0.0
        %1479 = vmatprep.subr.mxu0 0.0
        %1480 = vmatpush1.msra.mxu0 0.0
        %1481 = vmatprep.subr.mxu0 0.0
        %1482 = vmatpush1.msra.mxu0 0.0
        %1483 = vmatprep.subr.mxu0 0.0
        %1484 = vmatpush1.msra.mxu0 0.0
        %1485 = vmatprep.subr.mxu0 0.0
        %1486 = vmatpush1.msra.mxu0 0.0
        %1487 = vmatprep.subr.mxu0 0.0
        %1488 = vmatpush1.msra.mxu0 0.0
        %1489 = vmatprep.mubr.f32.mxu0 0.0
        %v1490 = vand.u32 %v476, 4294901760
        %v1491 = vsub.f32 %v476, %v1490
        %1492 = vmatmul.mubr.f32.gmra.mrb[0].mxu0 %v1491
        %v1493 = vpop.f32.mrb[0].mxu0
        %v1494 = vadd.f32 %v1390, %v1493
        %v1495 = vpop.f32.mrb[0].mxu0
        %1496 = vdwg.mxu0
        %1497 = vmatprep.subr.mxu0 0.0
        %v1498 = vand.u32 %v1135, 4294901760
        %1499 = vmatpush1.msra.mxu0 %v1498
        %1500 = vmatprep.subr.mxu0 0.0
        %v1501 = vand.u32 %v1136, 4294901760
        %1502 = vmatpush1.msra.mxu0 %v1501
        %1503 = vmatprep.subr.mxu0 0.0
        %v1504 = vand.u32 %v1137, 4294901760
        %1505 = vmatpush1.msra.mxu0 %v1504
        %1506 = vmatprep.subr.mxu0 0.0
        %v1507 = vand.u32 %v1138, 4294901760
        %1508 = vmatpush1.msra.mxu0 %v1507
        %1509 = vmatprep.subr.mxu0 0.0
        %v1510 = vand.u32 %v1139, 4294901760
        %1511 = vmatpush1.msra.mxu0 %v1510
        %1512 = vmatprep.subr.mxu0 0.0
        %v1513 = vand.u32 %v1140, 4294901760
        %1514 = vmatpush1.msra.mxu0 %v1513
        %1515 = vmatprep.subr.mxu0 0.0
        %v1516 = vand.u32 %v1141, 4294901760
        %1517 = vmatpush1.msra.mxu0 %v1516
        %1518 = vmatprep.subr.mxu0 0.0
        %v1519 = vand.u32 %v1142, 4294901760
        %1520 = vmatpush1.msra.mxu0 %v1519
        %1521 = vmatprep.subr.mxu0 0.0
        %v1522 = vand.u32 %v1143, 4294901760
        %1523 = vmatpush1.msra.mxu0 %v1522
        %1524 = vmatprep.subr.mxu0 0.0
        %v1525 = vand.u32 %v1144, 4294901760
        %1526 = vmatpush1.msra.mxu0 %v1525
        %1527 = vmatprep.subr.mxu0 0.0
        %v1528 = vand.u32 %v1145, 4294901760
        %1529 = vmatpush1.msra.mxu0 %v1528
        %1530 = vmatprep.subr.mxu0 0.0
        %v1531 = vand.u32 %v1146, 4294901760
        %1532 = vmatpush1.msra.mxu0 %v1531
        %1533 = vmatprep.subr.mxu0 0.0
        %v1534 = vand.u32 %v1147, 4294901760
        %1535 = vmatpush1.msra.mxu0 %v1534
        %1536 = vmatprep.subr.mxu0 0.0
        %v1537 = vand.u32 %v1148, 4294901760
        %1538 = vmatpush1.msra.mxu0 %v1537
        %1539 = vmatprep.subr.mxu0 0.0
        %v1540 = vand.u32 %v1149, 4294901760
        %1541 = vmatpush1.msra.mxu0 %v1540
        %1542 = vmatprep.subr.mxu0 0.0
        %v1543 = vand.u32 %v1150, 4294901760
        %1544 = vmatpush1.msra.mxu0 %v1543
        %1545 = vmatprep.subr.mxu0 0.0
        %1546 = vmatpush1.msra.mxu0 0.0
        %1547 = vmatprep.subr.mxu0 0.0
        %1548 = vmatpush1.msra.mxu0 0.0
        %1549 = vmatprep.subr.mxu0 0.0
        %1550 = vmatpush1.msra.mxu0 0.0
        %1551 = vmatprep.subr.mxu0 0.0
        %1552 = vmatpush1.msra.mxu0 0.0
        %1553 = vmatprep.subr.mxu0 0.0
        %1554 = vmatpush1.msra.mxu0 0.0
        %1555 = vmatprep.subr.mxu0 0.0
        %1556 = vmatpush1.msra.mxu0 0.0
        %1557 = vmatprep.subr.mxu0 0.0
        %1558 = vmatpush1.msra.mxu0 0.0
        %1559 = vmatprep.subr.mxu0 0.0
        %1560 = vmatpush1.msra.mxu0 0.0
        %1561 = vmatprep.subr.mxu0 0.0
        %1562 = vmatpush1.msra.mxu0 0.0
        %1563 = vmatprep.subr.mxu0 0.0
        %1564 = vmatpush1.msra.mxu0 0.0
        %1565 = vmatprep.subr.mxu0 0.0
        %1566 = vmatpush1.msra.mxu0 0.0
        %1567 = vmatprep.subr.mxu0 0.0
        %1568 = vmatpush1.msra.mxu0 0.0
        %1569 = vmatprep.subr.mxu0 0.0
        %1570 = vmatpush1.msra.mxu0 0.0
        %1571 = vmatprep.subr.mxu0 0.0
        %1572 = vmatpush1.msra.mxu0 0.0
        %1573 = vmatprep.subr.mxu0 0.0
        %1574 = vmatpush1.msra.mxu0 0.0
        %1575 = vmatprep.subr.mxu0 0.0
        %1576 = vmatpush1.msra.mxu0 0.0
        %1577 = vmatprep.mubr.f32.mxu0 0.0
        %v1578 = vand.u32 %v476, 4294901760
        %v1579 = vsub.f32 %v476, %v1578
        %v1580 = vand.u32 %v1579, 4294901760
        %1581 = vmatmul.mubr.f32.gmra.mrb[0].mxu0 %v1580
        %v1582 = vpop.f32.mrb[0].mxu0
        %v1583 = vadd.f32 %v1494, %v1582
        %v1584 = vpop.f32.mrb[0].mxu0
        %1585 = vdwg.mxu0
        %1586 = vmatprep.subr.mxu0 0.0
        %v1587 = vand.u32 %v1135, 4294901760
        %v1588 = vsub.f32 %v1135, %v1587
        %v1589 = vand.u32 %v1588, 4294901760
        %1590 = vmatpush1.msra.mxu0 %v1589
        %1591 = vmatprep.subr.mxu0 0.0
        %v1592 = vand.u32 %v1136, 4294901760
        %v1593 = vsub.f32 %v1136, %v1592
        %v1594 = vand.u32 %v1593, 4294901760
        %1595 = vmatpush1.msra.mxu0 %v1594
        %1596 = vmatprep.subr.mxu0 0.0
        %v1597 = vand.u32 %v1137, 4294901760
        %v1598 = vsub.f32 %v1137, %v1597
        %v1599 = vand.u32 %v1598, 4294901760
        %1600 = vmatpush1.msra.mxu0 %v1599
        %1601 = vmatprep.subr.mxu0 0.0
        %v1602 = vand.u32 %v1138, 4294901760
        %v1603 = vsub.f32 %v1138, %v1602
        %v1604 = vand.u32 %v1603, 4294901760
        %1605 = vmatpush1.msra.mxu0 %v1604
        %1606 = vmatprep.subr.mxu0 0.0
        %v1607 = vand.u32 %v1139, 4294901760
        %v1608 = vsub.f32 %v1139, %v1607
        %v1609 = vand.u32 %v1608, 4294901760
        %1610 = vmatpush1.msra.mxu0 %v1609
        %1611 = vmatprep.subr.mxu0 0.0
        %v1612 = vand.u32 %v1140, 4294901760
        %v1613 = vsub.f32 %v1140, %v1612
        %v1614 = vand.u32 %v1613, 4294901760
        %1615 = vmatpush1.msra.mxu0 %v1614
        %1616 = vmatprep.subr.mxu0 0.0
        %v1617 = vand.u32 %v1141, 4294901760
        %v1618 = vsub.f32 %v1141, %v1617
        %v1619 = vand.u32 %v1618, 4294901760
        %1620 = vmatpush1.msra.mxu0 %v1619
        %1621 = vmatprep.subr.mxu0 0.0
        %v1622 = vand.u32 %v1142, 4294901760
        %v1623 = vsub.f32 %v1142, %v1622
        %v1624 = vand.u32 %v1623, 4294901760
        %1625 = vmatpush1.msra.mxu0 %v1624
        %1626 = vmatprep.subr.mxu0 0.0
        %v1627 = vand.u32 %v1143, 4294901760
        %v1628 = vsub.f32 %v1143, %v1627
        %v1629 = vand.u32 %v1628, 4294901760
        %1630 = vmatpush1.msra.mxu0 %v1629
        %1631 = vmatprep.subr.mxu0 0.0
        %v1632 = vand.u32 %v1144, 4294901760
        %v1633 = vsub.f32 %v1144, %v1632
        %v1634 = vand.u32 %v1633, 4294901760
        %1635 = vmatpush1.msra.mxu0 %v1634
        %1636 = vmatprep.subr.mxu0 0.0
        %v1637 = vand.u32 %v1145, 4294901760
        %v1638 = vsub.f32 %v1145, %v1637
        %v1639 = vand.u32 %v1638, 4294901760
        %1640 = vmatpush1.msra.mxu0 %v1639
        %1641 = vmatprep.subr.mxu0 0.0
        %v1642 = vand.u32 %v1146, 4294901760
        %v1643 = vsub.f32 %v1146, %v1642
        %v1644 = vand.u32 %v1643, 4294901760
        %1645 = vmatpush1.msra.mxu0 %v1644
        %1646 = vmatprep.subr.mxu0 0.0
        %v1647 = vand.u32 %v1147, 4294901760
        %v1648 = vsub.f32 %v1147, %v1647
        %v1649 = vand.u32 %v1648, 4294901760
        %1650 = vmatpush1.msra.mxu0 %v1649
        %1651 = vmatprep.subr.mxu0 0.0
        %v1652 = vand.u32 %v1148, 4294901760
        %v1653 = vsub.f32 %v1148, %v1652
        %v1654 = vand.u32 %v1653, 4294901760
        %1655 = vmatpush1.msra.mxu0 %v1654
        %1656 = vmatprep.subr.mxu0 0.0
        %v1657 = vand.u32 %v1149, 4294901760
        %v1658 = vsub.f32 %v1149, %v1657
        %v1659 = vand.u32 %v1658, 4294901760
        %1660 = vmatpush1.msra.mxu0 %v1659
        %1661 = vmatprep.subr.mxu0 0.0
        %v1662 = vand.u32 %v1150, 4294901760
        %v1663 = vsub.f32 %v1150, %v1662
        %v1664 = vand.u32 %v1663, 4294901760
        %1665 = vmatpush1.msra.mxu0 %v1664
        %1666 = vmatprep.subr.mxu0 0.0
        %1667 = vmatpush1.msra.mxu0 0.0
        %1668 = vmatprep.subr.mxu0 0.0
        %1669 = vmatpush1.msra.mxu0 0.0
        %1670 = vmatprep.subr.mxu0 0.0
        %1671 = vmatpush1.msra.mxu0 0.0
        %1672 = vmatprep.subr.mxu0 0.0
        %1673 = vmatpush1.msra.mxu0 0.0
        %1674 = vmatprep.subr.mxu0 0.0
        %1675 = vmatpush1.msra.mxu0 0.0
        %1676 = vmatprep.subr.mxu0 0.0
        %1677 = vmatpush1.msra.mxu0 0.0
        %1678 = vmatprep.subr.mxu0 0.0
        %1679 = vmatpush1.msra.mxu0 0.0
        %1680 = vmatprep.subr.mxu0 0.0
        %1681 = vmatpush1.msra.mxu0 0.0
        %1682 = vmatprep.subr.mxu0 0.0
        %1683 = vmatpush1.msra.mxu0 0.0
        %1684 = vmatprep.subr.mxu0 0.0
        %1685 = vmatpush1.msra.mxu0 0.0
        %1686 = vmatprep.subr.mxu0 0.0
        %1687 = vmatpush1.msra.mxu0 0.0
        %1688 = vmatprep.subr.mxu0 0.0
        %1689 = vmatpush1.msra.mxu0 0.0
        %1690 = vmatprep.subr.mxu0 0.0
        %1691 = vmatpush1.msra.mxu0 0.0
        %1692 = vmatprep.subr.mxu0 0.0
        %1693 = vmatpush1.msra.mxu0 0.0
        %1694 = vmatprep.subr.mxu0 0.0
        %1695 = vmatpush1.msra.mxu0 0.0
        %1696 = vmatprep.subr.mxu0 0.0
        %1697 = vmatpush1.msra.mxu0 0.0
        %1698 = vmatprep.mubr.f32.mxu0 0.0
        %v1699 = vand.u32 %v476, 4294901760
        %1700 = vmatmul.mubr.f32.gmra.mrb[0].mxu0 %v1699
        %v1701 = vpop.f32.mrb[0].mxu0
        %v1702 = vadd.f32 %v1583, %v1701
        %v1703 = vpop.f32.mrb[0].mxu0
        %1704 = vdwg.mxu0
        %1705 = vmatprep.subr.mxu0 0.0
        %v1706 = vand.u32 %v1135, 4294901760
        %1707 = vmatpush1.msra.mxu0 %v1706
        %1708 = vmatprep.subr.mxu0 0.0
        %v1709 = vand.u32 %v1136, 4294901760
        %1710 = vmatpush1.msra.mxu0 %v1709
        %1711 = vmatprep.subr.mxu0 0.0
        %v1712 = vand.u32 %v1137, 4294901760
        %1713 = vmatpush1.msra.mxu0 %v1712
        %1714 = vmatprep.subr.mxu0 0.0
        %v1715 = vand.u32 %v1138, 4294901760
        %1716 = vmatpush1.msra.mxu0 %v1715
        %1717 = vmatprep.subr.mxu0 0.0
        %v1718 = vand.u32 %v1139, 4294901760
        %1719 = vmatpush1.msra.mxu0 %v1718
        %1720 = vmatprep.subr.mxu0 0.0
        %v1721 = vand.u32 %v1140, 4294901760
        %1722 = vmatpush1.msra.mxu0 %v1721
        %1723 = vmatprep.subr.mxu0 0.0
        %v1724 = vand.u32 %v1141, 4294901760
        %1725 = vmatpush1.msra.mxu0 %v1724
        %1726 = vmatprep.subr.mxu0 0.0
        %v1727 = vand.u32 %v1142, 4294901760
        %1728 = vmatpush1.msra.mxu0 %v1727
        %1729 = vmatprep.subr.mxu0 0.0
        %v1730 = vand.u32 %v1143, 4294901760
        %1731 = vmatpush1.msra.mxu0 %v1730
        %1732 = vmatprep.subr.mxu0 0.0
        %v1733 = vand.u32 %v1144, 4294901760
        %1734 = vmatpush1.msra.mxu0 %v1733
        %1735 = vmatprep.subr.mxu0 0.0
        %v1736 = vand.u32 %v1145, 4294901760
        %1737 = vmatpush1.msra.mxu0 %v1736
        %1738 = vmatprep.subr.mxu0 0.0
        %v1739 = vand.u32 %v1146, 4294901760
        %1740 = vmatpush1.msra.mxu0 %v1739
        %1741 = vmatprep.subr.mxu0 0.0
        %v1742 = vand.u32 %v1147, 4294901760
        %1743 = vmatpush1.msra.mxu0 %v1742
        %1744 = vmatprep.subr.mxu0 0.0
        %v1745 = vand.u32 %v1148, 4294901760
        %1746 = vmatpush1.msra.mxu0 %v1745
        %1747 = vmatprep.subr.mxu0 0.0
        %v1748 = vand.u32 %v1149, 4294901760
        %1749 = vmatpush1.msra.mxu0 %v1748
        %1750 = vmatprep.subr.mxu0 0.0
        %v1751 = vand.u32 %v1150, 4294901760
        %1752 = vmatpush1.msra.mxu0 %v1751
        %1753 = vmatprep.subr.mxu0 0.0
        %1754 = vmatpush1.msra.mxu0 0.0
        %1755 = vmatprep.subr.mxu0 0.0
        %1756 = vmatpush1.msra.mxu0 0.0
        %1757 = vmatprep.subr.mxu0 0.0
        %1758 = vmatpush1.msra.mxu0 0.0
        %1759 = vmatprep.subr.mxu0 0.0
        %1760 = vmatpush1.msra.mxu0 0.0
        %1761 = vmatprep.subr.mxu0 0.0
        %1762 = vmatpush1.msra.mxu0 0.0
        %1763 = vmatprep.subr.mxu0 0.0
        %1764 = vmatpush1.msra.mxu0 0.0
        %1765 = vmatprep.subr.mxu0 0.0
        %1766 = vmatpush1.msra.mxu0 0.0
        %1767 = vmatprep.subr.mxu0 0.0
        %1768 = vmatpush1.msra.mxu0 0.0
        %1769 = vmatprep.subr.mxu0 0.0
        %1770 = vmatpush1.msra.mxu0 0.0
        %1771 = vmatprep.subr.mxu0 0.0
        %1772 = vmatpush1.msra.mxu0 0.0
        %1773 = vmatprep.subr.mxu0 0.0
        %1774 = vmatpush1.msra.mxu0 0.0
        %1775 = vmatprep.subr.mxu0 0.0
        %1776 = vmatpush1.msra.mxu0 0.0
        %1777 = vmatprep.subr.mxu0 0.0
        %1778 = vmatpush1.msra.mxu0 0.0
        %1779 = vmatprep.subr.mxu0 0.0
        %1780 = vmatpush1.msra.mxu0 0.0
        %1781 = vmatprep.subr.mxu0 0.0
        %1782 = vmatpush1.msra.mxu0 0.0
        %1783 = vmatprep.subr.mxu0 0.0
        %1784 = vmatpush1.msra.mxu0 0.0
        %1785 = vmatprep.mubr.f32.mxu0 0.0
        %v1786 = vand.u32 %v476, 4294901760
        %1787 = vmatmul.mubr.f32.gmra.mrb[0].mxu0 %v1786
        %v1788 = vpop.f32.mrb[0].mxu0
        %v1789 = vadd.f32 %v1702, %v1788
        %v1790 = vpop.f32.mrb[0].mxu0
        %1791 = vdwg.mxu0
        %v1792 = vmax.f32 %v1789, 0.0
        %v1793 = vld [vmem:[#allocation8] sm:$0xff]
        %v1794 = vld [vmem:[#allocation8 + $0x8] sm:$0xff]
        %v1795 = vld [vmem:[#allocation8 + $0x10] sm:$0xff]
        %v1796 = vld [vmem:[#allocation8 + $0x18] sm:$0xff]
        %v1797 = vld [vmem:[#allocation8 + $0x20] sm:$0xff]
        %v1798 = vld [vmem:[#allocation8 + $0x28] sm:$0xff]
        %v1799 = vld [vmem:[#allocation8 + $0x30] sm:$0xff]
        %v1800 = vld [vmem:[#allocation8 + $0x38] sm:$0xff]
        %v1801 = vld [vmem:[#allocation8 + $0x40] sm:$0xff]
        %v1802 = vld [vmem:[#allocation8 + $0x48] sm:$0xff]
        %v1803 = vld [vmem:[#allocation8 + $0x50] sm:$0xff]
        %v1804 = vld [vmem:[#allocation8 + $0x58] sm:$0xff]
        %v1805 = vld [vmem:[#allocation8 + $0x60] sm:$0xff]
        %v1806 = vld [vmem:[#allocation8 + $0x68] sm:$0xff]
        %v1807 = vld [vmem:[#allocation8 + $0x70] sm:$0xff]
        %v1808 = vld [vmem:[#allocation8 + $0x78] sm:$0xff]
        %1809 = vmatprep.subr.mxu0 0.0
        %v1810 = vand.u32 %v1793, 4294901760
        %1811 = vmatpush1.msra.mxu0 %v1810
        %1812 = vmatprep.subr.mxu0 0.0
        %v1813 = vand.u32 %v1794, 4294901760
        %1814 = vmatpush1.msra.mxu0 %v1813
        %1815 = vmatprep.subr.mxu0 0.0
        %v1816 = vand.u32 %v1795, 4294901760
        %1817 = vmatpush1.msra.mxu0 %v1816
        %1818 = vmatprep.subr.mxu0 0.0
        %v1819 = vand.u32 %v1796, 4294901760
        %1820 = vmatpush1.msra.mxu0 %v1819
        %1821 = vmatprep.subr.mxu0 0.0
        %v1822 = vand.u32 %v1797, 4294901760
        %1823 = vmatpush1.msra.mxu0 %v1822
        %1824 = vmatprep.subr.mxu0 0.0
        %v1825 = vand.u32 %v1798, 4294901760
        %1826 = vmatpush1.msra.mxu0 %v1825
        %1827 = vmatprep.subr.mxu0 0.0
        %v1828 = vand.u32 %v1799, 4294901760
        %1829 = vmatpush1.msra.mxu0 %v1828
        %1830 = vmatprep.subr.mxu0 0.0
        %v1831 = vand.u32 %v1800, 4294901760
        %1832 = vmatpush1.msra.mxu0 %v1831
        %1833 = vmatprep.subr.mxu0 0.0
        %v1834 = vand.u32 %v1801, 4294901760
        %1835 = vmatpush1.msra.mxu0 %v1834
        %1836 = vmatprep.subr.mxu0 0.0
        %v1837 = vand.u32 %v1802, 4294901760
        %1838 = vmatpush1.msra.mxu0 %v1837
        %1839 = vmatprep.subr.mxu0 0.0
        %v1840 = vand.u32 %v1803, 4294901760
        %1841 = vmatpush1.msra.mxu0 %v1840
        %1842 = vmatprep.subr.mxu0 0.0
        %v1843 = vand.u32 %v1804, 4294901760
        %1844 = vmatpush1.msra.mxu0 %v1843
        %1845 = vmatprep.subr.mxu0 0.0
        %v1846 = vand.u32 %v1805, 4294901760
        %1847 = vmatpush1.msra.mxu0 %v1846
        %1848 = vmatprep.subr.mxu0 0.0
        %v1849 = vand.u32 %v1806, 4294901760
        %1850 = vmatpush1.msra.mxu0 %v1849
        %1851 = vmatprep.subr.mxu0 0.0
        %v1852 = vand.u32 %v1807, 4294901760
        %1853 = vmatpush1.msra.mxu0 %v1852
        %1854 = vmatprep.subr.mxu0 0.0
        %v1855 = vand.u32 %v1808, 4294901760
        %1856 = vmatpush1.msra.mxu0 %v1855
        %1857 = vmatprep.subr.mxu0 0.0
        %1858 = vmatpush1.msra.mxu0 0.0
        %1859 = vmatprep.subr.mxu0 0.0
        %1860 = vmatpush1.msra.mxu0 0.0
        %1861 = vmatprep.subr.mxu0 0.0
        %1862 = vmatpush1.msra.mxu0 0.0
        %1863 = vmatprep.subr.mxu0 0.0
        %1864 = vmatpush1.msra.mxu0 0.0
        %1865 = vmatprep.subr.mxu0 0.0
        %1866 = vmatpush1.msra.mxu0 0.0
        %1867 = vmatprep.subr.mxu0 0.0
        %1868 = vmatpush1.msra.mxu0 0.0
        %1869 = vmatprep.subr.mxu0 0.0
        %1870 = vmatpush1.msra.mxu0 0.0
        %1871 = vmatprep.subr.mxu0 0.0
        %1872 = vmatpush1.msra.mxu0 0.0
        %1873 = vmatprep.subr.mxu0 0.0
        %1874 = vmatpush1.msra.mxu0 0.0
        %1875 = vmatprep.subr.mxu0 0.0
        %1876 = vmatpush1.msra.mxu0 0.0
        %1877 = vmatprep.subr.mxu0 0.0
        %1878 = vmatpush1.msra.mxu0 0.0
        %1879 = vmatprep.subr.mxu0 0.0
        %1880 = vmatpush1.msra.mxu0 0.0
        %1881 = vmatprep.subr.mxu0 0.0
        %1882 = vmatpush1.msra.mxu0 0.0
        %1883 = vmatprep.subr.mxu0 0.0
        %1884 = vmatpush1.msra.mxu0 0.0
        %1885 = vmatprep.subr.mxu0 0.0
        %1886 = vmatpush1.msra.mxu0 0.0
        %1887 = vmatprep.subr.mxu0 0.0
        %1888 = vmatpush1.msra.mxu0 0.0
        %1889 = vmatprep.mubr.f32.mxu0 0.0
        %v1890 = vand.u32 %v476, 4294901760
        %v1891 = vsub.f32 %v476, %v1890
        %v1892 = vand.u32 %v1891, 4294901760
        %v1893 = vsub.f32 %v1891, %v1892
        %v1894 = vand.u32 %v1893, 4294901760
        %1895 = vmatmul.mubr.f32.gmra.mrb[0].mxu0 %v1894
        %v1896 = vpop.f32.mrb[0].mxu0
        %v1897 = vadd.f32 0.0, %v1896
        %v1898 = vpop.f32.mrb[0].mxu0
        %1899 = vdwg.mxu0
        %1900 = vmatprep.subr.mxu0 0.0
        %v1901 = vand.u32 %v1793, 4294901760
        %v1902 = vsub.f32 %v1793, %v1901
        %v1903 = vand.u32 %v1902, 4294901760
        %v1904 = vsub.f32 %v1902, %v1903
        %v1905 = vand.u32 %v1904, 4294901760
        %1906 = vmatpush1.msra.mxu0 %v1905
        %1907 = vmatprep.subr.mxu0 0.0
        %v1908 = vand.u32 %v1794, 4294901760
        %v1909 = vsub.f32 %v1794, %v1908
        %v1910 = vand.u32 %v1909, 4294901760
        %v1911 = vsub.f32 %v1909, %v1910
        %v1912 = vand.u32 %v1911, 4294901760
        %1913 = vmatpush1.msra.mxu0 %v1912
        %1914 = vmatprep.subr.mxu0 0.0
        %v1915 = vand.u32 %v1795, 4294901760
        %v1916 = vsub.f32 %v1795, %v1915
        %v1917 = vand.u32 %v1916, 4294901760
        %v1918 = vsub.f32 %v1916, %v1917
        %v1919 = vand.u32 %v1918, 4294901760
        %1920 = vmatpush1.msra.mxu0 %v1919
        %1921 = vmatprep.subr.mxu0 0.0
        %v1922 = vand.u32 %v1796, 4294901760
        %v1923 = vsub.f32 %v1796, %v1922
        %v1924 = vand.u32 %v1923, 4294901760
        %v1925 = vsub.f32 %v1923, %v1924
        %v1926 = vand.u32 %v1925, 4294901760
        %1927 = vmatpush1.msra.mxu0 %v1926
        %1928 = vmatprep.subr.mxu0 0.0
        %v1929 = vand.u32 %v1797, 4294901760
        %v1930 = vsub.f32 %v1797, %v1929
        %v1931 = vand.u32 %v1930, 4294901760
        %v1932 = vsub.f32 %v1930, %v1931
        %v1933 = vand.u32 %v1932, 4294901760
        %1934 = vmatpush1.msra.mxu0 %v1933
        %1935 = vmatprep.subr.mxu0 0.0
        %v1936 = vand.u32 %v1798, 4294901760
        %v1937 = vsub.f32 %v1798, %v1936
        %v1938 = vand.u32 %v1937, 4294901760
        %v1939 = vsub.f32 %v1937, %v1938
        %v1940 = vand.u32 %v1939, 4294901760
        %1941 = vmatpush1.msra.mxu0 %v1940
        %1942 = vmatprep.subr.mxu0 0.0
        %v1943 = vand.u32 %v1799, 4294901760
        %v1944 = vsub.f32 %v1799, %v1943
        %v1945 = vand.u32 %v1944, 4294901760
        %v1946 = vsub.f32 %v1944, %v1945
        %v1947 = vand.u32 %v1946, 4294901760
        %1948 = vmatpush1.msra.mxu0 %v1947
        %1949 = vmatprep.subr.mxu0 0.0
        %v1950 = vand.u32 %v1800, 4294901760
        %v1951 = vsub.f32 %v1800, %v1950
        %v1952 = vand.u32 %v1951, 4294901760
        %v1953 = vsub.f32 %v1951, %v1952
        %v1954 = vand.u32 %v1953, 4294901760
        %1955 = vmatpush1.msra.mxu0 %v1954
        %1956 = vmatprep.subr.mxu0 0.0
        %v1957 = vand.u32 %v1801, 4294901760
        %v1958 = vsub.f32 %v1801, %v1957
        %v1959 = vand.u32 %v1958, 4294901760
        %v1960 = vsub.f32 %v1958, %v1959
        %v1961 = vand.u32 %v1960, 4294901760
        %1962 = vmatpush1.msra.mxu0 %v1961
        %1963 = vmatprep.subr.mxu0 0.0
        %v1964 = vand.u32 %v1802, 4294901760
        %v1965 = vsub.f32 %v1802, %v1964
        %v1966 = vand.u32 %v1965, 4294901760
        %v1967 = vsub.f32 %v1965, %v1966
        %v1968 = vand.u32 %v1967, 4294901760
        %1969 = vmatpush1.msra.mxu0 %v1968
        %1970 = vmatprep.subr.mxu0 0.0
        %v1971 = vand.u32 %v1803, 4294901760
        %v1972 = vsub.f32 %v1803, %v1971
        %v1973 = vand.u32 %v1972, 4294901760
        %v1974 = vsub.f32 %v1972, %v1973
        %v1975 = vand.u32 %v1974, 4294901760
        %1976 = vmatpush1.msra.mxu0 %v1975
        %1977 = vmatprep.subr.mxu0 0.0
        %v1978 = vand.u32 %v1804, 4294901760
        %v1979 = vsub.f32 %v1804, %v1978
        %v1980 = vand.u32 %v1979, 4294901760
        %v1981 = vsub.f32 %v1979, %v1980
        %v1982 = vand.u32 %v1981, 4294901760
        %1983 = vmatpush1.msra.mxu0 %v1982
        %1984 = vmatprep.subr.mxu0 0.0
        %v1985 = vand.u32 %v1805, 4294901760
        %v1986 = vsub.f32 %v1805, %v1985
        %v1987 = vand.u32 %v1986, 4294901760
        %v1988 = vsub.f32 %v1986, %v1987
        %v1989 = vand.u32 %v1988, 4294901760
        %1990 = vmatpush1.msra.mxu0 %v1989
        %1991 = vmatprep.subr.mxu0 0.0
        %v1992 = vand.u32 %v1806, 4294901760
        %v1993 = vsub.f32 %v1806, %v1992
        %v1994 = vand.u32 %v1993, 4294901760
        %v1995 = vsub.f32 %v1993, %v1994
        %v1996 = vand.u32 %v1995, 4294901760
        %1997 = vmatpush1.msra.mxu0 %v1996
        %1998 = vmatprep.subr.mxu0 0.0
        %v1999 = vand.u32 %v1807, 4294901760
        %v2000 = vsub.f32 %v1807, %v1999
        %v2001 = vand.u32 %v2000, 4294901760
        %v2002 = vsub.f32 %v2000, %v2001
        %v2003 = vand.u32 %v2002, 4294901760
        %2004 = vmatpush1.msra.mxu0 %v2003
        %2005 = vmatprep.subr.mxu0 0.0
        %v2006 = vand.u32 %v1808, 4294901760
        %v2007 = vsub.f32 %v1808, %v2006
        %v2008 = vand.u32 %v2007, 4294901760
        %v2009 = vsub.f32 %v2007, %v2008
        %v2010 = vand.u32 %v2009, 4294901760
        %2011 = vmatpush1.msra.mxu0 %v2010
        %2012 = vmatprep.subr.mxu0 0.0
        %2013 = vmatpush1.msra.mxu0 0.0
        %2014 = vmatprep.subr.mxu0 0.0
        %2015 = vmatpush1.msra.mxu0 0.0
        %2016 = vmatprep.subr.mxu0 0.0
        %2017 = vmatpush1.msra.mxu0 0.0
        %2018 = vmatprep.subr.mxu0 0.0
        %2019 = vmatpush1.msra.mxu0 0.0
        %2020 = vmatprep.subr.mxu0 0.0
        %2021 = vmatpush1.msra.mxu0 0.0
        %2022 = vmatprep.subr.mxu0 0.0
        %2023 = vmatpush1.msra.mxu0 0.0
        %2024 = vmatprep.subr.mxu0 0.0
        %2025 = vmatpush1.msra.mxu0 0.0
        %2026 = vmatprep.subr.mxu0 0.0
        %2027 = vmatpush1.msra.mxu0 0.0
        %2028 = vmatprep.subr.mxu0 0.0
        %2029 = vmatpush1.msra.mxu0 0.0
        %2030 = vmatprep.subr.mxu0 0.0
        %2031 = vmatpush1.msra.mxu0 0.0
        %2032 = vmatprep.subr.mxu0 0.0
        %2033 = vmatpush1.msra.mxu0 0.0
        %2034 = vmatprep.subr.mxu0 0.0
        %2035 = vmatpush1.msra.mxu0 0.0
        %2036 = vmatprep.subr.mxu0 0.0
        %2037 = vmatpush1.msra.mxu0 0.0
        %2038 = vmatprep.subr.mxu0 0.0
        %2039 = vmatpush1.msra.mxu0 0.0
        %2040 = vmatprep.subr.mxu0 0.0
        %2041 = vmatpush1.msra.mxu0 0.0
        %2042 = vmatprep.subr.mxu0 0.0
        %2043 = vmatpush1.msra.mxu0 0.0
        %2044 = vmatprep.mubr.f32.mxu0 0.0
        %v2045 = vand.u32 %v476, 4294901760
        %2046 = vmatmul.mubr.f32.gmra.mrb[0].mxu0 %v2045
        %v2047 = vpop.f32.mrb[0].mxu0
        %v2048 = vadd.f32 %v1897, %v2047
        %v2049 = vpop.f32.mrb[0].mxu0
        %2050 = vdwg.mxu0
        %2051 = vmatprep.subr.mxu0 0.0
        %v2052 = vand.u32 %v1793, 4294901760
        %v2053 = vsub.f32 %v1793, %v2052
        %2054 = vmatpush1.msra.mxu0 %v2053
        %2055 = vmatprep.subr.mxu0 0.0
        %v2056 = vand.u32 %v1794, 4294901760
        %v2057 = vsub.f32 %v1794, %v2056
        %2058 = vmatpush1.msra.mxu0 %v2057
        %2059 = vmatprep.subr.mxu0 0.0
        %v2060 = vand.u32 %v1795, 4294901760
        %v2061 = vsub.f32 %v1795, %v2060
        %2062 = vmatpush1.msra.mxu0 %v2061
        %2063 = vmatprep.subr.mxu0 0.0
        %v2064 = vand.u32 %v1796, 4294901760
        %v2065 = vsub.f32 %v1796, %v2064
        %2066 = vmatpush1.msra.mxu0 %v2065
        %2067 = vmatprep.subr.mxu0 0.0
        %v2068 = vand.u32 %v1797, 4294901760
        %v2069 = vsub.f32 %v1797, %v2068
        %2070 = vmatpush1.msra.mxu0 %v2069
        %2071 = vmatprep.subr.mxu0 0.0
        %v2072 = vand.u32 %v1798, 4294901760
        %v2073 = vsub.f32 %v1798, %v2072
        %2074 = vmatpush1.msra.mxu0 %v2073
        %2075 = vmatprep.subr.mxu0 0.0
        %v2076 = vand.u32 %v1799, 4294901760
        %v2077 = vsub.f32 %v1799, %v2076
        %2078 = vmatpush1.msra.mxu0 %v2077
        %2079 = vmatprep.subr.mxu0 0.0
        %v2080 = vand.u32 %v1800, 4294901760
        %v2081 = vsub.f32 %v1800, %v2080
        %2082 = vmatpush1.msra.mxu0 %v2081
        %2083 = vmatprep.subr.mxu0 0.0
        %v2084 = vand.u32 %v1801, 4294901760
        %v2085 = vsub.f32 %v1801, %v2084
        %2086 = vmatpush1.msra.mxu0 %v2085
        %2087 = vmatprep.subr.mxu0 0.0
        %v2088 = vand.u32 %v1802, 4294901760
        %v2089 = vsub.f32 %v1802, %v2088
        %2090 = vmatpush1.msra.mxu0 %v2089
        %2091 = vmatprep.subr.mxu0 0.0
        %v2092 = vand.u32 %v1803, 4294901760
        %v2093 = vsub.f32 %v1803, %v2092
        %2094 = vmatpush1.msra.mxu0 %v2093
        %2095 = vmatprep.subr.mxu0 0.0
        %v2096 = vand.u32 %v1804, 4294901760
        %v2097 = vsub.f32 %v1804, %v2096
        %2098 = vmatpush1.msra.mxu0 %v2097
        %2099 = vmatprep.subr.mxu0 0.0
        %v2100 = vand.u32 %v1805, 4294901760
        %v2101 = vsub.f32 %v1805, %v2100
        %2102 = vmatpush1.msra.mxu0 %v2101
        %2103 = vmatprep.subr.mxu0 0.0
        %v2104 = vand.u32 %v1806, 4294901760
        %v2105 = vsub.f32 %v1806, %v2104
        %2106 = vmatpush1.msra.mxu0 %v2105
        %2107 = vmatprep.subr.mxu0 0.0
        %v2108 = vand.u32 %v1807, 4294901760
        %v2109 = vsub.f32 %v1807, %v2108
        %2110 = vmatpush1.msra.mxu0 %v2109
        %2111 = vmatprep.subr.mxu0 0.0
        %v2112 = vand.u32 %v1808, 4294901760
        %v2113 = vsub.f32 %v1808, %v2112
        %2114 = vmatpush1.msra.mxu0 %v2113
        %2115 = vmatprep.subr.mxu0 0.0
        %2116 = vmatpush1.msra.mxu0 0.0
        %2117 = vmatprep.subr.mxu0 0.0
        %2118 = vmatpush1.msra.mxu0 0.0
        %2119 = vmatprep.subr.mxu0 0.0
        %2120 = vmatpush1.msra.mxu0 0.0
        %2121 = vmatprep.subr.mxu0 0.0
        %2122 = vmatpush1.msra.mxu0 0.0
        %2123 = vmatprep.subr.mxu0 0.0
        %2124 = vmatpush1.msra.mxu0 0.0
        %2125 = vmatprep.subr.mxu0 0.0
        %2126 = vmatpush1.msra.mxu0 0.0
        %2127 = vmatprep.subr.mxu0 0.0
        %2128 = vmatpush1.msra.mxu0 0.0
        %2129 = vmatprep.subr.mxu0 0.0
        %2130 = vmatpush1.msra.mxu0 0.0
        %2131 = vmatprep.subr.mxu0 0.0
        %2132 = vmatpush1.msra.mxu0 0.0
        %2133 = vmatprep.subr.mxu0 0.0
        %2134 = vmatpush1.msra.mxu0 0.0
        %2135 = vmatprep.subr.mxu0 0.0
        %2136 = vmatpush1.msra.mxu0 0.0
        %2137 = vmatprep.subr.mxu0 0.0
        %2138 = vmatpush1.msra.mxu0 0.0
        %2139 = vmatprep.subr.mxu0 0.0
        %2140 = vmatpush1.msra.mxu0 0.0
        %2141 = vmatprep.subr.mxu0 0.0
        %2142 = vmatpush1.msra.mxu0 0.0
        %2143 = vmatprep.subr.mxu0 0.0
        %2144 = vmatpush1.msra.mxu0 0.0
        %2145 = vmatprep.subr.mxu0 0.0
        %2146 = vmatpush1.msra.mxu0 0.0
        %2147 = vmatprep.mubr.f32.mxu0 0.0
        %v2148 = vand.u32 %v476, 4294901760
        %v2149 = vsub.f32 %v476, %v2148
        %2150 = vmatmul.mubr.f32.gmra.mrb[0].mxu0 %v2149
        %v2151 = vpop.f32.mrb[0].mxu0
        %v2152 = vadd.f32 %v2048, %v2151
        %v2153 = vpop.f32.mrb[0].mxu0
        %2154 = vdwg.mxu0
        %2155 = vmatprep.subr.mxu0 0.0
        %v2156 = vand.u32 %v1793, 4294901760
        %2157 = vmatpush1.msra.mxu0 %v2156
        %2158 = vmatprep.subr.mxu0 0.0
        %v2159 = vand.u32 %v1794, 4294901760
        %2160 = vmatpush1.msra.mxu0 %v2159
        %2161 = vmatprep.subr.mxu0 0.0
        %v2162 = vand.u32 %v1795, 4294901760
        %2163 = vmatpush1.msra.mxu0 %v2162
        %2164 = vmatprep.subr.mxu0 0.0
        %v2165 = vand.u32 %v1796, 4294901760
        %2166 = vmatpush1.msra.mxu0 %v2165
        %2167 = vmatprep.subr.mxu0 0.0
        %v2168 = vand.u32 %v1797, 4294901760
        %2169 = vmatpush1.msra.mxu0 %v2168
        %2170 = vmatprep.subr.mxu0 0.0
        %v2171 = vand.u32 %v1798, 4294901760
        %2172 = vmatpush1.msra.mxu0 %v2171
        %2173 = vmatprep.subr.mxu0 0.0
        %v2174 = vand.u32 %v1799, 4294901760
        %2175 = vmatpush1.msra.mxu0 %v2174
        %2176 = vmatprep.subr.mxu0 0.0
        %v2177 = vand.u32 %v1800, 4294901760
        %2178 = vmatpush1.msra.mxu0 %v2177
        %2179 = vmatprep.subr.mxu0 0.0
        %v2180 = vand.u32 %v1801, 4294901760
        %2181 = vmatpush1.msra.mxu0 %v2180
        %2182 = vmatprep.subr.mxu0 0.0
        %v2183 = vand.u32 %v1802, 4294901760
        %2184 = vmatpush1.msra.mxu0 %v2183
        %2185 = vmatprep.subr.mxu0 0.0
        %v2186 = vand.u32 %v1803, 4294901760
        %2187 = vmatpush1.msra.mxu0 %v2186
        %2188 = vmatprep.subr.mxu0 0.0
        %v2189 = vand.u32 %v1804, 4294901760
        %2190 = vmatpush1.msra.mxu0 %v2189
        %2191 = vmatprep.subr.mxu0 0.0
        %v2192 = vand.u32 %v1805, 4294901760
        %2193 = vmatpush1.msra.mxu0 %v2192
        %2194 = vmatprep.subr.mxu0 0.0
        %v2195 = vand.u32 %v1806, 4294901760
        %2196 = vmatpush1.msra.mxu0 %v2195
        %2197 = vmatprep.subr.mxu0 0.0
        %v2198 = vand.u32 %v1807, 4294901760
        %2199 = vmatpush1.msra.mxu0 %v2198
        %2200 = vmatprep.subr.mxu0 0.0
        %v2201 = vand.u32 %v1808, 4294901760
        %2202 = vmatpush1.msra.mxu0 %v2201
        %2203 = vmatprep.subr.mxu0 0.0
        %2204 = vmatpush1.msra.mxu0 0.0
        %2205 = vmatprep.subr.mxu0 0.0
        %2206 = vmatpush1.msra.mxu0 0.0
        %2207 = vmatprep.subr.mxu0 0.0
        %2208 = vmatpush1.msra.mxu0 0.0
        %2209 = vmatprep.subr.mxu0 0.0
        %2210 = vmatpush1.msra.mxu0 0.0
        %2211 = vmatprep.subr.mxu0 0.0
        %2212 = vmatpush1.msra.mxu0 0.0
        %2213 = vmatprep.subr.mxu0 0.0
        %2214 = vmatpush1.msra.mxu0 0.0
        %2215 = vmatprep.subr.mxu0 0.0
        %2216 = vmatpush1.msra.mxu0 0.0
        %2217 = vmatprep.subr.mxu0 0.0
        %2218 = vmatpush1.msra.mxu0 0.0
        %2219 = vmatprep.subr.mxu0 0.0
        %2220 = vmatpush1.msra.mxu0 0.0
        %2221 = vmatprep.subr.mxu0 0.0
        %2222 = vmatpush1.msra.mxu0 0.0
        %2223 = vmatprep.subr.mxu0 0.0
        %2224 = vmatpush1.msra.mxu0 0.0
        %2225 = vmatprep.subr.mxu0 0.0
        %2226 = vmatpush1.msra.mxu0 0.0
        %2227 = vmatprep.subr.mxu0 0.0
        %2228 = vmatpush1.msra.mxu0 0.0
        %2229 = vmatprep.subr.mxu0 0.0
        %2230 = vmatpush1.msra.mxu0 0.0
        %2231 = vmatprep.subr.mxu0 0.0
        %2232 = vmatpush1.msra.mxu0 0.0
        %2233 = vmatprep.subr.mxu0 0.0
        %2234 = vmatpush1.msra.mxu0 0.0
        %2235 = vmatprep.mubr.f32.mxu0 0.0
        %v2236 = vand.u32 %v476, 4294901760
        %v2237 = vsub.f32 %v476, %v2236
        %v2238 = vand.u32 %v2237, 4294901760
        %2239 = vmatmul.mubr.f32.gmra.mrb[0].mxu0 %v2238
        %v2240 = vpop.f32.mrb[0].mxu0
        %v2241 = vadd.f32 %v2152, %v2240
        %v2242 = vpop.f32.mrb[0].mxu0
        %2243 = vdwg.mxu0
        %2244 = vmatprep.subr.mxu0 0.0
        %v2245 = vand.u32 %v1793, 4294901760
        %v2246 = vsub.f32 %v1793, %v2245
        %v2247 = vand.u32 %v2246, 4294901760
        %2248 = vmatpush1.msra.mxu0 %v2247
        %2249 = vmatprep.subr.mxu0 0.0
        %v2250 = vand.u32 %v1794, 4294901760
        %v2251 = vsub.f32 %v1794, %v2250
        %v2252 = vand.u32 %v2251, 4294901760
        %2253 = vmatpush1.msra.mxu0 %v2252
        %2254 = vmatprep.subr.mxu0 0.0
        %v2255 = vand.u32 %v1795, 4294901760
        %v2256 = vsub.f32 %v1795, %v2255
        %v2257 = vand.u32 %v2256, 4294901760
        %2258 = vmatpush1.msra.mxu0 %v2257
        %2259 = vmatprep.subr.mxu0 0.0
        %v2260 = vand.u32 %v1796, 4294901760
        %v2261 = vsub.f32 %v1796, %v2260
        %v2262 = vand.u32 %v2261, 4294901760
        %2263 = vmatpush1.msra.mxu0 %v2262
        %2264 = vmatprep.subr.mxu0 0.0
        %v2265 = vand.u32 %v1797, 4294901760
        %v2266 = vsub.f32 %v1797, %v2265
        %v2267 = vand.u32 %v2266, 4294901760
        %2268 = vmatpush1.msra.mxu0 %v2267
        %2269 = vmatprep.subr.mxu0 0.0
        %v2270 = vand.u32 %v1798, 4294901760
        %v2271 = vsub.f32 %v1798, %v2270
        %v2272 = vand.u32 %v2271, 4294901760
        %2273 = vmatpush1.msra.mxu0 %v2272
        %2274 = vmatprep.subr.mxu0 0.0
        %v2275 = vand.u32 %v1799, 4294901760
        %v2276 = vsub.f32 %v1799, %v2275
        %v2277 = vand.u32 %v2276, 4294901760
        %2278 = vmatpush1.msra.mxu0 %v2277
        %2279 = vmatprep.subr.mxu0 0.0
        %v2280 = vand.u32 %v1800, 4294901760
        %v2281 = vsub.f32 %v1800, %v2280
        %v2282 = vand.u32 %v2281, 4294901760
        %2283 = vmatpush1.msra.mxu0 %v2282
        %2284 = vmatprep.subr.mxu0 0.0
        %v2285 = vand.u32 %v1801, 4294901760
        %v2286 = vsub.f32 %v1801, %v2285
        %v2287 = vand.u32 %v2286, 4294901760
        %2288 = vmatpush1.msra.mxu0 %v2287
        %2289 = vmatprep.subr.mxu0 0.0
        %v2290 = vand.u32 %v1802, 4294901760
        %v2291 = vsub.f32 %v1802, %v2290
        %v2292 = vand.u32 %v2291, 4294901760
        %2293 = vmatpush1.msra.mxu0 %v2292
        %2294 = vmatprep.subr.mxu0 0.0
        %v2295 = vand.u32 %v1803, 4294901760
        %v2296 = vsub.f32 %v1803, %v2295
        %v2297 = vand.u32 %v2296, 4294901760
        %2298 = vmatpush1.msra.mxu0 %v2297
        %2299 = vmatprep.subr.mxu0 0.0
        %v2300 = vand.u32 %v1804, 4294901760
        %v2301 = vsub.f32 %v1804, %v2300
        %v2302 = vand.u32 %v2301, 4294901760
        %2303 = vmatpush1.msra.mxu0 %v2302
        %2304 = vmatprep.subr.mxu0 0.0
        %v2305 = vand.u32 %v1805, 4294901760
        %v2306 = vsub.f32 %v1805, %v2305
        %v2307 = vand.u32 %v2306, 4294901760
        %2308 = vmatpush1.msra.mxu0 %v2307
        %2309 = vmatprep.subr.mxu0 0.0
        %v2310 = vand.u32 %v1806, 4294901760
        %v2311 = vsub.f32 %v1806, %v2310
        %v2312 = vand.u32 %v2311, 4294901760
        %2313 = vmatpush1.msra.mxu0 %v2312
        %2314 = vmatprep.subr.mxu0 0.0
        %v2315 = vand.u32 %v1807, 4294901760
        %v2316 = vsub.f32 %v1807, %v2315
        %v2317 = vand.u32 %v2316, 4294901760
        %2318 = vmatpush1.msra.mxu0 %v2317
        %2319 = vmatprep.subr.mxu0 0.0
        %v2320 = vand.u32 %v1808, 4294901760
        %v2321 = vsub.f32 %v1808, %v2320
        %v2322 = vand.u32 %v2321, 4294901760
        %2323 = vmatpush1.msra.mxu0 %v2322
        %2324 = vmatprep.subr.mxu0 0.0
        %2325 = vmatpush1.msra.mxu0 0.0
        %2326 = vmatprep.subr.mxu0 0.0
        %2327 = vmatpush1.msra.mxu0 0.0
        %2328 = vmatprep.subr.mxu0 0.0
        %2329 = vmatpush1.msra.mxu0 0.0
        %2330 = vmatprep.subr.mxu0 0.0
        %2331 = vmatpush1.msra.mxu0 0.0
        %2332 = vmatprep.subr.mxu0 0.0
        %2333 = vmatpush1.msra.mxu0 0.0
        %2334 = vmatprep.subr.mxu0 0.0
        %2335 = vmatpush1.msra.mxu0 0.0
        %2336 = vmatprep.subr.mxu0 0.0
        %2337 = vmatpush1.msra.mxu0 0.0
        %2338 = vmatprep.subr.mxu0 0.0
        %2339 = vmatpush1.msra.mxu0 0.0
        %2340 = vmatprep.subr.mxu0 0.0
        %2341 = vmatpush1.msra.mxu0 0.0
        %2342 = vmatprep.subr.mxu0 0.0
        %2343 = vmatpush1.msra.mxu0 0.0
        %2344 = vmatprep.subr.mxu0 0.0
        %2345 = vmatpush1.msra.mxu0 0.0
        %2346 = vmatprep.subr.mxu0 0.0
        %2347 = vmatpush1.msra.mxu0 0.0
        %2348 = vmatprep.subr.mxu0 0.0
        %2349 = vmatpush1.msra.mxu0 0.0
        %2350 = vmatprep.subr.mxu0 0.0
        %2351 = vmatpush1.msra.mxu0 0.0
        %2352 = vmatprep.subr.mxu0 0.0
        %2353 = vmatpush1.msra.mxu0 0.0
        %2354 = vmatprep.subr.mxu0 0.0
        %2355 = vmatpush1.msra.mxu0 0.0
        %2356 = vmatprep.mubr.f32.mxu0 0.0
        %v2357 = vand.u32 %v476, 4294901760
        %2358 = vmatmul.mubr.f32.gmra.mrb[0].mxu0 %v2357
        %v2359 = vpop.f32.mrb[0].mxu0
        %v2360 = vadd.f32 %v2241, %v2359
        %v2361 = vpop.f32.mrb[0].mxu0
        %2362 = vdwg.mxu0
        %2363 = vmatprep.subr.mxu0 0.0
        %v2364 = vand.u32 %v1793, 4294901760
        %2365 = vmatpush1.msra.mxu0 %v2364
        %2366 = vmatprep.subr.mxu0 0.0
        %v2367 = vand.u32 %v1794, 4294901760
        %2368 = vmatpush1.msra.mxu0 %v2367
        %2369 = vmatprep.subr.mxu0 0.0
        %v2370 = vand.u32 %v1795, 4294901760
        %2371 = vmatpush1.msra.mxu0 %v2370
        %2372 = vmatprep.subr.mxu0 0.0
        %v2373 = vand.u32 %v1796, 4294901760
        %2374 = vmatpush1.msra.mxu0 %v2373
        %2375 = vmatprep.subr.mxu0 0.0
        %v2376 = vand.u32 %v1797, 4294901760
        %2377 = vmatpush1.msra.mxu0 %v2376
        %2378 = vmatprep.subr.mxu0 0.0
        %v2379 = vand.u32 %v1798, 4294901760
        %2380 = vmatpush1.msra.mxu0 %v2379
        %2381 = vmatprep.subr.mxu0 0.0
        %v2382 = vand.u32 %v1799, 4294901760
        %2383 = vmatpush1.msra.mxu0 %v2382
        %2384 = vmatprep.subr.mxu0 0.0
        %v2385 = vand.u32 %v1800, 4294901760
        %2386 = vmatpush1.msra.mxu0 %v2385
        %2387 = vmatprep.subr.mxu0 0.0
        %v2388 = vand.u32 %v1801, 4294901760
        %2389 = vmatpush1.msra.mxu0 %v2388
        %2390 = vmatprep.subr.mxu0 0.0
        %v2391 = vand.u32 %v1802, 4294901760
        %2392 = vmatpush1.msra.mxu0 %v2391
        %2393 = vmatprep.subr.mxu0 0.0
        %v2394 = vand.u32 %v1803, 4294901760
        %2395 = vmatpush1.msra.mxu0 %v2394
        %2396 = vmatprep.subr.mxu0 0.0
        %v2397 = vand.u32 %v1804, 4294901760
        %2398 = vmatpush1.msra.mxu0 %v2397
        %2399 = vmatprep.subr.mxu0 0.0
        %v2400 = vand.u32 %v1805, 4294901760
        %2401 = vmatpush1.msra.mxu0 %v2400
        %2402 = vmatprep.subr.mxu0 0.0
        %v2403 = vand.u32 %v1806, 4294901760
        %2404 = vmatpush1.msra.mxu0 %v2403
        %2405 = vmatprep.subr.mxu0 0.0
        %v2406 = vand.u32 %v1807, 4294901760
        %2407 = vmatpush1.msra.mxu0 %v2406
        %2408 = vmatprep.subr.mxu0 0.0
        %v2409 = vand.u32 %v1808, 4294901760
        %2410 = vmatpush1.msra.mxu0 %v2409
        %2411 = vmatprep.subr.mxu0 0.0
        %2412 = vmatpush1.msra.mxu0 0.0
        %2413 = vmatprep.subr.mxu0 0.0
        %2414 = vmatpush1.msra.mxu0 0.0
        %2415 = vmatprep.subr.mxu0 0.0
        %2416 = vmatpush1.msra.mxu0 0.0
        %2417 = vmatprep.subr.mxu0 0.0
        %2418 = vmatpush1.msra.mxu0 0.0
        %2419 = vmatprep.subr.mxu0 0.0
        %2420 = vmatpush1.msra.mxu0 0.0
        %2421 = vmatprep.subr.mxu0 0.0
        %2422 = vmatpush1.msra.mxu0 0.0
        %2423 = vmatprep.subr.mxu0 0.0
        %2424 = vmatpush1.msra.mxu0 0.0
        %2425 = vmatprep.subr.mxu0 0.0
        %2426 = vmatpush1.msra.mxu0 0.0
        %2427 = vmatprep.subr.mxu0 0.0
        %2428 = vmatpush1.msra.mxu0 0.0
        %2429 = vmatprep.subr.mxu0 0.0
        %2430 = vmatpush1.msra.mxu0 0.0
        %2431 = vmatprep.subr.mxu0 0.0
        %2432 = vmatpush1.msra.mxu0 0.0
        %2433 = vmatprep.subr.mxu0 0.0
        %2434 = vmatpush1.msra.mxu0 0.0
        %2435 = vmatprep.subr.mxu0 0.0
        %2436 = vmatpush1.msra.mxu0 0.0
        %2437 = vmatprep.subr.mxu0 0.0
        %2438 = vmatpush1.msra.mxu0 0.0
        %2439 = vmatprep.subr.mxu0 0.0
        %2440 = vmatpush1.msra.mxu0 0.0
        %2441 = vmatprep.subr.mxu0 0.0
        %2442 = vmatpush1.msra.mxu0 0.0
        %2443 = vmatprep.mubr.f32.mxu0 0.0
        %v2444 = vand.u32 %v476, 4294901760
        %2445 = vmatmul.mubr.f32.gmra.mrb[0].mxu0 %v2444
        %v2446 = vpop.f32.mrb[0].mxu0
        %v2447 = vadd.f32 %v2360, %v2446
        %v2448 = vpop.f32.mrb[0].mxu0
        %2449 = vdwg.mxu0
        %v2450 = vmul.f32 %v1134, 0.17677669
        %v2451 = vlaneseq
        %v2452 = vshrl.u32 %v2451, 7
        %v2453 = vlaneseq
        %v2454 = vand.u32 %v2453, 127
        %vm2455 = vcmp.ge.s32.totalorder %v2452, %v2454
        %vm2456 = vcmask 261120
        %v2458 = vsel %vm2456, %v2450, 0
        %v2461 = vsel %vm2456, %v1792, 0
        %2463 = vmatprep.subr.mxu0 0.0
        %v2464 = vand.u32 %v2461, 4294901760
        %2465 = vmatpush1.xpose.msra.mxu0 %v2464
        %2466 = vmatprep.subr.mxu0 0.0
        %2467 = vmatpush1.xpose.msra.mxu0 0.0
        %2468 = vmatprep.subr.mxu0 0.0
        %2469 = vmatpush1.xpose.msra.mxu0 0.0
        %2470 = vmatprep.subr.mxu0 0.0
        %2471 = vmatpush1.xpose.msra.mxu0 0.0
        %2472 = vmatprep.subr.mxu0 0.0
        %2473 = vmatpush1.xpose.msra.mxu0 0.0
        %2474 = vmatprep.subr.mxu0 0.0
        %2475 = vmatpush1.xpose.msra.mxu0 0.0
        %2476 = vmatprep.subr.mxu0 0.0
        %2477 = vmatpush1.xpose.msra.mxu0 0.0
        %2478 = vmatprep.subr.mxu0 0.0
        %2479 = vmatpush1.xpose.msra.mxu0 0.0
        %2480 = vmatprep.subr.mxu0 0.0
        %2481 = vmatpush1.xpose.msra.mxu0 0.0
        %2482 = vmatprep.subr.mxu0 0.0
        %2483 = vmatpush1.xpose.msra.mxu0 0.0
        %2484 = vmatprep.subr.mxu0 0.0
        %2485 = vmatpush1.xpose.msra.mxu0 0.0
        %2486 = vmatprep.subr.mxu0 0.0
        %2487 = vmatpush1.xpose.msra.mxu0 0.0
        %2488 = vmatprep.subr.mxu0 0.0
        %2489 = vmatpush1.xpose.msra.mxu0 0.0
        %2490 = vmatprep.subr.mxu0 0.0
        %2491 = vmatpush1.xpose.msra.mxu0 0.0
        %2492 = vmatprep.subr.mxu0 0.0
        %2493 = vmatpush1.xpose.msra.mxu0 0.0
        %2494 = vmatprep.subr.mxu0 0.0
        %2495 = vmatpush1.xpose.msra.mxu0 0.0
        %2496 = vmatprep.subr.mxu0 0.0
        %2497 = vmatpush1.xpose.msra.mxu0 0.0
        %2498 = vmatprep.subr.mxu0 0.0
        %2499 = vmatpush1.xpose.msra.mxu0 0.0
        %2500 = vmatprep.subr.mxu0 0.0
        %2501 = vmatpush1.xpose.msra.mxu0 0.0
        %2502 = vmatprep.subr.mxu0 0.0
        %2503 = vmatpush1.xpose.msra.mxu0 0.0
        %2504 = vmatprep.subr.mxu0 0.0
        %2505 = vmatpush1.xpose.msra.mxu0 0.0
        %2506 = vmatprep.subr.mxu0 0.0
        %2507 = vmatpush1.xpose.msra.mxu0 0.0
        %2508 = vmatprep.subr.mxu0 0.0
        %2509 = vmatpush1.xpose.msra.mxu0 0.0
        %2510 = vmatprep.subr.mxu0 0.0
        %2511 = vmatpush1.xpose.msra.mxu0 0.0
        %2512 = vmatprep.subr.mxu0 0.0
        %2513 = vmatpush1.xpose.msra.mxu0 0.0
        %2514 = vmatprep.subr.mxu0 0.0
        %2515 = vmatpush1.xpose.msra.mxu0 0.0
        %2516 = vmatprep.subr.mxu0 0.0
        %2517 = vmatpush1.xpose.msra.mxu0 0.0
        %2518 = vmatprep.subr.mxu0 0.0
        %2519 = vmatpush1.xpose.msra.mxu0 0.0
        %2520 = vmatprep.subr.mxu0 0.0
        %2521 = vmatpush1.xpose.msra.mxu0 0.0
        %2522 = vmatprep.subr.mxu0 0.0
        %2523 = vmatpush1.xpose.msra.mxu0 0.0
        %2524 = vmatprep.subr.mxu0 0.0
        %2525 = vmatpush1.xpose.msra.mxu0 0.0
        %2526 = vmatprep.subr.mxu0 0.0
        %2527 = vmatpush1.xpose.msra.mxu0 0.0
        %2528 = vmatprep.mubr.f32.mxu0 0.0
        %v2529 = vand.u32 %v2458, 4294901760
        %v2530 = vsub.f32 %v2458, %v2529
        %v2531 = vand.u32 %v2530, 4294901760
        %v2532 = vsub.f32 %v2530, %v2531
        %v2533 = vand.u32 %v2532, 4294901760
        %2534 = vmatmul.mubr.f32.gmra.mrb[0].mxu0 %v2533
        %v2535 = vpop.f32.mrb[0].mxu0
        %v2536 = vadd.f32 0.0, %v2535
        %v2537 = vpop.f32.mrb[0].mxu0
        %2538 = vdwg.mxu0
        %2539 = vmatprep.subr.mxu0 0.0
        %v2540 = vand.u32 %v2461, 4294901760
        %v2541 = vsub.f32 %v2461, %v2540
        %v2542 = vand.u32 %v2541, 4294901760
        %v2543 = vsub.f32 %v2541, %v2542
        %v2544 = vand.u32 %v2543, 4294901760
        %2545 = vmatpush1.xpose.msra.mxu0 %v2544
        %2546 = vmatprep.subr.mxu0 0.0
        %2547 = vmatpush1.xpose.msra.mxu0 0.0
        %2548 = vmatprep.subr.mxu0 0.0
        %2549 = vmatpush1.xpose.msra.mxu0 0.0
        %2550 = vmatprep.subr.mxu0 0.0
        %2551 = vmatpush1.xpose.msra.mxu0 0.0
        %2552 = vmatprep.subr.mxu0 0.0
        %2553 = vmatpush1.xpose.msra.mxu0 0.0
        %2554 = vmatprep.subr.mxu0 0.0
        %2555 = vmatpush1.xpose.msra.mxu0 0.0
        %2556 = vmatprep.subr.mxu0 0.0
        %2557 = vmatpush1.xpose.msra.mxu0 0.0
        %2558 = vmatprep.subr.mxu0 0.0
        %2559 = vmatpush1.xpose.msra.mxu0 0.0
        %2560 = vmatprep.subr.mxu0 0.0
        %2561 = vmatpush1.xpose.msra.mxu0 0.0
        %2562 = vmatprep.subr.mxu0 0.0
        %2563 = vmatpush1.xpose.msra.mxu0 0.0
        %2564 = vmatprep.subr.mxu0 0.0
        %2565 = vmatpush1.xpose.msra.mxu0 0.0
        %2566 = vmatprep.subr.mxu0 0.0
        %2567 = vmatpush1.xpose.msra.mxu0 0.0
        %2568 = vmatprep.subr.mxu0 0.0
        %2569 = vmatpush1.xpose.msra.mxu0 0.0
        %2570 = vmatprep.subr.mxu0 0.0
        %2571 = vmatpush1.xpose.msra.mxu0 0.0
        %2572 = vmatprep.subr.mxu0 0.0
        %2573 = vmatpush1.xpose.msra.mxu0 0.0
        %2574 = vmatprep.subr.mxu0 0.0
        %2575 = vmatpush1.xpose.msra.mxu0 0.0
        %2576 = vmatprep.subr.mxu0 0.0
        %2577 = vmatpush1.xpose.msra.mxu0 0.0
        %2578 = vmatprep.subr.mxu0 0.0
        %2579 = vmatpush1.xpose.msra.mxu0 0.0
        %2580 = vmatprep.subr.mxu0 0.0
        %2581 = vmatpush1.xpose.msra.mxu0 0.0
        %2582 = vmatprep.subr.mxu0 0.0
        %2583 = vmatpush1.xpose.msra.mxu0 0.0
        %2584 = vmatprep.subr.mxu0 0.0
        %2585 = vmatpush1.xpose.msra.mxu0 0.0
        %2586 = vmatprep.subr.mxu0 0.0
        %2587 = vmatpush1.xpose.msra.mxu0 0.0
        %2588 = vmatprep.subr.mxu0 0.0
        %2589 = vmatpush1.xpose.msra.mxu0 0.0
        %2590 = vmatprep.subr.mxu0 0.0
        %2591 = vmatpush1.xpose.msra.mxu0 0.0
        %2592 = vmatprep.subr.mxu0 0.0
        %2593 = vmatpush1.xpose.msra.mxu0 0.0
        %2594 = vmatprep.subr.mxu0 0.0
        %2595 = vmatpush1.xpose.msra.mxu0 0.0
        %2596 = vmatprep.subr.mxu0 0.0
        %2597 = vmatpush1.xpose.msra.mxu0 0.0
        %2598 = vmatprep.subr.mxu0 0.0
        %2599 = vmatpush1.xpose.msra.mxu0 0.0
        %2600 = vmatprep.subr.mxu0 0.0
        %2601 = vmatpush1.xpose.msra.mxu0 0.0
        %2602 = vmatprep.subr.mxu0 0.0
        %2603 = vmatpush1.xpose.msra.mxu0 0.0
        %2604 = vmatprep.subr.mxu0 0.0
        %2605 = vmatpush1.xpose.msra.mxu0 0.0
        %2606 = vmatprep.subr.mxu0 0.0
        %2607 = vmatpush1.xpose.msra.mxu0 0.0
        %2608 = vmatprep.mubr.f32.mxu0 0.0
        %v2609 = vand.u32 %v2458, 4294901760
        %2610 = vmatmul.mubr.f32.gmra.mrb[0].mxu0 %v2609
        %v2611 = vpop.f32.mrb[0].mxu0
        %v2612 = vadd.f32 %v2536, %v2611
        %v2613 = vpop.f32.mrb[0].mxu0
        %2614 = vdwg.mxu0
        %2615 = vmatprep.subr.mxu0 0.0
        %v2616 = vand.u32 %v2461, 4294901760
        %v2617 = vsub.f32 %v2461, %v2616
        %2618 = vmatpush1.xpose.msra.mxu0 %v2617
        %2619 = vmatprep.subr.mxu0 0.0
        %2620 = vmatpush1.xpose.msra.mxu0 0.0
        %2621 = vmatprep.subr.mxu0 0.0
        %2622 = vmatpush1.xpose.msra.mxu0 0.0
        %2623 = vmatprep.subr.mxu0 0.0
        %2624 = vmatpush1.xpose.msra.mxu0 0.0
        %2625 = vmatprep.subr.mxu0 0.0
        %2626 = vmatpush1.xpose.msra.mxu0 0.0
        %2627 = vmatprep.subr.mxu0 0.0
        %2628 = vmatpush1.xpose.msra.mxu0 0.0
        %2629 = vmatprep.subr.mxu0 0.0
        %2630 = vmatpush1.xpose.msra.mxu0 0.0
        %2631 = vmatprep.subr.mxu0 0.0
        %2632 = vmatpush1.xpose.msra.mxu0 0.0
        %2633 = vmatprep.subr.mxu0 0.0
        %2634 = vmatpush1.xpose.msra.mxu0 0.0
        %2635 = vmatprep.subr.mxu0 0.0
        %2636 = vmatpush1.xpose.msra.mxu0 0.0
        %2637 = vmatprep.subr.mxu0 0.0
        %2638 = vmatpush1.xpose.msra.mxu0 0.0
        %2639 = vmatprep.subr.mxu0 0.0
        %2640 = vmatpush1.xpose.msra.mxu0 0.0
        %2641 = vmatprep.subr.mxu0 0.0
        %2642 = vmatpush1.xpose.msra.mxu0 0.0
        %2643 = vmatprep.subr.mxu0 0.0
        %2644 = vmatpush1.xpose.msra.mxu0 0.0
        %2645 = vmatprep.subr.mxu0 0.0
        %2646 = vmatpush1.xpose.msra.mxu0 0.0
        %2647 = vmatprep.subr.mxu0 0.0
        %2648 = vmatpush1.xpose.msra.mxu0 0.0
        %2649 = vmatprep.subr.mxu0 0.0
        %2650 = vmatpush1.xpose.msra.mxu0 0.0
        %2651 = vmatprep.subr.mxu0 0.0
        %2652 = vmatpush1.xpose.msra.mxu0 0.0
        %2653 = vmatprep.subr.mxu0 0.0
        %2654 = vmatpush1.xpose.msra.mxu0 0.0
        %2655 = vmatprep.subr.mxu0 0.0
        %2656 = vmatpush1.xpose.msra.mxu0 0.0
        %2657 = vmatprep.subr.mxu0 0.0
        %2658 = vmatpush1.xpose.msra.mxu0 0.0
        %2659 = vmatprep.subr.mxu0 0.0
        %2660 = vmatpush1.xpose.msra.mxu0 0.0
        %2661 = vmatprep.subr.mxu0 0.0
        %2662 = vmatpush1.xpose.msra.mxu0 0.0
        %2663 = vmatprep.subr.mxu0 0.0
        %2664 = vmatpush1.xpose.msra.mxu0 0.0
        %2665 = vmatprep.subr.mxu0 0.0
        %2666 = vmatpush1.xpose.msra.mxu0 0.0
        %2667 = vmatprep.subr.mxu0 0.0
        %2668 = vmatpush1.xpose.msra.mxu0 0.0
        %2669 = vmatprep.subr.mxu0 0.0
        %2670 = vmatpush1.xpose.msra.mxu0 0.0
        %2671 = vmatprep.subr.mxu0 0.0
        %2672 = vmatpush1.xpose.msra.mxu0 0.0
        %2673 = vmatprep.subr.mxu0 0.0
        %2674 = vmatpush1.xpose.msra.mxu0 0.0
        %2675 = vmatprep.subr.mxu0 0.0
        %2676 = vmatpush1.xpose.msra.mxu0 0.0
        %2677 = vmatprep.subr.mxu0 0.0
        %2678 = vmatpush1.xpose.msra.mxu0 0.0
        %2679 = vmatprep.subr.mxu0 0.0
        %2680 = vmatpush1.xpose.msra.mxu0 0.0
        %2681 = vmatprep.mubr.f32.mxu0 0.0
        %v2682 = vand.u32 %v2458, 4294901760
        %v2683 = vsub.f32 %v2458, %v2682
        %2684 = vmatmul.mubr.f32.gmra.mrb[0].mxu0 %v2683
        %v2685 = vpop.f32.mrb[0].mxu0
        %v2686 = vadd.f32 %v2612, %v2685
        %v2687 = vpop.f32.mrb[0].mxu0
        %2688 = vdwg.mxu0
        %2689 = vmatprep.subr.mxu0 0.0
        %v2690 = vand.u32 %v2461, 4294901760
        %2691 = vmatpush1.xpose.msra.mxu0 %v2690
        %2692 = vmatprep.subr.mxu0 0.0
        %2693 = vmatpush1.xpose.msra.mxu0 0.0
        %2694 = vmatprep.subr.mxu0 0.0
        %2695 = vmatpush1.xpose.msra.mxu0 0.0
        %2696 = vmatprep.subr.mxu0 0.0
        %2697 = vmatpush1.xpose.msra.mxu0 0.0
        %2698 = vmatprep.subr.mxu0 0.0
        %2699 = vmatpush1.xpose.msra.mxu0 0.0
        %2700 = vmatprep.subr.mxu0 0.0
        %2701 = vmatpush1.xpose.msra.mxu0 0.0
        %2702 = vmatprep.subr.mxu0 0.0
        %2703 = vmatpush1.xpose.msra.mxu0 0.0
        %2704 = vmatprep.subr.mxu0 0.0
        %2705 = vmatpush1.xpose.msra.mxu0 0.0
        %2706 = vmatprep.subr.mxu0 0.0
        %2707 = vmatpush1.xpose.msra.mxu0 0.0
        %2708 = vmatprep.subr.mxu0 0.0
        %2709 = vmatpush1.xpose.msra.mxu0 0.0
        %2710 = vmatprep.subr.mxu0 0.0
        %2711 = vmatpush1.xpose.msra.mxu0 0.0
        %2712 = vmatprep.subr.mxu0 0.0
        %2713 = vmatpush1.xpose.msra.mxu0 0.0
        %2714 = vmatprep.subr.mxu0 0.0
        %2715 = vmatpush1.xpose.msra.mxu0 0.0
        %2716 = vmatprep.subr.mxu0 0.0
        %2717 = vmatpush1.xpose.msra.mxu0 0.0
        %2718 = vmatprep.subr.mxu0 0.0
        %2719 = vmatpush1.xpose.msra.mxu0 0.0
        %2720 = vmatprep.subr.mxu0 0.0
        %2721 = vmatpush1.xpose.msra.mxu0 0.0
        %2722 = vmatprep.subr.mxu0 0.0
        %2723 = vmatpush1.xpose.msra.mxu0 0.0
        %2724 = vmatprep.subr.mxu0 0.0
        %2725 = vmatpush1.xpose.msra.mxu0 0.0
        %2726 = vmatprep.subr.mxu0 0.0
        %2727 = vmatpush1.xpose.msra.mxu0 0.0
        %2728 = vmatprep.subr.mxu0 0.0
        %2729 = vmatpush1.xpose.msra.mxu0 0.0
        %2730 = vmatprep.subr.mxu0 0.0
        %2731 = vmatpush1.xpose.msra.mxu0 0.0
        %2732 = vmatprep.subr.mxu0 0.0
        %2733 = vmatpush1.xpose.msra.mxu0 0.0
        %2734 = vmatprep.subr.mxu0 0.0
        %2735 = vmatpush1.xpose.msra.mxu0 0.0
        %2736 = vmatprep.subr.mxu0 0.0
        %2737 = vmatpush1.xpose.msra.mxu0 0.0
        %2738 = vmatprep.subr.mxu0 0.0
        %2739 = vmatpush1.xpose.msra.mxu0 0.0
        %2740 = vmatprep.subr.mxu0 0.0
        %2741 = vmatpush1.xpose.msra.mxu0 0.0
        %2742 = vmatprep.subr.mxu0 0.0
        %2743 = vmatpush1.xpose.msra.mxu0 0.0
        %2744 = vmatprep.subr.mxu0 0.0
        %2745 = vmatpush1.xpose.msra.mxu0 0.0
        %2746 = vmatprep.subr.mxu0 0.0
        %2747 = vmatpush1.xpose.msra.mxu0 0.0
        %2748 = vmatprep.subr.mxu0 0.0
        %2749 = vmatpush1.xpose.msra.mxu0 0.0
        %2750 = vmatprep.subr.mxu0 0.0
        %2751 = vmatpush1.xpose.msra.mxu0 0.0
        %2752 = vmatprep.subr.mxu0 0.0
        %2753 = vmatpush1.xpose.msra.mxu0 0.0
        %2754 = vmatprep.mubr.f32.mxu0 0.0
        %v2755 = vand.u32 %v2458, 4294901760
        %v2756 = vsub.f32 %v2458, %v2755
        %v2757 = vand.u32 %v2756, 4294901760
        %2758 = vmatmul.mubr.f32.gmra.mrb[0].mxu0 %v2757
        %v2759 = vpop.f32.mrb[0].mxu0
        %v2760 = vadd.f32 %v2686, %v2759
        %v2761 = vpop.f32.mrb[0].mxu0
        %2762 = vdwg.mxu0
        %2763 = vmatprep.subr.mxu0 0.0
        %v2764 = vand.u32 %v2461, 4294901760
        %v2765 = vsub.f32 %v2461, %v2764
        %v2766 = vand.u32 %v2765, 4294901760
        %2767 = vmatpush1.xpose.msra.mxu0 %v2766
        %2768 = vmatprep.subr.mxu0 0.0
        %2769 = vmatpush1.xpose.msra.mxu0 0.0
        %2770 = vmatprep.subr.mxu0 0.0
        %2771 = vmatpush1.xpose.msra.mxu0 0.0
        %2772 = vmatprep.subr.mxu0 0.0
        %2773 = vmatpush1.xpose.msra.mxu0 0.0
        %2774 = vmatprep.subr.mxu0 0.0
        %2775 = vmatpush1.xpose.msra.mxu0 0.0
        %2776 = vmatprep.subr.mxu0 0.0
        %2777 = vmatpush1.xpose.msra.mxu0 0.0
        %2778 = vmatprep.subr.mxu0 0.0
        %2779 = vmatpush1.xpose.msra.mxu0 0.0
        %2780 = vmatprep.subr.mxu0 0.0
        %2781 = vmatpush1.xpose.msra.mxu0 0.0
        %2782 = vmatprep.subr.mxu0 0.0
        %2783 = vmatpush1.xpose.msra.mxu0 0.0
        %2784 = vmatprep.subr.mxu0 0.0
        %2785 = vmatpush1.xpose.msra.mxu0 0.0
        %2786 = vmatprep.subr.mxu0 0.0
        %2787 = vmatpush1.xpose.msra.mxu0 0.0
        %2788 = vmatprep.subr.mxu0 0.0
        %2789 = vmatpush1.xpose.msra.mxu0 0.0
        %2790 = vmatprep.subr.mxu0 0.0
        %2791 = vmatpush1.xpose.msra.mxu0 0.0
        %2792 = vmatprep.subr.mxu0 0.0
        %2793 = vmatpush1.xpose.msra.mxu0 0.0
        %2794 = vmatprep.subr.mxu0 0.0
        %2795 = vmatpush1.xpose.msra.mxu0 0.0
        %2796 = vmatprep.subr.mxu0 0.0
        %2797 = vmatpush1.xpose.msra.mxu0 0.0
        %2798 = vmatprep.subr.mxu0 0.0
        %2799 = vmatpush1.xpose.msra.mxu0 0.0
        %2800 = vmatprep.subr.mxu0 0.0
        %2801 = vmatpush1.xpose.msra.mxu0 0.0
        %2802 = vmatprep.subr.mxu0 0.0
        %2803 = vmatpush1.xpose.msra.mxu0 0.0
        %2804 = vmatprep.subr.mxu0 0.0
        %2805 = vmatpush1.xpose.msra.mxu0 0.0
        %2806 = vmatprep.subr.mxu0 0.0
        %2807 = vmatpush1.xpose.msra.mxu0 0.0
        %2808 = vmatprep.subr.mxu0 0.0
        %2809 = vmatpush1.xpose.msra.mxu0 0.0
        %2810 = vmatprep.subr.mxu0 0.0
        %2811 = vmatpush1.xpose.msra.mxu0 0.0
        %2812 = vmatprep.subr.mxu0 0.0
        %2813 = vmatpush1.xpose.msra.mxu0 0.0
        %2814 = vmatprep.subr.mxu0 0.0
        %2815 = vmatpush1.xpose.msra.mxu0 0.0
        %2816 = vmatprep.subr.mxu0 0.0
        %2817 = vmatpush1.xpose.msra.mxu0 0.0
        %2818 = vmatprep.subr.mxu0 0.0
        %2819 = vmatpush1.xpose.msra.mxu0 0.0
        %2820 = vmatprep.subr.mxu0 0.0
        %2821 = vmatpush1.xpose.msra.mxu0 0.0
        %2822 = vmatprep.subr.mxu0 0.0
        %2823 = vmatpush1.xpose.msra.mxu0 0.0
        %2824 = vmatprep.subr.mxu0 0.0
        %2825 = vmatpush1.xpose.msra.mxu0 0.0
        %2826 = vmatprep.subr.mxu0 0.0
        %2827 = vmatpush1.xpose.msra.mxu0 0.0
        %2828 = vmatprep.subr.mxu0 0.0
        %2829 = vmatpush1.xpose.msra.mxu0 0.0
        %2830 = vmatprep.mubr.f32.mxu0 0.0
        %v2831 = vand.u32 %v2458, 4294901760
        %2832 = vmatmul.mubr.f32.gmra.mrb[0].mxu0 %v2831
        %v2833 = vpop.f32.mrb[0].mxu0
        %v2834 = vadd.f32 %v2760, %v2833
        %v2835 = vpop.f32.mrb[0].mxu0
        %2836 = vdwg.mxu0
        %2837 = vmatprep.subr.mxu0 0.0
        %v2838 = vand.u32 %v2461, 4294901760
        %2839 = vmatpush1.xpose.msra.mxu0 %v2838
        %2840 = vmatprep.subr.mxu0 0.0
        %2841 = vmatpush1.xpose.msra.mxu0 0.0
        %2842 = vmatprep.subr.mxu0 0.0
        %2843 = vmatpush1.xpose.msra.mxu0 0.0
        %2844 = vmatprep.subr.mxu0 0.0
        %2845 = vmatpush1.xpose.msra.mxu0 0.0
        %2846 = vmatprep.subr.mxu0 0.0
        %2847 = vmatpush1.xpose.msra.mxu0 0.0
        %2848 = vmatprep.subr.mxu0 0.0
        %2849 = vmatpush1.xpose.msra.mxu0 0.0
        %2850 = vmatprep.subr.mxu0 0.0
        %2851 = vmatpush1.xpose.msra.mxu0 0.0
        %2852 = vmatprep.subr.mxu0 0.0
        %2853 = vmatpush1.xpose.msra.mxu0 0.0
        %2854 = vmatprep.subr.mxu0 0.0
        %2855 = vmatpush1.xpose.msra.mxu0 0.0
        %2856 = vmatprep.subr.mxu0 0.0
        %2857 = vmatpush1.xpose.msra.mxu0 0.0
        %2858 = vmatprep.subr.mxu0 0.0
        %2859 = vmatpush1.xpose.msra.mxu0 0.0
        %2860 = vmatprep.subr.mxu0 0.0
        %2861 = vmatpush1.xpose.msra.mxu0 0.0
        %2862 = vmatprep.subr.mxu0 0.0
        %2863 = vmatpush1.xpose.msra.mxu0 0.0
        %2864 = vmatprep.subr.mxu0 0.0
        %2865 = vmatpush1.xpose.msra.mxu0 0.0
        %2866 = vmatprep.subr.mxu0 0.0
        %2867 = vmatpush1.xpose.msra.mxu0 0.0
        %2868 = vmatprep.subr.mxu0 0.0
        %2869 = vmatpush1.xpose.msra.mxu0 0.0
        %2870 = vmatprep.subr.mxu0 0.0
        %2871 = vmatpush1.xpose.msra.mxu0 0.0
        %2872 = vmatprep.subr.mxu0 0.0
        %2873 = vmatpush1.xpose.msra.mxu0 0.0
        %2874 = vmatprep.subr.mxu0 0.0
        %2875 = vmatpush1.xpose.msra.mxu0 0.0
        %2876 = vmatprep.subr.mxu0 0.0
        %2877 = vmatpush1.xpose.msra.mxu0 0.0
        %2878 = vmatprep.subr.mxu0 0.0
        %2879 = vmatpush1.xpose.msra.mxu0 0.0
        %2880 = vmatprep.subr.mxu0 0.0
        %2881 = vmatpush1.xpose.msra.mxu0 0.0
        %2882 = vmatprep.subr.mxu0 0.0
        %2883 = vmatpush1.xpose.msra.mxu0 0.0
        %2884 = vmatprep.subr.mxu0 0.0
        %2885 = vmatpush1.xpose.msra.mxu0 0.0
        %2886 = vmatprep.subr.mxu0 0.0
        %2887 = vmatpush1.xpose.msra.mxu0 0.0
        %2888 = vmatprep.subr.mxu0 0.0
        %2889 = vmatpush1.xpose.msra.mxu0 0.0
        %2890 = vmatprep.subr.mxu0 0.0
        %2891 = vmatpush1.xpose.msra.mxu0 0.0
        %2892 = vmatprep.subr.mxu0 0.0
        %2893 = vmatpush1.xpose.msra.mxu0 0.0
        %2894 = vmatprep.subr.mxu0 0.0
        %2895 = vmatpush1.xpose.msra.mxu0 0.0
        %2896 = vmatprep.subr.mxu0 0.0
        %2897 = vmatpush1.xpose.msra.mxu0 0.0
        %2898 = vmatprep.subr.mxu0 0.0
        %2899 = vmatpush1.xpose.msra.mxu0 0.0
        %2900 = vmatprep.subr.mxu0 0.0
        %2901 = vmatpush1.xpose.msra.mxu0 0.0
        %2902 = vmatprep.mubr.f32.mxu0 0.0
        %v2903 = vand.u32 %v2458, 4294901760
        %2904 = vmatmul.mubr.f32.gmra.mrb[0].mxu0 %v2903
        %v2905 = vpop.f32.mrb[0].mxu0
        %v2906 = vadd.f32 %v2834, %v2905
        %v2907 = vpop.f32.mrb[0].mxu0
        %2908 = vdwg.mxu0
        %v2909 = vsel %vm2455, %v2906, -inf
        %vm2910 = vcmask 64512
        %v2911 = vsel %vm2910, %v2909, -inf
        %2912 = vmax.xlane.f32.xlu0 %v2911
        %v2913 = vpop.xlane.xlu0 %2912
        %v2914 = vsub.f32 %v2909, %v2913
        %v2915 = vmul.f32 %v2914, 1.442695
        %v2916 = vpow.pop %v2915
        %v2917 = vsel %vm2910, %v2916, 0.0
        %2918 = vadd.xlane.f32.xlu0 %v2917
        %v2919 = vpop.xlane.xlu0 %2918
        %v2920 = vrcp.pop %v2919
        %v2921 = vmul.f32 %v2916, %v2920
        %v2923 = vsel %vm2910, %v2921, 0
        %2925 = vmatprep.subr.mxu0 0.0
        %v2926 = vand.u32 %v2447, 4294901760
        %2927 = vmatpush1.msra.mxu0 %v2926
        %2928 = vmatprep.subr.mxu0 0.0
        %2929 = vmatpush1.msra.mxu0 0.0
        %2930 = vmatprep.subr.mxu0 0.0
        %2931 = vmatpush1.msra.mxu0 0.0
        %2932 = vmatprep.subr.mxu0 0.0
        %2933 = vmatpush1.msra.mxu0 0.0
        %2934 = vmatprep.subr.mxu0 0.0
        %2935 = vmatpush1.msra.mxu0 0.0
        %2936 = vmatprep.subr.mxu0 0.0
        %2937 = vmatpush1.msra.mxu0 0.0
        %2938 = vmatprep.subr.mxu0 0.0
        %2939 = vmatpush1.msra.mxu0 0.0
        %2940 = vmatprep.subr.mxu0 0.0
        %2941 = vmatpush1.msra.mxu0 0.0
        %2942 = vmatprep.subr.mxu0 0.0
        %2943 = vmatpush1.msra.mxu0 0.0
        %2944 = vmatprep.subr.mxu0 0.0
        %2945 = vmatpush1.msra.mxu0 0.0
        %2946 = vmatprep.subr.mxu0 0.0
        %2947 = vmatpush1.msra.mxu0 0.0
        %2948 = vmatprep.subr.mxu0 0.0
        %2949 = vmatpush1.msra.mxu0 0.0
        %2950 = vmatprep.subr.mxu0 0.0
        %2951 = vmatpush1.msra.mxu0 0.0
        %2952 = vmatprep.subr.mxu0 0.0
        %2953 = vmatpush1.msra.mxu0 0.0
        %2954 = vmatprep.subr.mxu0 0.0
        %2955 = vmatpush1.msra.mxu0 0.0
        %2956 = vmatprep.subr.mxu0 0.0
        %2957 = vmatpush1.msra.mxu0 0.0
        %2958 = vmatprep.subr.mxu0 0.0
        %2959 = vmatpush1.msra.mxu0 0.0
        %2960 = vmatprep.subr.mxu0 0.0
        %2961 = vmatpush1.msra.mxu0 0.0
        %2962 = vmatprep.subr.mxu0 0.0
        %2963 = vmatpush1.msra.mxu0 0.0
        %2964 = vmatprep.subr.mxu0 0.0
        %2965 = vmatpush1.msra.mxu0 0.0
        %2966 = vmatprep.subr.mxu0 0.0
        %2967 = vmatpush1.msra.mxu0 0.0
        %2968 = vmatprep.subr.mxu0 0.0
        %2969 = vmatpush1.msra.mxu0 0.0
        %2970 = vmatprep.subr.mxu0 0.0
        %2971 = vmatpush1.msra.mxu0 0.0
        %2972 = vmatprep.subr.mxu0 0.0
        %2973 = vmatpush1.msra.mxu0 0.0
        %2974 = vmatprep.subr.mxu0 0.0
        %2975 = vmatpush1.msra.mxu0 0.0
        %2976 = vmatprep.subr.mxu0 0.0
        %2977 = vmatpush1.msra.mxu0 0.0
        %2978 = vmatprep.subr.mxu0 0.0
        %2979 = vmatpush1.msra.mxu0 0.0
        %2980 = vmatprep.subr.mxu0 0.0
        %2981 = vmatpush1.msra.mxu0 0.0
        %2982 = vmatprep.subr.mxu0 0.0
        %2983 = vmatpush1.msra.mxu0 0.0
        %2984 = vmatprep.subr.mxu0 0.0
        %2985 = vmatpush1.msra.mxu0 0.0
        %2986 = vmatprep.subr.mxu0 0.0
        %2987 = vmatpush1.msra.mxu0 0.0
        %2988 = vmatprep.subr.mxu0 0.0
        %2989 = vmatpush1.msra.mxu0 0.0
        %2990 = vmatprep.mubr.f32.mxu0 0.0
        %v2991 = vand.u32 %v2923, 4294901760
        %v2992 = vsub.f32 %v2923, %v2991
        %v2993 = vand.u32 %v2992, 4294901760
        %v2994 = vsub.f32 %v2992, %v2993
        %v2995 = vand.u32 %v2994, 4294901760
        %2996 = vmatmul.mubr.f32.gmra.mrb[0].mxu0 %v2995
        %v2997 = vpop.f32.mrb[0].mxu0
        %v2998 = vadd.f32 0.0, %v2997
        %v2999 = vpop.f32.mrb[0].mxu0
        %3000 = vdwg.mxu0
        %3001 = vmatprep.subr.mxu0 0.0
        %v3002 = vand.u32 %v2447, 4294901760
        %v3003 = vsub.f32 %v2447, %v3002
        %v3004 = vand.u32 %v3003, 4294901760
        %v3005 = vsub.f32 %v3003, %v3004
        %v3006 = vand.u32 %v3005, 4294901760
        %3007 = vmatpush1.msra.mxu0 %v3006
        %3008 = vmatprep.subr.mxu0 0.0
        %3009 = vmatpush1.msra.mxu0 0.0
        %3010 = vmatprep.subr.mxu0 0.0
        %3011 = vmatpush1.msra.mxu0 0.0
        %3012 = vmatprep.subr.mxu0 0.0
        %3013 = vmatpush1.msra.mxu0 0.0
        %3014 = vmatprep.subr.mxu0 0.0
        %3015 = vmatpush1.msra.mxu0 0.0
        %3016 = vmatprep.subr.mxu0 0.0
        %3017 = vmatpush1.msra.mxu0 0.0
        %3018 = vmatprep.subr.mxu0 0.0
        %3019 = vmatpush1.msra.mxu0 0.0
        %3020 = vmatprep.subr.mxu0 0.0
        %3021 = vmatpush1.msra.mxu0 0.0
        %3022 = vmatprep.subr.mxu0 0.0
        %3023 = vmatpush1.msra.mxu0 0.0
        %3024 = vmatprep.subr.mxu0 0.0
        %3025 = vmatpush1.msra.mxu0 0.0
        %3026 = vmatprep.subr.mxu0 0.0
        %3027 = vmatpush1.msra.mxu0 0.0
        %3028 = vmatprep.subr.mxu0 0.0
        %3029 = vmatpush1.msra.mxu0 0.0
        %3030 = vmatprep.subr.mxu0 0.0
        %3031 = vmatpush1.msra.mxu0 0.0
        %3032 = vmatprep.subr.mxu0 0.0
        %3033 = vmatpush1.msra.mxu0 0.0
        %3034 = vmatprep.subr.mxu0 0.0
        %3035 = vmatpush1.msra.mxu0 0.0
        %3036 = vmatprep.subr.mxu0 0.0
        %3037 = vmatpush1.msra.mxu0 0.0
        %3038 = vmatprep.subr.mxu0 0.0
        %3039 = vmatpush1.msra.mxu0 0.0
        %3040 = vmatprep.subr.mxu0 0.0
        %3041 = vmatpush1.msra.mxu0 0.0
        %3042 = vmatprep.subr.mxu0 0.0
        %3043 = vmatpush1.msra.mxu0 0.0
        %3044 = vmatprep.subr.mxu0 0.0
        %3045 = vmatpush1.msra.mxu0 0.0
        %3046 = vmatprep.subr.mxu0 0.0
        %3047 = vmatpush1.msra.mxu0 0.0
        %3048 = vmatprep.subr.mxu0 0.0
        %3049 = vmatpush1.msra.mxu0 0.0
        %3050 = vmatprep.subr.mxu0 0.0
        %3051 = vmatpush1.msra.mxu0 0.0
        %3052 = vmatprep.subr.mxu0 0.0
        %3053 = vmatpush1.msra.mxu0 0.0
        %3054 = vmatprep.subr.mxu0 0.0
        %3055 = vmatpush1.msra.mxu0 0.0
        %3056 = vmatprep.subr.mxu0 0.0
        %3057 = vmatpush1.msra.mxu0 0.0
        %3058 = vmatprep.subr.mxu0 0.0
        %3059 = vmatpush1.msra.mxu0 0.0
        %3060 = vmatprep.subr.mxu0 0.0
        %3061 = vmatpush1.msra.mxu0 0.0
        %3062 = vmatprep.subr.mxu0 0.0
        %3063 = vmatpush1.msra.mxu0 0.0
        %3064 = vmatprep.subr.mxu0 0.0
        %3065 = vmatpush1.msra.mxu0 0.0
        %3066 = vmatprep.subr.mxu0 0.0
        %3067 = vmatpush1.msra.mxu0 0.0
        %3068 = vmatprep.subr.mxu0 0.0
        %3069 = vmatpush1.msra.mxu0 0.0
        %3070 = vmatprep.mubr.f32.mxu0 0.0
        %v3071 = vand.u32 %v2923, 4294901760
        %3072 = vmatmul.mubr.f32.gmra.mrb[0].mxu0 %v3071
        %v3073 = vpop.f32.mrb[0].mxu0
        %v3074 = vadd.f32 %v2998, %v3073
        %v3075 = vpop.f32.mrb[0].mxu0
        %3076 = vdwg.mxu0
        %3077 = vmatprep.subr.mxu0 0.0
        %v3078 = vand.u32 %v2447, 4294901760
        %v3079 = vsub.f32 %v2447, %v3078
        %3080 = vmatpush1.msra.mxu0 %v3079
        %3081 = vmatprep.subr.mxu0 0.0
        %3082 = vmatpush1.msra.mxu0 0.0
        %3083 = vmatprep.subr.mxu0 0.0
        %3084 = vmatpush1.msra.mxu0 0.0
        %3085 = vmatprep.subr.mxu0 0.0
        %3086 = vmatpush1.msra.mxu0 0.0
        %3087 = vmatprep.subr.mxu0 0.0
        %3088 = vmatpush1.msra.mxu0 0.0
        %3089 = vmatprep.subr.mxu0 0.0
        %3090 = vmatpush1.msra.mxu0 0.0
        %3091 = vmatprep.subr.mxu0 0.0
        %3092 = vmatpush1.msra.mxu0 0.0
        %3093 = vmatprep.subr.mxu0 0.0
        %3094 = vmatpush1.msra.mxu0 0.0
        %3095 = vmatprep.subr.mxu0 0.0
        %3096 = vmatpush1.msra.mxu0 0.0
        %3097 = vmatprep.subr.mxu0 0.0
        %3098 = vmatpush1.msra.mxu0 0.0
        %3099 = vmatprep.subr.mxu0 0.0
        %3100 = vmatpush1.msra.mxu0 0.0
        %3101 = vmatprep.subr.mxu0 0.0
        %3102 = vmatpush1.msra.mxu0 0.0
        %3103 = vmatprep.subr.mxu0 0.0
        %3104 = vmatpush1.msra.mxu0 0.0
        %3105 = vmatprep.subr.mxu0 0.0
        %3106 = vmatpush1.msra.mxu0 0.0
        %3107 = vmatprep.subr.mxu0 0.0
        %3108 = vmatpush1.msra.mxu0 0.0
        %3109 = vmatprep.subr.mxu0 0.0
        %3110 = vmatpush1.msra.mxu0 0.0
        %3111 = vmatprep.subr.mxu0 0.0
        %3112 = vmatpush1.msra.mxu0 0.0
        %3113 = vmatprep.subr.mxu0 0.0
        %3114 = vmatpush1.msra.mxu0 0.0
        %3115 = vmatprep.subr.mxu0 0.0
        %3116 = vmatpush1.msra.mxu0 0.0
        %3117 = vmatprep.subr.mxu0 0.0
        %3118 = vmatpush1.msra.mxu0 0.0
        %3119 = vmatprep.subr.mxu0 0.0
        %3120 = vmatpush1.msra.mxu0 0.0
        %3121 = vmatprep.subr.mxu0 0.0
        %3122 = vmatpush1.msra.mxu0 0.0
        %3123 = vmatprep.subr.mxu0 0.0
        %3124 = vmatpush1.msra.mxu0 0.0
        %3125 = vmatprep.subr.mxu0 0.0
        %3126 = vmatpush1.msra.mxu0 0.0
        %3127 = vmatprep.subr.mxu0 0.0
        %3128 = vmatpush1.msra.mxu0 0.0
        %3129 = vmatprep.subr.mxu0 0.0
        %3130 = vmatpush1.msra.mxu0 0.0
        %3131 = vmatprep.subr.mxu0 0.0
        %3132 = vmatpush1.msra.mxu0 0.0
        %3133 = vmatprep.subr.mxu0 0.0
        %3134 = vmatpush1.msra.mxu0 0.0
        %3135 = vmatprep.subr.mxu0 0.0
        %3136 = vmatpush1.msra.mxu0 0.0
        %3137 = vmatprep.subr.mxu0 0.0
        %3138 = vmatpush1.msra.mxu0 0.0
        %3139 = vmatprep.subr.mxu0 0.0
        %3140 = vmatpush1.msra.mxu0 0.0
        %3141 = vmatprep.subr.mxu0 0.0
        %3142 = vmatpush1.msra.mxu0 0.0
        %3143 = vmatprep.mubr.f32.mxu0 0.0
        %v3144 = vand.u32 %v2923, 4294901760
        %v3145 = vsub.f32 %v2923, %v3144
        %3146 = vmatmul.mubr.f32.gmra.mrb[0].mxu0 %v3145
        %v3147 = vpop.f32.mrb[0].mxu0
        %v3148 = vadd.f32 %v3074, %v3147
        %v3149 = vpop.f32.mrb[0].mxu0
        %3150 = vdwg.mxu0
        %3151 = vmatprep.subr.mxu0 0.0
        %v3152 = vand.u32 %v2447, 4294901760
        %3153 = vmatpush1.msra.mxu0 %v3152
        %3154 = vmatprep.subr.mxu0 0.0
        %3155 = vmatpush1.msra.mxu0 0.0
        %3156 = vmatprep.subr.mxu0 0.0
        %3157 = vmatpush1.msra.mxu0 0.0
        %3158 = vmatprep.subr.mxu0 0.0
        %3159 = vmatpush1.msra.mxu0 0.0
        %3160 = vmatprep.subr.mxu0 0.0
        %3161 = vmatpush1.msra.mxu0 0.0
        %3162 = vmatprep.subr.mxu0 0.0
        %3163 = vmatpush1.msra.mxu0 0.0
        %3164 = vmatprep.subr.mxu0 0.0
        %3165 = vmatpush1.msra.mxu0 0.0
        %3166 = vmatprep.subr.mxu0 0.0
        %3167 = vmatpush1.msra.mxu0 0.0
        %3168 = vmatprep.subr.mxu0 0.0
        %3169 = vmatpush1.msra.mxu0 0.0
        %3170 = vmatprep.subr.mxu0 0.0
        %3171 = vmatpush1.msra.mxu0 0.0
        %3172 = vmatprep.subr.mxu0 0.0
        %3173 = vmatpush1.msra.mxu0 0.0
        %3174 = vmatprep.subr.mxu0 0.0
        %3175 = vmatpush1.msra.mxu0 0.0
        %3176 = vmatprep.subr.mxu0 0.0
        %3177 = vmatpush1.msra.mxu0 0.0
        %3178 = vmatprep.subr.mxu0 0.0
        %3179 = vmatpush1.msra.mxu0 0.0
        %3180 = vmatprep.subr.mxu0 0.0
        %3181 = vmatpush1.msra.mxu0 0.0
        %3182 = vmatprep.subr.mxu0 0.0
        %3183 = vmatpush1.msra.mxu0 0.0
        %3184 = vmatprep.subr.mxu0 0.0
        %3185 = vmatpush1.msra.mxu0 0.0
        %3186 = vmatprep.subr.mxu0 0.0
        %3187 = vmatpush1.msra.mxu0 0.0
        %3188 = vmatprep.subr.mxu0 0.0
        %3189 = vmatpush1.msra.mxu0 0.0
        %3190 = vmatprep.subr.mxu0 0.0
        %3191 = vmatpush1.msra.mxu0 0.0
        %3192 = vmatprep.subr.mxu0 0.0
        %3193 = vmatpush1.msra.mxu0 0.0
        %3194 = vmatprep.subr.mxu0 0.0
        %3195 = vmatpush1.msra.mxu0 0.0
        %3196 = vmatprep.subr.mxu0 0.0
        %3197 = vmatpush1.msra.mxu0 0.0
        %3198 = vmatprep.subr.mxu0 0.0
        %3199 = vmatpush1.msra.mxu0 0.0
        %3200 = vmatprep.subr.mxu0 0.0
        %3201 = vmatpush1.msra.mxu0 0.0
        %3202 = vmatprep.subr.mxu0 0.0
        %3203 = vmatpush1.msra.mxu0 0.0
        %3204 = vmatprep.subr.mxu0 0.0
        %3205 = vmatpush1.msra.mxu0 0.0
        %3206 = vmatprep.subr.mxu0 0.0
        %3207 = vmatpush1.msra.mxu0 0.0
        %3208 = vmatprep.subr.mxu0 0.0
        %3209 = vmatpush1.msra.mxu0 0.0
        %3210 = vmatprep.subr.mxu0 0.0
        %3211 = vmatpush1.msra.mxu0 0.0
        %3212 = vmatprep.subr.mxu0 0.0
        %3213 = vmatpush1.msra.mxu0 0.0
        %3214 = vmatprep.subr.mxu0 0.0
        %3215 = vmatpush1.msra.mxu0 0.0
        %3216 = vmatprep.mubr.f32.mxu0 0.0
        %v3217 = vand.u32 %v2923, 4294901760
        %v3218 = vsub.f32 %v2923, %v3217
        %v3219 = vand.u32 %v3218, 4294901760
        %3220 = vmatmul.mubr.f32.gmra.mrb[0].mxu0 %v3219
        %v3221 = vpop.f32.mrb[0].mxu0
        %v3222 = vadd.f32 %v3148, %v3221
        %v3223 = vpop.f32.mrb[0].mxu0
        %3224 = vdwg.mxu0
        %3225 = vmatprep.subr.mxu0 0.0
        %v3226 = vand.u32 %v2447, 4294901760
        %v3227 = vsub.f32 %v2447, %v3226
        %v3228 = vand.u32 %v3227, 4294901760
        %3229 = vmatpush1.msra.mxu0 %v3228
        %3230 = vmatprep.subr.mxu0 0.0
        %3231 = vmatpush1.msra.mxu0 0.0
        %3232 = vmatprep.subr.mxu0 0.0
        %3233 = vmatpush1.msra.mxu0 0.0
        %3234 = vmatprep.subr.mxu0 0.0
        %3235 = vmatpush1.msra.mxu0 0.0
        %3236 = vmatprep.subr.mxu0 0.0
        %3237 = vmatpush1.msra.mxu0 0.0
        %3238 = vmatprep.subr.mxu0 0.0
        %3239 = vmatpush1.msra.mxu0 0.0
        %3240 = vmatprep.subr.mxu0 0.0
        %3241 = vmatpush1.msra.mxu0 0.0
        %3242 = vmatprep.subr.mxu0 0.0
        %3243 = vmatpush1.msra.mxu0 0.0
        %3244 = vmatprep.subr.mxu0 0.0
        %3245 = vmatpush1.msra.mxu0 0.0
        %3246 = vmatprep.subr.mxu0 0.0
        %3247 = vmatpush1.msra.mxu0 0.0
        %3248 = vmatprep.subr.mxu0 0.0
        %3249 = vmatpush1.msra.mxu0 0.0
        %3250 = vmatprep.subr.mxu0 0.0
        %3251 = vmatpush1.msra.mxu0 0.0
        %3252 = vmatprep.subr.mxu0 0.0
        %3253 = vmatpush1.msra.mxu0 0.0
        %3254 = vmatprep.subr.mxu0 0.0
        %3255 = vmatpush1.msra.mxu0 0.0
        %3256 = vmatprep.subr.mxu0 0.0
        %3257 = vmatpush1.msra.mxu0 0.0
        %3258 = vmatprep.subr.mxu0 0.0
        %3259 = vmatpush1.msra.mxu0 0.0
        %3260 = vmatprep.subr.mxu0 0.0
        %3261 = vmatpush1.msra.mxu0 0.0
        %3262 = vmatprep.subr.mxu0 0.0
        %3263 = vmatpush1.msra.mxu0 0.0
        %3264 = vmatprep.subr.mxu0 0.0
        %3265 = vmatpush1.msra.mxu0 0.0
        %3266 = vmatprep.subr.mxu0 0.0
        %3267 = vmatpush1.msra.mxu0 0.0
        %3268 = vmatprep.subr.mxu0 0.0
        %3269 = vmatpush1.msra.mxu0 0.0
        %3270 = vmatprep.subr.mxu0 0.0
        %3271 = vmatpush1.msra.mxu0 0.0
        %3272 = vmatprep.subr.mxu0 0.0
        %3273 = vmatpush1.msra.mxu0 0.0
        %3274 = vmatprep.subr.mxu0 0.0
        %3275 = vmatpush1.msra.mxu0 0.0
        %3276 = vmatprep.subr.mxu0 0.0
        %3277 = vmatpush1.msra.mxu0 0.0
        %3278 = vmatprep.subr.mxu0 0.0
        %3279 = vmatpush1.msra.mxu0 0.0
        %3280 = vmatprep.subr.mxu0 0.0
        %3281 = vmatpush1.msra.mxu0 0.0
        %3282 = vmatprep.subr.mxu0 0.0
        %3283 = vmatpush1.msra.mxu0 0.0
        %3284 = vmatprep.subr.mxu0 0.0
        %3285 = vmatpush1.msra.mxu0 0.0
        %3286 = vmatprep.subr.mxu0 0.0
        %3287 = vmatpush1.msra.mxu0 0.0
        %3288 = vmatprep.subr.mxu0 0.0
        %3289 = vmatpush1.msra.mxu0 0.0
        %3290 = vmatprep.subr.mxu0 0.0
        %3291 = vmatpush1.msra.mxu0 0.0
        %3292 = vmatprep.mubr.f32.mxu0 0.0
        %v3293 = vand.u32 %v2923, 4294901760
        %3294 = vmatmul.mubr.f32.gmra.mrb[0].mxu0 %v3293
        %v3295 = vpop.f32.mrb[0].mxu0
        %v3296 = vadd.f32 %v3222, %v3295
        %v3297 = vpop.f32.mrb[0].mxu0
        %3298 = vdwg.mxu0
        %3299 = vmatprep.subr.mxu0 0.0
        %v3300 = vand.u32 %v2447, 4294901760
        %3301 = vmatpush1.msra.mxu0 %v3300
        %3302 = vmatprep.subr.mxu0 0.0
        %3303 = vmatpush1.msra.mxu0 0.0
        %3304 = vmatprep.subr.mxu0 0.0
        %3305 = vmatpush1.msra.mxu0 0.0
        %3306 = vmatprep.subr.mxu0 0.0
        %3307 = vmatpush1.msra.mxu0 0.0
        %3308 = vmatprep.subr.mxu0 0.0
        %3309 = vmatpush1.msra.mxu0 0.0
        %3310 = vmatprep.subr.mxu0 0.0
        %3311 = vmatpush1.msra.mxu0 0.0
        %3312 = vmatprep.subr.mxu0 0.0
        %3313 = vmatpush1.msra.mxu0 0.0
        %3314 = vmatprep.subr.mxu0 0.0
        %3315 = vmatpush1.msra.mxu0 0.0
        %3316 = vmatprep.subr.mxu0 0.0
        %3317 = vmatpush1.msra.mxu0 0.0
        %3318 = vmatprep.subr.mxu0 0.0
        %3319 = vmatpush1.msra.mxu0 0.0
        %3320 = vmatprep.subr.mxu0 0.0
        %3321 = vmatpush1.msra.mxu0 0.0
        %3322 = vmatprep.subr.mxu0 0.0
        %3323 = vmatpush1.msra.mxu0 0.0
        %3324 = vmatprep.subr.mxu0 0.0
        %3325 = vmatpush1.msra.mxu0 0.0
        %3326 = vmatprep.subr.mxu0 0.0
        %3327 = vmatpush1.msra.mxu0 0.0
        %3328 = vmatprep.subr.mxu0 0.0
        %3329 = vmatpush1.msra.mxu0 0.0
        %3330 = vmatprep.subr.mxu0 0.0
        %3331 = vmatpush1.msra.mxu0 0.0
        %3332 = vmatprep.subr.mxu0 0.0
        %3333 = vmatpush1.msra.mxu0 0.0
        %3334 = vmatprep.subr.mxu0 0.0
        %3335 = vmatpush1.msra.mxu0 0.0
        %3336 = vmatprep.subr.mxu0 0.0
        %3337 = vmatpush1.msra.mxu0 0.0
        %3338 = vmatprep.subr.mxu0 0.0
        %3339 = vmatpush1.msra.mxu0 0.0
        %3340 = vmatprep.subr.mxu0 0.0
        %3341 = vmatpush1.msra.mxu0 0.0
        %3342 = vmatprep.subr.mxu0 0.0
        %3343 = vmatpush1.msra.mxu0 0.0
        %3344 = vmatprep.subr.mxu0 0.0
        %3345 = vmatpush1.msra.mxu0 0.0
        %3346 = vmatprep.subr.mxu0 0.0
        %3347 = vmatpush1.msra.mxu0 0.0
        %3348 = vmatprep.subr.mxu0 0.0
        %3349 = vmatpush1.msra.mxu0 0.0
        %3350 = vmatprep.subr.mxu0 0.0
        %3351 = vmatpush1.msra.mxu0 0.0
        %3352 = vmatprep.subr.mxu0 0.0
        %3353 = vmatpush1.msra.mxu0 0.0
        %3354 = vmatprep.subr.mxu0 0.0
        %3355 = vmatpush1.msra.mxu0 0.0
        %3356 = vmatprep.subr.mxu0 0.0
        %3357 = vmatpush1.msra.mxu0 0.0
        %3358 = vmatprep.subr.mxu0 0.0
        %3359 = vmatpush1.msra.mxu0 0.0
        %3360 = vmatprep.subr.mxu0 0.0
        %3361 = vmatpush1.msra.mxu0 0.0
        %3362 = vmatprep.subr.mxu0 0.0
        %3363 = vmatpush1.msra.mxu0 0.0
        %3364 = vmatprep.mubr.f32.mxu0 0.0
        %v3365 = vand.u32 %v2923, 4294901760
        %3366 = vmatmul.mubr.f32.gmra.mrb[0].mxu0 %v3365
        %v3367 = vpop.f32.mrb[0].mxu0
        %v3368 = vadd.f32 %v3296, %v3367
        %v3369 = vpop.f32.mrb[0].mxu0
        %3370 = vdwg.mxu0
        %3371 = vrot.lane.b32.xlu0 %v2450, 96
        %v3372 = vpop.permute.xlu0 %3371
        %3373 = vrot.lane.b32.xlu0 %v1792, 96
        %v3374 = vpop.permute.xlu0 %3373
        %v3375 = vsel %vm2456, %v3372, 0
        %v3377 = vsel %vm2456, %v3374, 0
        %3379 = vmatprep.subr.mxu0 0.0
        %v3380 = vand.u32 %v3377, 4294901760
        %3381 = vmatpush1.xpose.msra.mxu0 %v3380
        %3382 = vmatprep.subr.mxu0 0.0
        %3383 = vmatpush1.xpose.msra.mxu0 0.0
        %3384 = vmatprep.subr.mxu0 0.0
        %3385 = vmatpush1.xpose.msra.mxu0 0.0
        %3386 = vmatprep.subr.mxu0 0.0
        %3387 = vmatpush1.xpose.msra.mxu0 0.0
        %3388 = vmatprep.subr.mxu0 0.0
        %3389 = vmatpush1.xpose.msra.mxu0 0.0
        %3390 = vmatprep.subr.mxu0 0.0
        %3391 = vmatpush1.xpose.msra.mxu0 0.0
        %3392 = vmatprep.subr.mxu0 0.0
        %3393 = vmatpush1.xpose.msra.mxu0 0.0
        %3394 = vmatprep.subr.mxu0 0.0
        %3395 = vmatpush1.xpose.msra.mxu0 0.0
        %3396 = vmatprep.subr.mxu0 0.0
        %3397 = vmatpush1.xpose.msra.mxu0 0.0
        %3398 = vmatprep.subr.mxu0 0.0
        %3399 = vmatpush1.xpose.msra.mxu0 0.0
        %3400 = vmatprep.subr.mxu0 0.0
        %3401 = vmatpush1.xpose.msra.mxu0 0.0
        %3402 = vmatprep.subr.mxu0 0.0
        %3403 = vmatpush1.xpose.msra.mxu0 0.0
        %3404 = vmatprep.subr.mxu0 0.0
        %3405 = vmatpush1.xpose.msra.mxu0 0.0
        %3406 = vmatprep.subr.mxu0 0.0
        %3407 = vmatpush1.xpose.msra.mxu0 0.0
        %3408 = vmatprep.subr.mxu0 0.0
        %3409 = vmatpush1.xpose.msra.mxu0 0.0
        %3410 = vmatprep.subr.mxu0 0.0
        %3411 = vmatpush1.xpose.msra.mxu0 0.0
        %3412 = vmatprep.subr.mxu0 0.0
        %3413 = vmatpush1.xpose.msra.mxu0 0.0
        %3414 = vmatprep.subr.mxu0 0.0
        %3415 = vmatpush1.xpose.msra.mxu0 0.0
        %3416 = vmatprep.subr.mxu0 0.0
        %3417 = vmatpush1.xpose.msra.mxu0 0.0
        %3418 = vmatprep.subr.mxu0 0.0
        %3419 = vmatpush1.xpose.msra.mxu0 0.0
        %3420 = vmatprep.subr.mxu0 0.0
        %3421 = vmatpush1.xpose.msra.mxu0 0.0
        %3422 = vmatprep.subr.mxu0 0.0
        %3423 = vmatpush1.xpose.msra.mxu0 0.0
        %3424 = vmatprep.subr.mxu0 0.0
        %3425 = vmatpush1.xpose.msra.mxu0 0.0
        %3426 = vmatprep.subr.mxu0 0.0
        %3427 = vmatpush1.xpose.msra.mxu0 0.0
        %3428 = vmatprep.subr.mxu0 0.0
        %3429 = vmatpush1.xpose.msra.mxu0 0.0
        %3430 = vmatprep.subr.mxu0 0.0
        %3431 = vmatpush1.xpose.msra.mxu0 0.0
        %3432 = vmatprep.subr.mxu0 0.0
        %3433 = vmatpush1.xpose.msra.mxu0 0.0
        %3434 = vmatprep.subr.mxu0 0.0
        %3435 = vmatpush1.xpose.msra.mxu0 0.0
        %3436 = vmatprep.subr.mxu0 0.0
        %3437 = vmatpush1.xpose.msra.mxu0 0.0
        %3438 = vmatprep.subr.mxu0 0.0
        %3439 = vmatpush1.xpose.msra.mxu0 0.0
        %3440 = vmatprep.subr.mxu0 0.0
        %3441 = vmatpush1.xpose.msra.mxu0 0.0
        %3442 = vmatprep.subr.mxu0 0.0
        %3443 = vmatpush1.xpose.msra.mxu0 0.0
        %3444 = vmatprep.mubr.f32.mxu0 0.0
        %v3445 = vand.u32 %v3375, 4294901760
        %v3446 = vsub.f32 %v3375, %v3445
        %v3447 = vand.u32 %v3446, 4294901760
        %v3448 = vsub.f32 %v3446, %v3447
        %v3449 = vand.u32 %v3448, 4294901760
        %3450 = vmatmul.mubr.f32.gmra.mrb[0].mxu0 %v3449
        %v3451 = vpop.f32.mrb[0].mxu0
        %v3452 = vadd.f32 0.0, %v3451
        %v3453 = vpop.f32.mrb[0].mxu0
        %3454 = vdwg.mxu0
        %3455 = vmatprep.subr.mxu0 0.0
        %v3456 = vand.u32 %v3377, 4294901760
        %v3457 = vsub.f32 %v3377, %v3456
        %v3458 = vand.u32 %v3457, 4294901760
        %v3459 = vsub.f32 %v3457, %v3458
        %v3460 = vand.u32 %v3459, 4294901760
        %3461 = vmatpush1.xpose.msra.mxu0 %v3460
        %3462 = vmatprep.subr.mxu0 0.0
        %3463 = vmatpush1.xpose.msra.mxu0 0.0
        %3464 = vmatprep.subr.mxu0 0.0
        %3465 = vmatpush1.xpose.msra.mxu0 0.0
        %3466 = vmatprep.subr.mxu0 0.0
        %3467 = vmatpush1.xpose.msra.mxu0 0.0
        %3468 = vmatprep.subr.mxu0 0.0
        %3469 = vmatpush1.xpose.msra.mxu0 0.0
        %3470 = vmatprep.subr.mxu0 0.0
        %3471 = vmatpush1.xpose.msra.mxu0 0.0
        %3472 = vmatprep.subr.mxu0 0.0
        %3473 = vmatpush1.xpose.msra.mxu0 0.0
        %3474 = vmatprep.subr.mxu0 0.0
        %3475 = vmatpush1.xpose.msra.mxu0 0.0
        %3476 = vmatprep.subr.mxu0 0.0
        %3477 = vmatpush1.xpose.msra.mxu0 0.0
        %3478 = vmatprep.subr.mxu0 0.0
        %3479 = vmatpush1.xpose.msra.mxu0 0.0
        %3480 = vmatprep.subr.mxu0 0.0
        %3481 = vmatpush1.xpose.msra.mxu0 0.0
        %3482 = vmatprep.subr.mxu0 0.0
        %3483 = vmatpush1.xpose.msra.mxu0 0.0
        %3484 = vmatprep.subr.mxu0 0.0
        %3485 = vmatpush1.xpose.msra.mxu0 0.0
        %3486 = vmatprep.subr.mxu0 0.0
        %3487 = vmatpush1.xpose.msra.mxu0 0.0
        %3488 = vmatprep.subr.mxu0 0.0
        %3489 = vmatpush1.xpose.msra.mxu0 0.0
        %3490 = vmatprep.subr.mxu0 0.0
        %3491 = vmatpush1.xpose.msra.mxu0 0.0
        %3492 = vmatprep.subr.mxu0 0.0
        %3493 = vmatpush1.xpose.msra.mxu0 0.0
        %3494 = vmatprep.subr.mxu0 0.0
        %3495 = vmatpush1.xpose.msra.mxu0 0.0
        %3496 = vmatprep.subr.mxu0 0.0
        %3497 = vmatpush1.xpose.msra.mxu0 0.0
        %3498 = vmatprep.subr.mxu0 0.0
        %3499 = vmatpush1.xpose.msra.mxu0 0.0
        %3500 = vmatprep.subr.mxu0 0.0
        %3501 = vmatpush1.xpose.msra.mxu0 0.0
        %3502 = vmatprep.subr.mxu0 0.0
        %3503 = vmatpush1.xpose.msra.mxu0 0.0
        %3504 = vmatprep.subr.mxu0 0.0
        %3505 = vmatpush1.xpose.msra.mxu0 0.0
        %3506 = vmatprep.subr.mxu0 0.0
        %3507 = vmatpush1.xpose.msra.mxu0 0.0
        %3508 = vmatprep.subr.mxu0 0.0
        %3509 = vmatpush1.xpose.msra.mxu0 0.0
        %3510 = vmatprep.subr.mxu0 0.0
        %3511 = vmatpush1.xpose.msra.mxu0 0.0
        %3512 = vmatprep.subr.mxu0 0.0
        %3513 = vmatpush1.xpose.msra.mxu0 0.0
        %3514 = vmatprep.subr.mxu0 0.0
        %3515 = vmatpush1.xpose.msra.mxu0 0.0
        %3516 = vmatprep.subr.mxu0 0.0
        %3517 = vmatpush1.xpose.msra.mxu0 0.0
        %3518 = vmatprep.subr.mxu0 0.0
        %3519 = vmatpush1.xpose.msra.mxu0 0.0
        %3520 = vmatprep.subr.mxu0 0.0
        %3521 = vmatpush1.xpose.msra.mxu0 0.0
        %3522 = vmatprep.subr.mxu0 0.0
        %3523 = vmatpush1.xpose.msra.mxu0 0.0
        %3524 = vmatprep.mubr.f32.mxu0 0.0
        %v3525 = vand.u32 %v3375, 4294901760
        %3526 = vmatmul.mubr.f32.gmra.mrb[0].mxu0 %v3525
        %v3527 = vpop.f32.mrb[0].mxu0
        %v3528 = vadd.f32 %v3452, %v3527
        %v3529 = vpop.f32.mrb[0].mxu0
        %3530 = vdwg.mxu0
        %3531 = vmatprep.subr.mxu0 0.0
        %v3532 = vand.u32 %v3377, 4294901760
        %v3533 = vsub.f32 %v3377, %v3532
        %3534 = vmatpush1.xpose.msra.mxu0 %v3533
        %3535 = vmatprep.subr.mxu0 0.0
        %3536 = vmatpush1.xpose.msra.mxu0 0.0
        %3537 = vmatprep.subr.mxu0 0.0
        %3538 = vmatpush1.xpose.msra.mxu0 0.0
        %3539 = vmatprep.subr.mxu0 0.0
        %3540 = vmatpush1.xpose.msra.mxu0 0.0
        %3541 = vmatprep.subr.mxu0 0.0
        %3542 = vmatpush1.xpose.msra.mxu0 0.0
        %3543 = vmatprep.subr.mxu0 0.0
        %3544 = vmatpush1.xpose.msra.mxu0 0.0
        %3545 = vmatprep.subr.mxu0 0.0
        %3546 = vmatpush1.xpose.msra.mxu0 0.0
        %3547 = vmatprep.subr.mxu0 0.0
        %3548 = vmatpush1.xpose.msra.mxu0 0.0
        %3549 = vmatprep.subr.mxu0 0.0
        %3550 = vmatpush1.xpose.msra.mxu0 0.0
        %3551 = vmatprep.subr.mxu0 0.0
        %3552 = vmatpush1.xpose.msra.mxu0 0.0
        %3553 = vmatprep.subr.mxu0 0.0
        %3554 = vmatpush1.xpose.msra.mxu0 0.0
        %3555 = vmatprep.subr.mxu0 0.0
        %3556 = vmatpush1.xpose.msra.mxu0 0.0
        %3557 = vmatprep.subr.mxu0 0.0
        %3558 = vmatpush1.xpose.msra.mxu0 0.0
        %3559 = vmatprep.subr.mxu0 0.0
        %3560 = vmatpush1.xpose.msra.mxu0 0.0
        %3561 = vmatprep.subr.mxu0 0.0
        %3562 = vmatpush1.xpose.msra.mxu0 0.0
        %3563 = vmatprep.subr.mxu0 0.0
        %3564 = vmatpush1.xpose.msra.mxu0 0.0
        %3565 = vmatprep.subr.mxu0 0.0
        %3566 = vmatpush1.xpose.msra.mxu0 0.0
        %3567 = vmatprep.subr.mxu0 0.0
        %3568 = vmatpush1.xpose.msra.mxu0 0.0
        %3569 = vmatprep.subr.mxu0 0.0
        %3570 = vmatpush1.xpose.msra.mxu0 0.0
        %3571 = vmatprep.subr.mxu0 0.0
        %3572 = vmatpush1.xpose.msra.mxu0 0.0
        %3573 = vmatprep.subr.mxu0 0.0
        %3574 = vmatpush1.xpose.msra.mxu0 0.0
        %3575 = vmatprep.subr.mxu0 0.0
        %3576 = vmatpush1.xpose.msra.mxu0 0.0
        %3577 = vmatprep.subr.mxu0 0.0
        %3578 = vmatpush1.xpose.msra.mxu0 0.0
        %3579 = vmatprep.subr.mxu0 0.0
        %3580 = vmatpush1.xpose.msra.mxu0 0.0
        %3581 = vmatprep.subr.mxu0 0.0
        %3582 = vmatpush1.xpose.msra.mxu0 0.0
        %3583 = vmatprep.subr.mxu0 0.0
        %3584 = vmatpush1.xpose.msra.mxu0 0.0
        %3585 = vmatprep.subr.mxu0 0.0
        %3586 = vmatpush1.xpose.msra.mxu0 0.0
        %3587 = vmatprep.subr.mxu0 0.0
        %3588 = vmatpush1.xpose.msra.mxu0 0.0
        %3589 = vmatprep.subr.mxu0 0.0
        %3590 = vmatpush1.xpose.msra.mxu0 0.0
        %3591 = vmatprep.subr.mxu0 0.0
        %3592 = vmatpush1.xpose.msra.mxu0 0.0
        %3593 = vmatprep.subr.mxu0 0.0
        %3594 = vmatpush1.xpose.msra.mxu0 0.0
        %3595 = vmatprep.subr.mxu0 0.0
        %3596 = vmatpush1.xpose.msra.mxu0 0.0
        %3597 = vmatprep.mubr.f32.mxu0 0.0
        %v3598 = vand.u32 %v3375, 4294901760
        %v3599 = vsub.f32 %v3375, %v3598
        %3600 = vmatmul.mubr.f32.gmra.mrb[0].mxu0 %v3599
        %v3601 = vpop.f32.mrb[0].mxu0
        %v3602 = vadd.f32 %v3528, %v3601
        %v3603 = vpop.f32.mrb[0].mxu0
        %3604 = vdwg.mxu0
        %3605 = vmatprep.subr.mxu0 0.0
        %v3606 = vand.u32 %v3377, 4294901760
        %3607 = vmatpush1.xpose.msra.mxu0 %v3606
        %3608 = vmatprep.subr.mxu0 0.0
        %3609 = vmatpush1.xpose.msra.mxu0 0.0
        %3610 = vmatprep.subr.mxu0 0.0
        %3611 = vmatpush1.xpose.msra.mxu0 0.0
        %3612 = vmatprep.subr.mxu0 0.0
        %3613 = vmatpush1.xpose.msra.mxu0 0.0
        %3614 = vmatprep.subr.mxu0 0.0
        %3615 = vmatpush1.xpose.msra.mxu0 0.0
        %3616 = vmatprep.subr.mxu0 0.0
        %3617 = vmatpush1.xpose.msra.mxu0 0.0
        %3618 = vmatprep.subr.mxu0 0.0
        %3619 = vmatpush1.xpose.msra.mxu0 0.0
        %3620 = vmatprep.subr.mxu0 0.0
        %3621 = vmatpush1.xpose.msra.mxu0 0.0
        %3622 = vmatprep.subr.mxu0 0.0
        %3623 = vmatpush1.xpose.msra.mxu0 0.0
        %3624 = vmatprep.subr.mxu0 0.0
        %3625 = vmatpush1.xpose.msra.mxu0 0.0
        %3626 = vmatprep.subr.mxu0 0.0
        %3627 = vmatpush1.xpose.msra.mxu0 0.0
        %3628 = vmatprep.subr.mxu0 0.0
        %3629 = vmatpush1.xpose.msra.mxu0 0.0
        %3630 = vmatprep.subr.mxu0 0.0
        %3631 = vmatpush1.xpose.msra.mxu0 0.0
        %3632 = vmatprep.subr.mxu0 0.0
        %3633 = vmatpush1.xpose.msra.mxu0 0.0
        %3634 = vmatprep.subr.mxu0 0.0
        %3635 = vmatpush1.xpose.msra.mxu0 0.0
        %3636 = vmatprep.subr.mxu0 0.0
        %3637 = vmatpush1.xpose.msra.mxu0 0.0
        %3638 = vmatprep.subr.mxu0 0.0
        %3639 = vmatpush1.xpose.msra.mxu0 0.0
        %3640 = vmatprep.subr.mxu0 0.0
        %3641 = vmatpush1.xpose.msra.mxu0 0.0
        %3642 = vmatprep.subr.mxu0 0.0
        %3643 = vmatpush1.xpose.msra.mxu0 0.0
        %3644 = vmatprep.subr.mxu0 0.0
        %3645 = vmatpush1.xpose.msra.mxu0 0.0
        %3646 = vmatprep.subr.mxu0 0.0
        %3647 = vmatpush1.xpose.msra.mxu0 0.0
        %3648 = vmatprep.subr.mxu0 0.0
        %3649 = vmatpush1.xpose.msra.mxu0 0.0
        %3650 = vmatprep.subr.mxu0 0.0
        %3651 = vmatpush1.xpose.msra.mxu0 0.0
        %3652 = vmatprep.subr.mxu0 0.0
        %3653 = vmatpush1.xpose.msra.mxu0 0.0
        %3654 = vmatprep.subr.mxu0 0.0
        %3655 = vmatpush1.xpose.msra.mxu0 0.0
        %3656 = vmatprep.subr.mxu0 0.0
        %3657 = vmatpush1.xpose.msra.mxu0 0.0
        %3658 = vmatprep.subr.mxu0 0.0
        %3659 = vmatpush1.xpose.msra.mxu0 0.0
        %3660 = vmatprep.subr.mxu0 0.0
        %3661 = vmatpush1.xpose.msra.mxu0 0.0
        %3662 = vmatprep.subr.mxu0 0.0
        %3663 = vmatpush1.xpose.msra.mxu0 0.0
        %3664 = vmatprep.subr.mxu0 0.0
        %3665 = vmatpush1.xpose.msra.mxu0 0.0
        %3666 = vmatprep.subr.mxu0 0.0
        %3667 = vmatpush1.xpose.msra.mxu0 0.0
        %3668 = vmatprep.subr.mxu0 0.0
        %3669 = vmatpush1.xpose.msra.mxu0 0.0
        %3670 = vmatprep.mubr.f32.mxu0 0.0
        %v3671 = vand.u32 %v3375, 4294901760
        %v3672 = vsub.f32 %v3375, %v3671
        %v3673 = vand.u32 %v3672, 4294901760
        %3674 = vmatmul.mubr.f32.gmra.mrb[0].mxu0 %v3673
        %v3675 = vpop.f32.mrb[0].mxu0
        %v3676 = vadd.f32 %v3602, %v3675
        %v3677 = vpop.f32.mrb[0].mxu0
        %3678 = vdwg.mxu0
        %3679 = vmatprep.subr.mxu0 0.0
        %v3680 = vand.u32 %v3377, 4294901760
        %v3681 = vsub.f32 %v3377, %v3680
        %v3682 = vand.u32 %v3681, 4294901760
        %3683 = vmatpush1.xpose.msra.mxu0 %v3682
        %3684 = vmatprep.subr.mxu0 0.0
        %3685 = vmatpush1.xpose.msra.mxu0 0.0
        %3686 = vmatprep.subr.mxu0 0.0
        %3687 = vmatpush1.xpose.msra.mxu0 0.0
        %3688 = vmatprep.subr.mxu0 0.0
        %3689 = vmatpush1.xpose.msra.mxu0 0.0
        %3690 = vmatprep.subr.mxu0 0.0
        %3691 = vmatpush1.xpose.msra.mxu0 0.0
        %3692 = vmatprep.subr.mxu0 0.0
        %3693 = vmatpush1.xpose.msra.mxu0 0.0
        %3694 = vmatprep.subr.mxu0 0.0
        %3695 = vmatpush1.xpose.msra.mxu0 0.0
        %3696 = vmatprep.subr.mxu0 0.0
        %3697 = vmatpush1.xpose.msra.mxu0 0.0
        %3698 = vmatprep.subr.mxu0 0.0
        %3699 = vmatpush1.xpose.msra.mxu0 0.0
        %3700 = vmatprep.subr.mxu0 0.0
        %3701 = vmatpush1.xpose.msra.mxu0 0.0
        %3702 = vmatprep.subr.mxu0 0.0
        %3703 = vmatpush1.xpose.msra.mxu0 0.0
        %3704 = vmatprep.subr.mxu0 0.0
        %3705 = vmatpush1.xpose.msra.mxu0 0.0
        %3706 = vmatprep.subr.mxu0 0.0
        %3707 = vmatpush1.xpose.msra.mxu0 0.0
        %3708 = vmatprep.subr.mxu0 0.0
        %3709 = vmatpush1.xpose.msra.mxu0 0.0
        %3710 = vmatprep.subr.mxu0 0.0
        %3711 = vmatpush1.xpose.msra.mxu0 0.0
        %3712 = vmatprep.subr.mxu0 0.0
        %3713 = vmatpush1.xpose.msra.mxu0 0.0
        %3714 = vmatprep.subr.mxu0 0.0
        %3715 = vmatpush1.xpose.msra.mxu0 0.0
        %3716 = vmatprep.subr.mxu0 0.0
        %3717 = vmatpush1.xpose.msra.mxu0 0.0
        %3718 = vmatprep.subr.mxu0 0.0
        %3719 = vmatpush1.xpose.msra.mxu0 0.0
        %3720 = vmatprep.subr.mxu0 0.0
        %3721 = vmatpush1.xpose.msra.mxu0 0.0
        %3722 = vmatprep.subr.mxu0 0.0
        %3723 = vmatpush1.xpose.msra.mxu0 0.0
        %3724 = vmatprep.subr.mxu0 0.0
        %3725 = vmatpush1.xpose.msra.mxu0 0.0
        %3726 = vmatprep.subr.mxu0 0.0
        %3727 = vmatpush1.xpose.msra.mxu0 0.0
        %3728 = vmatprep.subr.mxu0 0.0
        %3729 = vmatpush1.xpose.msra.mxu0 0.0
        %3730 = vmatprep.subr.mxu0 0.0
        %3731 = vmatpush1.xpose.msra.mxu0 0.0
        %3732 = vmatprep.subr.mxu0 0.0
        %3733 = vmatpush1.xpose.msra.mxu0 0.0
        %3734 = vmatprep.subr.mxu0 0.0
        %3735 = vmatpush1.xpose.msra.mxu0 0.0
        %3736 = vmatprep.subr.mxu0 0.0
        %3737 = vmatpush1.xpose.msra.mxu0 0.0
        %3738 = vmatprep.subr.mxu0 0.0
        %3739 = vmatpush1.xpose.msra.mxu0 0.0
        %3740 = vmatprep.subr.mxu0 0.0
        %3741 = vmatpush1.xpose.msra.mxu0 0.0
        %3742 = vmatprep.subr.mxu0 0.0
        %3743 = vmatpush1.xpose.msra.mxu0 0.0
        %3744 = vmatprep.subr.mxu0 0.0
        %3745 = vmatpush1.xpose.msra.mxu0 0.0
        %3746 = vmatprep.mubr.f32.mxu0 0.0
        %v3747 = vand.u32 %v3375, 4294901760
        %3748 = vmatmul.mubr.f32.gmra.mrb[0].mxu0 %v3747
        %v3749 = vpop.f32.mrb[0].mxu0
        %v3750 = vadd.f32 %v3676, %v3749
        %v3751 = vpop.f32.mrb[0].mxu0
        %3752 = vdwg.mxu0
        %3753 = vmatprep.subr.mxu0 0.0
        %v3754 = vand.u32 %v3377, 4294901760
        %3755 = vmatpush1.xpose.msra.mxu0 %v3754
        %3756 = vmatprep.subr.mxu0 0.0
        %3757 = vmatpush1.xpose.msra.mxu0 0.0
        %3758 = vmatprep.subr.mxu0 0.0
        %3759 = vmatpush1.xpose.msra.mxu0 0.0
        %3760 = vmatprep.subr.mxu0 0.0
        %3761 = vmatpush1.xpose.msra.mxu0 0.0
        %3762 = vmatprep.subr.mxu0 0.0
        %3763 = vmatpush1.xpose.msra.mxu0 0.0
        %3764 = vmatprep.subr.mxu0 0.0
        %3765 = vmatpush1.xpose.msra.mxu0 0.0
        %3766 = vmatprep.subr.mxu0 0.0
        %3767 = vmatpush1.xpose.msra.mxu0 0.0
        %3768 = vmatprep.subr.mxu0 0.0
        %3769 = vmatpush1.xpose.msra.mxu0 0.0
        %3770 = vmatprep.subr.mxu0 0.0
        %3771 = vmatpush1.xpose.msra.mxu0 0.0
        %3772 = vmatprep.subr.mxu0 0.0
        %3773 = vmatpush1.xpose.msra.mxu0 0.0
        %3774 = vmatprep.subr.mxu0 0.0
        %3775 = vmatpush1.xpose.msra.mxu0 0.0
        %3776 = vmatprep.subr.mxu0 0.0
        %3777 = vmatpush1.xpose.msra.mxu0 0.0
        %3778 = vmatprep.subr.mxu0 0.0
        %3779 = vmatpush1.xpose.msra.mxu0 0.0
        %3780 = vmatprep.subr.mxu0 0.0
        %3781 = vmatpush1.xpose.msra.mxu0 0.0
        %3782 = vmatprep.subr.mxu0 0.0
        %3783 = vmatpush1.xpose.msra.mxu0 0.0
        %3784 = vmatprep.subr.mxu0 0.0
        %3785 = vmatpush1.xpose.msra.mxu0 0.0
        %3786 = vmatprep.subr.mxu0 0.0
        %3787 = vmatpush1.xpose.msra.mxu0 0.0
        %3788 = vmatprep.subr.mxu0 0.0
        %3789 = vmatpush1.xpose.msra.mxu0 0.0
        %3790 = vmatprep.subr.mxu0 0.0
        %3791 = vmatpush1.xpose.msra.mxu0 0.0
        %3792 = vmatprep.subr.mxu0 0.0
        %3793 = vmatpush1.xpose.msra.mxu0 0.0
        %3794 = vmatprep.subr.mxu0 0.0
        %3795 = vmatpush1.xpose.msra.mxu0 0.0
        %3796 = vmatprep.subr.mxu0 0.0
        %3797 = vmatpush1.xpose.msra.mxu0 0.0
        %3798 = vmatprep.subr.mxu0 0.0
        %3799 = vmatpush1.xpose.msra.mxu0 0.0
        %3800 = vmatprep.subr.mxu0 0.0
        %3801 = vmatpush1.xpose.msra.mxu0 0.0
        %3802 = vmatprep.subr.mxu0 0.0
        %3803 = vmatpush1.xpose.msra.mxu0 0.0
        %3804 = vmatprep.subr.mxu0 0.0
        %3805 = vmatpush1.xpose.msra.mxu0 0.0
        %3806 = vmatprep.subr.mxu0 0.0
        %3807 = vmatpush1.xpose.msra.mxu0 0.0
        %3808 = vmatprep.subr.mxu0 0.0
        %3809 = vmatpush1.xpose.msra.mxu0 0.0
        %3810 = vmatprep.subr.mxu0 0.0
        %3811 = vmatpush1.xpose.msra.mxu0 0.0
        %3812 = vmatprep.subr.mxu0 0.0
        %3813 = vmatpush1.xpose.msra.mxu0 0.0
        %3814 = vmatprep.subr.mxu0 0.0
        %3815 = vmatpush1.xpose.msra.mxu0 0.0
        %3816 = vmatprep.subr.mxu0 0.0
        %3817 = vmatpush1.xpose.msra.mxu0 0.0
        %3818 = vmatprep.mubr.f32.mxu0 0.0
        %v3819 = vand.u32 %v3375, 4294901760
        %3820 = vmatmul.mubr.f32.gmra.mrb[0].mxu0 %v3819
        %v3821 = vpop.f32.mrb[0].mxu0
        %v3822 = vadd.f32 %v3750, %v3821
        %v3823 = vpop.f32.mrb[0].mxu0
        %3824 = vdwg.mxu0
        %v3825 = vsel %vm2455, %v3822, -inf
        %v3826 = vsel %vm2910, %v3825, -inf
        %3827 = vmax.xlane.f32.xlu0 %v3826
        %v3828 = vpop.xlane.xlu0 %3827
        %v3829 = vsub.f32 %v3825, %v3828
        %v3830 = vmul.f32 %v3829, 1.442695
        %v3831 = vpow.pop %v3830
        %v3832 = vsel %vm2910, %v3831, 0.0
        %3833 = vadd.xlane.f32.xlu0 %v3832
        %v3834 = vpop.xlane.xlu0 %3833
        %v3835 = vrcp.pop %v3834
        %v3836 = vmul.f32 %v3831, %v3835
        %3838 = vrot.lane.b32.xlu0 %v2447, 96
        %v3839 = vpop.permute.xlu0 %3838
        %v3842 = vsel %vm2910, %v3836, 0
        %3844 = vmatprep.subr.mxu0 0.0
        %v3845 = vand.u32 %v3839, 4294901760
        %3846 = vmatpush1.msra.mxu0 %v3845
        %3847 = vmatprep.subr.mxu0 0.0
        %3848 = vmatpush1.msra.mxu0 0.0
        %3849 = vmatprep.subr.mxu0 0.0
        %3850 = vmatpush1.msra.mxu0 0.0
        %3851 = vmatprep.subr.mxu0 0.0
        %3852 = vmatpush1.msra.mxu0 0.0
        %3853 = vmatprep.subr.mxu0 0.0
        %3854 = vmatpush1.msra.mxu0 0.0
        %3855 = vmatprep.subr.mxu0 0.0
        %3856 = vmatpush1.msra.mxu0 0.0
        %3857 = vmatprep.subr.mxu0 0.0
        %3858 = vmatpush1.msra.mxu0 0.0
        %3859 = vmatprep.subr.mxu0 0.0
        %3860 = vmatpush1.msra.mxu0 0.0
        %3861 = vmatprep.subr.mxu0 0.0
        %3862 = vmatpush1.msra.mxu0 0.0
        %3863 = vmatprep.subr.mxu0 0.0
        %3864 = vmatpush1.msra.mxu0 0.0
        %3865 = vmatprep.subr.mxu0 0.0
        %3866 = vmatpush1.msra.mxu0 0.0
        %3867 = vmatprep.subr.mxu0 0.0
        %3868 = vmatpush1.msra.mxu0 0.0
        %3869 = vmatprep.subr.mxu0 0.0
        %3870 = vmatpush1.msra.mxu0 0.0
        %3871 = vmatprep.subr.mxu0 0.0
        %3872 = vmatpush1.msra.mxu0 0.0
        %3873 = vmatprep.subr.mxu0 0.0
        %3874 = vmatpush1.msra.mxu0 0.0
        %3875 = vmatprep.subr.mxu0 0.0
        %3876 = vmatpush1.msra.mxu0 0.0
        %3877 = vmatprep.subr.mxu0 0.0
        %3878 = vmatpush1.msra.mxu0 0.0
        %3879 = vmatprep.subr.mxu0 0.0
        %3880 = vmatpush1.msra.mxu0 0.0
        %3881 = vmatprep.subr.mxu0 0.0
        %3882 = vmatpush1.msra.mxu0 0.0
        %3883 = vmatprep.subr.mxu0 0.0
        %3884 = vmatpush1.msra.mxu0 0.0
        %3885 = vmatprep.subr.mxu0 0.0
        %3886 = vmatpush1.msra.mxu0 0.0
        %3887 = vmatprep.subr.mxu0 0.0
        %3888 = vmatpush1.msra.mxu0 0.0
        %3889 = vmatprep.subr.mxu0 0.0
        %3890 = vmatpush1.msra.mxu0 0.0
        %3891 = vmatprep.subr.mxu0 0.0
        %3892 = vmatpush1.msra.mxu0 0.0
        %3893 = vmatprep.subr.mxu0 0.0
        %3894 = vmatpush1.msra.mxu0 0.0
        %3895 = vmatprep.subr.mxu0 0.0
        %3896 = vmatpush1.msra.mxu0 0.0
        %3897 = vmatprep.subr.mxu0 0.0
        %3898 = vmatpush1.msra.mxu0 0.0
        %3899 = vmatprep.subr.mxu0 0.0
        %3900 = vmatpush1.msra.mxu0 0.0
        %3901 = vmatprep.subr.mxu0 0.0
        %3902 = vmatpush1.msra.mxu0 0.0
        %3903 = vmatprep.subr.mxu0 0.0
        %3904 = vmatpush1.msra.mxu0 0.0
        %3905 = vmatprep.subr.mxu0 0.0
        %3906 = vmatpush1.msra.mxu0 0.0
        %3907 = vmatprep.subr.mxu0 0.0
        %3908 = vmatpush1.msra.mxu0 0.0
        %3909 = vmatprep.mubr.f32.mxu0 0.0
        %v3910 = vand.u32 %v3842, 4294901760
        %v3911 = vsub.f32 %v3842, %v3910
        %v3912 = vand.u32 %v3911, 4294901760
        %v3913 = vsub.f32 %v3911, %v3912
        %v3914 = vand.u32 %v3913, 4294901760
        %3915 = vmatmul.mubr.f32.gmra.mrb[0].mxu0 %v3914
        %v3916 = vpop.f32.mrb[0].mxu0
        %v3917 = vadd.f32 0.0, %v3916
        %v3918 = vpop.f32.mrb[0].mxu0
        %3919 = vdwg.mxu0
        %3920 = vmatprep.subr.mxu0 0.0
        %v3921 = vand.u32 %v3839, 4294901760
        %v3922 = vsub.f32 %v3839, %v3921
        %v3923 = vand.u32 %v3922, 4294901760
        %v3924 = vsub.f32 %v3922, %v3923
        %v3925 = vand.u32 %v3924, 4294901760
        %3926 = vmatpush1.msra.mxu0 %v3925
        %3927 = vmatprep.subr.mxu0 0.0
        %3928 = vmatpush1.msra.mxu0 0.0
        %3929 = vmatprep.subr.mxu0 0.0
        %3930 = vmatpush1.msra.mxu0 0.0
        %3931 = vmatprep.subr.mxu0 0.0
        %3932 = vmatpush1.msra.mxu0 0.0
        %3933 = vmatprep.subr.mxu0 0.0
        %3934 = vmatpush1.msra.mxu0 0.0
        %3935 = vmatprep.subr.mxu0 0.0
        %3936 = vmatpush1.msra.mxu0 0.0
        %3937 = vmatprep.subr.mxu0 0.0
        %3938 = vmatpush1.msra.mxu0 0.0
        %3939 = vmatprep.subr.mxu0 0.0
        %3940 = vmatpush1.msra.mxu0 0.0
        %3941 = vmatprep.subr.mxu0 0.0
        %3942 = vmatpush1.msra.mxu0 0.0
        %3943 = vmatprep.subr.mxu0 0.0
        %3944 = vmatpush1.msra.mxu0 0.0
        %3945 = vmatprep.subr.mxu0 0.0
        %3946 = vmatpush1.msra.mxu0 0.0
        %3947 = vmatprep.subr.mxu0 0.0
        %3948 = vmatpush1.msra.mxu0 0.0
        %3949 = vmatprep.subr.mxu0 0.0
        %3950 = vmatpush1.msra.mxu0 0.0
        %3951 = vmatprep.subr.mxu0 0.0
        %3952 = vmatpush1.msra.mxu0 0.0
        %3953 = vmatprep.subr.mxu0 0.0
        %3954 = vmatpush1.msra.mxu0 0.0
        %3955 = vmatprep.subr.mxu0 0.0
        %3956 = vmatpush1.msra.mxu0 0.0
        %3957 = vmatprep.subr.mxu0 0.0
        %3958 = vmatpush1.msra.mxu0 0.0
        %3959 = vmatprep.subr.mxu0 0.0
        %3960 = vmatpush1.msra.mxu0 0.0
        %3961 = vmatprep.subr.mxu0 0.0
        %3962 = vmatpush1.msra.mxu0 0.0
        %3963 = vmatprep.subr.mxu0 0.0
        %3964 = vmatpush1.msra.mxu0 0.0
        %3965 = vmatprep.subr.mxu0 0.0
        %3966 = vmatpush1.msra.mxu0 0.0
        %3967 = vmatprep.subr.mxu0 0.0
        %3968 = vmatpush1.msra.mxu0 0.0
        %3969 = vmatprep.subr.mxu0 0.0
        %3970 = vmatpush1.msra.mxu0 0.0
        %3971 = vmatprep.subr.mxu0 0.0
        %3972 = vmatpush1.msra.mxu0 0.0
        %3973 = vmatprep.subr.mxu0 0.0
        %3974 = vmatpush1.msra.mxu0 0.0
        %3975 = vmatprep.subr.mxu0 0.0
        %3976 = vmatpush1.msra.mxu0 0.0
        %3977 = vmatprep.subr.mxu0 0.0
        %3978 = vmatpush1.msra.mxu0 0.0
        %3979 = vmatprep.subr.mxu0 0.0
        %3980 = vmatpush1.msra.mxu0 0.0
        %3981 = vmatprep.subr.mxu0 0.0
        %3982 = vmatpush1.msra.mxu0 0.0
        %3983 = vmatprep.subr.mxu0 0.0
        %3984 = vmatpush1.msra.mxu0 0.0
        %3985 = vmatprep.subr.mxu0 0.0
        %3986 = vmatpush1.msra.mxu0 0.0
        %3987 = vmatprep.subr.mxu0 0.0
        %3988 = vmatpush1.msra.mxu0 0.0
        %3989 = vmatprep.mubr.f32.mxu0 0.0
        %v3990 = vand.u32 %v3842, 4294901760
        %3991 = vmatmul.mubr.f32.gmra.mrb[0].mxu0 %v3990
        %v3992 = vpop.f32.mrb[0].mxu0
        %v3993 = vadd.f32 %v3917, %v3992
        %v3994 = vpop.f32.mrb[0].mxu0
        %3995 = vdwg.mxu0
        %3996 = vmatprep.subr.mxu0 0.0
        %v3997 = vand.u32 %v3839, 4294901760
        %v3998 = vsub.f32 %v3839, %v3997
        %3999 = vmatpush1.msra.mxu0 %v3998
        %4000 = vmatprep.subr.mxu0 0.0
        %4001 = vmatpush1.msra.mxu0 0.0
        %4002 = vmatprep.subr.mxu0 0.0
        %4003 = vmatpush1.msra.mxu0 0.0
        %4004 = vmatprep.subr.mxu0 0.0
        %4005 = vmatpush1.msra.mxu0 0.0
        %4006 = vmatprep.subr.mxu0 0.0
        %4007 = vmatpush1.msra.mxu0 0.0
        %4008 = vmatprep.subr.mxu0 0.0
        %4009 = vmatpush1.msra.mxu0 0.0
        %4010 = vmatprep.subr.mxu0 0.0
        %4011 = vmatpush1.msra.mxu0 0.0
        %4012 = vmatprep.subr.mxu0 0.0
        %4013 = vmatpush1.msra.mxu0 0.0
        %4014 = vmatprep.subr.mxu0 0.0
        %4015 = vmatpush1.msra.mxu0 0.0
        %4016 = vmatprep.subr.mxu0 0.0
        %4017 = vmatpush1.msra.mxu0 0.0
        %4018 = vmatprep.subr.mxu0 0.0
        %4019 = vmatpush1.msra.mxu0 0.0
        %4020 = vmatprep.subr.mxu0 0.0
        %4021 = vmatpush1.msra.mxu0 0.0
        %4022 = vmatprep.subr.mxu0 0.0
        %4023 = vmatpush1.msra.mxu0 0.0
        %4024 = vmatprep.subr.mxu0 0.0
        %4025 = vmatpush1.msra.mxu0 0.0
        %4026 = vmatprep.subr.mxu0 0.0
        %4027 = vmatpush1.msra.mxu0 0.0
        %4028 = vmatprep.subr.mxu0 0.0
        %4029 = vmatpush1.msra.mxu0 0.0
        %4030 = vmatprep.subr.mxu0 0.0
        %4031 = vmatpush1.msra.mxu0 0.0
        %4032 = vmatprep.subr.mxu0 0.0
        %4033 = vmatpush1.msra.mxu0 0.0
        %4034 = vmatprep.subr.mxu0 0.0
        %4035 = vmatpush1.msra.mxu0 0.0
        %4036 = vmatprep.subr.mxu0 0.0
        %4037 = vmatpush1.msra.mxu0 0.0
        %4038 = vmatprep.subr.mxu0 0.0
        %4039 = vmatpush1.msra.mxu0 0.0
        %4040 = vmatprep.subr.mxu0 0.0
        %4041 = vmatpush1.msra.mxu0 0.0
        %4042 = vmatprep.subr.mxu0 0.0
        %4043 = vmatpush1.msra.mxu0 0.0
        %4044 = vmatprep.subr.mxu0 0.0
        %4045 = vmatpush1.msra.mxu0 0.0
        %4046 = vmatprep.subr.mxu0 0.0
        %4047 = vmatpush1.msra.mxu0 0.0
        %4048 = vmatprep.subr.mxu0 0.0
        %4049 = vmatpush1.msra.mxu0 0.0
        %4050 = vmatprep.subr.mxu0 0.0
        %4051 = vmatpush1.msra.mxu0 0.0
        %4052 = vmatprep.subr.mxu0 0.0
        %4053 = vmatpush1.msra.mxu0 0.0
        %4054 = vmatprep.subr.mxu0 0.0
        %4055 = vmatpush1.msra.mxu0 0.0
        %4056 = vmatprep.subr.mxu0 0.0
        %4057 = vmatpush1.msra.mxu0 0.0
        %4058 = vmatprep.subr.mxu0 0.0
        %4059 = vmatpush1.msra.mxu0 0.0
        %4060 = vmatprep.subr.mxu0 0.0
        %4061 = vmatpush1.msra.mxu0 0.0
        %4062 = vmatprep.mubr.f32.mxu0 0.0
        %v4063 = vand.u32 %v3842, 4294901760
        %v4064 = vsub.f32 %v3842, %v4063
        %4065 = vmatmul.mubr.f32.gmra.mrb[0].mxu0 %v4064
        %v4066 = vpop.f32.mrb[0].mxu0
        %v4067 = vadd.f32 %v3993, %v4066
        %v4068 = vpop.f32.mrb[0].mxu0
        %4069 = vdwg.mxu0
        %4070 = vmatprep.subr.mxu0 0.0
        %v4071 = vand.u32 %v3839, 4294901760
        %4072 = vmatpush1.msra.mxu0 %v4071
        %4073 = vmatprep.subr.mxu0 0.0
        %4074 = vmatpush1.msra.mxu0 0.0
        %4075 = vmatprep.subr.mxu0 0.0
        %4076 = vmatpush1.msra.mxu0 0.0
        %4077 = vmatprep.subr.mxu0 0.0
        %4078 = vmatpush1.msra.mxu0 0.0
        %4079 = vmatprep.subr.mxu0 0.0
        %4080 = vmatpush1.msra.mxu0 0.0
        %4081 = vmatprep.subr.mxu0 0.0
        %4082 = vmatpush1.msra.mxu0 0.0
        %4083 = vmatprep.subr.mxu0 0.0
        %4084 = vmatpush1.msra.mxu0 0.0
        %4085 = vmatprep.subr.mxu0 0.0
        %4086 = vmatpush1.msra.mxu0 0.0
        %4087 = vmatprep.subr.mxu0 0.0
        %4088 = vmatpush1.msra.mxu0 0.0
        %4089 = vmatprep.subr.mxu0 0.0
        %4090 = vmatpush1.msra.mxu0 0.0
        %4091 = vmatprep.subr.mxu0 0.0
        %4092 = vmatpush1.msra.mxu0 0.0
        %4093 = vmatprep.subr.mxu0 0.0
        %4094 = vmatpush1.msra.mxu0 0.0
        %4095 = vmatprep.subr.mxu0 0.0
        %4096 = vmatpush1.msra.mxu0 0.0
        %4097 = vmatprep.subr.mxu0 0.0
        %4098 = vmatpush1.msra.mxu0 0.0
        %4099 = vmatprep.subr.mxu0 0.0
        %4100 = vmatpush1.msra.mxu0 0.0
        %4101 = vmatprep.subr.mxu0 0.0
        %4102 = vmatpush1.msra.mxu0 0.0
        %4103 = vmatprep.subr.mxu0 0.0
        %4104 = vmatpush1.msra.mxu0 0.0
        %4105 = vmatprep.subr.mxu0 0.0
        %4106 = vmatpush1.msra.mxu0 0.0
        %4107 = vmatprep.subr.mxu0 0.0
        %4108 = vmatpush1.msra.mxu0 0.0
        %4109 = vmatprep.subr.mxu0 0.0
        %4110 = vmatpush1.msra.mxu0 0.0
        %4111 = vmatprep.subr.mxu0 0.0
        %4112 = vmatpush1.msra.mxu0 0.0
        %4113 = vmatprep.subr.mxu0 0.0
        %4114 = vmatpush1.msra.mxu0 0.0
        %4115 = vmatprep.subr.mxu0 0.0
        %4116 = vmatpush1.msra.mxu0 0.0
        %4117 = vmatprep.subr.mxu0 0.0
        %4118 = vmatpush1.msra.mxu0 0.0
        %4119 = vmatprep.subr.mxu0 0.0
        %4120 = vmatpush1.msra.mxu0 0.0
        %4121 = vmatprep.subr.mxu0 0.0
        %4122 = vmatpush1.msra.mxu0 0.0
        %4123 = vmatprep.subr.mxu0 0.0
        %4124 = vmatpush1.msra.mxu0 0.0
        %4125 = vmatprep.subr.mxu0 0.0
        %4126 = vmatpush1.msra.mxu0 0.0
        %4127 = vmatprep.subr.mxu0 0.0
        %4128 = vmatpush1.msra.mxu0 0.0
        %4129 = vmatprep.subr.mxu0 0.0
        %4130 = vmatpush1.msra.mxu0 0.0
        %4131 = vmatprep.subr.mxu0 0.0
        %4132 = vmatpush1.msra.mxu0 0.0
        %4133 = vmatprep.subr.mxu0 0.0
        %4134 = vmatpush1.msra.mxu0 0.0
        %4135 = vmatprep.mubr.f32.mxu0 0.0
        %v4136 = vand.u32 %v3842, 4294901760
        %v4137 = vsub.f32 %v3842, %v4136
        %v4138 = vand.u32 %v4137, 4294901760
        %4139 = vmatmul.mubr.f32.gmra.mrb[0].mxu0 %v4138
        %v4140 = vpop.f32.mrb[0].mxu0
        %v4141 = vadd.f32 %v4067, %v4140
        %v4142 = vpop.f32.mrb[0].mxu0
        %4143 = vdwg.mxu0
        %4144 = vmatprep.subr.mxu0 0.0
        %v4145 = vand.u32 %v3839, 4294901760
        %v4146 = vsub.f32 %v3839, %v4145
        %v4147 = vand.u32 %v4146, 4294901760
        %4148 = vmatpush1.msra.mxu0 %v4147
        %4149 = vmatprep.subr.mxu0 0.0
        %4150 = vmatpush1.msra.mxu0 0.0
        %4151 = vmatprep.subr.mxu0 0.0
        %4152 = vmatpush1.msra.mxu0 0.0
        %4153 = vmatprep.subr.mxu0 0.0
        %4154 = vmatpush1.msra.mxu0 0.0
        %4155 = vmatprep.subr.mxu0 0.0
        %4156 = vmatpush1.msra.mxu0 0.0
        %4157 = vmatprep.subr.mxu0 0.0
        %4158 = vmatpush1.msra.mxu0 0.0
        %4159 = vmatprep.subr.mxu0 0.0
        %4160 = vmatpush1.msra.mxu0 0.0
        %4161 = vmatprep.subr.mxu0 0.0
        %4162 = vmatpush1.msra.mxu0 0.0
        %4163 = vmatprep.subr.mxu0 0.0
        %4164 = vmatpush1.msra.mxu0 0.0
        %4165 = vmatprep.subr.mxu0 0.0
        %4166 = vmatpush1.msra.mxu0 0.0
        %4167 = vmatprep.subr.mxu0 0.0
        %4168 = vmatpush1.msra.mxu0 0.0
        %4169 = vmatprep.subr.mxu0 0.0
        %4170 = vmatpush1.msra.mxu0 0.0
        %4171 = vmatprep.subr.mxu0 0.0
        %4172 = vmatpush1.msra.mxu0 0.0
        %4173 = vmatprep.subr.mxu0 0.0
        %4174 = vmatpush1.msra.mxu0 0.0
        %4175 = vmatprep.subr.mxu0 0.0
        %4176 = vmatpush1.msra.mxu0 0.0
        %4177 = vmatprep.subr.mxu0 0.0
        %4178 = vmatpush1.msra.mxu0 0.0
        %4179 = vmatprep.subr.mxu0 0.0
        %4180 = vmatpush1.msra.mxu0 0.0
        %4181 = vmatprep.subr.mxu0 0.0
        %4182 = vmatpush1.msra.mxu0 0.0
        %4183 = vmatprep.subr.mxu0 0.0
        %4184 = vmatpush1.msra.mxu0 0.0
        %4185 = vmatprep.subr.mxu0 0.0
        %4186 = vmatpush1.msra.mxu0 0.0
        %4187 = vmatprep.subr.mxu0 0.0
        %4188 = vmatpush1.msra.mxu0 0.0
        %4189 = vmatprep.subr.mxu0 0.0
        %4190 = vmatpush1.msra.mxu0 0.0
        %4191 = vmatprep.subr.mxu0 0.0
        %4192 = vmatpush1.msra.mxu0 0.0
        %4193 = vmatprep.subr.mxu0 0.0
        %4194 = vmatpush1.msra.mxu0 0.0
        %4195 = vmatprep.subr.mxu0 0.0
        %4196 = vmatpush1.msra.mxu0 0.0
        %4197 = vmatprep.subr.mxu0 0.0
        %4198 = vmatpush1.msra.mxu0 0.0
        %4199 = vmatprep.subr.mxu0 0.0
        %4200 = vmatpush1.msra.mxu0 0.0
        %4201 = vmatprep.subr.mxu0 0.0
        %4202 = vmatpush1.msra.mxu0 0.0
        %4203 = vmatprep.subr.mxu0 0.0
        %4204 = vmatpush1.msra.mxu0 0.0
        %4205 = vmatprep.subr.mxu0 0.0
        %4206 = vmatpush1.msra.mxu0 0.0
        %4207 = vmatprep.subr.mxu0 0.0
        %4208 = vmatpush1.msra.mxu0 0.0
        %4209 = vmatprep.subr.mxu0 0.0
        %4210 = vmatpush1.msra.mxu0 0.0
        %4211 = vmatprep.mubr.f32.mxu0 0.0
        %v4212 = vand.u32 %v3842, 4294901760
        %4213 = vmatmul.mubr.f32.gmra.mrb[0].mxu0 %v4212
        %v4214 = vpop.f32.mrb[0].mxu0
        %v4215 = vadd.f32 %v4141, %v4214
        %v4216 = vpop.f32.mrb[0].mxu0
        %4217 = vdwg.mxu0
        %4218 = vmatprep.subr.mxu0 0.0
        %v4219 = vand.u32 %v3839, 4294901760
        %4220 = vmatpush1.msra.mxu0 %v4219
        %4221 = vmatprep.subr.mxu0 0.0
        %4222 = vmatpush1.msra.mxu0 0.0
        %4223 = vmatprep.subr.mxu0 0.0
        %4224 = vmatpush1.msra.mxu0 0.0
        %4225 = vmatprep.subr.mxu0 0.0
        %4226 = vmatpush1.msra.mxu0 0.0
        %4227 = vmatprep.subr.mxu0 0.0
        %4228 = vmatpush1.msra.mxu0 0.0
        %4229 = vmatprep.subr.mxu0 0.0
        %4230 = vmatpush1.msra.mxu0 0.0
        %4231 = vmatprep.subr.mxu0 0.0
        %4232 = vmatpush1.msra.mxu0 0.0
        %4233 = vmatprep.subr.mxu0 0.0
        %4234 = vmatpush1.msra.mxu0 0.0
        %4235 = vmatprep.subr.mxu0 0.0
        %4236 = vmatpush1.msra.mxu0 0.0
        %4237 = vmatprep.subr.mxu0 0.0
        %4238 = vmatpush1.msra.mxu0 0.0
        %4239 = vmatprep.subr.mxu0 0.0
        %4240 = vmatpush1.msra.mxu0 0.0
        %4241 = vmatprep.subr.mxu0 0.0
        %4242 = vmatpush1.msra.mxu0 0.0
        %4243 = vmatprep.subr.mxu0 0.0
        %4244 = vmatpush1.msra.mxu0 0.0
        %4245 = vmatprep.subr.mxu0 0.0
        %4246 = vmatpush1.msra.mxu0 0.0
        %4247 = vmatprep.subr.mxu0 0.0
        %4248 = vmatpush1.msra.mxu0 0.0
        %4249 = vmatprep.subr.mxu0 0.0
        %4250 = vmatpush1.msra.mxu0 0.0
        %4251 = vmatprep.subr.mxu0 0.0
        %4252 = vmatpush1.msra.mxu0 0.0
        %4253 = vmatprep.subr.mxu0 0.0
        %4254 = vmatpush1.msra.mxu0 0.0
        %4255 = vmatprep.subr.mxu0 0.0
        %4256 = vmatpush1.msra.mxu0 0.0
        %4257 = vmatprep.subr.mxu0 0.0
        %4258 = vmatpush1.msra.mxu0 0.0
        %4259 = vmatprep.subr.mxu0 0.0
        %4260 = vmatpush1.msra.mxu0 0.0
        %4261 = vmatprep.subr.mxu0 0.0
        %4262 = vmatpush1.msra.mxu0 0.0
        %4263 = vmatprep.subr.mxu0 0.0
        %4264 = vmatpush1.msra.mxu0 0.0
        %4265 = vmatprep.subr.mxu0 0.0
        %4266 = vmatpush1.msra.mxu0 0.0
        %4267 = vmatprep.subr.mxu0 0.0
        %4268 = vmatpush1.msra.mxu0 0.0
        %4269 = vmatprep.subr.mxu0 0.0
        %4270 = vmatpush1.msra.mxu0 0.0
        %4271 = vmatprep.subr.mxu0 0.0
        %4272 = vmatpush1.msra.mxu0 0.0
        %4273 = vmatprep.subr.mxu0 0.0
        %4274 = vmatpush1.msra.mxu0 0.0
        %4275 = vmatprep.subr.mxu0 0.0
        %4276 = vmatpush1.msra.mxu0 0.0
        %4277 = vmatprep.subr.mxu0 0.0
        %4278 = vmatpush1.msra.mxu0 0.0
        %4279 = vmatprep.subr.mxu0 0.0
        %4280 = vmatpush1.msra.mxu0 0.0
        %4281 = vmatprep.subr.mxu0 0.0
        %4282 = vmatpush1.msra.mxu0 0.0
        %4283 = vmatprep.mubr.f32.mxu0 0.0
        %v4284 = vand.u32 %v3842, 4294901760
        %4285 = vmatmul.mubr.f32.gmra.mrb[0].mxu0 %v4284
        %v4286 = vpop.f32.mrb[0].mxu0
        %v4287 = vadd.f32 %v4215, %v4286
        %v4288 = vpop.f32.mrb[0].mxu0
        %4289 = vdwg.mxu0
        %4290 = vrot.lane.b32.xlu0 %v2450, 64
        %v4291 = vpop.permute.xlu0 %4290
        %4292 = vrot.lane.b32.xlu0 %v1792, 64
        %v4293 = vpop.permute.xlu0 %4292
        %v4294 = vsel %vm2456, %v4291, 0
        %v4296 = vsel %vm2456, %v4293, 0
        %4298 = vmatprep.subr.mxu0 0.0
        %v4299 = vand.u32 %v4296, 4294901760
        %4300 = vmatpush1.xpose.msra.mxu0 %v4299
        %4301 = vmatprep.subr.mxu0 0.0
        %4302 = vmatpush1.xpose.msra.mxu0 0.0
        %4303 = vmatprep.subr.mxu0 0.0
        %4304 = vmatpush1.xpose.msra.mxu0 0.0
        %4305 = vmatprep.subr.mxu0 0.0
        %4306 = vmatpush1.xpose.msra.mxu0 0.0
        %4307 = vmatprep.subr.mxu0 0.0
        %4308 = vmatpush1.xpose.msra.mxu0 0.0
        %4309 = vmatprep.subr.mxu0 0.0
        %4310 = vmatpush1.xpose.msra.mxu0 0.0
        %4311 = vmatprep.subr.mxu0 0.0
        %4312 = vmatpush1.xpose.msra.mxu0 0.0
        %4313 = vmatprep.subr.mxu0 0.0
        %4314 = vmatpush1.xpose.msra.mxu0 0.0
        %4315 = vmatprep.subr.mxu0 0.0
        %4316 = vmatpush1.xpose.msra.mxu0 0.0
        %4317 = vmatprep.subr.mxu0 0.0
        %4318 = vmatpush1.xpose.msra.mxu0 0.0
        %4319 = vmatprep.subr.mxu0 0.0
        %4320 = vmatpush1.xpose.msra.mxu0 0.0
        %4321 = vmatprep.subr.mxu0 0.0
        %4322 = vmatpush1.xpose.msra.mxu0 0.0
        %4323 = vmatprep.subr.mxu0 0.0
        %4324 = vmatpush1.xpose.msra.mxu0 0.0
        %4325 = vmatprep.subr.mxu0 0.0
        %4326 = vmatpush1.xpose.msra.mxu0 0.0
        %4327 = vmatprep.subr.mxu0 0.0
        %4328 = vmatpush1.xpose.msra.mxu0 0.0
        %4329 = vmatprep.subr.mxu0 0.0
        %4330 = vmatpush1.xpose.msra.mxu0 0.0
        %4331 = vmatprep.subr.mxu0 0.0
        %4332 = vmatpush1.xpose.msra.mxu0 0.0
        %4333 = vmatprep.subr.mxu0 0.0
        %4334 = vmatpush1.xpose.msra.mxu0 0.0
        %4335 = vmatprep.subr.mxu0 0.0
        %4336 = vmatpush1.xpose.msra.mxu0 0.0
        %4337 = vmatprep.subr.mxu0 0.0
        %4338 = vmatpush1.xpose.msra.mxu0 0.0
        %4339 = vmatprep.subr.mxu0 0.0
        %4340 = vmatpush1.xpose.msra.mxu0 0.0
        %4341 = vmatprep.subr.mxu0 0.0
        %4342 = vmatpush1.xpose.msra.mxu0 0.0
        %4343 = vmatprep.subr.mxu0 0.0
        %4344 = vmatpush1.xpose.msra.mxu0 0.0
        %4345 = vmatprep.subr.mxu0 0.0
        %4346 = vmatpush1.xpose.msra.mxu0 0.0
        %4347 = vmatprep.subr.mxu0 0.0
        %4348 = vmatpush1.xpose.msra.mxu0 0.0
        %4349 = vmatprep.subr.mxu0 0.0
        %4350 = vmatpush1.xpose.msra.mxu0 0.0
        %4351 = vmatprep.subr.mxu0 0.0
        %4352 = vmatpush1.xpose.msra.mxu0 0.0
        %4353 = vmatprep.subr.mxu0 0.0
        %4354 = vmatpush1.xpose.msra.mxu0 0.0
        %4355 = vmatprep.subr.mxu0 0.0
        %4356 = vmatpush1.xpose.msra.mxu0 0.0
        %4357 = vmatprep.subr.mxu0 0.0
        %4358 = vmatpush1.xpose.msra.mxu0 0.0
        %4359 = vmatprep.subr.mxu0 0.0
        %4360 = vmatpush1.xpose.msra.mxu0 0.0
        %4361 = vmatprep.subr.mxu0 0.0
        %4362 = vmatpush1.xpose.msra.mxu0 0.0
        %4363 = vmatprep.mubr.f32.mxu0 0.0
        %v4364 = vand.u32 %v4294, 4294901760
        %v4365 = vsub.f32 %v4294, %v4364
        %v4366 = vand.u32 %v4365, 4294901760
        %v4367 = vsub.f32 %v4365, %v4366
        %v4368 = vand.u32 %v4367, 4294901760
        %4369 = vmatmul.mubr.f32.gmra.mrb[0].mxu0 %v4368
        %v4370 = vpop.f32.mrb[0].mxu0
        %v4371 = vadd.f32 0.0, %v4370
        %v4372 = vpop.f32.mrb[0].mxu0
        %4373 = vdwg.mxu0
        %4374 = vmatprep.subr.mxu0 0.0
        %v4375 = vand.u32 %v4296, 4294901760
        %v4376 = vsub.f32 %v4296, %v4375
        %v4377 = vand.u32 %v4376, 4294901760
        %v4378 = vsub.f32 %v4376, %v4377
        %v4379 = vand.u32 %v4378, 4294901760
        %4380 = vmatpush1.xpose.msra.mxu0 %v4379
        %4381 = vmatprep.subr.mxu0 0.0
        %4382 = vmatpush1.xpose.msra.mxu0 0.0
        %4383 = vmatprep.subr.mxu0 0.0
        %4384 = vmatpush1.xpose.msra.mxu0 0.0
        %4385 = vmatprep.subr.mxu0 0.0
        %4386 = vmatpush1.xpose.msra.mxu0 0.0
        %4387 = vmatprep.subr.mxu0 0.0
        %4388 = vmatpush1.xpose.msra.mxu0 0.0
        %4389 = vmatprep.subr.mxu0 0.0
        %4390 = vmatpush1.xpose.msra.mxu0 0.0
        %4391 = vmatprep.subr.mxu0 0.0
        %4392 = vmatpush1.xpose.msra.mxu0 0.0
        %4393 = vmatprep.subr.mxu0 0.0
        %4394 = vmatpush1.xpose.msra.mxu0 0.0
        %4395 = vmatprep.subr.mxu0 0.0
        %4396 = vmatpush1.xpose.msra.mxu0 0.0
        %4397 = vmatprep.subr.mxu0 0.0
        %4398 = vmatpush1.xpose.msra.mxu0 0.0
        %4399 = vmatprep.subr.mxu0 0.0
        %4400 = vmatpush1.xpose.msra.mxu0 0.0
        %4401 = vmatprep.subr.mxu0 0.0
        %4402 = vmatpush1.xpose.msra.mxu0 0.0
        %4403 = vmatprep.subr.mxu0 0.0
        %4404 = vmatpush1.xpose.msra.mxu0 0.0
        %4405 = vmatprep.subr.mxu0 0.0
        %4406 = vmatpush1.xpose.msra.mxu0 0.0
        %4407 = vmatprep.subr.mxu0 0.0
        %4408 = vmatpush1.xpose.msra.mxu0 0.0
        %4409 = vmatprep.subr.mxu0 0.0
        %4410 = vmatpush1.xpose.msra.mxu0 0.0
        %4411 = vmatprep.subr.mxu0 0.0
        %4412 = vmatpush1.xpose.msra.mxu0 0.0
        %4413 = vmatprep.subr.mxu0 0.0
        %4414 = vmatpush1.xpose.msra.mxu0 0.0
        %4415 = vmatprep.subr.mxu0 0.0
        %4416 = vmatpush1.xpose.msra.mxu0 0.0
        %4417 = vmatprep.subr.mxu0 0.0
        %4418 = vmatpush1.xpose.msra.mxu0 0.0
        %4419 = vmatprep.subr.mxu0 0.0
        %4420 = vmatpush1.xpose.msra.mxu0 0.0
        %4421 = vmatprep.subr.mxu0 0.0
        %4422 = vmatpush1.xpose.msra.mxu0 0.0
        %4423 = vmatprep.subr.mxu0 0.0
        %4424 = vmatpush1.xpose.msra.mxu0 0.0
        %4425 = vmatprep.subr.mxu0 0.0
        %4426 = vmatpush1.xpose.msra.mxu0 0.0
        %4427 = vmatprep.subr.mxu0 0.0
        %4428 = vmatpush1.xpose.msra.mxu0 0.0
        %4429 = vmatprep.subr.mxu0 0.0
        %4430 = vmatpush1.xpose.msra.mxu0 0.0
        %4431 = vmatprep.subr.mxu0 0.0
        %4432 = vmatpush1.xpose.msra.mxu0 0.0
        %4433 = vmatprep.subr.mxu0 0.0
        %4434 = vmatpush1.xpose.msra.mxu0 0.0
        %4435 = vmatprep.subr.mxu0 0.0
        %4436 = vmatpush1.xpose.msra.mxu0 0.0
        %4437 = vmatprep.subr.mxu0 0.0
        %4438 = vmatpush1.xpose.msra.mxu0 0.0
        %4439 = vmatprep.subr.mxu0 0.0
        %4440 = vmatpush1.xpose.msra.mxu0 0.0
        %4441 = vmatprep.subr.mxu0 0.0
        %4442 = vmatpush1.xpose.msra.mxu0 0.0
        %4443 = vmatprep.mubr.f32.mxu0 0.0
        %v4444 = vand.u32 %v4294, 4294901760
        %4445 = vmatmul.mubr.f32.gmra.mrb[0].mxu0 %v4444
        %v4446 = vpop.f32.mrb[0].mxu0
        %v4447 = vadd.f32 %v4371, %v4446
        %v4448 = vpop.f32.mrb[0].mxu0
        %4449 = vdwg.mxu0
        %4450 = vmatprep.subr.mxu0 0.0
        %v4451 = vand.u32 %v4296, 4294901760
        %v4452 = vsub.f32 %v4296, %v4451
        %4453 = vmatpush1.xpose.msra.mxu0 %v4452
        %4454 = vmatprep.subr.mxu0 0.0
        %4455 = vmatpush1.xpose.msra.mxu0 0.0
        %4456 = vmatprep.subr.mxu0 0.0
        %4457 = vmatpush1.xpose.msra.mxu0 0.0
        %4458 = vmatprep.subr.mxu0 0.0
        %4459 = vmatpush1.xpose.msra.mxu0 0.0
        %4460 = vmatprep.subr.mxu0 0.0
        %4461 = vmatpush1.xpose.msra.mxu0 0.0
        %4462 = vmatprep.subr.mxu0 0.0
        %4463 = vmatpush1.xpose.msra.mxu0 0.0
        %4464 = vmatprep.subr.mxu0 0.0
        %4465 = vmatpush1.xpose.msra.mxu0 0.0
        %4466 = vmatprep.subr.mxu0 0.0
        %4467 = vmatpush1.xpose.msra.mxu0 0.0
        %4468 = vmatprep.subr.mxu0 0.0
        %4469 = vmatpush1.xpose.msra.mxu0 0.0
        %4470 = vmatprep.subr.mxu0 0.0
        %4471 = vmatpush1.xpose.msra.mxu0 0.0
        %4472 = vmatprep.subr.mxu0 0.0
        %4473 = vmatpush1.xpose.msra.mxu0 0.0
        %4474 = vmatprep.subr.mxu0 0.0
        %4475 = vmatpush1.xpose.msra.mxu0 0.0
        %4476 = vmatprep.subr.mxu0 0.0
        %4477 = vmatpush1.xpose.msra.mxu0 0.0
        %4478 = vmatprep.subr.mxu0 0.0
        %4479 = vmatpush1.xpose.msra.mxu0 0.0
        %4480 = vmatprep.subr.mxu0 0.0
        %4481 = vmatpush1.xpose.msra.mxu0 0.0
        %4482 = vmatprep.subr.mxu0 0.0
        %4483 = vmatpush1.xpose.msra.mxu0 0.0
        %4484 = vmatprep.subr.mxu0 0.0
        %4485 = vmatpush1.xpose.msra.mxu0 0.0
        %4486 = vmatprep.subr.mxu0 0.0
        %4487 = vmatpush1.xpose.msra.mxu0 0.0
        %4488 = vmatprep.subr.mxu0 0.0
        %4489 = vmatpush1.xpose.msra.mxu0 0.0
        %4490 = vmatprep.subr.mxu0 0.0
        %4491 = vmatpush1.xpose.msra.mxu0 0.0
        %4492 = vmatprep.subr.mxu0 0.0
        %4493 = vmatpush1.xpose.msra.mxu0 0.0
        %4494 = vmatprep.subr.mxu0 0.0
        %4495 = vmatpush1.xpose.msra.mxu0 0.0
        %4496 = vmatprep.subr.mxu0 0.0
        %4497 = vmatpush1.xpose.msra.mxu0 0.0
        %4498 = vmatprep.subr.mxu0 0.0
        %4499 = vmatpush1.xpose.msra.mxu0 0.0
        %4500 = vmatprep.subr.mxu0 0.0
        %4501 = vmatpush1.xpose.msra.mxu0 0.0
        %4502 = vmatprep.subr.mxu0 0.0
        %4503 = vmatpush1.xpose.msra.mxu0 0.0
        %4504 = vmatprep.subr.mxu0 0.0
        %4505 = vmatpush1.xpose.msra.mxu0 0.0
        %4506 = vmatprep.subr.mxu0 0.0
        %4507 = vmatpush1.xpose.msra.mxu0 0.0
        %4508 = vmatprep.subr.mxu0 0.0
        %4509 = vmatpush1.xpose.msra.mxu0 0.0
        %4510 = vmatprep.subr.mxu0 0.0
        %4511 = vmatpush1.xpose.msra.mxu0 0.0
        %4512 = vmatprep.subr.mxu0 0.0
        %4513 = vmatpush1.xpose.msra.mxu0 0.0
        %4514 = vmatprep.subr.mxu0 0.0
        %4515 = vmatpush1.xpose.msra.mxu0 0.0
        %4516 = vmatprep.mubr.f32.mxu0 0.0
        %v4517 = vand.u32 %v4294, 4294901760
        %v4518 = vsub.f32 %v4294, %v4517
        %4519 = vmatmul.mubr.f32.gmra.mrb[0].mxu0 %v4518
        %v4520 = vpop.f32.mrb[0].mxu0
        %v4521 = vadd.f32 %v4447, %v4520
        %v4522 = vpop.f32.mrb[0].mxu0
        %4523 = vdwg.mxu0
        %4524 = vmatprep.subr.mxu0 0.0
        %v4525 = vand.u32 %v4296, 4294901760
        %4526 = vmatpush1.xpose.msra.mxu0 %v4525
        %4527 = vmatprep.subr.mxu0 0.0
        %4528 = vmatpush1.xpose.msra.mxu0 0.0
        %4529 = vmatprep.subr.mxu0 0.0
        %4530 = vmatpush1.xpose.msra.mxu0 0.0
        %4531 = vmatprep.subr.mxu0 0.0
        %4532 = vmatpush1.xpose.msra.mxu0 0.0
        %4533 = vmatprep.subr.mxu0 0.0
        %4534 = vmatpush1.xpose.msra.mxu0 0.0
        %4535 = vmatprep.subr.mxu0 0.0
        %4536 = vmatpush1.xpose.msra.mxu0 0.0
        %4537 = vmatprep.subr.mxu0 0.0
        %4538 = vmatpush1.xpose.msra.mxu0 0.0
        %4539 = vmatprep.subr.mxu0 0.0
        %4540 = vmatpush1.xpose.msra.mxu0 0.0
        %4541 = vmatprep.subr.mxu0 0.0
        %4542 = vmatpush1.xpose.msra.mxu0 0.0
        %4543 = vmatprep.subr.mxu0 0.0
        %4544 = vmatpush1.xpose.msra.mxu0 0.0
        %4545 = vmatprep.subr.mxu0 0.0
        %4546 = vmatpush1.xpose.msra.mxu0 0.0
        %4547 = vmatprep.subr.mxu0 0.0
        %4548 = vmatpush1.xpose.msra.mxu0 0.0
        %4549 = vmatprep.subr.mxu0 0.0
        %4550 = vmatpush1.xpose.msra.mxu0 0.0
        %4551 = vmatprep.subr.mxu0 0.0
        %4552 = vmatpush1.xpose.msra.mxu0 0.0
        %4553 = vmatprep.subr.mxu0 0.0
        %4554 = vmatpush1.xpose.msra.mxu0 0.0
        %4555 = vmatprep.subr.mxu0 0.0
        %4556 = vmatpush1.xpose.msra.mxu0 0.0
        %4557 = vmatprep.subr.mxu0 0.0
        %4558 = vmatpush1.xpose.msra.mxu0 0.0
        %4559 = vmatprep.subr.mxu0 0.0
        %4560 = vmatpush1.xpose.msra.mxu0 0.0
        %4561 = vmatprep.subr.mxu0 0.0
        %4562 = vmatpush1.xpose.msra.mxu0 0.0
        %4563 = vmatprep.subr.mxu0 0.0
        %4564 = vmatpush1.xpose.msra.mxu0 0.0
        %4565 = vmatprep.subr.mxu0 0.0
        %4566 = vmatpush1.xpose.msra.mxu0 0.0
        %4567 = vmatprep.subr.mxu0 0.0
        %4568 = vmatpush1.xpose.msra.mxu0 0.0
        %4569 = vmatprep.subr.mxu0 0.0
        %4570 = vmatpush1.xpose.msra.mxu0 0.0
        %4571 = vmatprep.subr.mxu0 0.0
        %4572 = vmatpush1.xpose.msra.mxu0 0.0
        %4573 = vmatprep.subr.mxu0 0.0
        %4574 = vmatpush1.xpose.msra.mxu0 0.0
        %4575 = vmatprep.subr.mxu0 0.0
        %4576 = vmatpush1.xpose.msra.mxu0 0.0
        %4577 = vmatprep.subr.mxu0 0.0
        %4578 = vmatpush1.xpose.msra.mxu0 0.0
        %4579 = vmatprep.subr.mxu0 0.0
        %4580 = vmatpush1.xpose.msra.mxu0 0.0
        %4581 = vmatprep.subr.mxu0 0.0
        %4582 = vmatpush1.xpose.msra.mxu0 0.0
        %4583 = vmatprep.subr.mxu0 0.0
        %4584 = vmatpush1.xpose.msra.mxu0 0.0
        %4585 = vmatprep.subr.mxu0 0.0
        %4586 = vmatpush1.xpose.msra.mxu0 0.0
        %4587 = vmatprep.subr.mxu0 0.0
        %4588 = vmatpush1.xpose.msra.mxu0 0.0
        %4589 = vmatprep.mubr.f32.mxu0 0.0
        %v4590 = vand.u32 %v4294, 4294901760
        %v4591 = vsub.f32 %v4294, %v4590
        %v4592 = vand.u32 %v4591, 4294901760
        %4593 = vmatmul.mubr.f32.gmra.mrb[0].mxu0 %v4592
        %v4594 = vpop.f32.mrb[0].mxu0
        %v4595 = vadd.f32 %v4521, %v4594
        %v4596 = vpop.f32.mrb[0].mxu0
        %4597 = vdwg.mxu0
        %4598 = vmatprep.subr.mxu0 0.0
        %v4599 = vand.u32 %v4296, 4294901760
        %v4600 = vsub.f32 %v4296, %v4599
        %v4601 = vand.u32 %v4600, 4294901760
        %4602 = vmatpush1.xpose.msra.mxu0 %v4601
        %4603 = vmatprep.subr.mxu0 0.0
        %4604 = vmatpush1.xpose.msra.mxu0 0.0
        %4605 = vmatprep.subr.mxu0 0.0
        %4606 = vmatpush1.xpose.msra.mxu0 0.0
        %4607 = vmatprep.subr.mxu0 0.0
        %4608 = vmatpush1.xpose.msra.mxu0 0.0
        %4609 = vmatprep.subr.mxu0 0.0
        %4610 = vmatpush1.xpose.msra.mxu0 0.0
        %4611 = vmatprep.subr.mxu0 0.0
        %4612 = vmatpush1.xpose.msra.mxu0 0.0
        %4613 = vmatprep.subr.mxu0 0.0
        %4614 = vmatpush1.xpose.msra.mxu0 0.0
        %4615 = vmatprep.subr.mxu0 0.0
        %4616 = vmatpush1.xpose.msra.mxu0 0.0
        %4617 = vmatprep.subr.mxu0 0.0
        %4618 = vmatpush1.xpose.msra.mxu0 0.0
        %4619 = vmatprep.subr.mxu0 0.0
        %4620 = vmatpush1.xpose.msra.mxu0 0.0
        %4621 = vmatprep.subr.mxu0 0.0
        %4622 = vmatpush1.xpose.msra.mxu0 0.0
        %4623 = vmatprep.subr.mxu0 0.0
        %4624 = vmatpush1.xpose.msra.mxu0 0.0
        %4625 = vmatprep.subr.mxu0 0.0
        %4626 = vmatpush1.xpose.msra.mxu0 0.0
        %4627 = vmatprep.subr.mxu0 0.0
        %4628 = vmatpush1.xpose.msra.mxu0 0.0
        %4629 = vmatprep.subr.mxu0 0.0
        %4630 = vmatpush1.xpose.msra.mxu0 0.0
        %4631 = vmatprep.subr.mxu0 0.0
        %4632 = vmatpush1.xpose.msra.mxu0 0.0
        %4633 = vmatprep.subr.mxu0 0.0
        %4634 = vmatpush1.xpose.msra.mxu0 0.0
        %4635 = vmatprep.subr.mxu0 0.0
        %4636 = vmatpush1.xpose.msra.mxu0 0.0
        %4637 = vmatprep.subr.mxu0 0.0
        %4638 = vmatpush1.xpose.msra.mxu0 0.0
        %4639 = vmatprep.subr.mxu0 0.0
        %4640 = vmatpush1.xpose.msra.mxu0 0.0
        %4641 = vmatprep.subr.mxu0 0.0
        %4642 = vmatpush1.xpose.msra.mxu0 0.0
        %4643 = vmatprep.subr.mxu0 0.0
        %4644 = vmatpush1.xpose.msra.mxu0 0.0
        %4645 = vmatprep.subr.mxu0 0.0
        %4646 = vmatpush1.xpose.msra.mxu0 0.0
        %4647 = vmatprep.subr.mxu0 0.0
        %4648 = vmatpush1.xpose.msra.mxu0 0.0
        %4649 = vmatprep.subr.mxu0 0.0
        %4650 = vmatpush1.xpose.msra.mxu0 0.0
        %4651 = vmatprep.subr.mxu0 0.0
        %4652 = vmatpush1.xpose.msra.mxu0 0.0
        %4653 = vmatprep.subr.mxu0 0.0
        %4654 = vmatpush1.xpose.msra.mxu0 0.0
        %4655 = vmatprep.subr.mxu0 0.0
        %4656 = vmatpush1.xpose.msra.mxu0 0.0
        %4657 = vmatprep.subr.mxu0 0.0
        %4658 = vmatpush1.xpose.msra.mxu0 0.0
        %4659 = vmatprep.subr.mxu0 0.0
        %4660 = vmatpush1.xpose.msra.mxu0 0.0
        %4661 = vmatprep.subr.mxu0 0.0
        %4662 = vmatpush1.xpose.msra.mxu0 0.0
        %4663 = vmatprep.subr.mxu0 0.0
        %4664 = vmatpush1.xpose.msra.mxu0 0.0
        %4665 = vmatprep.mubr.f32.mxu0 0.0
        %v4666 = vand.u32 %v4294, 4294901760
        %4667 = vmatmul.mubr.f32.gmra.mrb[0].mxu0 %v4666
        %v4668 = vpop.f32.mrb[0].mxu0
        %v4669 = vadd.f32 %v4595, %v4668
        %v4670 = vpop.f32.mrb[0].mxu0
        %4671 = vdwg.mxu0
        %4672 = vmatprep.subr.mxu0 0.0
        %v4673 = vand.u32 %v4296, 4294901760
        %4674 = vmatpush1.xpose.msra.mxu0 %v4673
        %4675 = vmatprep.subr.mxu0 0.0
        %4676 = vmatpush1.xpose.msra.mxu0 0.0
        %4677 = vmatprep.subr.mxu0 0.0
        %4678 = vmatpush1.xpose.msra.mxu0 0.0
        %4679 = vmatprep.subr.mxu0 0.0
        %4680 = vmatpush1.xpose.msra.mxu0 0.0
        %4681 = vmatprep.subr.mxu0 0.0
        %4682 = vmatpush1.xpose.msra.mxu0 0.0
        %4683 = vmatprep.subr.mxu0 0.0
        %4684 = vmatpush1.xpose.msra.mxu0 0.0
        %4685 = vmatprep.subr.mxu0 0.0
        %4686 = vmatpush1.xpose.msra.mxu0 0.0
        %4687 = vmatprep.subr.mxu0 0.0
        %4688 = vmatpush1.xpose.msra.mxu0 0.0
        %4689 = vmatprep.subr.mxu0 0.0
        %4690 = vmatpush1.xpose.msra.mxu0 0.0
        %4691 = vmatprep.subr.mxu0 0.0
        %4692 = vmatpush1.xpose.msra.mxu0 0.0
        %4693 = vmatprep.subr.mxu0 0.0
        %4694 = vmatpush1.xpose.msra.mxu0 0.0
        %4695 = vmatprep.subr.mxu0 0.0
        %4696 = vmatpush1.xpose.msra.mxu0 0.0
        %4697 = vmatprep.subr.mxu0 0.0
        %4698 = vmatpush1.xpose.msra.mxu0 0.0
        %4699 = vmatprep.subr.mxu0 0.0
        %4700 = vmatpush1.xpose.msra.mxu0 0.0
        %4701 = vmatprep.subr.mxu0 0.0
        %4702 = vmatpush1.xpose.msra.mxu0 0.0
        %4703 = vmatprep.subr.mxu0 0.0
        %4704 = vmatpush1.xpose.msra.mxu0 0.0
        %4705 = vmatprep.subr.mxu0 0.0
        %4706 = vmatpush1.xpose.msra.mxu0 0.0
        %4707 = vmatprep.subr.mxu0 0.0
        %4708 = vmatpush1.xpose.msra.mxu0 0.0
        %4709 = vmatprep.subr.mxu0 0.0
        %4710 = vmatpush1.xpose.msra.mxu0 0.0
        %4711 = vmatprep.subr.mxu0 0.0
        %4712 = vmatpush1.xpose.msra.mxu0 0.0
        %4713 = vmatprep.subr.mxu0 0.0
        %4714 = vmatpush1.xpose.msra.mxu0 0.0
        %4715 = vmatprep.subr.mxu0 0.0
        %4716 = vmatpush1.xpose.msra.mxu0 0.0
        %4717 = vmatprep.subr.mxu0 0.0
        %4718 = vmatpush1.xpose.msra.mxu0 0.0
        %4719 = vmatprep.subr.mxu0 0.0
        %4720 = vmatpush1.xpose.msra.mxu0 0.0
        %4721 = vmatprep.subr.mxu0 0.0
        %4722 = vmatpush1.xpose.msra.mxu0 0.0
        %4723 = vmatprep.subr.mxu0 0.0
        %4724 = vmatpush1.xpose.msra.mxu0 0.0
        %4725 = vmatprep.subr.mxu0 0.0
        %4726 = vmatpush1.xpose.msra.mxu0 0.0
        %4727 = vmatprep.subr.mxu0 0.0
        %4728 = vmatpush1.xpose.msra.mxu0 0.0
        %4729 = vmatprep.subr.mxu0 0.0
        %4730 = vmatpush1.xpose.msra.mxu0 0.0
        %4731 = vmatprep.subr.mxu0 0.0
        %4732 = vmatpush1.xpose.msra.mxu0 0.0
        %4733 = vmatprep.subr.mxu0 0.0
        %4734 = vmatpush1.xpose.msra.mxu0 0.0
        %4735 = vmatprep.subr.mxu0 0.0
        %4736 = vmatpush1.xpose.msra.mxu0 0.0
        %4737 = vmatprep.mubr.f32.mxu0 0.0
        %v4738 = vand.u32 %v4294, 4294901760
        %4739 = vmatmul.mubr.f32.gmra.mrb[0].mxu0 %v4738
        %v4740 = vpop.f32.mrb[0].mxu0
        %v4741 = vadd.f32 %v4669, %v4740
        %v4742 = vpop.f32.mrb[0].mxu0
        %4743 = vdwg.mxu0
        %v4744 = vsel %vm2455, %v4741, -inf
        %v4745 = vsel %vm2910, %v4744, -inf
        %4746 = vmax.xlane.f32.xlu0 %v4745
        %v4747 = vpop.xlane.xlu0 %4746
        %v4748 = vsub.f32 %v4744, %v4747
        %v4749 = vmul.f32 %v4748, 1.442695
        %v4750 = vpow.pop %v4749
        %v4751 = vsel %vm2910, %v4750, 0.0
        %4752 = vadd.xlane.f32.xlu0 %v4751
        %v4753 = vpop.xlane.xlu0 %4752
        %v4754 = vrcp.pop %v4753
        %v4755 = vmul.f32 %v4750, %v4754
        %4756 = vrot.lane.b32.xlu0 %v2447, 64
        %v4757 = vpop.permute.xlu0 %4756
        %v4760 = vsel %vm2910, %v4755, 0
        %4762 = vmatprep.subr.mxu0 0.0
        %v4763 = vand.u32 %v4757, 4294901760
        %4764 = vmatpush1.msra.mxu0 %v4763
        %4765 = vmatprep.subr.mxu0 0.0
        %4766 = vmatpush1.msra.mxu0 0.0
        %4767 = vmatprep.subr.mxu0 0.0
        %4768 = vmatpush1.msra.mxu0 0.0
        %4769 = vmatprep.subr.mxu0 0.0
        %4770 = vmatpush1.msra.mxu0 0.0
        %4771 = vmatprep.subr.mxu0 0.0
        %4772 = vmatpush1.msra.mxu0 0.0
        %4773 = vmatprep.subr.mxu0 0.0
        %4774 = vmatpush1.msra.mxu0 0.0
        %4775 = vmatprep.subr.mxu0 0.0
        %4776 = vmatpush1.msra.mxu0 0.0
        %4777 = vmatprep.subr.mxu0 0.0
        %4778 = vmatpush1.msra.mxu0 0.0
        %4779 = vmatprep.subr.mxu0 0.0
        %4780 = vmatpush1.msra.mxu0 0.0
        %4781 = vmatprep.subr.mxu0 0.0
        %4782 = vmatpush1.msra.mxu0 0.0
        %4783 = vmatprep.subr.mxu0 0.0
        %4784 = vmatpush1.msra.mxu0 0.0
        %4785 = vmatprep.subr.mxu0 0.0
        %4786 = vmatpush1.msra.mxu0 0.0
        %4787 = vmatprep.subr.mxu0 0.0
        %4788 = vmatpush1.msra.mxu0 0.0
        %4789 = vmatprep.subr.mxu0 0.0
        %4790 = vmatpush1.msra.mxu0 0.0
        %4791 = vmatprep.subr.mxu0 0.0
        %4792 = vmatpush1.msra.mxu0 0.0
        %4793 = vmatprep.subr.mxu0 0.0
        %4794 = vmatpush1.msra.mxu0 0.0
        %4795 = vmatprep.subr.mxu0 0.0
        %4796 = vmatpush1.msra.mxu0 0.0
        %4797 = vmatprep.subr.mxu0 0.0
        %4798 = vmatpush1.msra.mxu0 0.0
        %4799 = vmatprep.subr.mxu0 0.0
        %4800 = vmatpush1.msra.mxu0 0.0
        %4801 = vmatprep.subr.mxu0 0.0
        %4802 = vmatpush1.msra.mxu0 0.0
        %4803 = vmatprep.subr.mxu0 0.0
        %4804 = vmatpush1.msra.mxu0 0.0
        %4805 = vmatprep.subr.mxu0 0.0
        %4806 = vmatpush1.msra.mxu0 0.0
        %4807 = vmatprep.subr.mxu0 0.0
        %4808 = vmatpush1.msra.mxu0 0.0
        %4809 = vmatprep.subr.mxu0 0.0
        %4810 = vmatpush1.msra.mxu0 0.0
        %4811 = vmatprep.subr.mxu0 0.0
        %4812 = vmatpush1.msra.mxu0 0.0
        %4813 = vmatprep.subr.mxu0 0.0
        %4814 = vmatpush1.msra.mxu0 0.0
        %4815 = vmatprep.subr.mxu0 0.0
        %4816 = vmatpush1.msra.mxu0 0.0
        %4817 = vmatprep.subr.mxu0 0.0
        %4818 = vmatpush1.msra.mxu0 0.0
        %4819 = vmatprep.subr.mxu0 0.0
        %4820 = vmatpush1.msra.mxu0 0.0
        %4821 = vmatprep.subr.mxu0 0.0
        %4822 = vmatpush1.msra.mxu0 0.0
        %4823 = vmatprep.subr.mxu0 0.0
        %4824 = vmatpush1.msra.mxu0 0.0
        %4825 = vmatprep.subr.mxu0 0.0
        %4826 = vmatpush1.msra.mxu0 0.0
        %4827 = vmatprep.mubr.f32.mxu0 0.0
        %v4828 = vand.u32 %v4760, 4294901760
        %v4829 = vsub.f32 %v4760, %v4828
        %v4830 = vand.u32 %v4829, 4294901760
        %v4831 = vsub.f32 %v4829, %v4830
        %v4832 = vand.u32 %v4831, 4294901760
        %4833 = vmatmul.mubr.f32.gmra.mrb[0].mxu0 %v4832
        %v4834 = vpop.f32.mrb[0].mxu0
        %v4835 = vadd.f32 0.0, %v4834
        %v4836 = vpop.f32.mrb[0].mxu0
        %4837 = vdwg.mxu0
        %4838 = vmatprep.subr.mxu0 0.0
        %v4839 = vand.u32 %v4757, 4294901760
        %v4840 = vsub.f32 %v4757, %v4839
        %v4841 = vand.u32 %v4840, 4294901760
        %v4842 = vsub.f32 %v4840, %v4841
        %v4843 = vand.u32 %v4842, 4294901760
        %4844 = vmatpush1.msra.mxu0 %v4843
        %4845 = vmatprep.subr.mxu0 0.0
        %4846 = vmatpush1.msra.mxu0 0.0
        %4847 = vmatprep.subr.mxu0 0.0
        %4848 = vmatpush1.msra.mxu0 0.0
        %4849 = vmatprep.subr.mxu0 0.0
        %4850 = vmatpush1.msra.mxu0 0.0
        %4851 = vmatprep.subr.mxu0 0.0
        %4852 = vmatpush1.msra.mxu0 0.0
        %4853 = vmatprep.subr.mxu0 0.0
        %4854 = vmatpush1.msra.mxu0 0.0
        %4855 = vmatprep.subr.mxu0 0.0
        %4856 = vmatpush1.msra.mxu0 0.0
        %4857 = vmatprep.subr.mxu0 0.0
        %4858 = vmatpush1.msra.mxu0 0.0
        %4859 = vmatprep.subr.mxu0 0.0
        %4860 = vmatpush1.msra.mxu0 0.0
        %4861 = vmatprep.subr.mxu0 0.0
        %4862 = vmatpush1.msra.mxu0 0.0
        %4863 = vmatprep.subr.mxu0 0.0
        %4864 = vmatpush1.msra.mxu0 0.0
        %4865 = vmatprep.subr.mxu0 0.0
        %4866 = vmatpush1.msra.mxu0 0.0
        %4867 = vmatprep.subr.mxu0 0.0
        %4868 = vmatpush1.msra.mxu0 0.0
        %4869 = vmatprep.subr.mxu0 0.0
        %4870 = vmatpush1.msra.mxu0 0.0
        %4871 = vmatprep.subr.mxu0 0.0
        %4872 = vmatpush1.msra.mxu0 0.0
        %4873 = vmatprep.subr.mxu0 0.0
        %4874 = vmatpush1.msra.mxu0 0.0
        %4875 = vmatprep.subr.mxu0 0.0
        %4876 = vmatpush1.msra.mxu0 0.0
        %4877 = vmatprep.subr.mxu0 0.0
        %4878 = vmatpush1.msra.mxu0 0.0
        %4879 = vmatprep.subr.mxu0 0.0
        %4880 = vmatpush1.msra.mxu0 0.0
        %4881 = vmatprep.subr.mxu0 0.0
        %4882 = vmatpush1.msra.mxu0 0.0
        %4883 = vmatprep.subr.mxu0 0.0
        %4884 = vmatpush1.msra.mxu0 0.0
        %4885 = vmatprep.subr.mxu0 0.0
        %4886 = vmatpush1.msra.mxu0 0.0
        %4887 = vmatprep.subr.mxu0 0.0
        %4888 = vmatpush1.msra.mxu0 0.0
        %4889 = vmatprep.subr.mxu0 0.0
        %4890 = vmatpush1.msra.mxu0 0.0
        %4891 = vmatprep.subr.mxu0 0.0
        %4892 = vmatpush1.msra.mxu0 0.0
        %4893 = vmatprep.subr.mxu0 0.0
        %4894 = vmatpush1.msra.mxu0 0.0
        %4895 = vmatprep.subr.mxu0 0.0
        %4896 = vmatpush1.msra.mxu0 0.0
        %4897 = vmatprep.subr.mxu0 0.0
        %4898 = vmatpush1.msra.mxu0 0.0
        %4899 = vmatprep.subr.mxu0 0.0
        %4900 = vmatpush1.msra.mxu0 0.0
        %4901 = vmatprep.subr.mxu0 0.0
        %4902 = vmatpush1.msra.mxu0 0.0
        %4903 = vmatprep.subr.mxu0 0.0
        %4904 = vmatpush1.msra.mxu0 0.0
        %4905 = vmatprep.subr.mxu0 0.0
        %4906 = vmatpush1.msra.mxu0 0.0
        %4907 = vmatprep.mubr.f32.mxu0 0.0
        %v4908 = vand.u32 %v4760, 4294901760
        %4909 = vmatmul.mubr.f32.gmra.mrb[0].mxu0 %v4908
        %v4910 = vpop.f32.mrb[0].mxu0
        %v4911 = vadd.f32 %v4835, %v4910
        %v4912 = vpop.f32.mrb[0].mxu0
        %4913 = vdwg.mxu0
        %4914 = vmatprep.subr.mxu0 0.0
        %v4915 = vand.u32 %v4757, 4294901760
        %v4916 = vsub.f32 %v4757, %v4915
        %4917 = vmatpush1.msra.mxu0 %v4916
        %4918 = vmatprep.subr.mxu0 0.0
        %4919 = vmatpush1.msra.mxu0 0.0
        %4920 = vmatprep.subr.mxu0 0.0
        %4921 = vmatpush1.msra.mxu0 0.0
        %4922 = vmatprep.subr.mxu0 0.0
        %4923 = vmatpush1.msra.mxu0 0.0
        %4924 = vmatprep.subr.mxu0 0.0
        %4925 = vmatpush1.msra.mxu0 0.0
        %4926 = vmatprep.subr.mxu0 0.0
        %4927 = vmatpush1.msra.mxu0 0.0
        %4928 = vmatprep.subr.mxu0 0.0
        %4929 = vmatpush1.msra.mxu0 0.0
        %4930 = vmatprep.subr.mxu0 0.0
        %4931 = vmatpush1.msra.mxu0 0.0
        %4932 = vmatprep.subr.mxu0 0.0
        %4933 = vmatpush1.msra.mxu0 0.0
        %4934 = vmatprep.subr.mxu0 0.0
        %4935 = vmatpush1.msra.mxu0 0.0
        %4936 = vmatprep.subr.mxu0 0.0
        %4937 = vmatpush1.msra.mxu0 0.0
        %4938 = vmatprep.subr.mxu0 0.0
        %4939 = vmatpush1.msra.mxu0 0.0
        %4940 = vmatprep.subr.mxu0 0.0
        %4941 = vmatpush1.msra.mxu0 0.0
        %4942 = vmatprep.subr.mxu0 0.0
        %4943 = vmatpush1.msra.mxu0 0.0
        %4944 = vmatprep.subr.mxu0 0.0
        %4945 = vmatpush1.msra.mxu0 0.0
        %4946 = vmatprep.subr.mxu0 0.0
        %4947 = vmatpush1.msra.mxu0 0.0
        %4948 = vmatprep.subr.mxu0 0.0
        %4949 = vmatpush1.msra.mxu0 0.0
        %4950 = vmatprep.subr.mxu0 0.0
        %4951 = vmatpush1.msra.mxu0 0.0
        %4952 = vmatprep.subr.mxu0 0.0
        %4953 = vmatpush1.msra.mxu0 0.0
        %4954 = vmatprep.subr.mxu0 0.0
        %4955 = vmatpush1.msra.mxu0 0.0
        %4956 = vmatprep.subr.mxu0 0.0
        %4957 = vmatpush1.msra.mxu0 0.0
        %4958 = vmatprep.subr.mxu0 0.0
        %4959 = vmatpush1.msra.mxu0 0.0
        %4960 = vmatprep.subr.mxu0 0.0
        %4961 = vmatpush1.msra.mxu0 0.0
        %4962 = vmatprep.subr.mxu0 0.0
        %4963 = vmatpush1.msra.mxu0 0.0
        %4964 = vmatprep.subr.mxu0 0.0
        %4965 = vmatpush1.msra.mxu0 0.0
        %4966 = vmatprep.subr.mxu0 0.0
        %4967 = vmatpush1.msra.mxu0 0.0
        %4968 = vmatprep.subr.mxu0 0.0
        %4969 = vmatpush1.msra.mxu0 0.0
        %4970 = vmatprep.subr.mxu0 0.0
        %4971 = vmatpush1.msra.mxu0 0.0
        %4972 = vmatprep.subr.mxu0 0.0
        %4973 = vmatpush1.msra.mxu0 0.0
        %4974 = vmatprep.subr.mxu0 0.0
        %4975 = vmatpush1.msra.mxu0 0.0
        %4976 = vmatprep.subr.mxu0 0.0
        %4977 = vmatpush1.msra.mxu0 0.0
        %4978 = vmatprep.subr.mxu0 0.0
        %4979 = vmatpush1.msra.mxu0 0.0
        %4980 = vmatprep.mubr.f32.mxu0 0.0
        %v4981 = vand.u32 %v4760, 4294901760
        %v4982 = vsub.f32 %v4760, %v4981
        %4983 = vmatmul.mubr.f32.gmra.mrb[0].mxu0 %v4982
        %v4984 = vpop.f32.mrb[0].mxu0
        %v4985 = vadd.f32 %v4911, %v4984
        %v4986 = vpop.f32.mrb[0].mxu0
        %4987 = vdwg.mxu0
        %4988 = vmatprep.subr.mxu0 0.0
        %v4989 = vand.u32 %v4757, 4294901760
        %4990 = vmatpush1.msra.mxu0 %v4989
        %4991 = vmatprep.subr.mxu0 0.0
        %4992 = vmatpush1.msra.mxu0 0.0
        %4993 = vmatprep.subr.mxu0 0.0
        %4994 = vmatpush1.msra.mxu0 0.0
        %4995 = vmatprep.subr.mxu0 0.0
        %4996 = vmatpush1.msra.mxu0 0.0
        %4997 = vmatprep.subr.mxu0 0.0
        %4998 = vmatpush1.msra.mxu0 0.0
        %4999 = vmatprep.subr.mxu0 0.0
        %5000 = vmatpush1.msra.mxu0 0.0
        %5001 = vmatprep.subr.mxu0 0.0
        %5002 = vmatpush1.msra.mxu0 0.0
        %5003 = vmatprep.subr.mxu0 0.0
        %5004 = vmatpush1.msra.mxu0 0.0
        %5005 = vmatprep.subr.mxu0 0.0
        %5006 = vmatpush1.msra.mxu0 0.0
        %5007 = vmatprep.subr.mxu0 0.0
        %5008 = vmatpush1.msra.mxu0 0.0
        %5009 = vmatprep.subr.mxu0 0.0
        %5010 = vmatpush1.msra.mxu0 0.0
        %5011 = vmatprep.subr.mxu0 0.0
        %5012 = vmatpush1.msra.mxu0 0.0
        %5013 = vmatprep.subr.mxu0 0.0
        %5014 = vmatpush1.msra.mxu0 0.0
        %5015 = vmatprep.subr.mxu0 0.0
        %5016 = vmatpush1.msra.mxu0 0.0
        %5017 = vmatprep.subr.mxu0 0.0
        %5018 = vmatpush1.msra.mxu0 0.0
        %5019 = vmatprep.subr.mxu0 0.0
        %5020 = vmatpush1.msra.mxu0 0.0
        %5021 = vmatprep.subr.mxu0 0.0
        %5022 = vmatpush1.msra.mxu0 0.0
        %5023 = vmatprep.subr.mxu0 0.0
        %5024 = vmatpush1.msra.mxu0 0.0
        %5025 = vmatprep.subr.mxu0 0.0
        %5026 = vmatpush1.msra.mxu0 0.0
        %5027 = vmatprep.subr.mxu0 0.0
        %5028 = vmatpush1.msra.mxu0 0.0
        %5029 = vmatprep.subr.mxu0 0.0
        %5030 = vmatpush1.msra.mxu0 0.0
        %5031 = vmatprep.subr.mxu0 0.0
        %5032 = vmatpush1.msra.mxu0 0.0
        %5033 = vmatprep.subr.mxu0 0.0
        %5034 = vmatpush1.msra.mxu0 0.0
        %5035 = vmatprep.subr.mxu0 0.0
        %5036 = vmatpush1.msra.mxu0 0.0
        %5037 = vmatprep.subr.mxu0 0.0
        %5038 = vmatpush1.msra.mxu0 0.0
        %5039 = vmatprep.subr.mxu0 0.0
        %5040 = vmatpush1.msra.mxu0 0.0
        %5041 = vmatprep.subr.mxu0 0.0
        %5042 = vmatpush1.msra.mxu0 0.0
        %5043 = vmatprep.subr.mxu0 0.0
        %5044 = vmatpush1.msra.mxu0 0.0
        %5045 = vmatprep.subr.mxu0 0.0
        %5046 = vmatpush1.msra.mxu0 0.0
        %5047 = vmatprep.subr.mxu0 0.0
        %5048 = vmatpush1.msra.mxu0 0.0
        %5049 = vmatprep.subr.mxu0 0.0
        %5050 = vmatpush1.msra.mxu0 0.0
        %5051 = vmatprep.subr.mxu0 0.0
        %5052 = vmatpush1.msra.mxu0 0.0
        %5053 = vmatprep.mubr.f32.mxu0 0.0
        %v5054 = vand.u32 %v4760, 4294901760
        %v5055 = vsub.f32 %v4760, %v5054
        %v5056 = vand.u32 %v5055, 4294901760
        %5057 = vmatmul.mubr.f32.gmra.mrb[0].mxu0 %v5056
        %v5058 = vpop.f32.mrb[0].mxu0
        %v5059 = vadd.f32 %v4985, %v5058
        %v5060 = vpop.f32.mrb[0].mxu0
        %5061 = vdwg.mxu0
        %5062 = vmatprep.subr.mxu0 0.0
        %v5063 = vand.u32 %v4757, 4294901760
        %v5064 = vsub.f32 %v4757, %v5063
        %v5065 = vand.u32 %v5064, 4294901760
        %5066 = vmatpush1.msra.mxu0 %v5065
        %5067 = vmatprep.subr.mxu0 0.0
        %5068 = vmatpush1.msra.mxu0 0.0
        %5069 = vmatprep.subr.mxu0 0.0
        %5070 = vmatpush1.msra.mxu0 0.0
        %5071 = vmatprep.subr.mxu0 0.0
        %5072 = vmatpush1.msra.mxu0 0.0
        %5073 = vmatprep.subr.mxu0 0.0
        %5074 = vmatpush1.msra.mxu0 0.0
        %5075 = vmatprep.subr.mxu0 0.0
        %5076 = vmatpush1.msra.mxu0 0.0
        %5077 = vmatprep.subr.mxu0 0.0
        %5078 = vmatpush1.msra.mxu0 0.0
        %5079 = vmatprep.subr.mxu0 0.0
        %5080 = vmatpush1.msra.mxu0 0.0
        %5081 = vmatprep.subr.mxu0 0.0
        %5082 = vmatpush1.msra.mxu0 0.0
        %5083 = vmatprep.subr.mxu0 0.0
        %5084 = vmatpush1.msra.mxu0 0.0
        %5085 = vmatprep.subr.mxu0 0.0
        %5086 = vmatpush1.msra.mxu0 0.0
        %5087 = vmatprep.subr.mxu0 0.0
        %5088 = vmatpush1.msra.mxu0 0.0
        %5089 = vmatprep.subr.mxu0 0.0
        %5090 = vmatpush1.msra.mxu0 0.0
        %5091 = vmatprep.subr.mxu0 0.0
        %5092 = vmatpush1.msra.mxu0 0.0
        %5093 = vmatprep.subr.mxu0 0.0
        %5094 = vmatpush1.msra.mxu0 0.0
        %5095 = vmatprep.subr.mxu0 0.0
        %5096 = vmatpush1.msra.mxu0 0.0
        %5097 = vmatprep.subr.mxu0 0.0
        %5098 = vmatpush1.msra.mxu0 0.0
        %5099 = vmatprep.subr.mxu0 0.0
        %5100 = vmatpush1.msra.mxu0 0.0
        %5101 = vmatprep.subr.mxu0 0.0
        %5102 = vmatpush1.msra.mxu0 0.0
        %5103 = vmatprep.subr.mxu0 0.0
        %5104 = vmatpush1.msra.mxu0 0.0
        %5105 = vmatprep.subr.mxu0 0.0
        %5106 = vmatpush1.msra.mxu0 0.0
        %5107 = vmatprep.subr.mxu0 0.0
        %5108 = vmatpush1.msra.mxu0 0.0
        %5109 = vmatprep.subr.mxu0 0.0
        %5110 = vmatpush1.msra.mxu0 0.0
        %5111 = vmatprep.subr.mxu0 0.0
        %5112 = vmatpush1.msra.mxu0 0.0
        %5113 = vmatprep.subr.mxu0 0.0
        %5114 = vmatpush1.msra.mxu0 0.0
        %5115 = vmatprep.subr.mxu0 0.0
        %5116 = vmatpush1.msra.mxu0 0.0
        %5117 = vmatprep.subr.mxu0 0.0
        %5118 = vmatpush1.msra.mxu0 0.0
        %5119 = vmatprep.subr.mxu0 0.0
        %5120 = vmatpush1.msra.mxu0 0.0
        %5121 = vmatprep.subr.mxu0 0.0
        %5122 = vmatpush1.msra.mxu0 0.0
        %5123 = vmatprep.subr.mxu0 0.0
        %5124 = vmatpush1.msra.mxu0 0.0
        %5125 = vmatprep.subr.mxu0 0.0
        %5126 = vmatpush1.msra.mxu0 0.0
        %5127 = vmatprep.subr.mxu0 0.0
        %5128 = vmatpush1.msra.mxu0 0.0
        %5129 = vmatprep.mubr.f32.mxu0 0.0
        %v5130 = vand.u32 %v4760, 4294901760
        %5131 = vmatmul.mubr.f32.gmra.mrb[0].mxu0 %v5130
        %v5132 = vpop.f32.mrb[0].mxu0
        %v5133 = vadd.f32 %v5059, %v5132
        %v5134 = vpop.f32.mrb[0].mxu0
        %5135 = vdwg.mxu0
        %5136 = vmatprep.subr.mxu0 0.0
        %v5137 = vand.u32 %v4757, 4294901760
        %5138 = vmatpush1.msra.mxu0 %v5137
        %5139 = vmatprep.subr.mxu0 0.0
        %5140 = vmatpush1.msra.mxu0 0.0
        %5141 = vmatprep.subr.mxu0 0.0
        %5142 = vmatpush1.msra.mxu0 0.0
        %5143 = vmatprep.subr.mxu0 0.0
        %5144 = vmatpush1.msra.mxu0 0.0
        %5145 = vmatprep.subr.mxu0 0.0
        %5146 = vmatpush1.msra.mxu0 0.0
        %5147 = vmatprep.subr.mxu0 0.0
        %5148 = vmatpush1.msra.mxu0 0.0
        %5149 = vmatprep.subr.mxu0 0.0
        %5150 = vmatpush1.msra.mxu0 0.0
        %5151 = vmatprep.subr.mxu0 0.0
        %5152 = vmatpush1.msra.mxu0 0.0
        %5153 = vmatprep.subr.mxu0 0.0
        %5154 = vmatpush1.msra.mxu0 0.0
        %5155 = vmatprep.subr.mxu0 0.0
        %5156 = vmatpush1.msra.mxu0 0.0
        %5157 = vmatprep.subr.mxu0 0.0
        %5158 = vmatpush1.msra.mxu0 0.0
        %5159 = vmatprep.subr.mxu0 0.0
        %5160 = vmatpush1.msra.mxu0 0.0
        %5161 = vmatprep.subr.mxu0 0.0
        %5162 = vmatpush1.msra.mxu0 0.0
        %5163 = vmatprep.subr.mxu0 0.0
        %5164 = vmatpush1.msra.mxu0 0.0
        %5165 = vmatprep.subr.mxu0 0.0
        %5166 = vmatpush1.msra.mxu0 0.0
        %5167 = vmatprep.subr.mxu0 0.0
        %5168 = vmatpush1.msra.mxu0 0.0
        %5169 = vmatprep.subr.mxu0 0.0
        %5170 = vmatpush1.msra.mxu0 0.0
        %5171 = vmatprep.subr.mxu0 0.0
        %5172 = vmatpush1.msra.mxu0 0.0
        %5173 = vmatprep.subr.mxu0 0.0
        %5174 = vmatpush1.msra.mxu0 0.0
        %5175 = vmatprep.subr.mxu0 0.0
        %5176 = vmatpush1.msra.mxu0 0.0
        %5177 = vmatprep.subr.mxu0 0.0
        %5178 = vmatpush1.msra.mxu0 0.0
        %5179 = vmatprep.subr.mxu0 0.0
        %5180 = vmatpush1.msra.mxu0 0.0
        %5181 = vmatprep.subr.mxu0 0.0
        %5182 = vmatpush1.msra.mxu0 0.0
        %5183 = vmatprep.subr.mxu0 0.0
        %5184 = vmatpush1.msra.mxu0 0.0
        %5185 = vmatprep.subr.mxu0 0.0
        %5186 = vmatpush1.msra.mxu0 0.0
        %5187 = vmatprep.subr.mxu0 0.0
        %5188 = vmatpush1.msra.mxu0 0.0
        %5189 = vmatprep.subr.mxu0 0.0
        %5190 = vmatpush1.msra.mxu0 0.0
        %5191 = vmatprep.subr.mxu0 0.0
        %5192 = vmatpush1.msra.mxu0 0.0
        %5193 = vmatprep.subr.mxu0 0.0
        %5194 = vmatpush1.msra.mxu0 0.0
        %5195 = vmatprep.subr.mxu0 0.0
        %5196 = vmatpush1.msra.mxu0 0.0
        %5197 = vmatprep.subr.mxu0 0.0
        %5198 = vmatpush1.msra.mxu0 0.0
        %5199 = vmatprep.subr.mxu0 0.0
        %5200 = vmatpush1.msra.mxu0 0.0
        %5201 = vmatprep.mubr.f32.mxu0 0.0
        %v5202 = vand.u32 %v4760, 4294901760
        %5203 = vmatmul.mubr.f32.gmra.mrb[0].mxu0 %v5202
        %v5204 = vpop.f32.mrb[0].mxu0
        %v5205 = vadd.f32 %v5133, %v5204
        %v5206 = vpop.f32.mrb[0].mxu0
        %5207 = vdwg.mxu0
        %5208 = vrot.lane.b32.xlu0 %v2450, 32
        %v5209 = vpop.permute.xlu0 %5208
        %5210 = vrot.lane.b32.xlu0 %v1792, 32
        %v5211 = vpop.permute.xlu0 %5210
        %v5212 = vsel %vm2456, %v5209, 0
        %v5214 = vsel %vm2456, %v5211, 0
        %5216 = vmatprep.subr.mxu0 0.0
        %v5217 = vand.u32 %v5214, 4294901760
        %5218 = vmatpush1.xpose.msra.mxu0 %v5217
        %5219 = vmatprep.subr.mxu0 0.0
        %5220 = vmatpush1.xpose.msra.mxu0 0.0
        %5221 = vmatprep.subr.mxu0 0.0
        %5222 = vmatpush1.xpose.msra.mxu0 0.0
        %5223 = vmatprep.subr.mxu0 0.0
        %5224 = vmatpush1.xpose.msra.mxu0 0.0
        %5225 = vmatprep.subr.mxu0 0.0
        %5226 = vmatpush1.xpose.msra.mxu0 0.0
        %5227 = vmatprep.subr.mxu0 0.0
        %5228 = vmatpush1.xpose.msra.mxu0 0.0
        %5229 = vmatprep.subr.mxu0 0.0
        %5230 = vmatpush1.xpose.msra.mxu0 0.0
        %5231 = vmatprep.subr.mxu0 0.0
        %5232 = vmatpush1.xpose.msra.mxu0 0.0
        %5233 = vmatprep.subr.mxu0 0.0
        %5234 = vmatpush1.xpose.msra.mxu0 0.0
        %5235 = vmatprep.subr.mxu0 0.0
        %5236 = vmatpush1.xpose.msra.mxu0 0.0
        %5237 = vmatprep.subr.mxu0 0.0
        %5238 = vmatpush1.xpose.msra.mxu0 0.0
        %5239 = vmatprep.subr.mxu0 0.0
        %5240 = vmatpush1.xpose.msra.mxu0 0.0
        %5241 = vmatprep.subr.mxu0 0.0
        %5242 = vmatpush1.xpose.msra.mxu0 0.0
        %5243 = vmatprep.subr.mxu0 0.0
        %5244 = vmatpush1.xpose.msra.mxu0 0.0
        %5245 = vmatprep.subr.mxu0 0.0
        %5246 = vmatpush1.xpose.msra.mxu0 0.0
        %5247 = vmatprep.subr.mxu0 0.0
        %5248 = vmatpush1.xpose.msra.mxu0 0.0
        %5249 = vmatprep.subr.mxu0 0.0
        %5250 = vmatpush1.xpose.msra.mxu0 0.0
        %5251 = vmatprep.subr.mxu0 0.0
        %5252 = vmatpush1.xpose.msra.mxu0 0.0
        %5253 = vmatprep.subr.mxu0 0.0
        %5254 = vmatpush1.xpose.msra.mxu0 0.0
        %5255 = vmatprep.subr.mxu0 0.0
        %5256 = vmatpush1.xpose.msra.mxu0 0.0
        %5257 = vmatprep.subr.mxu0 0.0
        %5258 = vmatpush1.xpose.msra.mxu0 0.0
        %5259 = vmatprep.subr.mxu0 0.0
        %5260 = vmatpush1.xpose.msra.mxu0 0.0
        %5261 = vmatprep.subr.mxu0 0.0
        %5262 = vmatpush1.xpose.msra.mxu0 0.0
        %5263 = vmatprep.subr.mxu0 0.0
        %5264 = vmatpush1.xpose.msra.mxu0 0.0
        %5265 = vmatprep.subr.mxu0 0.0
        %5266 = vmatpush1.xpose.msra.mxu0 0.0
        %5267 = vmatprep.subr.mxu0 0.0
        %5268 = vmatpush1.xpose.msra.mxu0 0.0
        %5269 = vmatprep.subr.mxu0 0.0
        %5270 = vmatpush1.xpose.msra.mxu0 0.0
        %5271 = vmatprep.subr.mxu0 0.0
        %5272 = vmatpush1.xpose.msra.mxu0 0.0
        %5273 = vmatprep.subr.mxu0 0.0
        %5274 = vmatpush1.xpose.msra.mxu0 0.0
        %5275 = vmatprep.subr.mxu0 0.0
        %5276 = vmatpush1.xpose.msra.mxu0 0.0
        %5277 = vmatprep.subr.mxu0 0.0
        %5278 = vmatpush1.xpose.msra.mxu0 0.0
        %5279 = vmatprep.subr.mxu0 0.0
        %5280 = vmatpush1.xpose.msra.mxu0 0.0
        %5281 = vmatprep.mubr.f32.mxu0 0.0
        %v5282 = vand.u32 %v5212, 4294901760
        %v5283 = vsub.f32 %v5212, %v5282
        %v5284 = vand.u32 %v5283, 4294901760
        %v5285 = vsub.f32 %v5283, %v5284
        %v5286 = vand.u32 %v5285, 4294901760
        %5287 = vmatmul.mubr.f32.gmra.mrb[0].mxu0 %v5286
        %v5288 = vpop.f32.mrb[0].mxu0
        %v5289 = vadd.f32 0.0, %v5288
        %v5290 = vpop.f32.mrb[0].mxu0
        %5291 = vdwg.mxu0
        %5292 = vmatprep.subr.mxu0 0.0
        %v5293 = vand.u32 %v5214, 4294901760
        %v5294 = vsub.f32 %v5214, %v5293
        %v5295 = vand.u32 %v5294, 4294901760
        %v5296 = vsub.f32 %v5294, %v5295
        %v5297 = vand.u32 %v5296, 4294901760
        %5298 = vmatpush1.xpose.msra.mxu0 %v5297
        %5299 = vmatprep.subr.mxu0 0.0
        %5300 = vmatpush1.xpose.msra.mxu0 0.0
        %5301 = vmatprep.subr.mxu0 0.0
        %5302 = vmatpush1.xpose.msra.mxu0 0.0
        %5303 = vmatprep.subr.mxu0 0.0
        %5304 = vmatpush1.xpose.msra.mxu0 0.0
        %5305 = vmatprep.subr.mxu0 0.0
        %5306 = vmatpush1.xpose.msra.mxu0 0.0
        %5307 = vmatprep.subr.mxu0 0.0
        %5308 = vmatpush1.xpose.msra.mxu0 0.0
        %5309 = vmatprep.subr.mxu0 0.0
        %5310 = vmatpush1.xpose.msra.mxu0 0.0
        %5311 = vmatprep.subr.mxu0 0.0
        %5312 = vmatpush1.xpose.msra.mxu0 0.0
        %5313 = vmatprep.subr.mxu0 0.0
        %5314 = vmatpush1.xpose.msra.mxu0 0.0
        %5315 = vmatprep.subr.mxu0 0.0
        %5316 = vmatpush1.xpose.msra.mxu0 0.0
        %5317 = vmatprep.subr.mxu0 0.0
        %5318 = vmatpush1.xpose.msra.mxu0 0.0
        %5319 = vmatprep.subr.mxu0 0.0
        %5320 = vmatpush1.xpose.msra.mxu0 0.0
        %5321 = vmatprep.subr.mxu0 0.0
        %5322 = vmatpush1.xpose.msra.mxu0 0.0
        %5323 = vmatprep.subr.mxu0 0.0
        %5324 = vmatpush1.xpose.msra.mxu0 0.0
        %5325 = vmatprep.subr.mxu0 0.0
        %5326 = vmatpush1.xpose.msra.mxu0 0.0
        %5327 = vmatprep.subr.mxu0 0.0
        %5328 = vmatpush1.xpose.msra.mxu0 0.0
        %5329 = vmatprep.subr.mxu0 0.0
        %5330 = vmatpush1.xpose.msra.mxu0 0.0
        %5331 = vmatprep.subr.mxu0 0.0
        %5332 = vmatpush1.xpose.msra.mxu0 0.0
        %5333 = vmatprep.subr.mxu0 0.0
        %5334 = vmatpush1.xpose.msra.mxu0 0.0
        %5335 = vmatprep.subr.mxu0 0.0
        %5336 = vmatpush1.xpose.msra.mxu0 0.0
        %5337 = vmatprep.subr.mxu0 0.0
        %5338 = vmatpush1.xpose.msra.mxu0 0.0
        %5339 = vmatprep.subr.mxu0 0.0
        %5340 = vmatpush1.xpose.msra.mxu0 0.0
        %5341 = vmatprep.subr.mxu0 0.0
        %5342 = vmatpush1.xpose.msra.mxu0 0.0
        %5343 = vmatprep.subr.mxu0 0.0
        %5344 = vmatpush1.xpose.msra.mxu0 0.0
        %5345 = vmatprep.subr.mxu0 0.0
        %5346 = vmatpush1.xpose.msra.mxu0 0.0
        %5347 = vmatprep.subr.mxu0 0.0
        %5348 = vmatpush1.xpose.msra.mxu0 0.0
        %5349 = vmatprep.subr.mxu0 0.0
        %5350 = vmatpush1.xpose.msra.mxu0 0.0
        %5351 = vmatprep.subr.mxu0 0.0
        %5352 = vmatpush1.xpose.msra.mxu0 0.0
        %5353 = vmatprep.subr.mxu0 0.0
        %5354 = vmatpush1.xpose.msra.mxu0 0.0
        %5355 = vmatprep.subr.mxu0 0.0
        %5356 = vmatpush1.xpose.msra.mxu0 0.0
        %5357 = vmatprep.subr.mxu0 0.0
        %5358 = vmatpush1.xpose.msra.mxu0 0.0
        %5359 = vmatprep.subr.mxu0 0.0
        %5360 = vmatpush1.xpose.msra.mxu0 0.0
        %5361 = vmatprep.mubr.f32.mxu0 0.0
        %v5362 = vand.u32 %v5212, 4294901760
        %5363 = vmatmul.mubr.f32.gmra.mrb[0].mxu0 %v5362
        %v5364 = vpop.f32.mrb[0].mxu0
        %v5365 = vadd.f32 %v5289, %v5364
        %v5366 = vpop.f32.mrb[0].mxu0
        %5367 = vdwg.mxu0
        %5368 = vmatprep.subr.mxu0 0.0
        %v5369 = vand.u32 %v5214, 4294901760
        %v5370 = vsub.f32 %v5214, %v5369
        %5371 = vmatpush1.xpose.msra.mxu0 %v5370
        %5372 = vmatprep.subr.mxu0 0.0
        %5373 = vmatpush1.xpose.msra.mxu0 0.0
        %5374 = vmatprep.subr.mxu0 0.0
        %5375 = vmatpush1.xpose.msra.mxu0 0.0
        %5376 = vmatprep.subr.mxu0 0.0
        %5377 = vmatpush1.xpose.msra.mxu0 0.0
        %5378 = vmatprep.subr.mxu0 0.0
        %5379 = vmatpush1.xpose.msra.mxu0 0.0
        %5380 = vmatprep.subr.mxu0 0.0
        %5381 = vmatpush1.xpose.msra.mxu0 0.0
        %5382 = vmatprep.subr.mxu0 0.0
        %5383 = vmatpush1.xpose.msra.mxu0 0.0
        %5384 = vmatprep.subr.mxu0 0.0
        %5385 = vmatpush1.xpose.msra.mxu0 0.0
        %5386 = vmatprep.subr.mxu0 0.0
        %5387 = vmatpush1.xpose.msra.mxu0 0.0
        %5388 = vmatprep.subr.mxu0 0.0
        %5389 = vmatpush1.xpose.msra.mxu0 0.0
        %5390 = vmatprep.subr.mxu0 0.0
        %5391 = vmatpush1.xpose.msra.mxu0 0.0
        %5392 = vmatprep.subr.mxu0 0.0
        %5393 = vmatpush1.xpose.msra.mxu0 0.0
        %5394 = vmatprep.subr.mxu0 0.0
        %5395 = vmatpush1.xpose.msra.mxu0 0.0
        %5396 = vmatprep.subr.mxu0 0.0
        %5397 = vmatpush1.xpose.msra.mxu0 0.0
        %5398 = vmatprep.subr.mxu0 0.0
        %5399 = vmatpush1.xpose.msra.mxu0 0.0
        %5400 = vmatprep.subr.mxu0 0.0
        %5401 = vmatpush1.xpose.msra.mxu0 0.0
        %5402 = vmatprep.subr.mxu0 0.0
        %5403 = vmatpush1.xpose.msra.mxu0 0.0
        %5404 = vmatprep.subr.mxu0 0.0
        %5405 = vmatpush1.xpose.msra.mxu0 0.0
        %5406 = vmatprep.subr.mxu0 0.0
        %5407 = vmatpush1.xpose.msra.mxu0 0.0
        %5408 = vmatprep.subr.mxu0 0.0
        %5409 = vmatpush1.xpose.msra.mxu0 0.0
        %5410 = vmatprep.subr.mxu0 0.0
        %5411 = vmatpush1.xpose.msra.mxu0 0.0
        %5412 = vmatprep.subr.mxu0 0.0
        %5413 = vmatpush1.xpose.msra.mxu0 0.0
        %5414 = vmatprep.subr.mxu0 0.0
        %5415 = vmatpush1.xpose.msra.mxu0 0.0
        %5416 = vmatprep.subr.mxu0 0.0
        %5417 = vmatpush1.xpose.msra.mxu0 0.0
        %5418 = vmatprep.subr.mxu0 0.0
        %5419 = vmatpush1.xpose.msra.mxu0 0.0
        %5420 = vmatprep.subr.mxu0 0.0
        %5421 = vmatpush1.xpose.msra.mxu0 0.0
        %5422 = vmatprep.subr.mxu0 0.0
        %5423 = vmatpush1.xpose.msra.mxu0 0.0
        %5424 = vmatprep.subr.mxu0 0.0
        %5425 = vmatpush1.xpose.msra.mxu0 0.0
        %5426 = vmatprep.subr.mxu0 0.0
        %5427 = vmatpush1.xpose.msra.mxu0 0.0
        %5428 = vmatprep.subr.mxu0 0.0
        %5429 = vmatpush1.xpose.msra.mxu0 0.0
        %5430 = vmatprep.subr.mxu0 0.0
        %5431 = vmatpush1.xpose.msra.mxu0 0.0
        %5432 = vmatprep.subr.mxu0 0.0
        %5433 = vmatpush1.xpose.msra.mxu0 0.0
        %5434 = vmatprep.mubr.f32.mxu0 0.0
        %v5435 = vand.u32 %v5212, 4294901760
        %v5436 = vsub.f32 %v5212, %v5435
        %5437 = vmatmul.mubr.f32.gmra.mrb[0].mxu0 %v5436
        %v5438 = vpop.f32.mrb[0].mxu0
        %v5439 = vadd.f32 %v5365, %v5438
        %v5440 = vpop.f32.mrb[0].mxu0
        %5441 = vdwg.mxu0
        %5442 = vmatprep.subr.mxu0 0.0
        %v5443 = vand.u32 %v5214, 4294901760
        %5444 = vmatpush1.xpose.msra.mxu0 %v5443
        %5445 = vmatprep.subr.mxu0 0.0
        %5446 = vmatpush1.xpose.msra.mxu0 0.0
        %5447 = vmatprep.subr.mxu0 0.0
        %5448 = vmatpush1.xpose.msra.mxu0 0.0
        %5449 = vmatprep.subr.mxu0 0.0
        %5450 = vmatpush1.xpose.msra.mxu0 0.0
        %5451 = vmatprep.subr.mxu0 0.0
        %5452 = vmatpush1.xpose.msra.mxu0 0.0
        %5453 = vmatprep.subr.mxu0 0.0
        %5454 = vmatpush1.xpose.msra.mxu0 0.0
        %5455 = vmatprep.subr.mxu0 0.0
        %5456 = vmatpush1.xpose.msra.mxu0 0.0
        %5457 = vmatprep.subr.mxu0 0.0
        %5458 = vmatpush1.xpose.msra.mxu0 0.0
        %5459 = vmatprep.subr.mxu0 0.0
        %5460 = vmatpush1.xpose.msra.mxu0 0.0
        %5461 = vmatprep.subr.mxu0 0.0
        %5462 = vmatpush1.xpose.msra.mxu0 0.0
        %5463 = vmatprep.subr.mxu0 0.0
        %5464 = vmatpush1.xpose.msra.mxu0 0.0
        %5465 = vmatprep.subr.mxu0 0.0
        %5466 = vmatpush1.xpose.msra.mxu0 0.0
        %5467 = vmatprep.subr.mxu0 0.0
        %5468 = vmatpush1.xpose.msra.mxu0 0.0
        %5469 = vmatprep.subr.mxu0 0.0
        %5470 = vmatpush1.xpose.msra.mxu0 0.0
        %5471 = vmatprep.subr.mxu0 0.0
        %5472 = vmatpush1.xpose.msra.mxu0 0.0
        %5473 = vmatprep.subr.mxu0 0.0
        %5474 = vmatpush1.xpose.msra.mxu0 0.0
        %5475 = vmatprep.subr.mxu0 0.0
        %5476 = vmatpush1.xpose.msra.mxu0 0.0
        %5477 = vmatprep.subr.mxu0 0.0
        %5478 = vmatpush1.xpose.msra.mxu0 0.0
        %5479 = vmatprep.subr.mxu0 0.0
        %5480 = vmatpush1.xpose.msra.mxu0 0.0
        %5481 = vmatprep.subr.mxu0 0.0
        %5482 = vmatpush1.xpose.msra.mxu0 0.0
        %5483 = vmatprep.subr.mxu0 0.0
        %5484 = vmatpush1.xpose.msra.mxu0 0.0
        %5485 = vmatprep.subr.mxu0 0.0
        %5486 = vmatpush1.xpose.msra.mxu0 0.0
        %5487 = vmatprep.subr.mxu0 0.0
        %5488 = vmatpush1.xpose.msra.mxu0 0.0
        %5489 = vmatprep.subr.mxu0 0.0
        %5490 = vmatpush1.xpose.msra.mxu0 0.0
        %5491 = vmatprep.subr.mxu0 0.0
        %5492 = vmatpush1.xpose.msra.mxu0 0.0
        %5493 = vmatprep.subr.mxu0 0.0
        %5494 = vmatpush1.xpose.msra.mxu0 0.0
        %5495 = vmatprep.subr.mxu0 0.0
        %5496 = vmatpush1.xpose.msra.mxu0 0.0
        %5497 = vmatprep.subr.mxu0 0.0
        %5498 = vmatpush1.xpose.msra.mxu0 0.0
        %5499 = vmatprep.subr.mxu0 0.0
        %5500 = vmatpush1.xpose.msra.mxu0 0.0
        %5501 = vmatprep.subr.mxu0 0.0
        %5502 = vmatpush1.xpose.msra.mxu0 0.0
        %5503 = vmatprep.subr.mxu0 0.0
        %5504 = vmatpush1.xpose.msra.mxu0 0.0
        %5505 = vmatprep.subr.mxu0 0.0
        %5506 = vmatpush1.xpose.msra.mxu0 0.0
        %5507 = vmatprep.mubr.f32.mxu0 0.0
        %v5508 = vand.u32 %v5212, 4294901760
        %v5509 = vsub.f32 %v5212, %v5508
        %v5510 = vand.u32 %v5509, 4294901760
        %5511 = vmatmul.mubr.f32.gmra.mrb[0].mxu0 %v5510
        %v5512 = vpop.f32.mrb[0].mxu0
        %v5513 = vadd.f32 %v5439, %v5512
        %v5514 = vpop.f32.mrb[0].mxu0
        %5515 = vdwg.mxu0
        %5516 = vmatprep.subr.mxu0 0.0
        %v5517 = vand.u32 %v5214, 4294901760
        %v5518 = vsub.f32 %v5214, %v5517
        %v5519 = vand.u32 %v5518, 4294901760
        %5520 = vmatpush1.xpose.msra.mxu0 %v5519
        %5521 = vmatprep.subr.mxu0 0.0
        %5522 = vmatpush1.xpose.msra.mxu0 0.0
        %5523 = vmatprep.subr.mxu0 0.0
        %5524 = vmatpush1.xpose.msra.mxu0 0.0
        %5525 = vmatprep.subr.mxu0 0.0
        %5526 = vmatpush1.xpose.msra.mxu0 0.0
        %5527 = vmatprep.subr.mxu0 0.0
        %5528 = vmatpush1.xpose.msra.mxu0 0.0
        %5529 = vmatprep.subr.mxu0 0.0
        %5530 = vmatpush1.xpose.msra.mxu0 0.0
        %5531 = vmatprep.subr.mxu0 0.0
        %5532 = vmatpush1.xpose.msra.mxu0 0.0
        %5533 = vmatprep.subr.mxu0 0.0
        %5534 = vmatpush1.xpose.msra.mxu0 0.0
        %5535 = vmatprep.subr.mxu0 0.0
        %5536 = vmatpush1.xpose.msra.mxu0 0.0
        %5537 = vmatprep.subr.mxu0 0.0
        %5538 = vmatpush1.xpose.msra.mxu0 0.0
        %5539 = vmatprep.subr.mxu0 0.0
        %5540 = vmatpush1.xpose.msra.mxu0 0.0
        %5541 = vmatprep.subr.mxu0 0.0
        %5542 = vmatpush1.xpose.msra.mxu0 0.0
        %5543 = vmatprep.subr.mxu0 0.0
        %5544 = vmatpush1.xpose.msra.mxu0 0.0
        %5545 = vmatprep.subr.mxu0 0.0
        %5546 = vmatpush1.xpose.msra.mxu0 0.0
        %5547 = vmatprep.subr.mxu0 0.0
        %5548 = vmatpush1.xpose.msra.mxu0 0.0
        %5549 = vmatprep.subr.mxu0 0.0
        %5550 = vmatpush1.xpose.msra.mxu0 0.0
        %5551 = vmatprep.subr.mxu0 0.0
        %5552 = vmatpush1.xpose.msra.mxu0 0.0
        %5553 = vmatprep.subr.mxu0 0.0
        %5554 = vmatpush1.xpose.msra.mxu0 0.0
        %5555 = vmatprep.subr.mxu0 0.0
        %5556 = vmatpush1.xpose.msra.mxu0 0.0
        %5557 = vmatprep.subr.mxu0 0.0
        %5558 = vmatpush1.xpose.msra.mxu0 0.0
        %5559 = vmatprep.subr.mxu0 0.0
        %5560 = vmatpush1.xpose.msra.mxu0 0.0
        %5561 = vmatprep.subr.mxu0 0.0
        %5562 = vmatpush1.xpose.msra.mxu0 0.0
        %5563 = vmatprep.subr.mxu0 0.0
        %5564 = vmatpush1.xpose.msra.mxu0 0.0
        %5565 = vmatprep.subr.mxu0 0.0
        %5566 = vmatpush1.xpose.msra.mxu0 0.0
        %5567 = vmatprep.subr.mxu0 0.0
        %5568 = vmatpush1.xpose.msra.mxu0 0.0
        %5569 = vmatprep.subr.mxu0 0.0
        %5570 = vmatpush1.xpose.msra.mxu0 0.0
        %5571 = vmatprep.subr.mxu0 0.0
        %5572 = vmatpush1.xpose.msra.mxu0 0.0
        %5573 = vmatprep.subr.mxu0 0.0
        %5574 = vmatpush1.xpose.msra.mxu0 0.0
        %5575 = vmatprep.subr.mxu0 0.0
        %5576 = vmatpush1.xpose.msra.mxu0 0.0
        %5577 = vmatprep.subr.mxu0 0.0
        %5578 = vmatpush1.xpose.msra.mxu0 0.0
        %5579 = vmatprep.subr.mxu0 0.0
        %5580 = vmatpush1.xpose.msra.mxu0 0.0
        %5581 = vmatprep.subr.mxu0 0.0
        %5582 = vmatpush1.xpose.msra.mxu0 0.0
        %5583 = vmatprep.mubr.f32.mxu0 0.0
        %v5584 = vand.u32 %v5212, 4294901760
        %5585 = vmatmul.mubr.f32.gmra.mrb[0].mxu0 %v5584
        %v5586 = vpop.f32.mrb[0].mxu0
        %v5587 = vadd.f32 %v5513, %v5586
        %v5588 = vpop.f32.mrb[0].mxu0
        %5589 = vdwg.mxu0
        %5590 = vmatprep.subr.mxu0 0.0
        %v5591 = vand.u32 %v5214, 4294901760
        %5592 = vmatpush1.xpose.msra.mxu0 %v5591
        %5593 = vmatprep.subr.mxu0 0.0
        %5594 = vmatpush1.xpose.msra.mxu0 0.0
        %5595 = vmatprep.subr.mxu0 0.0
        %5596 = vmatpush1.xpose.msra.mxu0 0.0
        %5597 = vmatprep.subr.mxu0 0.0
        %5598 = vmatpush1.xpose.msra.mxu0 0.0
        %5599 = vmatprep.subr.mxu0 0.0
        %5600 = vmatpush1.xpose.msra.mxu0 0.0
        %5601 = vmatprep.subr.mxu0 0.0
        %5602 = vmatpush1.xpose.msra.mxu0 0.0
        %5603 = vmatprep.subr.mxu0 0.0
        %5604 = vmatpush1.xpose.msra.mxu0 0.0
        %5605 = vmatprep.subr.mxu0 0.0
        %5606 = vmatpush1.xpose.msra.mxu0 0.0
        %5607 = vmatprep.subr.mxu0 0.0
        %5608 = vmatpush1.xpose.msra.mxu0 0.0
        %5609 = vmatprep.subr.mxu0 0.0
        %5610 = vmatpush1.xpose.msra.mxu0 0.0
        %5611 = vmatprep.subr.mxu0 0.0
        %5612 = vmatpush1.xpose.msra.mxu0 0.0
        %5613 = vmatprep.subr.mxu0 0.0
        %5614 = vmatpush1.xpose.msra.mxu0 0.0
        %5615 = vmatprep.subr.mxu0 0.0
        %5616 = vmatpush1.xpose.msra.mxu0 0.0
        %5617 = vmatprep.subr.mxu0 0.0
        %5618 = vmatpush1.xpose.msra.mxu0 0.0
        %5619 = vmatprep.subr.mxu0 0.0
        %5620 = vmatpush1.xpose.msra.mxu0 0.0
        %5621 = vmatprep.subr.mxu0 0.0
        %5622 = vmatpush1.xpose.msra.mxu0 0.0
        %5623 = vmatprep.subr.mxu0 0.0
        %5624 = vmatpush1.xpose.msra.mxu0 0.0
        %5625 = vmatprep.subr.mxu0 0.0
        %5626 = vmatpush1.xpose.msra.mxu0 0.0
        %5627 = vmatprep.subr.mxu0 0.0
        %5628 = vmatpush1.xpose.msra.mxu0 0.0
        %5629 = vmatprep.subr.mxu0 0.0
        %5630 = vmatpush1.xpose.msra.mxu0 0.0
        %5631 = vmatprep.subr.mxu0 0.0
        %5632 = vmatpush1.xpose.msra.mxu0 0.0
        %5633 = vmatprep.subr.mxu0 0.0
        %5634 = vmatpush1.xpose.msra.mxu0 0.0
        %5635 = vmatprep.subr.mxu0 0.0
        %5636 = vmatpush1.xpose.msra.mxu0 0.0
        %5637 = vmatprep.subr.mxu0 0.0
        %5638 = vmatpush1.xpose.msra.mxu0 0.0
        %5639 = vmatprep.subr.mxu0 0.0
        %5640 = vmatpush1.xpose.msra.mxu0 0.0
        %5641 = vmatprep.subr.mxu0 0.0
        %5642 = vmatpush1.xpose.msra.mxu0 0.0
        %5643 = vmatprep.subr.mxu0 0.0
        %5644 = vmatpush1.xpose.msra.mxu0 0.0
        %5645 = vmatprep.subr.mxu0 0.0
        %5646 = vmatpush1.xpose.msra.mxu0 0.0
        %5647 = vmatprep.subr.mxu0 0.0
        %5648 = vmatpush1.xpose.msra.mxu0 0.0
        %5649 = vmatprep.subr.mxu0 0.0
        %5650 = vmatpush1.xpose.msra.mxu0 0.0
        %5651 = vmatprep.subr.mxu0 0.0
        %5652 = vmatpush1.xpose.msra.mxu0 0.0
        %5653 = vmatprep.subr.mxu0 0.0
        %5654 = vmatpush1.xpose.msra.mxu0 0.0
        %5655 = vmatprep.mubr.f32.mxu0 0.0
        %v5656 = vand.u32 %v5212, 4294901760
        %5657 = vmatmul.mubr.f32.gmra.mrb[0].mxu0 %v5656
        %v5658 = vpop.f32.mrb[0].mxu0
        %v5659 = vadd.f32 %v5587, %v5658
        %v5660 = vpop.f32.mrb[0].mxu0
        %5661 = vdwg.mxu0
        %v5662 = vsel %vm2455, %v5659, -inf
        %v5663 = vsel %vm2910, %v5662, -inf
        %5664 = vmax.xlane.f32.xlu0 %v5663
        %v5665 = vpop.xlane.xlu0 %5664
        %v5666 = vsub.f32 %v5662, %v5665
        %v5667 = vmul.f32 %v5666, 1.442695
        %v5668 = vpow.pop %v5667
        %v5669 = vsel %vm2910, %v5668, 0.0
        %5670 = vadd.xlane.f32.xlu0 %v5669
        %v5671 = vpop.xlane.xlu0 %5670
        %v5672 = vrcp.pop %v5671
        %v5673 = vmul.f32 %v5668, %v5672
        %5674 = vrot.lane.b32.xlu0 %v2447, 32
        %v5675 = vpop.permute.xlu0 %5674
        %v5678 = vsel %vm2910, %v5673, 0
        %5680 = vmatprep.subr.mxu0 0.0
        %v5681 = vand.u32 %v5675, 4294901760
        %5682 = vmatpush1.msra.mxu0 %v5681
        %5683 = vmatprep.subr.mxu0 0.0
        %5684 = vmatpush1.msra.mxu0 0.0
        %5685 = vmatprep.subr.mxu0 0.0
        %5686 = vmatpush1.msra.mxu0 0.0
        %5687 = vmatprep.subr.mxu0 0.0
        %5688 = vmatpush1.msra.mxu0 0.0
        %5689 = vmatprep.subr.mxu0 0.0
        %5690 = vmatpush1.msra.mxu0 0.0
        %5691 = vmatprep.subr.mxu0 0.0
        %5692 = vmatpush1.msra.mxu0 0.0
        %5693 = vmatprep.subr.mxu0 0.0
        %5694 = vmatpush1.msra.mxu0 0.0
        %5695 = vmatprep.subr.mxu0 0.0
        %5696 = vmatpush1.msra.mxu0 0.0
        %5697 = vmatprep.subr.mxu0 0.0
        %5698 = vmatpush1.msra.mxu0 0.0
        %5699 = vmatprep.subr.mxu0 0.0
        %5700 = vmatpush1.msra.mxu0 0.0
        %5701 = vmatprep.subr.mxu0 0.0
        %5702 = vmatpush1.msra.mxu0 0.0
        %5703 = vmatprep.subr.mxu0 0.0
        %5704 = vmatpush1.msra.mxu0 0.0
        %5705 = vmatprep.subr.mxu0 0.0
        %5706 = vmatpush1.msra.mxu0 0.0
        %5707 = vmatprep.subr.mxu0 0.0
        %5708 = vmatpush1.msra.mxu0 0.0
        %5709 = vmatprep.subr.mxu0 0.0
        %5710 = vmatpush1.msra.mxu0 0.0
        %5711 = vmatprep.subr.mxu0 0.0
        %5712 = vmatpush1.msra.mxu0 0.0
        %5713 = vmatprep.subr.mxu0 0.0
        %5714 = vmatpush1.msra.mxu0 0.0
        %5715 = vmatprep.subr.mxu0 0.0
        %5716 = vmatpush1.msra.mxu0 0.0
        %5717 = vmatprep.subr.mxu0 0.0
        %5718 = vmatpush1.msra.mxu0 0.0
        %5719 = vmatprep.subr.mxu0 0.0
        %5720 = vmatpush1.msra.mxu0 0.0
        %5721 = vmatprep.subr.mxu0 0.0
        %5722 = vmatpush1.msra.mxu0 0.0
        %5723 = vmatprep.subr.mxu0 0.0
        %5724 = vmatpush1.msra.mxu0 0.0
        %5725 = vmatprep.subr.mxu0 0.0
        %5726 = vmatpush1.msra.mxu0 0.0
        %5727 = vmatprep.subr.mxu0 0.0
        %5728 = vmatpush1.msra.mxu0 0.0
        %5729 = vmatprep.subr.mxu0 0.0
        %5730 = vmatpush1.msra.mxu0 0.0
        %5731 = vmatprep.subr.mxu0 0.0
        %5732 = vmatpush1.msra.mxu0 0.0
        %5733 = vmatprep.subr.mxu0 0.0
        %5734 = vmatpush1.msra.mxu0 0.0
        %5735 = vmatprep.subr.mxu0 0.0
        %5736 = vmatpush1.msra.mxu0 0.0
        %5737 = vmatprep.subr.mxu0 0.0
        %5738 = vmatpush1.msra.mxu0 0.0
        %5739 = vmatprep.subr.mxu0 0.0
        %5740 = vmatpush1.msra.mxu0 0.0
        %5741 = vmatprep.subr.mxu0 0.0
        %5742 = vmatpush1.msra.mxu0 0.0
        %5743 = vmatprep.subr.mxu0 0.0
        %5744 = vmatpush1.msra.mxu0 0.0
        %5745 = vmatprep.mubr.f32.mxu0 0.0
        %v5746 = vand.u32 %v5678, 4294901760
        %v5747 = vsub.f32 %v5678, %v5746
        %v5748 = vand.u32 %v5747, 4294901760
        %v5749 = vsub.f32 %v5747, %v5748
        %v5750 = vand.u32 %v5749, 4294901760
        %5751 = vmatmul.mubr.f32.gmra.mrb[0].mxu0 %v5750
        %v5752 = vpop.f32.mrb[0].mxu0
        %v5753 = vadd.f32 0.0, %v5752
        %v5754 = vpop.f32.mrb[0].mxu0
        %5755 = vdwg.mxu0
        %5756 = vmatprep.subr.mxu0 0.0
        %v5757 = vand.u32 %v5675, 4294901760
        %v5758 = vsub.f32 %v5675, %v5757
        %v5759 = vand.u32 %v5758, 4294901760
        %v5760 = vsub.f32 %v5758, %v5759
        %v5761 = vand.u32 %v5760, 4294901760
        %5762 = vmatpush1.msra.mxu0 %v5761
        %5763 = vmatprep.subr.mxu0 0.0
        %5764 = vmatpush1.msra.mxu0 0.0
        %5765 = vmatprep.subr.mxu0 0.0
        %5766 = vmatpush1.msra.mxu0 0.0
        %5767 = vmatprep.subr.mxu0 0.0
        %5768 = vmatpush1.msra.mxu0 0.0
        %5769 = vmatprep.subr.mxu0 0.0
        %5770 = vmatpush1.msra.mxu0 0.0
        %5771 = vmatprep.subr.mxu0 0.0
        %5772 = vmatpush1.msra.mxu0 0.0
        %5773 = vmatprep.subr.mxu0 0.0
        %5774 = vmatpush1.msra.mxu0 0.0
        %5775 = vmatprep.subr.mxu0 0.0
        %5776 = vmatpush1.msra.mxu0 0.0
        %5777 = vmatprep.subr.mxu0 0.0
        %5778 = vmatpush1.msra.mxu0 0.0
        %5779 = vmatprep.subr.mxu0 0.0
        %5780 = vmatpush1.msra.mxu0 0.0
        %5781 = vmatprep.subr.mxu0 0.0
        %5782 = vmatpush1.msra.mxu0 0.0
        %5783 = vmatprep.subr.mxu0 0.0
        %5784 = vmatpush1.msra.mxu0 0.0
        %5785 = vmatprep.subr.mxu0 0.0
        %5786 = vmatpush1.msra.mxu0 0.0
        %5787 = vmatprep.subr.mxu0 0.0
        %5788 = vmatpush1.msra.mxu0 0.0
        %5789 = vmatprep.subr.mxu0 0.0
        %5790 = vmatpush1.msra.mxu0 0.0
        %5791 = vmatprep.subr.mxu0 0.0
        %5792 = vmatpush1.msra.mxu0 0.0
        %5793 = vmatprep.subr.mxu0 0.0
        %5794 = vmatpush1.msra.mxu0 0.0
        %5795 = vmatprep.subr.mxu0 0.0
        %5796 = vmatpush1.msra.mxu0 0.0
        %5797 = vmatprep.subr.mxu0 0.0
        %5798 = vmatpush1.msra.mxu0 0.0
        %5799 = vmatprep.subr.mxu0 0.0
        %5800 = vmatpush1.msra.mxu0 0.0
        %5801 = vmatprep.subr.mxu0 0.0
        %5802 = vmatpush1.msra.mxu0 0.0
        %5803 = vmatprep.subr.mxu0 0.0
        %5804 = vmatpush1.msra.mxu0 0.0
        %5805 = vmatprep.subr.mxu0 0.0
        %5806 = vmatpush1.msra.mxu0 0.0
        %5807 = vmatprep.subr.mxu0 0.0
        %5808 = vmatpush1.msra.mxu0 0.0
        %5809 = vmatprep.subr.mxu0 0.0
        %5810 = vmatpush1.msra.mxu0 0.0
        %5811 = vmatprep.subr.mxu0 0.0
        %5812 = vmatpush1.msra.mxu0 0.0
        %5813 = vmatprep.subr.mxu0 0.0
        %5814 = vmatpush1.msra.mxu0 0.0
        %5815 = vmatprep.subr.mxu0 0.0
        %5816 = vmatpush1.msra.mxu0 0.0
        %5817 = vmatprep.subr.mxu0 0.0
        %5818 = vmatpush1.msra.mxu0 0.0
        %5819 = vmatprep.subr.mxu0 0.0
        %5820 = vmatpush1.msra.mxu0 0.0
        %5821 = vmatprep.subr.mxu0 0.0
        %5822 = vmatpush1.msra.mxu0 0.0
        %5823 = vmatprep.subr.mxu0 0.0
        %5824 = vmatpush1.msra.mxu0 0.0
        %5825 = vmatprep.mubr.f32.mxu0 0.0
        %v5826 = vand.u32 %v5678, 4294901760
        %5827 = vmatmul.mubr.f32.gmra.mrb[0].mxu0 %v5826
        %v5828 = vpop.f32.mrb[0].mxu0
        %v5829 = vadd.f32 %v5753, %v5828
        %v5830 = vpop.f32.mrb[0].mxu0
        %5831 = vdwg.mxu0
        %5832 = vmatprep.subr.mxu0 0.0
        %v5833 = vand.u32 %v5675, 4294901760
        %v5834 = vsub.f32 %v5675, %v5833
        %5835 = vmatpush1.msra.mxu0 %v5834
        %5836 = vmatprep.subr.mxu0 0.0
        %5837 = vmatpush1.msra.mxu0 0.0
        %5838 = vmatprep.subr.mxu0 0.0
        %5839 = vmatpush1.msra.mxu0 0.0
        %5840 = vmatprep.subr.mxu0 0.0
        %5841 = vmatpush1.msra.mxu0 0.0
        %5842 = vmatprep.subr.mxu0 0.0
        %5843 = vmatpush1.msra.mxu0 0.0
        %5844 = vmatprep.subr.mxu0 0.0
        %5845 = vmatpush1.msra.mxu0 0.0
        %5846 = vmatprep.subr.mxu0 0.0
        %5847 = vmatpush1.msra.mxu0 0.0
        %5848 = vmatprep.subr.mxu0 0.0
        %5849 = vmatpush1.msra.mxu0 0.0
        %5850 = vmatprep.subr.mxu0 0.0
        %5851 = vmatpush1.msra.mxu0 0.0
        %5852 = vmatprep.subr.mxu0 0.0
        %5853 = vmatpush1.msra.mxu0 0.0
        %5854 = vmatprep.subr.mxu0 0.0
        %5855 = vmatpush1.msra.mxu0 0.0
        %5856 = vmatprep.subr.mxu0 0.0
        %5857 = vmatpush1.msra.mxu0 0.0
        %5858 = vmatprep.subr.mxu0 0.0
        %5859 = vmatpush1.msra.mxu0 0.0
        %5860 = vmatprep.subr.mxu0 0.0
        %5861 = vmatpush1.msra.mxu0 0.0
        %5862 = vmatprep.subr.mxu0 0.0
        %5863 = vmatpush1.msra.mxu0 0.0
        %5864 = vmatprep.subr.mxu0 0.0
        %5865 = vmatpush1.msra.mxu0 0.0
        %5866 = vmatprep.subr.mxu0 0.0
        %5867 = vmatpush1.msra.mxu0 0.0
        %5868 = vmatprep.subr.mxu0 0.0
        %5869 = vmatpush1.msra.mxu0 0.0
        %5870 = vmatprep.subr.mxu0 0.0
        %5871 = vmatpush1.msra.mxu0 0.0
        %5872 = vmatprep.subr.mxu0 0.0
        %5873 = vmatpush1.msra.mxu0 0.0
        %5874 = vmatprep.subr.mxu0 0.0
        %5875 = vmatpush1.msra.mxu0 0.0
        %5876 = vmatprep.subr.mxu0 0.0
        %5877 = vmatpush1.msra.mxu0 0.0
        %5878 = vmatprep.subr.mxu0 0.0
        %5879 = vmatpush1.msra.mxu0 0.0
        %5880 = vmatprep.subr.mxu0 0.0
        %5881 = vmatpush1.msra.mxu0 0.0
        %5882 = vmatprep.subr.mxu0 0.0
        %5883 = vmatpush1.msra.mxu0 0.0
        %5884 = vmatprep.subr.mxu0 0.0
        %5885 = vmatpush1.msra.mxu0 0.0
        %5886 = vmatprep.subr.mxu0 0.0
        %5887 = vmatpush1.msra.mxu0 0.0
        %5888 = vmatprep.subr.mxu0 0.0
        %5889 = vmatpush1.msra.mxu0 0.0
        %5890 = vmatprep.subr.mxu0 0.0
        %5891 = vmatpush1.msra.mxu0 0.0
        %5892 = vmatprep.subr.mxu0 0.0
        %5893 = vmatpush1.msra.mxu0 0.0
        %5894 = vmatprep.subr.mxu0 0.0
        %5895 = vmatpush1.msra.mxu0 0.0
        %5896 = vmatprep.subr.mxu0 0.0
        %5897 = vmatpush1.msra.mxu0 0.0
        %5898 = vmatprep.mubr.f32.mxu0 0.0
        %v5899 = vand.u32 %v5678, 4294901760
        %v5900 = vsub.f32 %v5678, %v5899
        %5901 = vmatmul.mubr.f32.gmra.mrb[0].mxu0 %v5900
        %v5902 = vpop.f32.mrb[0].mxu0
        %v5903 = vadd.f32 %v5829, %v5902
        %v5904 = vpop.f32.mrb[0].mxu0
        %5905 = vdwg.mxu0
        %5906 = vmatprep.subr.mxu0 0.0
        %v5907 = vand.u32 %v5675, 4294901760
        %5908 = vmatpush1.msra.mxu0 %v5907
        %5909 = vmatprep.subr.mxu0 0.0
        %5910 = vmatpush1.msra.mxu0 0.0
        %5911 = vmatprep.subr.mxu0 0.0
        %5912 = vmatpush1.msra.mxu0 0.0
        %5913 = vmatprep.subr.mxu0 0.0
        %5914 = vmatpush1.msra.mxu0 0.0
        %5915 = vmatprep.subr.mxu0 0.0
        %5916 = vmatpush1.msra.mxu0 0.0
        %5917 = vmatprep.subr.mxu0 0.0
        %5918 = vmatpush1.msra.mxu0 0.0
        %5919 = vmatprep.subr.mxu0 0.0
        %5920 = vmatpush1.msra.mxu0 0.0
        %5921 = vmatprep.subr.mxu0 0.0
        %5922 = vmatpush1.msra.mxu0 0.0
        %5923 = vmatprep.subr.mxu0 0.0
        %5924 = vmatpush1.msra.mxu0 0.0
        %5925 = vmatprep.subr.mxu0 0.0
        %5926 = vmatpush1.msra.mxu0 0.0
        %5927 = vmatprep.subr.mxu0 0.0
        %5928 = vmatpush1.msra.mxu0 0.0
        %5929 = vmatprep.subr.mxu0 0.0
        %5930 = vmatpush1.msra.mxu0 0.0
        %5931 = vmatprep.subr.mxu0 0.0
        %5932 = vmatpush1.msra.mxu0 0.0
        %5933 = vmatprep.subr.mxu0 0.0
        %5934 = vmatpush1.msra.mxu0 0.0
        %5935 = vmatprep.subr.mxu0 0.0
        %5936 = vmatpush1.msra.mxu0 0.0
        %5937 = vmatprep.subr.mxu0 0.0
        %5938 = vmatpush1.msra.mxu0 0.0
        %5939 = vmatprep.subr.mxu0 0.0
        %5940 = vmatpush1.msra.mxu0 0.0
        %5941 = vmatprep.subr.mxu0 0.0
        %5942 = vmatpush1.msra.mxu0 0.0
        %5943 = vmatprep.subr.mxu0 0.0
        %5944 = vmatpush1.msra.mxu0 0.0
        %5945 = vmatprep.subr.mxu0 0.0
        %5946 = vmatpush1.msra.mxu0 0.0
        %5947 = vmatprep.subr.mxu0 0.0
        %5948 = vmatpush1.msra.mxu0 0.0
        %5949 = vmatprep.subr.mxu0 0.0
        %5950 = vmatpush1.msra.mxu0 0.0
        %5951 = vmatprep.subr.mxu0 0.0
        %5952 = vmatpush1.msra.mxu0 0.0
        %5953 = vmatprep.subr.mxu0 0.0
        %5954 = vmatpush1.msra.mxu0 0.0
        %5955 = vmatprep.subr.mxu0 0.0
        %5956 = vmatpush1.msra.mxu0 0.0
        %5957 = vmatprep.subr.mxu0 0.0
        %5958 = vmatpush1.msra.mxu0 0.0
        %5959 = vmatprep.subr.mxu0 0.0
        %5960 = vmatpush1.msra.mxu0 0.0
        %5961 = vmatprep.subr.mxu0 0.0
        %5962 = vmatpush1.msra.mxu0 0.0
        %5963 = vmatprep.subr.mxu0 0.0
        %5964 = vmatpush1.msra.mxu0 0.0
        %5965 = vmatprep.subr.mxu0 0.0
        %5966 = vmatpush1.msra.mxu0 0.0
        %5967 = vmatprep.subr.mxu0 0.0
        %5968 = vmatpush1.msra.mxu0 0.0
        %5969 = vmatprep.subr.mxu0 0.0
        %5970 = vmatpush1.msra.mxu0 0.0
        %5971 = vmatprep.mubr.f32.mxu0 0.0
        %v5972 = vand.u32 %v5678, 4294901760
        %v5973 = vsub.f32 %v5678, %v5972
        %v5974 = vand.u32 %v5973, 4294901760
        %5975 = vmatmul.mubr.f32.gmra.mrb[0].mxu0 %v5974
        %v5976 = vpop.f32.mrb[0].mxu0
        %v5977 = vadd.f32 %v5903, %v5976
        %v5978 = vpop.f32.mrb[0].mxu0
        %5979 = vdwg.mxu0
        %5980 = vmatprep.subr.mxu0 0.0
        %v5981 = vand.u32 %v5675, 4294901760
        %v5982 = vsub.f32 %v5675, %v5981
        %v5983 = vand.u32 %v5982, 4294901760
        %5984 = vmatpush1.msra.mxu0 %v5983
        %5985 = vmatprep.subr.mxu0 0.0
        %5986 = vmatpush1.msra.mxu0 0.0
        %5987 = vmatprep.subr.mxu0 0.0
        %5988 = vmatpush1.msra.mxu0 0.0
        %5989 = vmatprep.subr.mxu0 0.0
        %5990 = vmatpush1.msra.mxu0 0.0
        %5991 = vmatprep.subr.mxu0 0.0
        %5992 = vmatpush1.msra.mxu0 0.0
        %5993 = vmatprep.subr.mxu0 0.0
        %5994 = vmatpush1.msra.mxu0 0.0
        %5995 = vmatprep.subr.mxu0 0.0
        %5996 = vmatpush1.msra.mxu0 0.0
        %5997 = vmatprep.subr.mxu0 0.0
        %5998 = vmatpush1.msra.mxu0 0.0
        %5999 = vmatprep.subr.mxu0 0.0
        %6000 = vmatpush1.msra.mxu0 0.0
        %6001 = vmatprep.subr.mxu0 0.0
        %6002 = vmatpush1.msra.mxu0 0.0
        %6003 = vmatprep.subr.mxu0 0.0
        %6004 = vmatpush1.msra.mxu0 0.0
        %6005 = vmatprep.subr.mxu0 0.0
        %6006 = vmatpush1.msra.mxu0 0.0
        %6007 = vmatprep.subr.mxu0 0.0
        %6008 = vmatpush1.msra.mxu0 0.0
        %6009 = vmatprep.subr.mxu0 0.0
        %6010 = vmatpush1.msra.mxu0 0.0
        %6011 = vmatprep.subr.mxu0 0.0
        %6012 = vmatpush1.msra.mxu0 0.0
        %6013 = vmatprep.subr.mxu0 0.0
        %6014 = vmatpush1.msra.mxu0 0.0
        %6015 = vmatprep.subr.mxu0 0.0
        %6016 = vmatpush1.msra.mxu0 0.0
        %6017 = vmatprep.subr.mxu0 0.0
        %6018 = vmatpush1.msra.mxu0 0.0
        %6019 = vmatprep.subr.mxu0 0.0
        %6020 = vmatpush1.msra.mxu0 0.0
        %6021 = vmatprep.subr.mxu0 0.0
        %6022 = vmatpush1.msra.mxu0 0.0
        %6023 = vmatprep.subr.mxu0 0.0
        %6024 = vmatpush1.msra.mxu0 0.0
        %6025 = vmatprep.subr.mxu0 0.0
        %6026 = vmatpush1.msra.mxu0 0.0
        %6027 = vmatprep.subr.mxu0 0.0
        %6028 = vmatpush1.msra.mxu0 0.0
        %6029 = vmatprep.subr.mxu0 0.0
        %6030 = vmatpush1.msra.mxu0 0.0
        %6031 = vmatprep.subr.mxu0 0.0
        %6032 = vmatpush1.msra.mxu0 0.0
        %6033 = vmatprep.subr.mxu0 0.0
        %6034 = vmatpush1.msra.mxu0 0.0
        %6035 = vmatprep.subr.mxu0 0.0
        %6036 = vmatpush1.msra.mxu0 0.0
        %6037 = vmatprep.subr.mxu0 0.0
        %6038 = vmatpush1.msra.mxu0 0.0
        %6039 = vmatprep.subr.mxu0 0.0
        %6040 = vmatpush1.msra.mxu0 0.0
        %6041 = vmatprep.subr.mxu0 0.0
        %6042 = vmatpush1.msra.mxu0 0.0
        %6043 = vmatprep.subr.mxu0 0.0
        %6044 = vmatpush1.msra.mxu0 0.0
        %6045 = vmatprep.subr.mxu0 0.0
        %6046 = vmatpush1.msra.mxu0 0.0
        %6047 = vmatprep.mubr.f32.mxu0 0.0
        %v6048 = vand.u32 %v5678, 4294901760
        %6049 = vmatmul.mubr.f32.gmra.mrb[0].mxu0 %v6048
        %v6050 = vpop.f32.mrb[0].mxu0
        %v6051 = vadd.f32 %v5977, %v6050
        %v6052 = vpop.f32.mrb[0].mxu0
        %6053 = vdwg.mxu0
        %6054 = vmatprep.subr.mxu0 0.0
        %v6055 = vand.u32 %v5675, 4294901760
        %6056 = vmatpush1.msra.mxu0 %v6055
        %6057 = vmatprep.subr.mxu0 0.0
        %6058 = vmatpush1.msra.mxu0 0.0
        %6059 = vmatprep.subr.mxu0 0.0
        %6060 = vmatpush1.msra.mxu0 0.0
        %6061 = vmatprep.subr.mxu0 0.0
        %6062 = vmatpush1.msra.mxu0 0.0
        %6063 = vmatprep.subr.mxu0 0.0
        %6064 = vmatpush1.msra.mxu0 0.0
        %6065 = vmatprep.subr.mxu0 0.0
        %6066 = vmatpush1.msra.mxu0 0.0
        %6067 = vmatprep.subr.mxu0 0.0
        %6068 = vmatpush1.msra.mxu0 0.0
        %6069 = vmatprep.subr.mxu0 0.0
        %6070 = vmatpush1.msra.mxu0 0.0
        %6071 = vmatprep.subr.mxu0 0.0
        %6072 = vmatpush1.msra.mxu0 0.0
        %6073 = vmatprep.subr.mxu0 0.0
        %6074 = vmatpush1.msra.mxu0 0.0
        %6075 = vmatprep.subr.mxu0 0.0
        %6076 = vmatpush1.msra.mxu0 0.0
        %6077 = vmatprep.subr.mxu0 0.0
        %6078 = vmatpush1.msra.mxu0 0.0
        %6079 = vmatprep.subr.mxu0 0.0
        %6080 = vmatpush1.msra.mxu0 0.0
        %6081 = vmatprep.subr.mxu0 0.0
        %6082 = vmatpush1.msra.mxu0 0.0
        %6083 = vmatprep.subr.mxu0 0.0
        %6084 = vmatpush1.msra.mxu0 0.0
        %6085 = vmatprep.subr.mxu0 0.0
        %6086 = vmatpush1.msra.mxu0 0.0
        %6087 = vmatprep.subr.mxu0 0.0
        %6088 = vmatpush1.msra.mxu0 0.0
        %6089 = vmatprep.subr.mxu0 0.0
        %6090 = vmatpush1.msra.mxu0 0.0
        %6091 = vmatprep.subr.mxu0 0.0
        %6092 = vmatpush1.msra.mxu0 0.0
        %6093 = vmatprep.subr.mxu0 0.0
        %6094 = vmatpush1.msra.mxu0 0.0
        %6095 = vmatprep.subr.mxu0 0.0
        %6096 = vmatpush1.msra.mxu0 0.0
        %6097 = vmatprep.subr.mxu0 0.0
        %6098 = vmatpush1.msra.mxu0 0.0
        %6099 = vmatprep.subr.mxu0 0.0
        %6100 = vmatpush1.msra.mxu0 0.0
        %6101 = vmatprep.subr.mxu0 0.0
        %6102 = vmatpush1.msra.mxu0 0.0
        %6103 = vmatprep.subr.mxu0 0.0
        %6104 = vmatpush1.msra.mxu0 0.0
        %6105 = vmatprep.subr.mxu0 0.0
        %6106 = vmatpush1.msra.mxu0 0.0
        %6107 = vmatprep.subr.mxu0 0.0
        %6108 = vmatpush1.msra.mxu0 0.0
        %6109 = vmatprep.subr.mxu0 0.0
        %6110 = vmatpush1.msra.mxu0 0.0
        %6111 = vmatprep.subr.mxu0 0.0
        %6112 = vmatpush1.msra.mxu0 0.0
        %6113 = vmatprep.subr.mxu0 0.0
        %6114 = vmatpush1.msra.mxu0 0.0
        %6115 = vmatprep.subr.mxu0 0.0
        %6116 = vmatpush1.msra.mxu0 0.0
        %6117 = vmatprep.subr.mxu0 0.0
        %6118 = vmatpush1.msra.mxu0 0.0
        %6119 = vmatprep.mubr.f32.mxu0 0.0
        %v6120 = vand.u32 %v5678, 4294901760
        %6121 = vmatmul.mubr.f32.gmra.mrb[0].mxu0 %v6120
        %v6122 = vpop.f32.mrb[0].mxu0
        %v6123 = vadd.f32 %v6051, %v6122
        %v6124 = vpop.f32.mrb[0].mxu0
        %6125 = vdwg.mxu0
        %6127 = vrot.lane.b32.xlu0 %v4287, 32
        %v6128 = vpop.permute.xlu0 %6127
        %6131 = vrot.lane.b32.xlu0 %v5205, 64
        %v6132 = vpop.permute.xlu0 %6131
        %6135 = vrot.lane.b32.xlu0 %v6123, 96
        %v6136 = vpop.permute.xlu0 %6135
        %v6138 = vsel %vm2456, %v3368, %v6128
        %vm6139 = vcmask 523264
        %v6140 = vsel %vm6139, %v6138, %v6132
        %vm6141 = vcmask 785408
        %v6142 = vsel %vm6141, %v6140, %v6136
        %v6143 = vld [vmem:[#allocation10] sm:$0xff]
        %v6144 = vld [vmem:[#allocation10 + $0x8] sm:$0xff]
        %v6145 = vld [vmem:[#allocation10 + $0x10] sm:$0xff]
        %v6146 = vld [vmem:[#allocation10 + $0x18] sm:$0xff]
        %v6147 = vld [vmem:[#allocation10 + $0x20] sm:$0xff]
        %v6148 = vld [vmem:[#allocation10 + $0x28] sm:$0xff]
        %v6149 = vld [vmem:[#allocation10 + $0x30] sm:$0xff]
        %v6150 = vld [vmem:[#allocation10 + $0x38] sm:$0xff]
        %v6151 = vld [vmem:[#allocation10 + $0x40] sm:$0xff]
        %v6152 = vld [vmem:[#allocation10 + $0x48] sm:$0xff]
        %v6153 = vld [vmem:[#allocation10 + $0x50] sm:$0xff]
        %v6154 = vld [vmem:[#allocation10 + $0x58] sm:$0xff]
        %v6155 = vld [vmem:[#allocation10 + $0x60] sm:$0xff]
        %v6156 = vld [vmem:[#allocation10 + $0x68] sm:$0xff]
        %v6157 = vld [vmem:[#allocation10 + $0x70] sm:$0xff]
        %v6158 = vld [vmem:[#allocation10 + $0x78] sm:$0xff]
        %v6159 = vld [vmem:[%s5] sm:$0x1]
        %v6161 = vlaneseq
        %v6162 = vshrl.u32 %v6161, 7
        %v6163 = vsub.s32 0, %v6162
        %v6164 = vrot.slane %v6159, %v6163
        %6166 = vmatprep.subr.mxu0 0.0
        %v6167 = vand.u32 %v6143, 4294901760
        %6168 = vmatpush1.msra.mxu0 %v6167
        %6169 = vmatprep.subr.mxu0 0.0
        %v6170 = vand.u32 %v6144, 4294901760
        %6171 = vmatpush1.msra.mxu0 %v6170
        %6172 = vmatprep.subr.mxu0 0.0
        %v6173 = vand.u32 %v6145, 4294901760
        %6174 = vmatpush1.msra.mxu0 %v6173
        %6175 = vmatprep.subr.mxu0 0.0
        %v6176 = vand.u32 %v6146, 4294901760
        %6177 = vmatpush1.msra.mxu0 %v6176
        %6178 = vmatprep.subr.mxu0 0.0
        %v6179 = vand.u32 %v6147, 4294901760
        %6180 = vmatpush1.msra.mxu0 %v6179
        %6181 = vmatprep.subr.mxu0 0.0
        %v6182 = vand.u32 %v6148, 4294901760
        %6183 = vmatpush1.msra.mxu0 %v6182
        %6184 = vmatprep.subr.mxu0 0.0
        %v6185 = vand.u32 %v6149, 4294901760
        %6186 = vmatpush1.msra.mxu0 %v6185
        %6187 = vmatprep.subr.mxu0 0.0
        %v6188 = vand.u32 %v6150, 4294901760
        %6189 = vmatpush1.msra.mxu0 %v6188
        %6190 = vmatprep.subr.mxu0 0.0
        %v6191 = vand.u32 %v6151, 4294901760
        %6192 = vmatpush1.msra.mxu0 %v6191
        %6193 = vmatprep.subr.mxu0 0.0
        %v6194 = vand.u32 %v6152, 4294901760
        %6195 = vmatpush1.msra.mxu0 %v6194
        %6196 = vmatprep.subr.mxu0 0.0
        %v6197 = vand.u32 %v6153, 4294901760
        %6198 = vmatpush1.msra.mxu0 %v6197
        %6199 = vmatprep.subr.mxu0 0.0
        %v6200 = vand.u32 %v6154, 4294901760
        %6201 = vmatpush1.msra.mxu0 %v6200
        %6202 = vmatprep.subr.mxu0 0.0
        %v6203 = vand.u32 %v6155, 4294901760
        %6204 = vmatpush1.msra.mxu0 %v6203
        %6205 = vmatprep.subr.mxu0 0.0
        %v6206 = vand.u32 %v6156, 4294901760
        %6207 = vmatpush1.msra.mxu0 %v6206
        %6208 = vmatprep.subr.mxu0 0.0
        %v6209 = vand.u32 %v6157, 4294901760
        %6210 = vmatpush1.msra.mxu0 %v6209
        %6211 = vmatprep.subr.mxu0 0.0
        %v6212 = vand.u32 %v6158, 4294901760
        %6213 = vmatpush1.msra.mxu0 %v6212
        %6214 = vmatprep.subr.mxu0 0.0
        %6215 = vmatpush1.msra.mxu0 0.0
        %6216 = vmatprep.subr.mxu0 0.0
        %6217 = vmatpush1.msra.mxu0 0.0
        %6218 = vmatprep.subr.mxu0 0.0
        %6219 = vmatpush1.msra.mxu0 0.0
        %6220 = vmatprep.subr.mxu0 0.0
        %6221 = vmatpush1.msra.mxu0 0.0
        %6222 = vmatprep.subr.mxu0 0.0
        %6223 = vmatpush1.msra.mxu0 0.0
        %6224 = vmatprep.subr.mxu0 0.0
        %6225 = vmatpush1.msra.mxu0 0.0
        %6226 = vmatprep.subr.mxu0 0.0
        %6227 = vmatpush1.msra.mxu0 0.0
        %6228 = vmatprep.subr.mxu0 0.0
        %6229 = vmatpush1.msra.mxu0 0.0
        %6230 = vmatprep.subr.mxu0 0.0
        %6231 = vmatpush1.msra.mxu0 0.0
        %6232 = vmatprep.subr.mxu0 0.0
        %6233 = vmatpush1.msra.mxu0 0.0
        %6234 = vmatprep.subr.mxu0 0.0
        %6235 = vmatpush1.msra.mxu0 0.0
        %6236 = vmatprep.subr.mxu0 0.0
        %6237 = vmatpush1.msra.mxu0 0.0
        %6238 = vmatprep.subr.mxu0 0.0
        %6239 = vmatpush1.msra.mxu0 0.0
        %6240 = vmatprep.subr.mxu0 0.0
        %6241 = vmatpush1.msra.mxu0 0.0
        %6242 = vmatprep.subr.mxu0 0.0
        %6243 = vmatpush1.msra.mxu0 0.0
        %6244 = vmatprep.subr.mxu0 0.0
        %6245 = vmatpush1.msra.mxu0 0.0
        %6246 = vmatprep.mubr.f32.mxu0 0.0
        %v6247 = vand.u32 %v6142, 4294901760
        %v6248 = vsub.f32 %v6142, %v6247
        %v6249 = vand.u32 %v6248, 4294901760
        %v6250 = vsub.f32 %v6248, %v6249
        %v6251 = vand.u32 %v6250, 4294901760
        %6252 = vmatmul.mubr.f32.gmra.mrb[0].mxu0 %v6251
        %v6253 = vpop.f32.mrb[0].mxu0
        %v6254 = vadd.f32 %v6164, %v6253
        %v6255 = vpop.f32.mrb[0].mxu0
        %6256 = vdwg.mxu0
        %6257 = vmatprep.subr.mxu0 0.0
        %v6258 = vand.u32 %v6143, 4294901760
        %v6259 = vsub.f32 %v6143, %v6258
        %v6260 = vand.u32 %v6259, 4294901760
        %v6261 = vsub.f32 %v6259, %v6260
        %v6262 = vand.u32 %v6261, 4294901760
        %6263 = vmatpush1.msra.mxu0 %v6262
        %6264 = vmatprep.subr.mxu0 0.0
        %v6265 = vand.u32 %v6144, 4294901760
        %v6266 = vsub.f32 %v6144, %v6265
        %v6267 = vand.u32 %v6266, 4294901760
        %v6268 = vsub.f32 %v6266, %v6267
        %v6269 = vand.u32 %v6268, 4294901760
        %6270 = vmatpush1.msra.mxu0 %v6269
        %6271 = vmatprep.subr.mxu0 0.0
        %v6272 = vand.u32 %v6145, 4294901760
        %v6273 = vsub.f32 %v6145, %v6272
        %v6274 = vand.u32 %v6273, 4294901760
        %v6275 = vsub.f32 %v6273, %v6274
        %v6276 = vand.u32 %v6275, 4294901760
        %6277 = vmatpush1.msra.mxu0 %v6276
        %6278 = vmatprep.subr.mxu0 0.0
        %v6279 = vand.u32 %v6146, 4294901760
        %v6280 = vsub.f32 %v6146, %v6279
        %v6281 = vand.u32 %v6280, 4294901760
        %v6282 = vsub.f32 %v6280, %v6281
        %v6283 = vand.u32 %v6282, 4294901760
        %6284 = vmatpush1.msra.mxu0 %v6283
        %6285 = vmatprep.subr.mxu0 0.0
        %v6286 = vand.u32 %v6147, 4294901760
        %v6287 = vsub.f32 %v6147, %v6286
        %v6288 = vand.u32 %v6287, 4294901760
        %v6289 = vsub.f32 %v6287, %v6288
        %v6290 = vand.u32 %v6289, 4294901760
        %6291 = vmatpush1.msra.mxu0 %v6290
        %6292 = vmatprep.subr.mxu0 0.0
        %v6293 = vand.u32 %v6148, 4294901760
        %v6294 = vsub.f32 %v6148, %v6293
        %v6295 = vand.u32 %v6294, 4294901760
        %v6296 = vsub.f32 %v6294, %v6295
        %v6297 = vand.u32 %v6296, 4294901760
        %6298 = vmatpush1.msra.mxu0 %v6297
        %6299 = vmatprep.subr.mxu0 0.0
        %v6300 = vand.u32 %v6149, 4294901760
        %v6301 = vsub.f32 %v6149, %v6300
        %v6302 = vand.u32 %v6301, 4294901760
        %v6303 = vsub.f32 %v6301, %v6302
        %v6304 = vand.u32 %v6303, 4294901760
        %6305 = vmatpush1.msra.mxu0 %v6304
        %6306 = vmatprep.subr.mxu0 0.0
        %v6307 = vand.u32 %v6150, 4294901760
        %v6308 = vsub.f32 %v6150, %v6307
        %v6309 = vand.u32 %v6308, 4294901760
        %v6310 = vsub.f32 %v6308, %v6309
        %v6311 = vand.u32 %v6310, 4294901760
        %6312 = vmatpush1.msra.mxu0 %v6311
        %6313 = vmatprep.subr.mxu0 0.0
        %v6314 = vand.u32 %v6151, 4294901760
        %v6315 = vsub.f32 %v6151, %v6314
        %v6316 = vand.u32 %v6315, 4294901760
        %v6317 = vsub.f32 %v6315, %v6316
        %v6318 = vand.u32 %v6317, 4294901760
        %6319 = vmatpush1.msra.mxu0 %v6318
        %6320 = vmatprep.subr.mxu0 0.0
        %v6321 = vand.u32 %v6152, 4294901760
        %v6322 = vsub.f32 %v6152, %v6321
        %v6323 = vand.u32 %v6322, 4294901760
        %v6324 = vsub.f32 %v6322, %v6323
        %v6325 = vand.u32 %v6324, 4294901760
        %6326 = vmatpush1.msra.mxu0 %v6325
        %6327 = vmatprep.subr.mxu0 0.0
        %v6328 = vand.u32 %v6153, 4294901760
        %v6329 = vsub.f32 %v6153, %v6328
        %v6330 = vand.u32 %v6329, 4294901760
        %v6331 = vsub.f32 %v6329, %v6330
        %v6332 = vand.u32 %v6331, 4294901760
        %6333 = vmatpush1.msra.mxu0 %v6332
        %6334 = vmatprep.subr.mxu0 0.0
        %v6335 = vand.u32 %v6154, 4294901760
        %v6336 = vsub.f32 %v6154, %v6335
        %v6337 = vand.u32 %v6336, 4294901760
        %v6338 = vsub.f32 %v6336, %v6337
        %v6339 = vand.u32 %v6338, 4294901760
        %6340 = vmatpush1.msra.mxu0 %v6339
        %6341 = vmatprep.subr.mxu0 0.0
        %v6342 = vand.u32 %v6155, 4294901760
        %v6343 = vsub.f32 %v6155, %v6342
        %v6344 = vand.u32 %v6343, 4294901760
        %v6345 = vsub.f32 %v6343, %v6344
        %v6346 = vand.u32 %v6345, 4294901760
        %6347 = vmatpush1.msra.mxu0 %v6346
        %6348 = vmatprep.subr.mxu0 0.0
        %v6349 = vand.u32 %v6156, 4294901760
        %v6350 = vsub.f32 %v6156, %v6349
        %v6351 = vand.u32 %v6350, 4294901760
        %v6352 = vsub.f32 %v6350, %v6351
        %v6353 = vand.u32 %v6352, 4294901760
        %6354 = vmatpush1.msra.mxu0 %v6353
        %6355 = vmatprep.subr.mxu0 0.0
        %v6356 = vand.u32 %v6157, 4294901760
        %v6357 = vsub.f32 %v6157, %v6356
        %v6358 = vand.u32 %v6357, 4294901760
        %v6359 = vsub.f32 %v6357, %v6358
        %v6360 = vand.u32 %v6359, 4294901760
        %6361 = vmatpush1.msra.mxu0 %v6360
        %6362 = vmatprep.subr.mxu0 0.0
        %v6363 = vand.u32 %v6158, 4294901760
        %v6364 = vsub.f32 %v6158, %v6363
        %v6365 = vand.u32 %v6364, 4294901760
        %v6366 = vsub.f32 %v6364, %v6365
        %v6367 = vand.u32 %v6366, 4294901760
        %6368 = vmatpush1.msra.mxu0 %v6367
        %6369 = vmatprep.subr.mxu0 0.0
        %6370 = vmatpush1.msra.mxu0 0.0
        %6371 = vmatprep.subr.mxu0 0.0
        %6372 = vmatpush1.msra.mxu0 0.0
        %6373 = vmatprep.subr.mxu0 0.0
        %6374 = vmatpush1.msra.mxu0 0.0
        %6375 = vmatprep.subr.mxu0 0.0
        %6376 = vmatpush1.msra.mxu0 0.0
        %6377 = vmatprep.subr.mxu0 0.0
        %6378 = vmatpush1.msra.mxu0 0.0
        %6379 = vmatprep.subr.mxu0 0.0
        %6380 = vmatpush1.msra.mxu0 0.0
        %6381 = vmatprep.subr.mxu0 0.0
        %6382 = vmatpush1.msra.mxu0 0.0
        %6383 = vmatprep.subr.mxu0 0.0
        %6384 = vmatpush1.msra.mxu0 0.0
        %6385 = vmatprep.subr.mxu0 0.0
        %6386 = vmatpush1.msra.mxu0 0.0
        %6387 = vmatprep.subr.mxu0 0.0
        %6388 = vmatpush1.msra.mxu0 0.0
        %6389 = vmatprep.subr.mxu0 0.0
        %6390 = vmatpush1.msra.mxu0 0.0
        %6391 = vmatprep.subr.mxu0 0.0
        %6392 = vmatpush1.msra.mxu0 0.0
        %6393 = vmatprep.subr.mxu0 0.0
        %6394 = vmatpush1.msra.mxu0 0.0
        %6395 = vmatprep.subr.mxu0 0.0
        %6396 = vmatpush1.msra.mxu0 0.0
        %6397 = vmatprep.subr.mxu0 0.0
        %6398 = vmatpush1.msra.mxu0 0.0
        %6399 = vmatprep.subr.mxu0 0.0
        %6400 = vmatpush1.msra.mxu0 0.0
        %6401 = vmatprep.mubr.f32.mxu0 0.0
        %v6402 = vand.u32 %v6142, 4294901760
        %6403 = vmatmul.mubr.f32.gmra.mrb[0].mxu0 %v6402
        %v6404 = vpop.f32.mrb[0].mxu0
        %v6405 = vadd.f32 %v6254, %v6404
        %v6406 = vpop.f32.mrb[0].mxu0
        %6407 = vdwg.mxu0
        %6408 = vmatprep.subr.mxu0 0.0
        %v6409 = vand.u32 %v6143, 4294901760
        %v6410 = vsub.f32 %v6143, %v6409
        %6411 = vmatpush1.msra.mxu0 %v6410
        %6412 = vmatprep.subr.mxu0 0.0
        %v6413 = vand.u32 %v6144, 4294901760
        %v6414 = vsub.f32 %v6144, %v6413
        %6415 = vmatpush1.msra.mxu0 %v6414
        %6416 = vmatprep.subr.mxu0 0.0
        %v6417 = vand.u32 %v6145, 4294901760
        %v6418 = vsub.f32 %v6145, %v6417
        %6419 = vmatpush1.msra.mxu0 %v6418
        %6420 = vmatprep.subr.mxu0 0.0
        %v6421 = vand.u32 %v6146, 4294901760
        %v6422 = vsub.f32 %v6146, %v6421
        %6423 = vmatpush1.msra.mxu0 %v6422
        %6424 = vmatprep.subr.mxu0 0.0
        %v6425 = vand.u32 %v6147, 4294901760
        %v6426 = vsub.f32 %v6147, %v6425
        %6427 = vmatpush1.msra.mxu0 %v6426
        %6428 = vmatprep.subr.mxu0 0.0
        %v6429 = vand.u32 %v6148, 4294901760
        %v6430 = vsub.f32 %v6148, %v6429
        %6431 = vmatpush1.msra.mxu0 %v6430
        %6432 = vmatprep.subr.mxu0 0.0
        %v6433 = vand.u32 %v6149, 4294901760
        %v6434 = vsub.f32 %v6149, %v6433
        %6435 = vmatpush1.msra.mxu0 %v6434
        %6436 = vmatprep.subr.mxu0 0.0
        %v6437 = vand.u32 %v6150, 4294901760
        %v6438 = vsub.f32 %v6150, %v6437
        %6439 = vmatpush1.msra.mxu0 %v6438
        %6440 = vmatprep.subr.mxu0 0.0
        %v6441 = vand.u32 %v6151, 4294901760
        %v6442 = vsub.f32 %v6151, %v6441
        %6443 = vmatpush1.msra.mxu0 %v6442
        %6444 = vmatprep.subr.mxu0 0.0
        %v6445 = vand.u32 %v6152, 4294901760
        %v6446 = vsub.f32 %v6152, %v6445
        %6447 = vmatpush1.msra.mxu0 %v6446
        %6448 = vmatprep.subr.mxu0 0.0
        %v6449 = vand.u32 %v6153, 4294901760
        %v6450 = vsub.f32 %v6153, %v6449
        %6451 = vmatpush1.msra.mxu0 %v6450
        %6452 = vmatprep.subr.mxu0 0.0
        %v6453 = vand.u32 %v6154, 4294901760
        %v6454 = vsub.f32 %v6154, %v6453
        %6455 = vmatpush1.msra.mxu0 %v6454
        %6456 = vmatprep.subr.mxu0 0.0
        %v6457 = vand.u32 %v6155, 4294901760
        %v6458 = vsub.f32 %v6155, %v6457
        %6459 = vmatpush1.msra.mxu0 %v6458
        %6460 = vmatprep.subr.mxu0 0.0
        %v6461 = vand.u32 %v6156, 4294901760
        %v6462 = vsub.f32 %v6156, %v6461
        %6463 = vmatpush1.msra.mxu0 %v6462
        %6464 = vmatprep.subr.mxu0 0.0
        %v6465 = vand.u32 %v6157, 4294901760
        %v6466 = vsub.f32 %v6157, %v6465
        %6467 = vmatpush1.msra.mxu0 %v6466
        %6468 = vmatprep.subr.mxu0 0.0
        %v6469 = vand.u32 %v6158, 4294901760
        %v6470 = vsub.f32 %v6158, %v6469
        %6471 = vmatpush1.msra.mxu0 %v6470
        %6472 = vmatprep.subr.mxu0 0.0
        %6473 = vmatpush1.msra.mxu0 0.0
        %6474 = vmatprep.subr.mxu0 0.0
        %6475 = vmatpush1.msra.mxu0 0.0
        %6476 = vmatprep.subr.mxu0 0.0
        %6477 = vmatpush1.msra.mxu0 0.0
        %6478 = vmatprep.subr.mxu0 0.0
        %6479 = vmatpush1.msra.mxu0 0.0
        %6480 = vmatprep.subr.mxu0 0.0
        %6481 = vmatpush1.msra.mxu0 0.0
        %6482 = vmatprep.subr.mxu0 0.0
        %6483 = vmatpush1.msra.mxu0 0.0
        %6484 = vmatprep.subr.mxu0 0.0
        %6485 = vmatpush1.msra.mxu0 0.0
        %6486 = vmatprep.subr.mxu0 0.0
        %6487 = vmatpush1.msra.mxu0 0.0
        %6488 = vmatprep.subr.mxu0 0.0
        %6489 = vmatpush1.msra.mxu0 0.0
        %6490 = vmatprep.subr.mxu0 0.0
        %6491 = vmatpush1.msra.mxu0 0.0
        %6492 = vmatprep.subr.mxu0 0.0
        %6493 = vmatpush1.msra.mxu0 0.0
        %6494 = vmatprep.subr.mxu0 0.0
        %6495 = vmatpush1.msra.mxu0 0.0
        %6496 = vmatprep.subr.mxu0 0.0
        %6497 = vmatpush1.msra.mxu0 0.0
        %6498 = vmatprep.subr.mxu0 0.0
        %6499 = vmatpush1.msra.mxu0 0.0
        %6500 = vmatprep.subr.mxu0 0.0
        %6501 = vmatpush1.msra.mxu0 0.0
        %6502 = vmatprep.subr.mxu0 0.0
        %6503 = vmatpush1.msra.mxu0 0.0
        %6504 = vmatprep.mubr.f32.mxu0 0.0
        %v6505 = vand.u32 %v6142, 4294901760
        %v6506 = vsub.f32 %v6142, %v6505
        %6507 = vmatmul.mubr.f32.gmra.mrb[0].mxu0 %v6506
        %v6508 = vpop.f32.mrb[0].mxu0
        %v6509 = vadd.f32 %v6405, %v6508
        %v6510 = vpop.f32.mrb[0].mxu0
        %6511 = vdwg.mxu0
        %6512 = vmatprep.subr.mxu0 0.0
        %v6513 = vand.u32 %v6143, 4294901760
        %6514 = vmatpush1.msra.mxu0 %v6513
        %6515 = vmatprep.subr.mxu0 0.0
        %v6516 = vand.u32 %v6144, 4294901760
        %6517 = vmatpush1.msra.mxu0 %v6516
        %6518 = vmatprep.subr.mxu0 0.0
        %v6519 = vand.u32 %v6145, 4294901760
        %6520 = vmatpush1.msra.mxu0 %v6519
        %6521 = vmatprep.subr.mxu0 0.0
        %v6522 = vand.u32 %v6146, 4294901760
        %6523 = vmatpush1.msra.mxu0 %v6522
        %6524 = vmatprep.subr.mxu0 0.0
        %v6525 = vand.u32 %v6147, 4294901760
        %6526 = vmatpush1.msra.mxu0 %v6525
        %6527 = vmatprep.subr.mxu0 0.0
        %v6528 = vand.u32 %v6148, 4294901760
        %6529 = vmatpush1.msra.mxu0 %v6528
        %6530 = vmatprep.subr.mxu0 0.0
        %v6531 = vand.u32 %v6149, 4294901760
        %6532 = vmatpush1.msra.mxu0 %v6531
        %6533 = vmatprep.subr.mxu0 0.0
        %v6534 = vand.u32 %v6150, 4294901760
        %6535 = vmatpush1.msra.mxu0 %v6534
        %6536 = vmatprep.subr.mxu0 0.0
        %v6537 = vand.u32 %v6151, 4294901760
        %6538 = vmatpush1.msra.mxu0 %v6537
        %6539 = vmatprep.subr.mxu0 0.0
        %v6540 = vand.u32 %v6152, 4294901760
        %6541 = vmatpush1.msra.mxu0 %v6540
        %6542 = vmatprep.subr.mxu0 0.0
        %v6543 = vand.u32 %v6153, 4294901760
        %6544 = vmatpush1.msra.mxu0 %v6543
        %6545 = vmatprep.subr.mxu0 0.0
        %v6546 = vand.u32 %v6154, 4294901760
        %6547 = vmatpush1.msra.mxu0 %v6546
        %6548 = vmatprep.subr.mxu0 0.0
        %v6549 = vand.u32 %v6155, 4294901760
        %6550 = vmatpush1.msra.mxu0 %v6549
        %6551 = vmatprep.subr.mxu0 0.0
        %v6552 = vand.u32 %v6156, 4294901760
        %6553 = vmatpush1.msra.mxu0 %v6552
        %6554 = vmatprep.subr.mxu0 0.0
        %v6555 = vand.u32 %v6157, 4294901760
        %6556 = vmatpush1.msra.mxu0 %v6555
        %6557 = vmatprep.subr.mxu0 0.0
        %v6558 = vand.u32 %v6158, 4294901760
        %6559 = vmatpush1.msra.mxu0 %v6558
        %6560 = vmatprep.subr.mxu0 0.0
        %6561 = vmatpush1.msra.mxu0 0.0
        %6562 = vmatprep.subr.mxu0 0.0
        %6563 = vmatpush1.msra.mxu0 0.0
        %6564 = vmatprep.subr.mxu0 0.0
        %6565 = vmatpush1.msra.mxu0 0.0
        %6566 = vmatprep.subr.mxu0 0.0
        %6567 = vmatpush1.msra.mxu0 0.0
        %6568 = vmatprep.subr.mxu0 0.0
        %6569 = vmatpush1.msra.mxu0 0.0
        %6570 = vmatprep.subr.mxu0 0.0
        %6571 = vmatpush1.msra.mxu0 0.0
        %6572 = vmatprep.subr.mxu0 0.0
        %6573 = vmatpush1.msra.mxu0 0.0
        %6574 = vmatprep.subr.mxu0 0.0
        %6575 = vmatpush1.msra.mxu0 0.0
        %6576 = vmatprep.subr.mxu0 0.0
        %6577 = vmatpush1.msra.mxu0 0.0
        %6578 = vmatprep.subr.mxu0 0.0
        %6579 = vmatpush1.msra.mxu0 0.0
        %6580 = vmatprep.subr.mxu0 0.0
        %6581 = vmatpush1.msra.mxu0 0.0
        %6582 = vmatprep.subr.mxu0 0.0
        %6583 = vmatpush1.msra.mxu0 0.0
        %6584 = vmatprep.subr.mxu0 0.0
        %6585 = vmatpush1.msra.mxu0 0.0
        %6586 = vmatprep.subr.mxu0 0.0
        %6587 = vmatpush1.msra.mxu0 0.0
        %6588 = vmatprep.subr.mxu0 0.0
        %6589 = vmatpush1.msra.mxu0 0.0
        %6590 = vmatprep.subr.mxu0 0.0
        %6591 = vmatpush1.msra.mxu0 0.0
        %6592 = vmatprep.mubr.f32.mxu0 0.0
        %v6593 = vand.u32 %v6142, 4294901760
        %v6594 = vsub.f32 %v6142, %v6593
        %v6595 = vand.u32 %v6594, 4294901760
        %6596 = vmatmul.mubr.f32.gmra.mrb[0].mxu0 %v6595
        %v6597 = vpop.f32.mrb[0].mxu0
        %v6598 = vadd.f32 %v6509, %v6597
        %v6599 = vpop.f32.mrb[0].mxu0
        %6600 = vdwg.mxu0
        %6601 = vmatprep.subr.mxu0 0.0
        %v6602 = vand.u32 %v6143, 4294901760
        %v6603 = vsub.f32 %v6143, %v6602
        %v6604 = vand.u32 %v6603, 4294901760
        %6605 = vmatpush1.msra.mxu0 %v6604
        %6606 = vmatprep.subr.mxu0 0.0
        %v6607 = vand.u32 %v6144, 4294901760
        %v6608 = vsub.f32 %v6144, %v6607
        %v6609 = vand.u32 %v6608, 4294901760
        %6610 = vmatpush1.msra.mxu0 %v6609
        %6611 = vmatprep.subr.mxu0 0.0
        %v6612 = vand.u32 %v6145, 4294901760
        %v6613 = vsub.f32 %v6145, %v6612
        %v6614 = vand.u32 %v6613, 4294901760
        %6615 = vmatpush1.msra.mxu0 %v6614
        %6616 = vmatprep.subr.mxu0 0.0
        %v6617 = vand.u32 %v6146, 4294901760
        %v6618 = vsub.f32 %v6146, %v6617
        %v6619 = vand.u32 %v6618, 4294901760
        %6620 = vmatpush1.msra.mxu0 %v6619
        %6621 = vmatprep.subr.mxu0 0.0
        %v6622 = vand.u32 %v6147, 4294901760
        %v6623 = vsub.f32 %v6147, %v6622
        %v6624 = vand.u32 %v6623, 4294901760
        %6625 = vmatpush1.msra.mxu0 %v6624
        %6626 = vmatprep.subr.mxu0 0.0
        %v6627 = vand.u32 %v6148, 4294901760
        %v6628 = vsub.f32 %v6148, %v6627
        %v6629 = vand.u32 %v6628, 4294901760
        %6630 = vmatpush1.msra.mxu0 %v6629
        %6631 = vmatprep.subr.mxu0 0.0
        %v6632 = vand.u32 %v6149, 4294901760
        %v6633 = vsub.f32 %v6149, %v6632
        %v6634 = vand.u32 %v6633, 4294901760
        %6635 = vmatpush1.msra.mxu0 %v6634
        %6636 = vmatprep.subr.mxu0 0.0
        %v6637 = vand.u32 %v6150, 4294901760
        %v6638 = vsub.f32 %v6150, %v6637
        %v6639 = vand.u32 %v6638, 4294901760
        %6640 = vmatpush1.msra.mxu0 %v6639
        %6641 = vmatprep.subr.mxu0 0.0
        %v6642 = vand.u32 %v6151, 4294901760
        %v6643 = vsub.f32 %v6151, %v6642
        %v6644 = vand.u32 %v6643, 4294901760
        %6645 = vmatpush1.msra.mxu0 %v6644
        %6646 = vmatprep.subr.mxu0 0.0
        %v6647 = vand.u32 %v6152, 4294901760
        %v6648 = vsub.f32 %v6152, %v6647
        %v6649 = vand.u32 %v6648, 4294901760
        %6650 = vmatpush1.msra.mxu0 %v6649
        %6651 = vmatprep.subr.mxu0 0.0
        %v6652 = vand.u32 %v6153, 4294901760
        %v6653 = vsub.f32 %v6153, %v6652
        %v6654 = vand.u32 %v6653, 4294901760
        %6655 = vmatpush1.msra.mxu0 %v6654
        %6656 = vmatprep.subr.mxu0 0.0
        %v6657 = vand.u32 %v6154, 4294901760
        %v6658 = vsub.f32 %v6154, %v6657
        %v6659 = vand.u32 %v6658, 4294901760
        %6660 = vmatpush1.msra.mxu0 %v6659
        %6661 = vmatprep.subr.mxu0 0.0
        %v6662 = vand.u32 %v6155, 4294901760
        %v6663 = vsub.f32 %v6155, %v6662
        %v6664 = vand.u32 %v6663, 4294901760
        %6665 = vmatpush1.msra.mxu0 %v6664
        %6666 = vmatprep.subr.mxu0 0.0
        %v6667 = vand.u32 %v6156, 4294901760
        %v6668 = vsub.f32 %v6156, %v6667
        %v6669 = vand.u32 %v6668, 4294901760
        %6670 = vmatpush1.msra.mxu0 %v6669
        %6671 = vmatprep.subr.mxu0 0.0
        %v6672 = vand.u32 %v6157, 4294901760
        %v6673 = vsub.f32 %v6157, %v6672
        %v6674 = vand.u32 %v6673, 4294901760
        %6675 = vmatpush1.msra.mxu0 %v6674
        %6676 = vmatprep.subr.mxu0 0.0
        %v6677 = vand.u32 %v6158, 4294901760
        %v6678 = vsub.f32 %v6158, %v6677
        %v6679 = vand.u32 %v6678, 4294901760
        %6680 = vmatpush1.msra.mxu0 %v6679
        %6681 = vmatprep.subr.mxu0 0.0
        %6682 = vmatpush1.msra.mxu0 0.0
        %6683 = vmatprep.subr.mxu0 0.0
        %6684 = vmatpush1.msra.mxu0 0.0
        %6685 = vmatprep.subr.mxu0 0.0
        %6686 = vmatpush1.msra.mxu0 0.0
        %6687 = vmatprep.subr.mxu0 0.0
        %6688 = vmatpush1.msra.mxu0 0.0
        %6689 = vmatprep.subr.mxu0 0.0
        %6690 = vmatpush1.msra.mxu0 0.0
        %6691 = vmatprep.subr.mxu0 0.0
        %6692 = vmatpush1.msra.mxu0 0.0
        %6693 = vmatprep.subr.mxu0 0.0
        %6694 = vmatpush1.msra.mxu0 0.0
        %6695 = vmatprep.subr.mxu0 0.0
        %6696 = vmatpush1.msra.mxu0 0.0
        %6697 = vmatprep.subr.mxu0 0.0
        %6698 = vmatpush1.msra.mxu0 0.0
        %6699 = vmatprep.subr.mxu0 0.0
        %6700 = vmatpush1.msra.mxu0 0.0
        %6701 = vmatprep.subr.mxu0 0.0
        %6702 = vmatpush1.msra.mxu0 0.0
        %6703 = vmatprep.subr.mxu0 0.0
        %6704 = vmatpush1.msra.mxu0 0.0
        %6705 = vmatprep.subr.mxu0 0.0
        %6706 = vmatpush1.msra.mxu0 0.0
        %6707 = vmatprep.subr.mxu0 0.0
        %6708 = vmatpush1.msra.mxu0 0.0
        %6709 = vmatprep.subr.mxu0 0.0
        %6710 = vmatpush1.msra.mxu0 0.0
        %6711 = vmatprep.subr.mxu0 0.0
        %6712 = vmatpush1.msra.mxu0 0.0
        %6713 = vmatprep.mubr.f32.mxu0 0.0
        %v6714 = vand.u32 %v6142, 4294901760
        %6715 = vmatmul.mubr.f32.gmra.mrb[0].mxu0 %v6714
        %v6716 = vpop.f32.mrb[0].mxu0
        %v6717 = vadd.f32 %v6598, %v6716
        %v6718 = vpop.f32.mrb[0].mxu0
        %6719 = vdwg.mxu0
        %6720 = vmatprep.subr.mxu0 0.0
        %v6721 = vand.u32 %v6143, 4294901760
        %6722 = vmatpush1.msra.mxu0 %v6721
        %6723 = vmatprep.subr.mxu0 0.0
        %v6724 = vand.u32 %v6144, 4294901760
        %6725 = vmatpush1.msra.mxu0 %v6724
        %6726 = vmatprep.subr.mxu0 0.0
        %v6727 = vand.u32 %v6145, 4294901760
        %6728 = vmatpush1.msra.mxu0 %v6727
        %6729 = vmatprep.subr.mxu0 0.0
        %v6730 = vand.u32 %v6146, 4294901760
        %6731 = vmatpush1.msra.mxu0 %v6730
        %6732 = vmatprep.subr.mxu0 0.0
        %v6733 = vand.u32 %v6147, 4294901760
        %6734 = vmatpush1.msra.mxu0 %v6733
        %6735 = vmatprep.subr.mxu0 0.0
        %v6736 = vand.u32 %v6148, 4294901760
        %6737 = vmatpush1.msra.mxu0 %v6736
        %6738 = vmatprep.subr.mxu0 0.0
        %v6739 = vand.u32 %v6149, 4294901760
        %6740 = vmatpush1.msra.mxu0 %v6739
        %6741 = vmatprep.subr.mxu0 0.0
        %v6742 = vand.u32 %v6150, 4294901760
        %6743 = vmatpush1.msra.mxu0 %v6742
        %6744 = vmatprep.subr.mxu0 0.0
        %v6745 = vand.u32 %v6151, 4294901760
        %6746 = vmatpush1.msra.mxu0 %v6745
        %6747 = vmatprep.subr.mxu0 0.0
        %v6748 = vand.u32 %v6152, 4294901760
        %6749 = vmatpush1.msra.mxu0 %v6748
        %6750 = vmatprep.subr.mxu0 0.0
        %v6751 = vand.u32 %v6153, 4294901760
        %6752 = vmatpush1.msra.mxu0 %v6751
        %6753 = vmatprep.subr.mxu0 0.0
        %v6754 = vand.u32 %v6154, 4294901760
        %6755 = vmatpush1.msra.mxu0 %v6754
        %6756 = vmatprep.subr.mxu0 0.0
        %v6757 = vand.u32 %v6155, 4294901760
        %6758 = vmatpush1.msra.mxu0 %v6757
        %6759 = vmatprep.subr.mxu0 0.0
        %v6760 = vand.u32 %v6156, 4294901760
        %6761 = vmatpush1.msra.mxu0 %v6760
        %6762 = vmatprep.subr.mxu0 0.0
        %v6763 = vand.u32 %v6157, 4294901760
        %6764 = vmatpush1.msra.mxu0 %v6763
        %6765 = vmatprep.subr.mxu0 0.0
        %v6766 = vand.u32 %v6158, 4294901760
        %6767 = vmatpush1.msra.mxu0 %v6766
        %6768 = vmatprep.subr.mxu0 0.0
        %6769 = vmatpush1.msra.mxu0 0.0
        %6770 = vmatprep.subr.mxu0 0.0
        %6771 = vmatpush1.msra.mxu0 0.0
        %6772 = vmatprep.subr.mxu0 0.0
        %6773 = vmatpush1.msra.mxu0 0.0
        %6774 = vmatprep.subr.mxu0 0.0
        %6775 = vmatpush1.msra.mxu0 0.0
        %6776 = vmatprep.subr.mxu0 0.0
        %6777 = vmatpush1.msra.mxu0 0.0
        %6778 = vmatprep.subr.mxu0 0.0
        %6779 = vmatpush1.msra.mxu0 0.0
        %6780 = vmatprep.subr.mxu0 0.0
        %6781 = vmatpush1.msra.mxu0 0.0
        %6782 = vmatprep.subr.mxu0 0.0
        %6783 = vmatpush1.msra.mxu0 0.0
        %6784 = vmatprep.subr.mxu0 0.0
        %6785 = vmatpush1.msra.mxu0 0.0
        %6786 = vmatprep.subr.mxu0 0.0
        %6787 = vmatpush1.msra.mxu0 0.0
        %6788 = vmatprep.subr.mxu0 0.0
        %6789 = vmatpush1.msra.mxu0 0.0
        %6790 = vmatprep.subr.mxu0 0.0
        %6791 = vmatpush1.msra.mxu0 0.0
        %6792 = vmatprep.subr.mxu0 0.0
        %6793 = vmatpush1.msra.mxu0 0.0
        %6794 = vmatprep.subr.mxu0 0.0
        %6795 = vmatpush1.msra.mxu0 0.0
        %6796 = vmatprep.subr.mxu0 0.0
        %6797 = vmatpush1.msra.mxu0 0.0
        %6798 = vmatprep.subr.mxu0 0.0
        %6799 = vmatpush1.msra.mxu0 0.0
        %6800 = vmatprep.mubr.f32.mxu0 0.0
        %v6801 = vand.u32 %v6142, 4294901760
        %6802 = vmatmul.mubr.f32.gmra.mrb[0].mxu0 %v6801
        %v6803 = vpop.f32.mrb[0].mxu0
        %v6804 = vadd.f32 %v6717, %v6803
        %v6805 = vpop.f32.mrb[0].mxu0
        %6806 = vdwg.mxu0
        %v6807 = vadd.f32 %v462, %v6804
        %v6808 = vmul.f32 %v6807, %v6807
        %6809 = vadd.xlane.f32.xlu0 %v6808
        %v6810 = vpop.xlane.xlu0 %6809
        %v6811 = vmul.f32 %v6810, %v466
        %v6812 = vrsqrt.pop %v6811
        %v6813 = vmul.f32 %v6811, %v6812
        %vm6814 = vcmp.eq.f32.partialorder %v6811, inf
        %v6815 = vsel %vm6814, %v6811, %v6813
        %vm6816 = vcmp.eq.f32.partialorder %v6811, 0.0
        %v6817 = vand.u32 %v6811, 2147483648
        %v6818 = vsel %vm6816, %v6817, %v6815
        %v6819 = vrcp.pop %v6818
        %v6820 = vmul.f32 %v6807, %v6819
        %v6821 = vld [vmem:[#allocation11] sm:$0xff]
        %v6822 = vld [vmem:[#allocation11 + $0x8] sm:$0xff]
        %v6823 = vld [vmem:[#allocation11 + $0x10] sm:$0xff]
        %v6824 = vld [vmem:[#allocation11 + $0x18] sm:$0xff]
        %v6825 = vld [vmem:[#allocation11 + $0x20] sm:$0xff]
        %v6826 = vld [vmem:[#allocation11 + $0x28] sm:$0xff]
        %v6827 = vld [vmem:[#allocation11 + $0x30] sm:$0xff]
        %v6828 = vld [vmem:[#allocation11 + $0x38] sm:$0xff]
        %v6829 = vld [vmem:[#allocation11 + $0x40] sm:$0xff]
        %v6830 = vld [vmem:[#allocation11 + $0x48] sm:$0xff]
        %v6831 = vld [vmem:[#allocation11 + $0x50] sm:$0xff]
        %v6832 = vld [vmem:[#allocation11 + $0x58] sm:$0xff]
        %v6833 = vld [vmem:[#allocation11 + $0x60] sm:$0xff]
        %v6834 = vld [vmem:[#allocation11 + $0x68] sm:$0xff]
        %v6835 = vld [vmem:[#allocation11 + $0x70] sm:$0xff]
        %v6836 = vld [vmem:[#allocation11 + $0x78] sm:$0xff]
        %v6837 = vld [vmem:[#allocation11 + $0x80] sm:$0xff]
        %v6838 = vld [vmem:[#allocation11 + $0x88] sm:$0xff]
        %v6839 = vld [vmem:[#allocation11 + $0x90] sm:$0xff]
        %v6840 = vld [vmem:[#allocation11 + $0x98] sm:$0xff]
        %v6841 = vld [vmem:[#allocation11 + $0xa0] sm:$0xff]
        %v6842 = vld [vmem:[#allocation11 + $0xa8] sm:$0xff]
        %v6843 = vld [vmem:[#allocation11 + $0xb0] sm:$0xff]
        %v6844 = vld [vmem:[#allocation11 + $0xb8] sm:$0xff]
        %v6845 = vld [vmem:[#allocation11 + $0xc0] sm:$0xff]
        %v6846 = vld [vmem:[#allocation11 + $0xc8] sm:$0xff]
        %v6847 = vld [vmem:[#allocation11 + $0xd0] sm:$0xff]
        %v6848 = vld [vmem:[#allocation11 + $0xd8] sm:$0xff]
        %v6849 = vld [vmem:[#allocation11 + $0xe0] sm:$0xff]
        %v6850 = vld [vmem:[#allocation11 + $0xe8] sm:$0xff]
        %v6851 = vld [vmem:[#allocation11 + $0xf0] sm:$0xff]
        %v6852 = vld [vmem:[#allocation11 + $0xf8] sm:$0xff]
        %v6853 = vld [vmem:[#allocation11 + $0x100] sm:$0xff]
        %v6854 = vld [vmem:[#allocation11 + $0x108] sm:$0xff]
        %v6855 = vld [vmem:[#allocation11 + $0x110] sm:$0xff]
        %v6856 = vld [vmem:[#allocation11 + $0x118] sm:$0xff]
        %v6857 = vld [vmem:[#allocation11 + $0x120] sm:$0xff]
        %v6858 = vld [vmem:[#allocation11 + $0x128] sm:$0xff]
        %v6859 = vld [vmem:[#allocation11 + $0x130] sm:$0xff]
        %v6860 = vld [vmem:[#allocation11 + $0x138] sm:$0xff]
        %v6861 = vld [vmem:[#allocation11 + $0x140] sm:$0xff]
        %v6862 = vld [vmem:[#allocation11 + $0x148] sm:$0xff]
        %v6863 = vld [vmem:[#allocation11 + $0x150] sm:$0xff]
        %v6864 = vld [vmem:[#allocation11 + $0x158] sm:$0xff]
        %v6865 = vld [vmem:[#allocation11 + $0x160] sm:$0xff]
        %v6866 = vld [vmem:[#allocation11 + $0x168] sm:$0xff]
        %v6867 = vld [vmem:[#allocation11 + $0x170] sm:$0xff]
        %v6868 = vld [vmem:[#allocation11 + $0x178] sm:$0xff]
        %v6869 = vld [vmem:[#allocation11 + $0x180] sm:$0xff]
        %v6870 = vld [vmem:[#allocation11 + $0x188] sm:$0xff]
        %v6871 = vld [vmem:[#allocation11 + $0x190] sm:$0xff]
        %v6872 = vld [vmem:[#allocation11 + $0x198] sm:$0xff]
        %v6873 = vld [vmem:[#allocation11 + $0x1a0] sm:$0xff]
        %v6874 = vld [vmem:[#allocation11 + $0x1a8] sm:$0xff]
        %v6875 = vld [vmem:[#allocation11 + $0x1b0] sm:$0xff]
        %v6876 = vld [vmem:[#allocation11 + $0x1b8] sm:$0xff]
        %v6877 = vld [vmem:[#allocation11 + $0x1c0] sm:$0xff]
        %v6878 = vld [vmem:[#allocation11 + $0x1c8] sm:$0xff]
        %v6879 = vld [vmem:[#allocation11 + $0x1d0] sm:$0xff]
        %v6880 = vld [vmem:[#allocation11 + $0x1d8] sm:$0xff]
        %v6881 = vld [vmem:[#allocation11 + $0x1e0] sm:$0xff]
        %v6882 = vld [vmem:[#allocation11 + $0x1e8] sm:$0xff]
        %v6883 = vld [vmem:[#allocation11 + $0x1f0] sm:$0xff]
        %v6884 = vld [vmem:[#allocation11 + $0x1f8] sm:$0xff]
        %v6885 = vld [vmem:[%s7] sm:$0xf]
        %v6887 = vlaneseq
        %v6888 = vshrl.u32 %v6887, 7
        %v6889 = vsub.s32 0, %v6888
        %v6890 = vrot.slane %v6885, %v6889
        %v6891 = vlaneseq
        %v6892 = vshrl.u32 %v6891, 7
        %v6893 = vsub.s32 1, %v6892
        %v6894 = vrot.slane %v6885, %v6893
        %v6895 = vlaneseq
        %v6896 = vshrl.u32 %v6895, 7
        %v6897 = vsub.s32 2, %v6896
        %v6898 = vrot.slane %v6885, %v6897
        %v6899 = vlaneseq
        %v6900 = vshrl.u32 %v6899, 7
        %v6901 = vsub.s32 3, %v6900
        %v6902 = vrot.slane %v6885, %v6901
        %v6907 = vand.u32 %v6822, 4294901760
        %6908 = vmatprep.subr.mxu0 %v6907
        %v6909 = vand.u32 %v6821, 4294901760
        %6910 = vmatpush1.msra.mxu0 %v6909
        %v6911 = vand.u32 %v6826, 4294901760
        %6912 = vmatprep.subr.mxu0 %v6911
        %v6913 = vand.u32 %v6825, 4294901760
        %6914 = vmatpush1.msra.mxu0 %v6913
        %v6915 = vand.u32 %v6830, 4294901760
        %6916 = vmatprep.subr.mxu0 %v6915
        %v6917 = vand.u32 %v6829, 4294901760
        %6918 = vmatpush1.msra.mxu0 %v6917
        %v6919 = vand.u32 %v6834, 4294901760
        %6920 = vmatprep.subr.mxu0 %v6919
        %v6921 = vand.u32 %v6833, 4294901760
        %6922 = vmatpush1.msra.mxu0 %v6921
        %v6923 = vand.u32 %v6838, 4294901760
        %6924 = vmatprep.subr.mxu0 %v6923
        %v6925 = vand.u32 %v6837, 4294901760
        %6926 = vmatpush1.msra.mxu0 %v6925
        %v6927 = vand.u32 %v6842, 4294901760
        %6928 = vmatprep.subr.mxu0 %v6927
        %v6929 = vand.u32 %v6841, 4294901760
        %6930 = vmatpush1.msra.mxu0 %v6929
        %v6931 = vand.u32 %v6846, 4294901760
        %6932 = vmatprep.subr.mxu0 %v6931
        %v6933 = vand.u32 %v6845, 4294901760
        %6934 = vmatpush1.msra.mxu0 %v6933
        %v6935 = vand.u32 %v6850, 4294901760
        %6936 = vmatprep.subr.mxu0 %v6935
        %v6937 = vand.u32 %v6849, 4294901760
        %6938 = vmatpush1.msra.mxu0 %v6937
        %v6939 = vand.u32 %v6854, 4294901760
        %6940 = vmatprep.subr.mxu0 %v6939
        %v6941 = vand.u32 %v6853, 4294901760
        %6942 = vmatpush1.msra.mxu0 %v6941
        %v6943 = vand.u32 %v6858, 4294901760
        %6944 = vmatprep.subr.mxu0 %v6943
        %v6945 = vand.u32 %v6857, 4294901760
        %6946 = vmatpush1.msra.mxu0 %v6945
        %v6947 = vand.u32 %v6862, 4294901760
        %6948 = vmatprep.subr.mxu0 %v6947
        %v6949 = vand.u32 %v6861, 4294901760
        %6950 = vmatpush1.msra.mxu0 %v6949
        %v6951 = vand.u32 %v6866, 4294901760
        %6952 = vmatprep.subr.mxu0 %v6951
        %v6953 = vand.u32 %v6865, 4294901760
        %6954 = vmatpush1.msra.mxu0 %v6953
        %v6955 = vand.u32 %v6870, 4294901760
        %6956 = vmatprep.subr.mxu0 %v6955
        %v6957 = vand.u32 %v6869, 4294901760
        %6958 = vmatpush1.msra.mxu0 %v6957
        %v6959 = vand.u32 %v6874, 4294901760
        %6960 = vmatprep.subr.mxu0 %v6959
        %v6961 = vand.u32 %v6873, 4294901760
        %6962 = vmatpush1.msra.mxu0 %v6961
        %v6963 = vand.u32 %v6878, 4294901760
        %6964 = vmatprep.subr.mxu0 %v6963
        %v6965 = vand.u32 %v6877, 4294901760
        %6966 = vmatpush1.msra.mxu0 %v6965
        %v6967 = vand.u32 %v6882, 4294901760
        %6968 = vmatprep.subr.mxu0 %v6967
        %v6969 = vand.u32 %v6881, 4294901760
        %6970 = vmatpush1.msra.mxu0 %v6969
        %6971 = vmatprep.subr.mxu0 0.0
        %6972 = vmatpush1.msra.mxu0 0.0
        %6973 = vmatprep.subr.mxu0 0.0
        %6974 = vmatpush1.msra.mxu0 0.0
        %6975 = vmatprep.subr.mxu0 0.0
        %6976 = vmatpush1.msra.mxu0 0.0
        %6977 = vmatprep.subr.mxu0 0.0
        %6978 = vmatpush1.msra.mxu0 0.0
        %6979 = vmatprep.subr.mxu0 0.0
        %6980 = vmatpush1.msra.mxu0 0.0
        %6981 = vmatprep.subr.mxu0 0.0
        %6982 = vmatpush1.msra.mxu0 0.0
        %6983 = vmatprep.subr.mxu0 0.0
        %6984 = vmatpush1.msra.mxu0 0.0
        %6985 = vmatprep.subr.mxu0 0.0
        %6986 = vmatpush1.msra.mxu0 0.0
        %6987 = vmatprep.subr.mxu0 0.0
        %6988 = vmatpush1.msra.mxu0 0.0
        %6989 = vmatprep.subr.mxu0 0.0
        %6990 = vmatpush1.msra.mxu0 0.0
        %6991 = vmatprep.subr.mxu0 0.0
        %6992 = vmatpush1.msra.mxu0 0.0
        %6993 = vmatprep.subr.mxu0 0.0
        %6994 = vmatpush1.msra.mxu0 0.0
        %6995 = vmatprep.subr.mxu0 0.0
        %6996 = vmatpush1.msra.mxu0 0.0
        %6997 = vmatprep.subr.mxu0 0.0
        %6998 = vmatpush1.msra.mxu0 0.0
        %6999 = vmatprep.subr.mxu0 0.0
        %7000 = vmatpush1.msra.mxu0 0.0
        %7001 = vmatprep.subr.mxu0 0.0
        %7002 = vmatpush1.msra.mxu0 0.0
        %7003 = vmatprep.mubr.f32.mxu0 0.0
        %v7004 = vand.u32 %v6820, 4294901760
        %v7005 = vsub.f32 %v6820, %v7004
        %v7006 = vand.u32 %v7005, 4294901760
        %v7007 = vsub.f32 %v7005, %v7006
        %v7008 = vand.u32 %v7007, 4294901760
        %7009 = vmatmul.mubr.f32.gmra.mrb[0].mxu0 %v7008
        %v7010 = vpop.f32.mrb[0].mxu0
        %v7011 = vadd.f32 %v6890, %v7010
        %v7012 = vpop.f32.mrb[0].mxu0
        %v7013 = vadd.f32 %v6894, %v7012
        %7014 = vdwg.mxu0
        %v7015 = vand.u32 %v6822, 4294901760
        %v7016 = vsub.f32 %v6822, %v7015
        %v7017 = vand.u32 %v7016, 4294901760
        %v7018 = vsub.f32 %v7016, %v7017
        %v7019 = vand.u32 %v7018, 4294901760
        %7020 = vmatprep.subr.mxu0 %v7019
        %v7021 = vand.u32 %v6821, 4294901760
        %v7022 = vsub.f32 %v6821, %v7021
        %v7023 = vand.u32 %v7022, 4294901760
        %v7024 = vsub.f32 %v7022, %v7023
        %v7025 = vand.u32 %v7024, 4294901760
        %7026 = vmatpush1.msra.mxu0 %v7025
        %v7027 = vand.u32 %v6826, 4294901760
        %v7028 = vsub.f32 %v6826, %v7027
        %v7029 = vand.u32 %v7028, 4294901760
        %v7030 = vsub.f32 %v7028, %v7029
        %v7031 = vand.u32 %v7030, 4294901760
        %7032 = vmatprep.subr.mxu0 %v7031
        %v7033 = vand.u32 %v6825, 4294901760
        %v7034 = vsub.f32 %v6825, %v7033
        %v7035 = vand.u32 %v7034, 4294901760
        %v7036 = vsub.f32 %v7034, %v7035
        %v7037 = vand.u32 %v7036, 4294901760
        %7038 = vmatpush1.msra.mxu0 %v7037
        %v7039 = vand.u32 %v6830, 4294901760
        %v7040 = vsub.f32 %v6830, %v7039
        %v7041 = vand.u32 %v7040, 4294901760
        %v7042 = vsub.f32 %v7040, %v7041
        %v7043 = vand.u32 %v7042, 4294901760
        %7044 = vmatprep.subr.mxu0 %v7043
        %v7045 = vand.u32 %v6829, 4294901760
        %v7046 = vsub.f32 %v6829, %v7045
        %v7047 = vand.u32 %v7046, 4294901760
        %v7048 = vsub.f32 %v7046, %v7047
        %v7049 = vand.u32 %v7048, 4294901760
        %7050 = vmatpush1.msra.mxu0 %v7049
        %v7051 = vand.u32 %v6834, 4294901760
        %v7052 = vsub.f32 %v6834, %v7051
        %v7053 = vand.u32 %v7052, 4294901760
        %v7054 = vsub.f32 %v7052, %v7053
        %v7055 = vand.u32 %v7054, 4294901760
        %7056 = vmatprep.subr.mxu0 %v7055
        %v7057 = vand.u32 %v6833, 4294901760
        %v7058 = vsub.f32 %v6833, %v7057
        %v7059 = vand.u32 %v7058, 4294901760
        %v7060 = vsub.f32 %v7058, %v7059
        %v7061 = vand.u32 %v7060, 4294901760
        %7062 = vmatpush1.msra.mxu0 %v7061
        %v7063 = vand.u32 %v6838, 4294901760
        %v7064 = vsub.f32 %v6838, %v7063
        %v7065 = vand.u32 %v7064, 4294901760
        %v7066 = vsub.f32 %v7064, %v7065
        %v7067 = vand.u32 %v7066, 4294901760
        %7068 = vmatprep.subr.mxu0 %v7067
        %v7069 = vand.u32 %v6837, 4294901760
        %v7070 = vsub.f32 %v6837, %v7069
        %v7071 = vand.u32 %v7070, 4294901760
        %v7072 = vsub.f32 %v7070, %v7071
        %v7073 = vand.u32 %v7072, 4294901760
        %7074 = vmatpush1.msra.mxu0 %v7073
        %v7075 = vand.u32 %v6842, 4294901760
        %v7076 = vsub.f32 %v6842, %v7075
        %v7077 = vand.u32 %v7076, 4294901760
        %v7078 = vsub.f32 %v7076, %v7077
        %v7079 = vand.u32 %v7078, 4294901760
        %7080 = vmatprep.subr.mxu0 %v7079
        %v7081 = vand.u32 %v6841, 4294901760
        %v7082 = vsub.f32 %v6841, %v7081
        %v7083 = vand.u32 %v7082, 4294901760
        %v7084 = vsub.f32 %v7082, %v7083
        %v7085 = vand.u32 %v7084, 4294901760
        %7086 = vmatpush1.msra.mxu0 %v7085
        %v7087 = vand.u32 %v6846, 4294901760
        %v7088 = vsub.f32 %v6846, %v7087
        %v7089 = vand.u32 %v7088, 4294901760
        %v7090 = vsub.f32 %v7088, %v7089
        %v7091 = vand.u32 %v7090, 4294901760
        %7092 = vmatprep.subr.mxu0 %v7091
        %v7093 = vand.u32 %v6845, 4294901760
        %v7094 = vsub.f32 %v6845, %v7093
        %v7095 = vand.u32 %v7094, 4294901760
        %v7096 = vsub.f32 %v7094, %v7095
        %v7097 = vand.u32 %v7096, 4294901760
        %7098 = vmatpush1.msra.mxu0 %v7097
        %v7099 = vand.u32 %v6850, 4294901760
        %v7100 = vsub.f32 %v6850, %v7099
        %v7101 = vand.u32 %v7100, 4294901760
        %v7102 = vsub.f32 %v7100, %v7101
        %v7103 = vand.u32 %v7102, 4294901760
        %7104 = vmatprep.subr.mxu0 %v7103
        %v7105 = vand.u32 %v6849, 4294901760
        %v7106 = vsub.f32 %v6849, %v7105
        %v7107 = vand.u32 %v7106, 4294901760
        %v7108 = vsub.f32 %v7106, %v7107
        %v7109 = vand.u32 %v7108, 4294901760
        %7110 = vmatpush1.msra.mxu0 %v7109
        %v7111 = vand.u32 %v6854, 4294901760
        %v7112 = vsub.f32 %v6854, %v7111
        %v7113 = vand.u32 %v7112, 4294901760
        %v7114 = vsub.f32 %v7112, %v7113
        %v7115 = vand.u32 %v7114, 4294901760
        %7116 = vmatprep.subr.mxu0 %v7115
        %v7117 = vand.u32 %v6853, 4294901760
        %v7118 = vsub.f32 %v6853, %v7117
        %v7119 = vand.u32 %v7118, 4294901760
        %v7120 = vsub.f32 %v7118, %v7119
        %v7121 = vand.u32 %v7120, 4294901760
        %7122 = vmatpush1.msra.mxu0 %v7121
        %v7123 = vand.u32 %v6858, 4294901760
        %v7124 = vsub.f32 %v6858, %v7123
        %v7125 = vand.u32 %v7124, 4294901760
        %v7126 = vsub.f32 %v7124, %v7125
        %v7127 = vand.u32 %v7126, 4294901760
        %7128 = vmatprep.subr.mxu0 %v7127
        %v7129 = vand.u32 %v6857, 4294901760
        %v7130 = vsub.f32 %v6857, %v7129
        %v7131 = vand.u32 %v7130, 4294901760
        %v7132 = vsub.f32 %v7130, %v7131
        %v7133 = vand.u32 %v7132, 4294901760
        %7134 = vmatpush1.msra.mxu0 %v7133
        %v7135 = vand.u32 %v6862, 4294901760
        %v7136 = vsub.f32 %v6862, %v7135
        %v7137 = vand.u32 %v7136, 4294901760
        %v7138 = vsub.f32 %v7136, %v7137
        %v7139 = vand.u32 %v7138, 4294901760
        %7140 = vmatprep.subr.mxu0 %v7139
        %v7141 = vand.u32 %v6861, 4294901760
        %v7142 = vsub.f32 %v6861, %v7141
        %v7143 = vand.u32 %v7142, 4294901760
        %v7144 = vsub.f32 %v7142, %v7143
        %v7145 = vand.u32 %v7144, 4294901760
        %7146 = vmatpush1.msra.mxu0 %v7145
        %v7147 = vand.u32 %v6866, 4294901760
        %v7148 = vsub.f32 %v6866, %v7147
        %v7149 = vand.u32 %v7148, 4294901760
        %v7150 = vsub.f32 %v7148, %v7149
        %v7151 = vand.u32 %v7150, 4294901760
        %7152 = vmatprep.subr.mxu0 %v7151
        %v7153 = vand.u32 %v6865, 4294901760
        %v7154 = vsub.f32 %v6865, %v7153
        %v7155 = vand.u32 %v7154, 4294901760
        %v7156 = vsub.f32 %v7154, %v7155
        %v7157 = vand.u32 %v7156, 4294901760
        %7158 = vmatpush1.msra.mxu0 %v7157
        %v7159 = vand.u32 %v6870, 4294901760
        %v7160 = vsub.f32 %v6870, %v7159
        %v7161 = vand.u32 %v7160, 4294901760
        %v7162 = vsub.f32 %v7160, %v7161
        %v7163 = vand.u32 %v7162, 4294901760
        %7164 = vmatprep.subr.mxu0 %v7163
        %v7165 = vand.u32 %v6869, 4294901760
        %v7166 = vsub.f32 %v6869, %v7165
        %v7167 = vand.u32 %v7166, 4294901760
        %v7168 = vsub.f32 %v7166, %v7167
        %v7169 = vand.u32 %v7168, 4294901760
        %7170 = vmatpush1.msra.mxu0 %v7169
        %v7171 = vand.u32 %v6874, 4294901760
        %v7172 = vsub.f32 %v6874, %v7171
        %v7173 = vand.u32 %v7172, 4294901760
        %v7174 = vsub.f32 %v7172, %v7173
        %v7175 = vand.u32 %v7174, 4294901760
        %7176 = vmatprep.subr.mxu0 %v7175
        %v7177 = vand.u32 %v6873, 4294901760
        %v7178 = vsub.f32 %v6873, %v7177
        %v7179 = vand.u32 %v7178, 4294901760
        %v7180 = vsub.f32 %v7178, %v7179
        %v7181 = vand.u32 %v7180, 4294901760
        %7182 = vmatpush1.msra.mxu0 %v7181
        %v7183 = vand.u32 %v6878, 4294901760
        %v7184 = vsub.f32 %v6878, %v7183
        %v7185 = vand.u32 %v7184, 4294901760
        %v7186 = vsub.f32 %v7184, %v7185
        %v7187 = vand.u32 %v7186, 4294901760
        %7188 = vmatprep.subr.mxu0 %v7187
        %v7189 = vand.u32 %v6877, 4294901760
        %v7190 = vsub.f32 %v6877, %v7189
        %v7191 = vand.u32 %v7190, 4294901760
        %v7192 = vsub.f32 %v7190, %v7191
        %v7193 = vand.u32 %v7192, 4294901760
        %7194 = vmatpush1.msra.mxu0 %v7193
        %v7195 = vand.u32 %v6882, 4294901760
        %v7196 = vsub.f32 %v6882, %v7195
        %v7197 = vand.u32 %v7196, 4294901760
        %v7198 = vsub.f32 %v7196, %v7197
        %v7199 = vand.u32 %v7198, 4294901760
        %7200 = vmatprep.subr.mxu0 %v7199
        %v7201 = vand.u32 %v6881, 4294901760
        %v7202 = vsub.f32 %v6881, %v7201
        %v7203 = vand.u32 %v7202, 4294901760
        %v7204 = vsub.f32 %v7202, %v7203
        %v7205 = vand.u32 %v7204, 4294901760
        %7206 = vmatpush1.msra.mxu0 %v7205
        %7207 = vmatprep.subr.mxu0 0.0
        %7208 = vmatpush1.msra.mxu0 0.0
        %7209 = vmatprep.subr.mxu0 0.0
        %7210 = vmatpush1.msra.mxu0 0.0
        %7211 = vmatprep.subr.mxu0 0.0
        %7212 = vmatpush1.msra.mxu0 0.0
        %7213 = vmatprep.subr.mxu0 0.0
        %7214 = vmatpush1.msra.mxu0 0.0
        %7215 = vmatprep.subr.mxu0 0.0
        %7216 = vmatpush1.msra.mxu0 0.0
        %7217 = vmatprep.subr.mxu0 0.0
        %7218 = vmatpush1.msra.mxu0 0.0
        %7219 = vmatprep.subr.mxu0 0.0
        %7220 = vmatpush1.msra.mxu0 0.0
        %7221 = vmatprep.subr.mxu0 0.0
        %7222 = vmatpush1.msra.mxu0 0.0
        %7223 = vmatprep.subr.mxu0 0.0
        %7224 = vmatpush1.msra.mxu0 0.0
        %7225 = vmatprep.subr.mxu0 0.0
        %7226 = vmatpush1.msra.mxu0 0.0
        %7227 = vmatprep.subr.mxu0 0.0
        %7228 = vmatpush1.msra.mxu0 0.0
        %7229 = vmatprep.subr.mxu0 0.0
        %7230 = vmatpush1.msra.mxu0 0.0
        %7231 = vmatprep.subr.mxu0 0.0
        %7232 = vmatpush1.msra.mxu0 0.0
        %7233 = vmatprep.subr.mxu0 0.0
        %7234 = vmatpush1.msra.mxu0 0.0
        %7235 = vmatprep.subr.mxu0 0.0
        %7236 = vmatpush1.msra.mxu0 0.0
        %7237 = vmatprep.subr.mxu0 0.0
        %7238 = vmatpush1.msra.mxu0 0.0
        %7239 = vmatprep.mubr.f32.mxu0 0.0
        %v7240 = vand.u32 %v6820, 4294901760
        %7241 = vmatmul.mubr.f32.gmra.mrb[0].mxu0 %v7240
        %v7242 = vpop.f32.mrb[0].mxu0
        %v7243 = vadd.f32 %v7011, %v7242
        %v7244 = vpop.f32.mrb[0].mxu0
        %v7245 = vadd.f32 %v7013, %v7244
        %7246 = vdwg.mxu0
        %v7247 = vand.u32 %v6822, 4294901760
        %v7248 = vsub.f32 %v6822, %v7247
        %7249 = vmatprep.subr.mxu0 %v7248
        %v7250 = vand.u32 %v6821, 4294901760
        %v7251 = vsub.f32 %v6821, %v7250
        %7252 = vmatpush1.msra.mxu0 %v7251
        %v7253 = vand.u32 %v6826, 4294901760
        %v7254 = vsub.f32 %v6826, %v7253
        %7255 = vmatprep.subr.mxu0 %v7254
        %v7256 = vand.u32 %v6825, 4294901760
        %v7257 = vsub.f32 %v6825, %v7256
        %7258 = vmatpush1.msra.mxu0 %v7257
        %v7259 = vand.u32 %v6830, 4294901760
        %v7260 = vsub.f32 %v6830, %v7259
        %7261 = vmatprep.subr.mxu0 %v7260
        %v7262 = vand.u32 %v6829, 4294901760
        %v7263 = vsub.f32 %v6829, %v7262
        %7264 = vmatpush1.msra.mxu0 %v7263
        %v7265 = vand.u32 %v6834, 4294901760
        %v7266 = vsub.f32 %v6834, %v7265
        %7267 = vmatprep.subr.mxu0 %v7266
        %v7268 = vand.u32 %v6833, 4294901760
        %v7269 = vsub.f32 %v6833, %v7268
        %7270 = vmatpush1.msra.mxu0 %v7269
        %v7271 = vand.u32 %v6838, 4294901760
        %v7272 = vsub.f32 %v6838, %v7271
        %7273 = vmatprep.subr.mxu0 %v7272
        %v7274 = vand.u32 %v6837, 4294901760
        %v7275 = vsub.f32 %v6837, %v7274
        %7276 = vmatpush1.msra.mxu0 %v7275
        %v7277 = vand.u32 %v6842, 4294901760
        %v7278 = vsub.f32 %v6842, %v7277
        %7279 = vmatprep.subr.mxu0 %v7278
        %v7280 = vand.u32 %v6841, 4294901760
        %v7281 = vsub.f32 %v6841, %v7280
        %7282 = vmatpush1.msra.mxu0 %v7281
        %v7283 = vand.u32 %v6846, 4294901760
        %v7284 = vsub.f32 %v6846, %v7283
        %7285 = vmatprep.subr.mxu0 %v7284
        %v7286 = vand.u32 %v6845, 4294901760
        %v7287 = vsub.f32 %v6845, %v7286
        %7288 = vmatpush1.msra.mxu0 %v7287
        %v7289 = vand.u32 %v6850, 4294901760
        %v7290 = vsub.f32 %v6850, %v7289
        %7291 = vmatprep.subr.mxu0 %v7290
        %v7292 = vand.u32 %v6849, 4294901760
        %v7293 = vsub.f32 %v6849, %v7292
        %7294 = vmatpush1.msra.mxu0 %v7293
        %v7295 = vand.u32 %v6854, 4294901760
        %v7296 = vsub.f32 %v6854, %v7295
        %7297 = vmatprep.subr.mxu0 %v7296
        %v7298 = vand.u32 %v6853, 4294901760
        %v7299 = vsub.f32 %v6853, %v7298
        %7300 = vmatpush1.msra.mxu0 %v7299
        %v7301 = vand.u32 %v6858, 4294901760
        %v7302 = vsub.f32 %v6858, %v7301
        %7303 = vmatprep.subr.mxu0 %v7302
        %v7304 = vand.u32 %v6857, 4294901760
        %v7305 = vsub.f32 %v6857, %v7304
        %7306 = vmatpush1.msra.mxu0 %v7305
        %v7307 = vand.u32 %v6862, 4294901760
        %v7308 = vsub.f32 %v6862, %v7307
        %7309 = vmatprep.subr.mxu0 %v7308
        %v7310 = vand.u32 %v6861, 4294901760
        %v7311 = vsub.f32 %v6861, %v7310
        %7312 = vmatpush1.msra.mxu0 %v7311
        %v7313 = vand.u32 %v6866, 4294901760
        %v7314 = vsub.f32 %v6866, %v7313
        %7315 = vmatprep.subr.mxu0 %v7314
        %v7316 = vand.u32 %v6865, 4294901760
        %v7317 = vsub.f32 %v6865, %v7316
        %7318 = vmatpush1.msra.mxu0 %v7317
        %v7319 = vand.u32 %v6870, 4294901760
        %v7320 = vsub.f32 %v6870, %v7319
        %7321 = vmatprep.subr.mxu0 %v7320
        %v7322 = vand.u32 %v6869, 4294901760
        %v7323 = vsub.f32 %v6869, %v7322
        %7324 = vmatpush1.msra.mxu0 %v7323
        %v7325 = vand.u32 %v6874, 4294901760
        %v7326 = vsub.f32 %v6874, %v7325
        %7327 = vmatprep.subr.mxu0 %v7326
        %v7328 = vand.u32 %v6873, 4294901760
        %v7329 = vsub.f32 %v6873, %v7328
        %7330 = vmatpush1.msra.mxu0 %v7329
        %v7331 = vand.u32 %v6878, 4294901760
        %v7332 = vsub.f32 %v6878, %v7331
        %7333 = vmatprep.subr.mxu0 %v7332
        %v7334 = vand.u32 %v6877, 4294901760
        %v7335 = vsub.f32 %v6877, %v7334
        %7336 = vmatpush1.msra.mxu0 %v7335
        %v7337 = vand.u32 %v6882, 4294901760
        %v7338 = vsub.f32 %v6882, %v7337
        %7339 = vmatprep.subr.mxu0 %v7338
        %v7340 = vand.u32 %v6881, 4294901760
        %v7341 = vsub.f32 %v6881, %v7340
        %7342 = vmatpush1.msra.mxu0 %v7341
        %7343 = vmatprep.subr.mxu0 0.0
        %7344 = vmatpush1.msra.mxu0 0.0
        %7345 = vmatprep.subr.mxu0 0.0
        %7346 = vmatpush1.msra.mxu0 0.0
        %7347 = vmatprep.subr.mxu0 0.0
        %7348 = vmatpush1.msra.mxu0 0.0
        %7349 = vmatprep.subr.mxu0 0.0
        %7350 = vmatpush1.msra.mxu0 0.0
        %7351 = vmatprep.subr.mxu0 0.0
        %7352 = vmatpush1.msra.mxu0 0.0
        %7353 = vmatprep.subr.mxu0 0.0
        %7354 = vmatpush1.msra.mxu0 0.0
        %7355 = vmatprep.subr.mxu0 0.0
        %7356 = vmatpush1.msra.mxu0 0.0
        %7357 = vmatprep.subr.mxu0 0.0
        %7358 = vmatpush1.msra.mxu0 0.0
        %7359 = vmatprep.subr.mxu0 0.0
        %7360 = vmatpush1.msra.mxu0 0.0
        %7361 = vmatprep.subr.mxu0 0.0
        %7362 = vmatpush1.msra.mxu0 0.0
        %7363 = vmatprep.subr.mxu0 0.0
        %7364 = vmatpush1.msra.mxu0 0.0
        %7365 = vmatprep.subr.mxu0 0.0
        %7366 = vmatpush1.msra.mxu0 0.0
        %7367 = vmatprep.subr.mxu0 0.0
        %7368 = vmatpush1.msra.mxu0 0.0
        %7369 = vmatprep.subr.mxu0 0.0
        %7370 = vmatpush1.msra.mxu0 0.0
        %7371 = vmatprep.subr.mxu0 0.0
        %7372 = vmatpush1.msra.mxu0 0.0
        %7373 = vmatprep.subr.mxu0 0.0
        %7374 = vmatpush1.msra.mxu0 0.0
        %7375 = vmatprep.mubr.f32.mxu0 0.0
        %v7376 = vand.u32 %v6820, 4294901760
        %v7377 = vsub.f32 %v6820, %v7376
        %7378 = vmatmul.mubr.f32.gmra.mrb[0].mxu0 %v7377
        %v7379 = vpop.f32.mrb[0].mxu0
        %v7380 = vadd.f32 %v7243, %v7379
        %v7381 = vpop.f32.mrb[0].mxu0
        %v7382 = vadd.f32 %v7245, %v7381
        %7383 = vdwg.mxu0
        %v7384 = vand.u32 %v6822, 4294901760
        %7385 = vmatprep.subr.mxu0 %v7384
        %v7386 = vand.u32 %v6821, 4294901760
        %7387 = vmatpush1.msra.mxu0 %v7386
        %v7388 = vand.u32 %v6826, 4294901760
        %7389 = vmatprep.subr.mxu0 %v7388
        %v7390 = vand.u32 %v6825, 4294901760
        %7391 = vmatpush1.msra.mxu0 %v7390
        %v7392 = vand.u32 %v6830, 4294901760
        %7393 = vmatprep.subr.mxu0 %v7392
        %v7394 = vand.u32 %v6829, 4294901760
        %7395 = vmatpush1.msra.mxu0 %v7394
        %v7396 = vand.u32 %v6834, 4294901760
        %7397 = vmatprep.subr.mxu0 %v7396
        %v7398 = vand.u32 %v6833, 4294901760
        %7399 = vmatpush1.msra.mxu0 %v7398
        %v7400 = vand.u32 %v6838, 4294901760
        %7401 = vmatprep.subr.mxu0 %v7400
        %v7402 = vand.u32 %v6837, 4294901760
        %7403 = vmatpush1.msra.mxu0 %v7402
        %v7404 = vand.u32 %v6842, 4294901760
        %7405 = vmatprep.subr.mxu0 %v7404
        %v7406 = vand.u32 %v6841, 4294901760
        %7407 = vmatpush1.msra.mxu0 %v7406
        %v7408 = vand.u32 %v6846, 4294901760
        %7409 = vmatprep.subr.mxu0 %v7408
        %v7410 = vand.u32 %v6845, 4294901760
        %7411 = vmatpush1.msra.mxu0 %v7410
        %v7412 = vand.u32 %v6850, 4294901760
        %7413 = vmatprep.subr.mxu0 %v7412
        %v7414 = vand.u32 %v6849, 4294901760
        %7415 = vmatpush1.msra.mxu0 %v7414
        %v7416 = vand.u32 %v6854, 4294901760
        %7417 = vmatprep.subr.mxu0 %v7416
        %v7418 = vand.u32 %v6853, 4294901760
        %7419 = vmatpush1.msra.mxu0 %v7418
        %v7420 = vand.u32 %v6858, 4294901760
        %7421 = vmatprep.subr.mxu0 %v7420
        %v7422 = vand.u32 %v6857, 4294901760
        %7423 = vmatpush1.msra.mxu0 %v7422
        %v7424 = vand.u32 %v6862, 4294901760
        %7425 = vmatprep.subr.mxu0 %v7424
        %v7426 = vand.u32 %v6861, 4294901760
        %7427 = vmatpush1.msra.mxu0 %v7426
        %v7428 = vand.u32 %v6866, 4294901760
        %7429 = vmatprep.subr.mxu0 %v7428
        %v7430 = vand.u32 %v6865, 4294901760
        %7431 = vmatpush1.msra.mxu0 %v7430
        %v7432 = vand.u32 %v6870, 4294901760
        %7433 = vmatprep.subr.mxu0 %v7432
        %v7434 = vand.u32 %v6869, 4294901760
        %7435 = vmatpush1.msra.mxu0 %v7434
        %v7436 = vand.u32 %v6874, 4294901760
        %7437 = vmatprep.subr.mxu0 %v7436
        %v7438 = vand.u32 %v6873, 4294901760
        %7439 = vmatpush1.msra.mxu0 %v7438
        %v7440 = vand.u32 %v6878, 4294901760
        %7441 = vmatprep.subr.mxu0 %v7440
        %v7442 = vand.u32 %v6877, 4294901760
        %7443 = vmatpush1.msra.mxu0 %v7442
        %v7444 = vand.u32 %v6882, 4294901760
        %7445 = vmatprep.subr.mxu0 %v7444
        %v7446 = vand.u32 %v6881, 4294901760
        %7447 = vmatpush1.msra.mxu0 %v7446
        %7448 = vmatprep.subr.mxu0 0.0
        %7449 = vmatpush1.msra.mxu0 0.0
        %7450 = vmatprep.subr.mxu0 0.0
        %7451 = vmatpush1.msra.mxu0 0.0
        %7452 = vmatprep.subr.mxu0 0.0
        %7453 = vmatpush1.msra.mxu0 0.0
        %7454 = vmatprep.subr.mxu0 0.0
        %7455 = vmatpush1.msra.mxu0 0.0
        %7456 = vmatprep.subr.mxu0 0.0
        %7457 = vmatpush1.msra.mxu0 0.0
        %7458 = vmatprep.subr.mxu0 0.0
        %7459 = vmatpush1.msra.mxu0 0.0
        %7460 = vmatprep.subr.mxu0 0.0
        %7461 = vmatpush1.msra.mxu0 0.0
        %7462 = vmatprep.subr.mxu0 0.0
        %7463 = vmatpush1.msra.mxu0 0.0
        %7464 = vmatprep.subr.mxu0 0.0
        %7465 = vmatpush1.msra.mxu0 0.0
        %7466 = vmatprep.subr.mxu0 0.0
        %7467 = vmatpush1.msra.mxu0 0.0
        %7468 = vmatprep.subr.mxu0 0.0
        %7469 = vmatpush1.msra.mxu0 0.0
        %7470 = vmatprep.subr.mxu0 0.0
        %7471 = vmatpush1.msra.mxu0 0.0
        %7472 = vmatprep.subr.mxu0 0.0
        %7473 = vmatpush1.msra.mxu0 0.0
        %7474 = vmatprep.subr.mxu0 0.0
        %7475 = vmatpush1.msra.mxu0 0.0
        %7476 = vmatprep.subr.mxu0 0.0
        %7477 = vmatpush1.msra.mxu0 0.0
        %7478 = vmatprep.subr.mxu0 0.0
        %7479 = vmatpush1.msra.mxu0 0.0
        %7480 = vmatprep.mubr.f32.mxu0 0.0
        %v7481 = vand.u32 %v6820, 4294901760
        %v7482 = vsub.f32 %v6820, %v7481
        %v7483 = vand.u32 %v7482, 4294901760
        %7484 = vmatmul.mubr.f32.gmra.mrb[0].mxu0 %v7483
        %v7485 = vpop.f32.mrb[0].mxu0
        %v7486 = vadd.f32 %v7380, %v7485
        %v7487 = vpop.f32.mrb[0].mxu0
        %v7488 = vadd.f32 %v7382, %v7487
        %7489 = vdwg.mxu0
        %v7490 = vand.u32 %v6822, 4294901760
        %v7491 = vsub.f32 %v6822, %v7490
        %v7492 = vand.u32 %v7491, 4294901760
        %7493 = vmatprep.subr.mxu0 %v7492
        %v7494 = vand.u32 %v6821, 4294901760
        %v7495 = vsub.f32 %v6821, %v7494
        %v7496 = vand.u32 %v7495, 4294901760
        %7497 = vmatpush1.msra.mxu0 %v7496
        %v7498 = vand.u32 %v6826, 4294901760
        %v7499 = vsub.f32 %v6826, %v7498
        %v7500 = vand.u32 %v7499, 4294901760
        %7501 = vmatprep.subr.mxu0 %v7500
        %v7502 = vand.u32 %v6825, 4294901760
        %v7503 = vsub.f32 %v6825, %v7502
        %v7504 = vand.u32 %v7503, 4294901760
        %7505 = vmatpush1.msra.mxu0 %v7504
        %v7506 = vand.u32 %v6830, 4294901760
        %v7507 = vsub.f32 %v6830, %v7506
        %v7508 = vand.u32 %v7507, 4294901760
        %7509 = vmatprep.subr.mxu0 %v7508
        %v7510 = vand.u32 %v6829, 4294901760
        %v7511 = vsub.f32 %v6829, %v7510
        %v7512 = vand.u32 %v7511, 4294901760
        %7513 = vmatpush1.msra.mxu0 %v7512
        %v7514 = vand.u32 %v6834, 4294901760
        %v7515 = vsub.f32 %v6834, %v7514
        %v7516 = vand.u32 %v7515, 4294901760
        %7517 = vmatprep.subr.mxu0 %v7516
        %v7518 = vand.u32 %v6833, 4294901760
        %v7519 = vsub.f32 %v6833, %v7518
        %v7520 = vand.u32 %v7519, 4294901760
        %7521 = vmatpush1.msra.mxu0 %v7520
        %v7522 = vand.u32 %v6838, 4294901760
        %v7523 = vsub.f32 %v6838, %v7522
        %v7524 = vand.u32 %v7523, 4294901760
        %7525 = vmatprep.subr.mxu0 %v7524
        %v7526 = vand.u32 %v6837, 4294901760
        %v7527 = vsub.f32 %v6837, %v7526
        %v7528 = vand.u32 %v7527, 4294901760
        %7529 = vmatpush1.msra.mxu0 %v7528
        %v7530 = vand.u32 %v6842, 4294901760
        %v7531 = vsub.f32 %v6842, %v7530
        %v7532 = vand.u32 %v7531, 4294901760
        %7533 = vmatprep.subr.mxu0 %v7532
        %v7534 = vand.u32 %v6841, 4294901760
        %v7535 = vsub.f32 %v6841, %v7534
        %v7536 = vand.u32 %v7535, 4294901760
        %7537 = vmatpush1.msra.mxu0 %v7536
        %v7538 = vand.u32 %v6846, 4294901760
        %v7539 = vsub.f32 %v6846, %v7538
        %v7540 = vand.u32 %v7539, 4294901760
        %7541 = vmatprep.subr.mxu0 %v7540
        %v7542 = vand.u32 %v6845, 4294901760
        %v7543 = vsub.f32 %v6845, %v7542
        %v7544 = vand.u32 %v7543, 4294901760
        %7545 = vmatpush1.msra.mxu0 %v7544
        %v7546 = vand.u32 %v6850, 4294901760
        %v7547 = vsub.f32 %v6850, %v7546
        %v7548 = vand.u32 %v7547, 4294901760
        %7549 = vmatprep.subr.mxu0 %v7548
        %v7550 = vand.u32 %v6849, 4294901760
        %v7551 = vsub.f32 %v6849, %v7550
        %v7552 = vand.u32 %v7551, 4294901760
        %7553 = vmatpush1.msra.mxu0 %v7552
        %v7554 = vand.u32 %v6854, 4294901760
        %v7555 = vsub.f32 %v6854, %v7554
        %v7556 = vand.u32 %v7555, 4294901760
        %7557 = vmatprep.subr.mxu0 %v7556
        %v7558 = vand.u32 %v6853, 4294901760
        %v7559 = vsub.f32 %v6853, %v7558
        %v7560 = vand.u32 %v7559, 4294901760
        %7561 = vmatpush1.msra.mxu0 %v7560
        %v7562 = vand.u32 %v6858, 4294901760
        %v7563 = vsub.f32 %v6858, %v7562
        %v7564 = vand.u32 %v7563, 4294901760
        %7565 = vmatprep.subr.mxu0 %v7564
        %v7566 = vand.u32 %v6857, 4294901760
        %v7567 = vsub.f32 %v6857, %v7566
        %v7568 = vand.u32 %v7567, 4294901760
        %7569 = vmatpush1.msra.mxu0 %v7568
        %v7570 = vand.u32 %v6862, 4294901760
        %v7571 = vsub.f32 %v6862, %v7570
        %v7572 = vand.u32 %v7571, 4294901760
        %7573 = vmatprep.subr.mxu0 %v7572
        %v7574 = vand.u32 %v6861, 4294901760
        %v7575 = vsub.f32 %v6861, %v7574
        %v7576 = vand.u32 %v7575, 4294901760
        %7577 = vmatpush1.msra.mxu0 %v7576
        %v7578 = vand.u32 %v6866, 4294901760
        %v7579 = vsub.f32 %v6866, %v7578
        %v7580 = vand.u32 %v7579, 4294901760
        %7581 = vmatprep.subr.mxu0 %v7580
        %v7582 = vand.u32 %v6865, 4294901760
        %v7583 = vsub.f32 %v6865, %v7582
        %v7584 = vand.u32 %v7583, 4294901760
        %7585 = vmatpush1.msra.mxu0 %v7584
        %v7586 = vand.u32 %v6870, 4294901760
        %v7587 = vsub.f32 %v6870, %v7586
        %v7588 = vand.u32 %v7587, 4294901760
        %7589 = vmatprep.subr.mxu0 %v7588
        %v7590 = vand.u32 %v6869, 4294901760
        %v7591 = vsub.f32 %v6869, %v7590
        %v7592 = vand.u32 %v7591, 4294901760
        %7593 = vmatpush1.msra.mxu0 %v7592
        %v7594 = vand.u32 %v6874, 4294901760
        %v7595 = vsub.f32 %v6874, %v7594
        %v7596 = vand.u32 %v7595, 4294901760
        %7597 = vmatprep.subr.mxu0 %v7596
        %v7598 = vand.u32 %v6873, 4294901760
        %v7599 = vsub.f32 %v6873, %v7598
        %v7600 = vand.u32 %v7599, 4294901760
        %7601 = vmatpush1.msra.mxu0 %v7600
        %v7602 = vand.u32 %v6878, 4294901760
        %v7603 = vsub.f32 %v6878, %v7602
        %v7604 = vand.u32 %v7603, 4294901760
        %7605 = vmatprep.subr.mxu0 %v7604
        %v7606 = vand.u32 %v6877, 4294901760
        %v7607 = vsub.f32 %v6877, %v7606
        %v7608 = vand.u32 %v7607, 4294901760
        %7609 = vmatpush1.msra.mxu0 %v7608
        %v7610 = vand.u32 %v6882, 4294901760
        %v7611 = vsub.f32 %v6882, %v7610
        %v7612 = vand.u32 %v7611, 4294901760
        %7613 = vmatprep.subr.mxu0 %v7612
        %v7614 = vand.u32 %v6881, 4294901760
        %v7615 = vsub.f32 %v6881, %v7614
        %v7616 = vand.u32 %v7615, 4294901760
        %7617 = vmatpush1.msra.mxu0 %v7616
        %7618 = vmatprep.subr.mxu0 0.0
        %7619 = vmatpush1.msra.mxu0 0.0
        %7620 = vmatprep.subr.mxu0 0.0
        %7621 = vmatpush1.msra.mxu0 0.0
        %7622 = vmatprep.subr.mxu0 0.0
        %7623 = vmatpush1.msra.mxu0 0.0
        %7624 = vmatprep.subr.mxu0 0.0
        %7625 = vmatpush1.msra.mxu0 0.0
        %7626 = vmatprep.subr.mxu0 0.0
        %7627 = vmatpush1.msra.mxu0 0.0
        %7628 = vmatprep.subr.mxu0 0.0
        %7629 = vmatpush1.msra.mxu0 0.0
        %7630 = vmatprep.subr.mxu0 0.0
        %7631 = vmatpush1.msra.mxu0 0.0
        %7632 = vmatprep.subr.mxu0 0.0
        %7633 = vmatpush1.msra.mxu0 0.0
        %7634 = vmatprep.subr.mxu0 0.0
        %7635 = vmatpush1.msra.mxu0 0.0
        %7636 = vmatprep.subr.mxu0 0.0
        %7637 = vmatpush1.msra.mxu0 0.0
        %7638 = vmatprep.subr.mxu0 0.0
        %7639 = vmatpush1.msra.mxu0 0.0
        %7640 = vmatprep.subr.mxu0 0.0
        %7641 = vmatpush1.msra.mxu0 0.0
        %7642 = vmatprep.subr.mxu0 0.0
        %7643 = vmatpush1.msra.mxu0 0.0
        %7644 = vmatprep.subr.mxu0 0.0
        %7645 = vmatpush1.msra.mxu0 0.0
        %7646 = vmatprep.subr.mxu0 0.0
        %7647 = vmatpush1.msra.mxu0 0.0
        %7648 = vmatprep.subr.mxu0 0.0
        %7649 = vmatpush1.msra.mxu0 0.0
        %7650 = vmatprep.mubr.f32.mxu0 0.0
        %v7651 = vand.u32 %v6820, 4294901760
        %7652 = vmatmul.mubr.f32.gmra.mrb[0].mxu0 %v7651
        %v7653 = vpop.f32.mrb[0].mxu0
        %v7654 = vadd.f32 %v7486, %v7653
        %v7655 = vpop.f32.mrb[0].mxu0
        %v7656 = vadd.f32 %v7488, %v7655
        %7657 = vdwg.mxu0
        %v7658 = vand.u32 %v6822, 4294901760
        %7659 = vmatprep.subr.mxu0 %v7658
        %v7660 = vand.u32 %v6821, 4294901760
        %7661 = vmatpush1.msra.mxu0 %v7660
        %v7662 = vand.u32 %v6826, 4294901760
        %7663 = vmatprep.subr.mxu0 %v7662
        %v7664 = vand.u32 %v6825, 4294901760
        %7665 = vmatpush1.msra.mxu0 %v7664
        %v7666 = vand.u32 %v6830, 4294901760
        %7667 = vmatprep.subr.mxu0 %v7666
        %v7668 = vand.u32 %v6829, 4294901760
        %7669 = vmatpush1.msra.mxu0 %v7668
        %v7670 = vand.u32 %v6834, 4294901760
        %7671 = vmatprep.subr.mxu0 %v7670
        %v7672 = vand.u32 %v6833, 4294901760
        %7673 = vmatpush1.msra.mxu0 %v7672
        %v7674 = vand.u32 %v6838, 4294901760
        %7675 = vmatprep.subr.mxu0 %v7674
        %v7676 = vand.u32 %v6837, 4294901760
        %7677 = vmatpush1.msra.mxu0 %v7676
        %v7678 = vand.u32 %v6842, 4294901760
        %7679 = vmatprep.subr.mxu0 %v7678
        %v7680 = vand.u32 %v6841, 4294901760
        %7681 = vmatpush1.msra.mxu0 %v7680
        %v7682 = vand.u32 %v6846, 4294901760
        %7683 = vmatprep.subr.mxu0 %v7682
        %v7684 = vand.u32 %v6845, 4294901760
        %7685 = vmatpush1.msra.mxu0 %v7684
        %v7686 = vand.u32 %v6850, 4294901760
        %7687 = vmatprep.subr.mxu0 %v7686
        %v7688 = vand.u32 %v6849, 4294901760
        %7689 = vmatpush1.msra.mxu0 %v7688
        %v7690 = vand.u32 %v6854, 4294901760
        %7691 = vmatprep.subr.mxu0 %v7690
        %v7692 = vand.u32 %v6853, 4294901760
        %7693 = vmatpush1.msra.mxu0 %v7692
        %v7694 = vand.u32 %v6858, 4294901760
        %7695 = vmatprep.subr.mxu0 %v7694
        %v7696 = vand.u32 %v6857, 4294901760
        %7697 = vmatpush1.msra.mxu0 %v7696
        %v7698 = vand.u32 %v6862, 4294901760
        %7699 = vmatprep.subr.mxu0 %v7698
        %v7700 = vand.u32 %v6861, 4294901760
        %7701 = vmatpush1.msra.mxu0 %v7700
        %v7702 = vand.u32 %v6866, 4294901760
        %7703 = vmatprep.subr.mxu0 %v7702
        %v7704 = vand.u32 %v6865, 4294901760
        %7705 = vmatpush1.msra.mxu0 %v7704
        %v7706 = vand.u32 %v6870, 4294901760
        %7707 = vmatprep.subr.mxu0 %v7706
        %v7708 = vand.u32 %v6869, 4294901760
        %7709 = vmatpush1.msra.mxu0 %v7708
        %v7710 = vand.u32 %v6874, 4294901760
        %7711 = vmatprep.subr.mxu0 %v7710
        %v7712 = vand.u32 %v6873, 4294901760
        %7713 = vmatpush1.msra.mxu0 %v7712
        %v7714 = vand.u32 %v6878, 4294901760
        %7715 = vmatprep.subr.mxu0 %v7714
        %v7716 = vand.u32 %v6877, 4294901760
        %7717 = vmatpush1.msra.mxu0 %v7716
        %v7718 = vand.u32 %v6882, 4294901760
        %7719 = vmatprep.subr.mxu0 %v7718
        %v7720 = vand.u32 %v6881, 4294901760
        %7721 = vmatpush1.msra.mxu0 %v7720
        %7722 = vmatprep.subr.mxu0 0.0
        %7723 = vmatpush1.msra.mxu0 0.0
        %7724 = vmatprep.subr.mxu0 0.0
        %7725 = vmatpush1.msra.mxu0 0.0
        %7726 = vmatprep.subr.mxu0 0.0
        %7727 = vmatpush1.msra.mxu0 0.0
        %7728 = vmatprep.subr.mxu0 0.0
        %7729 = vmatpush1.msra.mxu0 0.0
        %7730 = vmatprep.subr.mxu0 0.0
        %7731 = vmatpush1.msra.mxu0 0.0
        %7732 = vmatprep.subr.mxu0 0.0
        %7733 = vmatpush1.msra.mxu0 0.0
        %7734 = vmatprep.subr.mxu0 0.0
        %7735 = vmatpush1.msra.mxu0 0.0
        %7736 = vmatprep.subr.mxu0 0.0
        %7737 = vmatpush1.msra.mxu0 0.0
        %7738 = vmatprep.subr.mxu0 0.0
        %7739 = vmatpush1.msra.mxu0 0.0
        %7740 = vmatprep.subr.mxu0 0.0
        %7741 = vmatpush1.msra.mxu0 0.0
        %7742 = vmatprep.subr.mxu0 0.0
        %7743 = vmatpush1.msra.mxu0 0.0
        %7744 = vmatprep.subr.mxu0 0.0
        %7745 = vmatpush1.msra.mxu0 0.0
        %7746 = vmatprep.subr.mxu0 0.0
        %7747 = vmatpush1.msra.mxu0 0.0
        %7748 = vmatprep.subr.mxu0 0.0
        %7749 = vmatpush1.msra.mxu0 0.0
        %7750 = vmatprep.subr.mxu0 0.0
        %7751 = vmatpush1.msra.mxu0 0.0
        %7752 = vmatprep.subr.mxu0 0.0
        %7753 = vmatpush1.msra.mxu0 0.0
        %7754 = vmatprep.mubr.f32.mxu0 0.0
        %v7755 = vand.u32 %v6820, 4294901760
        %7756 = vmatmul.mubr.f32.gmra.mrb[0].mxu0 %v7755
        %v7757 = vpop.f32.mrb[0].mxu0
        %v7758 = vadd.f32 %v7654, %v7757
        %v7759 = vpop.f32.mrb[0].mxu0
        %v7760 = vadd.f32 %v7656, %v7759
        %7761 = vdwg.mxu0
        %v7762 = vand.u32 %v6824, 4294901760
        %7763 = vmatprep.subr.mxu0 %v7762
        %v7764 = vand.u32 %v6823, 4294901760
        %7765 = vmatpush1.msra.mxu0 %v7764
        %v7766 = vand.u32 %v6828, 4294901760
        %7767 = vmatprep.subr.mxu0 %v7766
        %v7768 = vand.u32 %v6827, 4294901760
        %7769 = vmatpush1.msra.mxu0 %v7768
        %v7770 = vand.u32 %v6832, 4294901760
        %7771 = vmatprep.subr.mxu0 %v7770
        %v7772 = vand.u32 %v6831, 4294901760
        %7773 = vmatpush1.msra.mxu0 %v7772
        %v7774 = vand.u32 %v6836, 4294901760
        %7775 = vmatprep.subr.mxu0 %v7774
        %v7776 = vand.u32 %v6835, 4294901760
        %7777 = vmatpush1.msra.mxu0 %v7776
        %v7778 = vand.u32 %v6840, 4294901760
        %7779 = vmatprep.subr.mxu0 %v7778
        %v7780 = vand.u32 %v6839, 4294901760
        %7781 = vmatpush1.msra.mxu0 %v7780
        %v7782 = vand.u32 %v6844, 4294901760
        %7783 = vmatprep.subr.mxu0 %v7782
        %v7784 = vand.u32 %v6843, 4294901760
        %7785 = vmatpush1.msra.mxu0 %v7784
        %v7786 = vand.u32 %v6848, 4294901760
        %7787 = vmatprep.subr.mxu0 %v7786
        %v7788 = vand.u32 %v6847, 4294901760
        %7789 = vmatpush1.msra.mxu0 %v7788
        %v7790 = vand.u32 %v6852, 4294901760
        %7791 = vmatprep.subr.mxu0 %v7790
        %v7792 = vand.u32 %v6851, 4294901760
        %7793 = vmatpush1.msra.mxu0 %v7792
        %v7794 = vand.u32 %v6856, 4294901760
        %7795 = vmatprep.subr.mxu0 %v7794
        %v7796 = vand.u32 %v6855, 4294901760
        %7797 = vmatpush1.msra.mxu0 %v7796
        %v7798 = vand.u32 %v6860, 4294901760
        %7799 = vmatprep.subr.mxu0 %v7798
        %v7800 = vand.u32 %v6859, 4294901760
        %7801 = vmatpush1.msra.mxu0 %v7800
        %v7802 = vand.u32 %v6864, 4294901760
        %7803 = vmatprep.subr.mxu0 %v7802
        %v7804 = vand.u32 %v6863, 4294901760
        %7805 = vmatpush1.msra.mxu0 %v7804
        %v7806 = vand.u32 %v6868, 4294901760
        %7807 = vmatprep.subr.mxu0 %v7806
        %v7808 = vand.u32 %v6867, 4294901760
        %7809 = vmatpush1.msra.mxu0 %v7808
        %v7810 = vand.u32 %v6872, 4294901760
        %7811 = vmatprep.subr.mxu0 %v7810
        %v7812 = vand.u32 %v6871, 4294901760
        %7813 = vmatpush1.msra.mxu0 %v7812
        %v7814 = vand.u32 %v6876, 4294901760
        %7815 = vmatprep.subr.mxu0 %v7814
        %v7816 = vand.u32 %v6875, 4294901760
        %7817 = vmatpush1.msra.mxu0 %v7816
        %v7818 = vand.u32 %v6880, 4294901760
        %7819 = vmatprep.subr.mxu0 %v7818
        %v7820 = vand.u32 %v6879, 4294901760
        %7821 = vmatpush1.msra.mxu0 %v7820
        %v7822 = vand.u32 %v6884, 4294901760
        %7823 = vmatprep.subr.mxu0 %v7822
        %v7824 = vand.u32 %v6883, 4294901760
        %7825 = vmatpush1.msra.mxu0 %v7824
        %7826 = vmatprep.subr.mxu0 0.0
        %7827 = vmatpush1.msra.mxu0 0.0
        %7828 = vmatprep.subr.mxu0 0.0
        %7829 = vmatpush1.msra.mxu0 0.0
        %7830 = vmatprep.subr.mxu0 0.0
        %7831 = vmatpush1.msra.mxu0 0.0
        %7832 = vmatprep.subr.mxu0 0.0
        %7833 = vmatpush1.msra.mxu0 0.0
        %7834 = vmatprep.subr.mxu0 0.0
        %7835 = vmatpush1.msra.mxu0 0.0
        %7836 = vmatprep.subr.mxu0 0.0
        %7837 = vmatpush1.msra.mxu0 0.0
        %7838 = vmatprep.subr.mxu0 0.0
        %7839 = vmatpush1.msra.mxu0 0.0
        %7840 = vmatprep.subr.mxu0 0.0
        %7841 = vmatpush1.msra.mxu0 0.0
        %7842 = vmatprep.subr.mxu0 0.0
        %7843 = vmatpush1.msra.mxu0 0.0
        %7844 = vmatprep.subr.mxu0 0.0
        %7845 = vmatpush1.msra.mxu0 0.0
        %7846 = vmatprep.subr.mxu0 0.0
        %7847 = vmatpush1.msra.mxu0 0.0
        %7848 = vmatprep.subr.mxu0 0.0
        %7849 = vmatpush1.msra.mxu0 0.0
        %7850 = vmatprep.subr.mxu0 0.0
        %7851 = vmatpush1.msra.mxu0 0.0
        %7852 = vmatprep.subr.mxu0 0.0
        %7853 = vmatpush1.msra.mxu0 0.0
        %7854 = vmatprep.subr.mxu0 0.0
        %7855 = vmatpush1.msra.mxu0 0.0
        %7856 = vmatprep.subr.mxu0 0.0
        %7857 = vmatpush1.msra.mxu0 0.0
        %7858 = vmatprep.mubr.f32.mxu0 0.0
        %v7859 = vand.u32 %v6820, 4294901760
        %v7860 = vsub.f32 %v6820, %v7859
        %v7861 = vand.u32 %v7860, 4294901760
        %v7862 = vsub.f32 %v7860, %v7861
        %v7863 = vand.u32 %v7862, 4294901760
        %7864 = vmatmul.mubr.f32.gmra.mrb[0].mxu0 %v7863
        %v7865 = vpop.f32.mrb[0].mxu0
        %v7866 = vadd.f32 %v6898, %v7865
        %v7867 = vpop.f32.mrb[0].mxu0
        %v7868 = vadd.f32 %v6902, %v7867
        %7869 = vdwg.mxu0
        %v7870 = vand.u32 %v6824, 4294901760
        %v7871 = vsub.f32 %v6824, %v7870
        %v7872 = vand.u32 %v7871, 4294901760
        %v7873 = vsub.f32 %v7871, %v7872
        %v7874 = vand.u32 %v7873, 4294901760
        %7875 = vmatprep.subr.mxu0 %v7874
        %v7876 = vand.u32 %v6823, 4294901760
        %v7877 = vsub.f32 %v6823, %v7876
        %v7878 = vand.u32 %v7877, 4294901760
        %v7879 = vsub.f32 %v7877, %v7878
        %v7880 = vand.u32 %v7879, 4294901760
        %7881 = vmatpush1.msra.mxu0 %v7880
        %v7882 = vand.u32 %v6828, 4294901760
        %v7883 = vsub.f32 %v6828, %v7882
        %v7884 = vand.u32 %v7883, 4294901760
        %v7885 = vsub.f32 %v7883, %v7884
        %v7886 = vand.u32 %v7885, 4294901760
        %7887 = vmatprep.subr.mxu0 %v7886
        %v7888 = vand.u32 %v6827, 4294901760
        %v7889 = vsub.f32 %v6827, %v7888
        %v7890 = vand.u32 %v7889, 4294901760
        %v7891 = vsub.f32 %v7889, %v7890
        %v7892 = vand.u32 %v7891, 4294901760
        %7893 = vmatpush1.msra.mxu0 %v7892
        %v7894 = vand.u32 %v6832, 4294901760
        %v7895 = vsub.f32 %v6832, %v7894
        %v7896 = vand.u32 %v7895, 4294901760
        %v7897 = vsub.f32 %v7895, %v7896
        %v7898 = vand.u32 %v7897, 4294901760
        %7899 = vmatprep.subr.mxu0 %v7898
        %v7900 = vand.u32 %v6831, 4294901760
        %v7901 = vsub.f32 %v6831, %v7900
        %v7902 = vand.u32 %v7901, 4294901760
        %v7903 = vsub.f32 %v7901, %v7902
        %v7904 = vand.u32 %v7903, 4294901760
        %7905 = vmatpush1.msra.mxu0 %v7904
        %v7906 = vand.u32 %v6836, 4294901760
        %v7907 = vsub.f32 %v6836, %v7906
        %v7908 = vand.u32 %v7907, 4294901760
        %v7909 = vsub.f32 %v7907, %v7908
        %v7910 = vand.u32 %v7909, 4294901760
        %7911 = vmatprep.subr.mxu0 %v7910
        %v7912 = vand.u32 %v6835, 4294901760
        %v7913 = vsub.f32 %v6835, %v7912
        %v7914 = vand.u32 %v7913, 4294901760
        %v7915 = vsub.f32 %v7913, %v7914
        %v7916 = vand.u32 %v7915, 4294901760
        %7917 = vmatpush1.msra.mxu0 %v7916
        %v7918 = vand.u32 %v6840, 4294901760
        %v7919 = vsub.f32 %v6840, %v7918
        %v7920 = vand.u32 %v7919, 4294901760
        %v7921 = vsub.f32 %v7919, %v7920
        %v7922 = vand.u32 %v7921, 4294901760
        %7923 = vmatprep.subr.mxu0 %v7922
        %v7924 = vand.u32 %v6839, 4294901760
        %v7925 = vsub.f32 %v6839, %v7924
        %v7926 = vand.u32 %v7925, 4294901760
        %v7927 = vsub.f32 %v7925, %v7926
        %v7928 = vand.u32 %v7927, 4294901760
        %7929 = vmatpush1.msra.mxu0 %v7928
        %v7930 = vand.u32 %v6844, 4294901760
        %v7931 = vsub.f32 %v6844, %v7930
        %v7932 = vand.u32 %v7931, 4294901760
        %v7933 = vsub.f32 %v7931, %v7932
        %v7934 = vand.u32 %v7933, 4294901760
        %7935 = vmatprep.subr.mxu0 %v7934
        %v7936 = vand.u32 %v6843, 4294901760
        %v7937 = vsub.f32 %v6843, %v7936
        %v7938 = vand.u32 %v7937, 4294901760
        %v7939 = vsub.f32 %v7937, %v7938
        %v7940 = vand.u32 %v7939, 4294901760
        %7941 = vmatpush1.msra.mxu0 %v7940
        %v7942 = vand.u32 %v6848, 4294901760
        %v7943 = vsub.f32 %v6848, %v7942
        %v7944 = vand.u32 %v7943, 4294901760
        %v7945 = vsub.f32 %v7943, %v7944
        %v7946 = vand.u32 %v7945, 4294901760
        %7947 = vmatprep.subr.mxu0 %v7946
        %v7948 = vand.u32 %v6847, 4294901760
        %v7949 = vsub.f32 %v6847, %v7948
        %v7950 = vand.u32 %v7949, 4294901760
        %v7951 = vsub.f32 %v7949, %v7950
        %v7952 = vand.u32 %v7951, 4294901760
        %7953 = vmatpush1.msra.mxu0 %v7952
        %v7954 = vand.u32 %v6852, 4294901760
        %v7955 = vsub.f32 %v6852, %v7954
        %v7956 = vand.u32 %v7955, 4294901760
        %v7957 = vsub.f32 %v7955, %v7956
        %v7958 = vand.u32 %v7957, 4294901760
        %7959 = vmatprep.subr.mxu0 %v7958
        %v7960 = vand.u32 %v6851, 4294901760
        %v7961 = vsub.f32 %v6851, %v7960
        %v7962 = vand.u32 %v7961, 4294901760
        %v7963 = vsub.f32 %v7961, %v7962
        %v7964 = vand.u32 %v7963, 4294901760
        %7965 = vmatpush1.msra.mxu0 %v7964
        %v7966 = vand.u32 %v6856, 4294901760
        %v7967 = vsub.f32 %v6856, %v7966
        %v7968 = vand.u32 %v7967, 4294901760
        %v7969 = vsub.f32 %v7967, %v7968
        %v7970 = vand.u32 %v7969, 4294901760
        %7971 = vmatprep.subr.mxu0 %v7970
        %v7972 = vand.u32 %v6855, 4294901760
        %v7973 = vsub.f32 %v6855, %v7972
        %v7974 = vand.u32 %v7973, 4294901760
        %v7975 = vsub.f32 %v7973, %v7974
        %v7976 = vand.u32 %v7975, 4294901760
        %7977 = vmatpush1.msra.mxu0 %v7976
        %v7978 = vand.u32 %v6860, 4294901760
        %v7979 = vsub.f32 %v6860, %v7978
        %v7980 = vand.u32 %v7979, 4294901760
        %v7981 = vsub.f32 %v7979, %v7980
        %v7982 = vand.u32 %v7981, 4294901760
        %7983 = vmatprep.subr.mxu0 %v7982
        %v7984 = vand.u32 %v6859, 4294901760
        %v7985 = vsub.f32 %v6859, %v7984
        %v7986 = vand.u32 %v7985, 4294901760
        %v7987 = vsub.f32 %v7985, %v7986
        %v7988 = vand.u32 %v7987, 4294901760
        %7989 = vmatpush1.msra.mxu0 %v7988
        %v7990 = vand.u32 %v6864, 4294901760
        %v7991 = vsub.f32 %v6864, %v7990
        %v7992 = vand.u32 %v7991, 4294901760
        %v7993 = vsub.f32 %v7991, %v7992
        %v7994 = vand.u32 %v7993, 4294901760
        %7995 = vmatprep.subr.mxu0 %v7994
        %v7996 = vand.u32 %v6863, 4294901760
        %v7997 = vsub.f32 %v6863, %v7996
        %v7998 = vand.u32 %v7997, 4294901760
        %v7999 = vsub.f32 %v7997, %v7998
        %v8000 = vand.u32 %v7999, 4294901760
        %8001 = vmatpush1.msra.mxu0 %v8000
        %v8002 = vand.u32 %v6868, 4294901760
        %v8003 = vsub.f32 %v6868, %v8002
        %v8004 = vand.u32 %v8003, 4294901760
        %v8005 = vsub.f32 %v8003, %v8004
        %v8006 = vand.u32 %v8005, 4294901760
        %8007 = vmatprep.subr.mxu0 %v8006
        %v8008 = vand.u32 %v6867, 4294901760
        %v8009 = vsub.f32 %v6867, %v8008
        %v8010 = vand.u32 %v8009, 4294901760
        %v8011 = vsub.f32 %v8009, %v8010
        %v8012 = vand.u32 %v8011, 4294901760
        %8013 = vmatpush1.msra.mxu0 %v8012
        %v8014 = vand.u32 %v6872, 4294901760
        %v8015 = vsub.f32 %v6872, %v8014
        %v8016 = vand.u32 %v8015, 4294901760
        %v8017 = vsub.f32 %v8015, %v8016
        %v8018 = vand.u32 %v8017, 4294901760
        %8019 = vmatprep.subr.mxu0 %v8018
        %v8020 = vand.u32 %v6871, 4294901760
        %v8021 = vsub.f32 %v6871, %v8020
        %v8022 = vand.u32 %v8021, 4294901760
        %v8023 = vsub.f32 %v8021, %v8022
        %v8024 = vand.u32 %v8023, 4294901760
        %8025 = vmatpush1.msra.mxu0 %v8024
        %v8026 = vand.u32 %v6876, 4294901760
        %v8027 = vsub.f32 %v6876, %v8026
        %v8028 = vand.u32 %v8027, 4294901760
        %v8029 = vsub.f32 %v8027, %v8028
        %v8030 = vand.u32 %v8029, 4294901760
        %8031 = vmatprep.subr.mxu0 %v8030
        %v8032 = vand.u32 %v6875, 4294901760
        %v8033 = vsub.f32 %v6875, %v8032
        %v8034 = vand.u32 %v8033, 4294901760
        %v8035 = vsub.f32 %v8033, %v8034
        %v8036 = vand.u32 %v8035, 4294901760
        %8037 = vmatpush1.msra.mxu0 %v8036
        %v8038 = vand.u32 %v6880, 4294901760
        %v8039 = vsub.f32 %v6880, %v8038
        %v8040 = vand.u32 %v8039, 4294901760
        %v8041 = vsub.f32 %v8039, %v8040
        %v8042 = vand.u32 %v8041, 4294901760
        %8043 = vmatprep.subr.mxu0 %v8042
        %v8044 = vand.u32 %v6879, 4294901760
        %v8045 = vsub.f32 %v6879, %v8044
        %v8046 = vand.u32 %v8045, 4294901760
        %v8047 = vsub.f32 %v8045, %v8046
        %v8048 = vand.u32 %v8047, 4294901760
        %8049 = vmatpush1.msra.mxu0 %v8048
        %v8050 = vand.u32 %v6884, 4294901760
        %v8051 = vsub.f32 %v6884, %v8050
        %v8052 = vand.u32 %v8051, 4294901760
        %v8053 = vsub.f32 %v8051, %v8052
        %v8054 = vand.u32 %v8053, 4294901760
        %8055 = vmatprep.subr.mxu0 %v8054
        %v8056 = vand.u32 %v6883, 4294901760
        %v8057 = vsub.f32 %v6883, %v8056
        %v8058 = vand.u32 %v8057, 4294901760
        %v8059 = vsub.f32 %v8057, %v8058
        %v8060 = vand.u32 %v8059, 4294901760
        %8061 = vmatpush1.msra.mxu0 %v8060
        %8062 = vmatprep.subr.mxu0 0.0
        %8063 = vmatpush1.msra.mxu0 0.0
        %8064 = vmatprep.subr.mxu0 0.0
        %8065 = vmatpush1.msra.mxu0 0.0
        %8066 = vmatprep.subr.mxu0 0.0
        %8067 = vmatpush1.msra.mxu0 0.0
        %8068 = vmatprep.subr.mxu0 0.0
        %8069 = vmatpush1.msra.mxu0 0.0
        %8070 = vmatprep.subr.mxu0 0.0
        %8071 = vmatpush1.msra.mxu0 0.0
        %8072 = vmatprep.subr.mxu0 0.0
        %8073 = vmatpush1.msra.mxu0 0.0
        %8074 = vmatprep.subr.mxu0 0.0
        %8075 = vmatpush1.msra.mxu0 0.0
        %8076 = vmatprep.subr.mxu0 0.0
        %8077 = vmatpush1.msra.mxu0 0.0
        %8078 = vmatprep.subr.mxu0 0.0
        %8079 = vmatpush1.msra.mxu0 0.0
        %8080 = vmatprep.subr.mxu0 0.0
        %8081 = vmatpush1.msra.mxu0 0.0
        %8082 = vmatprep.subr.mxu0 0.0
        %8083 = vmatpush1.msra.mxu0 0.0
        %8084 = vmatprep.subr.mxu0 0.0
        %8085 = vmatpush1.msra.mxu0 0.0
        %8086 = vmatprep.subr.mxu0 0.0
        %8087 = vmatpush1.msra.mxu0 0.0
        %8088 = vmatprep.subr.mxu0 0.0
        %8089 = vmatpush1.msra.mxu0 0.0
        %8090 = vmatprep.subr.mxu0 0.0
        %8091 = vmatpush1.msra.mxu0 0.0
        %8092 = vmatprep.subr.mxu0 0.0
        %8093 = vmatpush1.msra.mxu0 0.0
        %8094 = vmatprep.mubr.f32.mxu0 0.0
        %v8095 = vand.u32 %v6820, 4294901760
        %8096 = vmatmul.mubr.f32.gmra.mrb[0].mxu0 %v8095
        %v8097 = vpop.f32.mrb[0].mxu0
        %v8098 = vadd.f32 %v7866, %v8097
        %v8099 = vpop.f32.mrb[0].mxu0
        %v8100 = vadd.f32 %v7868, %v8099
        %8101 = vdwg.mxu0
        %v8102 = vand.u32 %v6824, 4294901760
        %v8103 = vsub.f32 %v6824, %v8102
        %8104 = vmatprep.subr.mxu0 %v8103
        %v8105 = vand.u32 %v6823, 4294901760
        %v8106 = vsub.f32 %v6823, %v8105
        %8107 = vmatpush1.msra.mxu0 %v8106
        %v8108 = vand.u32 %v6828, 4294901760
        %v8109 = vsub.f32 %v6828, %v8108
        %8110 = vmatprep.subr.mxu0 %v8109
        %v8111 = vand.u32 %v6827, 4294901760
        %v8112 = vsub.f32 %v6827, %v8111
        %8113 = vmatpush1.msra.mxu0 %v8112
        %v8114 = vand.u32 %v6832, 4294901760
        %v8115 = vsub.f32 %v6832, %v8114
        %8116 = vmatprep.subr.mxu0 %v8115
        %v8117 = vand.u32 %v6831, 4294901760
        %v8118 = vsub.f32 %v6831, %v8117
        %8119 = vmatpush1.msra.mxu0 %v8118
        %v8120 = vand.u32 %v6836, 4294901760
        %v8121 = vsub.f32 %v6836, %v8120
        %8122 = vmatprep.subr.mxu0 %v8121
        %v8123 = vand.u32 %v6835, 4294901760
        %v8124 = vsub.f32 %v6835, %v8123
        %8125 = vmatpush1.msra.mxu0 %v8124
        %v8126 = vand.u32 %v6840, 4294901760
        %v8127 = vsub.f32 %v6840, %v8126
        %8128 = vmatprep.subr.mxu0 %v8127
        %v8129 = vand.u32 %v6839, 4294901760
        %v8130 = vsub.f32 %v6839, %v8129
        %8131 = vmatpush1.msra.mxu0 %v8130
        %v8132 = vand.u32 %v6844, 4294901760
        %v8133 = vsub.f32 %v6844, %v8132
        %8134 = vmatprep.subr.mxu0 %v8133
        %v8135 = vand.u32 %v6843, 4294901760
        %v8136 = vsub.f32 %v6843, %v8135
        %8137 = vmatpush1.msra.mxu0 %v8136
        %v8138 = vand.u32 %v6848, 4294901760
        %v8139 = vsub.f32 %v6848, %v8138
        %8140 = vmatprep.subr.mxu0 %v8139
        %v8141 = vand.u32 %v6847, 4294901760
        %v8142 = vsub.f32 %v6847, %v8141
        %8143 = vmatpush1.msra.mxu0 %v8142
        %v8144 = vand.u32 %v6852, 4294901760
        %v8145 = vsub.f32 %v6852, %v8144
        %8146 = vmatprep.subr.mxu0 %v8145
        %v8147 = vand.u32 %v6851, 4294901760
        %v8148 = vsub.f32 %v6851, %v8147
        %8149 = vmatpush1.msra.mxu0 %v8148
        %v8150 = vand.u32 %v6856, 4294901760
        %v8151 = vsub.f32 %v6856, %v8150
        %8152 = vmatprep.subr.mxu0 %v8151
        %v8153 = vand.u32 %v6855, 4294901760
        %v8154 = vsub.f32 %v6855, %v8153
        %8155 = vmatpush1.msra.mxu0 %v8154
        %v8156 = vand.u32 %v6860, 4294901760
        %v8157 = vsub.f32 %v6860, %v8156
        %8158 = vmatprep.subr.mxu0 %v8157
        %v8159 = vand.u32 %v6859, 4294901760
        %v8160 = vsub.f32 %v6859, %v8159
        %8161 = vmatpush1.msra.mxu0 %v8160
        %v8162 = vand.u32 %v6864, 4294901760
        %v8163 = vsub.f32 %v6864, %v8162
        %8164 = vmatprep.subr.mxu0 %v8163
        %v8165 = vand.u32 %v6863, 4294901760
        %v8166 = vsub.f32 %v6863, %v8165
        %8167 = vmatpush1.msra.mxu0 %v8166
        %v8168 = vand.u32 %v6868, 4294901760
        %v8169 = vsub.f32 %v6868, %v8168
        %8170 = vmatprep.subr.mxu0 %v8169
        %v8171 = vand.u32 %v6867, 4294901760
        %v8172 = vsub.f32 %v6867, %v8171
        %8173 = vmatpush1.msra.mxu0 %v8172
        %v8174 = vand.u32 %v6872, 4294901760
        %v8175 = vsub.f32 %v6872, %v8174
        %8176 = vmatprep.subr.mxu0 %v8175
        %v8177 = vand.u32 %v6871, 4294901760
        %v8178 = vsub.f32 %v6871, %v8177
        %8179 = vmatpush1.msra.mxu0 %v8178
        %v8180 = vand.u32 %v6876, 4294901760
        %v8181 = vsub.f32 %v6876, %v8180
        %8182 = vmatprep.subr.mxu0 %v8181
        %v8183 = vand.u32 %v6875, 4294901760
        %v8184 = vsub.f32 %v6875, %v8183
        %8185 = vmatpush1.msra.mxu0 %v8184
        %v8186 = vand.u32 %v6880, 4294901760
        %v8187 = vsub.f32 %v6880, %v8186
        %8188 = vmatprep.subr.mxu0 %v8187
        %v8189 = vand.u32 %v6879, 4294901760
        %v8190 = vsub.f32 %v6879, %v8189
        %8191 = vmatpush1.msra.mxu0 %v8190
        %v8192 = vand.u32 %v6884, 4294901760
        %v8193 = vsub.f32 %v6884, %v8192
        %8194 = vmatprep.subr.mxu0 %v8193
        %v8195 = vand.u32 %v6883, 4294901760
        %v8196 = vsub.f32 %v6883, %v8195
        %8197 = vmatpush1.msra.mxu0 %v8196
        %8198 = vmatprep.subr.mxu0 0.0
        %8199 = vmatpush1.msra.mxu0 0.0
        %8200 = vmatprep.subr.mxu0 0.0
        %8201 = vmatpush1.msra.mxu0 0.0
        %8202 = vmatprep.subr.mxu0 0.0
        %8203 = vmatpush1.msra.mxu0 0.0
        %8204 = vmatprep.subr.mxu0 0.0
        %8205 = vmatpush1.msra.mxu0 0.0
        %8206 = vmatprep.subr.mxu0 0.0
        %8207 = vmatpush1.msra.mxu0 0.0
        %8208 = vmatprep.subr.mxu0 0.0
        %8209 = vmatpush1.msra.mxu0 0.0
        %8210 = vmatprep.subr.mxu0 0.0
        %8211 = vmatpush1.msra.mxu0 0.0
        %8212 = vmatprep.subr.mxu0 0.0
        %8213 = vmatpush1.msra.mxu0 0.0
        %8214 = vmatprep.subr.mxu0 0.0
        %8215 = vmatpush1.msra.mxu0 0.0
        %8216 = vmatprep.subr.mxu0 0.0
        %8217 = vmatpush1.msra.mxu0 0.0
        %8218 = vmatprep.subr.mxu0 0.0
        %8219 = vmatpush1.msra.mxu0 0.0
        %8220 = vmatprep.subr.mxu0 0.0
        %8221 = vmatpush1.msra.mxu0 0.0
        %8222 = vmatprep.subr.mxu0 0.0
        %8223 = vmatpush1.msra.mxu0 0.0
        %8224 = vmatprep.subr.mxu0 0.0
        %8225 = vmatpush1.msra.mxu0 0.0
        %8226 = vmatprep.subr.mxu0 0.0
        %8227 = vmatpush1.msra.mxu0 0.0
        %8228 = vmatprep.subr.mxu0 0.0
        %8229 = vmatpush1.msra.mxu0 0.0
        %8230 = vmatprep.mubr.f32.mxu0 0.0
        %v8231 = vand.u32 %v6820, 4294901760
        %v8232 = vsub.f32 %v6820, %v8231
        %8233 = vmatmul.mubr.f32.gmra.mrb[0].mxu0 %v8232
        %v8234 = vpop.f32.mrb[0].mxu0
        %v8235 = vadd.f32 %v8098, %v8234
        %v8236 = vpop.f32.mrb[0].mxu0
        %v8237 = vadd.f32 %v8100, %v8236
        %8238 = vdwg.mxu0
        %v8239 = vand.u32 %v6824, 4294901760
        %8240 = vmatprep.subr.mxu0 %v8239
        %v8241 = vand.u32 %v6823, 4294901760
        %8242 = vmatpush1.msra.mxu0 %v8241
        %v8243 = vand.u32 %v6828, 4294901760
        %8244 = vmatprep.subr.mxu0 %v8243
        %v8245 = vand.u32 %v6827, 4294901760
        %8246 = vmatpush1.msra.mxu0 %v8245
        %v8247 = vand.u32 %v6832, 4294901760
        %8248 = vmatprep.subr.mxu0 %v8247
        %v8249 = vand.u32 %v6831, 4294901760
        %8250 = vmatpush1.msra.mxu0 %v8249
        %v8251 = vand.u32 %v6836, 4294901760
        %8252 = vmatprep.subr.mxu0 %v8251
        %v8253 = vand.u32 %v6835, 4294901760
        %8254 = vmatpush1.msra.mxu0 %v8253
        %v8255 = vand.u32 %v6840, 4294901760
        %8256 = vmatprep.subr.mxu0 %v8255
        %v8257 = vand.u32 %v6839, 4294901760
        %8258 = vmatpush1.msra.mxu0 %v8257
        %v8259 = vand.u32 %v6844, 4294901760
        %8260 = vmatprep.subr.mxu0 %v8259
        %v8261 = vand.u32 %v6843, 4294901760
        %8262 = vmatpush1.msra.mxu0 %v8261
        %v8263 = vand.u32 %v6848, 4294901760
        %8264 = vmatprep.subr.mxu0 %v8263
        %v8265 = vand.u32 %v6847, 4294901760
        %8266 = vmatpush1.msra.mxu0 %v8265
        %v8267 = vand.u32 %v6852, 4294901760
        %8268 = vmatprep.subr.mxu0 %v8267
        %v8269 = vand.u32 %v6851, 4294901760
        %8270 = vmatpush1.msra.mxu0 %v8269
        %v8271 = vand.u32 %v6856, 4294901760
        %8272 = vmatprep.subr.mxu0 %v8271
        %v8273 = vand.u32 %v6855, 4294901760
        %8274 = vmatpush1.msra.mxu0 %v8273
        %v8275 = vand.u32 %v6860, 4294901760
        %8276 = vmatprep.subr.mxu0 %v8275
        %v8277 = vand.u32 %v6859, 4294901760
        %8278 = vmatpush1.msra.mxu0 %v8277
        %v8279 = vand.u32 %v6864, 4294901760
        %8280 = vmatprep.subr.mxu0 %v8279
        %v8281 = vand.u32 %v6863, 4294901760
        %8282 = vmatpush1.msra.mxu0 %v8281
        %v8283 = vand.u32 %v6868, 4294901760
        %8284 = vmatprep.subr.mxu0 %v8283
        %v8285 = vand.u32 %v6867, 4294901760
        %8286 = vmatpush1.msra.mxu0 %v8285
        %v8287 = vand.u32 %v6872, 4294901760
        %8288 = vmatprep.subr.mxu0 %v8287
        %v8289 = vand.u32 %v6871, 4294901760
        %8290 = vmatpush1.msra.mxu0 %v8289
        %v8291 = vand.u32 %v6876, 4294901760
        %8292 = vmatprep.subr.mxu0 %v8291
        %v8293 = vand.u32 %v6875, 4294901760
        %8294 = vmatpush1.msra.mxu0 %v8293
        %v8295 = vand.u32 %v6880, 4294901760
        %8296 = vmatprep.subr.mxu0 %v8295
        %v8297 = vand.u32 %v6879, 4294901760
        %8298 = vmatpush1.msra.mxu0 %v8297
        %v8299 = vand.u32 %v6884, 4294901760
        %8300 = vmatprep.subr.mxu0 %v8299
        %v8301 = vand.u32 %v6883, 4294901760
        %8302 = vmatpush1.msra.mxu0 %v8301
        %8303 = vmatprep.subr.mxu0 0.0
        %8304 = vmatpush1.msra.mxu0 0.0
        %8305 = vmatprep.subr.mxu0 0.0
        %8306 = vmatpush1.msra.mxu0 0.0
        %8307 = vmatprep.subr.mxu0 0.0
        %8308 = vmatpush1.msra.mxu0 0.0
        %8309 = vmatprep.subr.mxu0 0.0
        %8310 = vmatpush1.msra.mxu0 0.0
        %8311 = vmatprep.subr.mxu0 0.0
        %8312 = vmatpush1.msra.mxu0 0.0
        %8313 = vmatprep.subr.mxu0 0.0
        %8314 = vmatpush1.msra.mxu0 0.0
        %8315 = vmatprep.subr.mxu0 0.0
        %8316 = vmatpush1.msra.mxu0 0.0
        %8317 = vmatprep.subr.mxu0 0.0
        %8318 = vmatpush1.msra.mxu0 0.0
        %8319 = vmatprep.subr.mxu0 0.0
        %8320 = vmatpush1.msra.mxu0 0.0
        %8321 = vmatprep.subr.mxu0 0.0
        %8322 = vmatpush1.msra.mxu0 0.0
        %8323 = vmatprep.subr.mxu0 0.0
        %8324 = vmatpush1.msra.mxu0 0.0
        %8325 = vmatprep.subr.mxu0 0.0
        %8326 = vmatpush1.msra.mxu0 0.0
        %8327 = vmatprep.subr.mxu0 0.0
        %8328 = vmatpush1.msra.mxu0 0.0
        %8329 = vmatprep.subr.mxu0 0.0
        %8330 = vmatpush1.msra.mxu0 0.0
        %8331 = vmatprep.subr.mxu0 0.0
        %8332 = vmatpush1.msra.mxu0 0.0
        %8333 = vmatprep.subr.mxu0 0.0
        %8334 = vmatpush1.msra.mxu0 0.0
        %8335 = vmatprep.mubr.f32.mxu0 0.0
        %v8336 = vand.u32 %v6820, 4294901760
        %v8337 = vsub.f32 %v6820, %v8336
        %v8338 = vand.u32 %v8337, 4294901760
        %8339 = vmatmul.mubr.f32.gmra.mrb[0].mxu0 %v8338
        %v8340 = vpop.f32.mrb[0].mxu0
        %v8341 = vadd.f32 %v8235, %v8340
        %v8342 = vpop.f32.mrb[0].mxu0
        %v8343 = vadd.f32 %v8237, %v8342
        %8344 = vdwg.mxu0
        %v8345 = vand.u32 %v6824, 4294901760
        %v8346 = vsub.f32 %v6824, %v8345
        %v8347 = vand.u32 %v8346, 4294901760
        %8348 = vmatprep.subr.mxu0 %v8347
        %v8349 = vand.u32 %v6823, 4294901760
        %v8350 = vsub.f32 %v6823, %v8349
        %v8351 = vand.u32 %v8350, 4294901760
        %8352 = vmatpush1.msra.mxu0 %v8351
        %v8353 = vand.u32 %v6828, 4294901760
        %v8354 = vsub.f32 %v6828, %v8353
        %v8355 = vand.u32 %v8354, 4294901760
        %8356 = vmatprep.subr.mxu0 %v8355
        %v8357 = vand.u32 %v6827, 4294901760
        %v8358 = vsub.f32 %v6827, %v8357
        %v8359 = vand.u32 %v8358, 4294901760
        %8360 = vmatpush1.msra.mxu0 %v8359
        %v8361 = vand.u32 %v6832, 4294901760
        %v8362 = vsub.f32 %v6832, %v8361
        %v8363 = vand.u32 %v8362, 4294901760
        %8364 = vmatprep.subr.mxu0 %v8363
        %v8365 = vand.u32 %v6831, 4294901760
        %v8366 = vsub.f32 %v6831, %v8365
        %v8367 = vand.u32 %v8366, 4294901760
        %8368 = vmatpush1.msra.mxu0 %v8367
        %v8369 = vand.u32 %v6836, 4294901760
        %v8370 = vsub.f32 %v6836, %v8369
        %v8371 = vand.u32 %v8370, 4294901760
        %8372 = vmatprep.subr.mxu0 %v8371
        %v8373 = vand.u32 %v6835, 4294901760
        %v8374 = vsub.f32 %v6835, %v8373
        %v8375 = vand.u32 %v8374, 4294901760
        %8376 = vmatpush1.msra.mxu0 %v8375
        %v8377 = vand.u32 %v6840, 4294901760
        %v8378 = vsub.f32 %v6840, %v8377
        %v8379 = vand.u32 %v8378, 4294901760
        %8380 = vmatprep.subr.mxu0 %v8379
        %v8381 = vand.u32 %v6839, 4294901760
        %v8382 = vsub.f32 %v6839, %v8381
        %v8383 = vand.u32 %v8382, 4294901760
        %8384 = vmatpush1.msra.mxu0 %v8383
        %v8385 = vand.u32 %v6844, 4294901760
        %v8386 = vsub.f32 %v6844, %v8385
        %v8387 = vand.u32 %v8386, 4294901760
        %8388 = vmatprep.subr.mxu0 %v8387
        %v8389 = vand.u32 %v6843, 4294901760
        %v8390 = vsub.f32 %v6843, %v8389
        %v8391 = vand.u32 %v8390, 4294901760
        %8392 = vmatpush1.msra.mxu0 %v8391
        %v8393 = vand.u32 %v6848, 4294901760
        %v8394 = vsub.f32 %v6848, %v8393
        %v8395 = vand.u32 %v8394, 4294901760
        %8396 = vmatprep.subr.mxu0 %v8395
        %v8397 = vand.u32 %v6847, 4294901760
        %v8398 = vsub.f32 %v6847, %v8397
        %v8399 = vand.u32 %v8398, 4294901760
        %8400 = vmatpush1.msra.mxu0 %v8399
        %v8401 = vand.u32 %v6852, 4294901760
        %v8402 = vsub.f32 %v6852, %v8401
        %v8403 = vand.u32 %v8402, 4294901760
        %8404 = vmatprep.subr.mxu0 %v8403
        %v8405 = vand.u32 %v6851, 4294901760
        %v8406 = vsub.f32 %v6851, %v8405
        %v8407 = vand.u32 %v8406, 4294901760
        %8408 = vmatpush1.msra.mxu0 %v8407
        %v8409 = vand.u32 %v6856, 4294901760
        %v8410 = vsub.f32 %v6856, %v8409
        %v8411 = vand.u32 %v8410, 4294901760
        %8412 = vmatprep.subr.mxu0 %v8411
        %v8413 = vand.u32 %v6855, 4294901760
        %v8414 = vsub.f32 %v6855, %v8413
        %v8415 = vand.u32 %v8414, 4294901760
        %8416 = vmatpush1.msra.mxu0 %v8415
        %v8417 = vand.u32 %v6860, 4294901760
        %v8418 = vsub.f32 %v6860, %v8417
        %v8419 = vand.u32 %v8418, 4294901760
        %8420 = vmatprep.subr.mxu0 %v8419
        %v8421 = vand.u32 %v6859, 4294901760
        %v8422 = vsub.f32 %v6859, %v8421
        %v8423 = vand.u32 %v8422, 4294901760
        %8424 = vmatpush1.msra.mxu0 %v8423
        %v8425 = vand.u32 %v6864, 4294901760
        %v8426 = vsub.f32 %v6864, %v8425
        %v8427 = vand.u32 %v8426, 4294901760
        %8428 = vmatprep.subr.mxu0 %v8427
        %v8429 = vand.u32 %v6863, 4294901760
        %v8430 = vsub.f32 %v6863, %v8429
        %v8431 = vand.u32 %v8430, 4294901760
        %8432 = vmatpush1.msra.mxu0 %v8431
        %v8433 = vand.u32 %v6868, 4294901760
        %v8434 = vsub.f32 %v6868, %v8433
        %v8435 = vand.u32 %v8434, 4294901760
        %8436 = vmatprep.subr.mxu0 %v8435
        %v8437 = vand.u32 %v6867, 4294901760
        %v8438 = vsub.f32 %v6867, %v8437
        %v8439 = vand.u32 %v8438, 4294901760
        %8440 = vmatpush1.msra.mxu0 %v8439
        %v8441 = vand.u32 %v6872, 4294901760
        %v8442 = vsub.f32 %v6872, %v8441
        %v8443 = vand.u32 %v8442, 4294901760
        %8444 = vmatprep.subr.mxu0 %v8443
        %v8445 = vand.u32 %v6871, 4294901760
        %v8446 = vsub.f32 %v6871, %v8445
        %v8447 = vand.u32 %v8446, 4294901760
        %8448 = vmatpush1.msra.mxu0 %v8447
        %v8449 = vand.u32 %v6876, 4294901760
        %v8450 = vsub.f32 %v6876, %v8449
        %v8451 = vand.u32 %v8450, 4294901760
        %8452 = vmatprep.subr.mxu0 %v8451
        %v8453 = vand.u32 %v6875, 4294901760
        %v8454 = vsub.f32 %v6875, %v8453
        %v8455 = vand.u32 %v8454, 4294901760
        %8456 = vmatpush1.msra.mxu0 %v8455
        %v8457 = vand.u32 %v6880, 4294901760
        %v8458 = vsub.f32 %v6880, %v8457
        %v8459 = vand.u32 %v8458, 4294901760
        %8460 = vmatprep.subr.mxu0 %v8459
        %v8461 = vand.u32 %v6879, 4294901760
        %v8462 = vsub.f32 %v6879, %v8461
        %v8463 = vand.u32 %v8462, 4294901760
        %8464 = vmatpush1.msra.mxu0 %v8463
        %v8465 = vand.u32 %v6884, 4294901760
        %v8466 = vsub.f32 %v6884, %v8465
        %v8467 = vand.u32 %v8466, 4294901760
        %8468 = vmatprep.subr.mxu0 %v8467
        %v8469 = vand.u32 %v6883, 4294901760
        %v8470 = vsub.f32 %v6883, %v8469
        %v8471 = vand.u32 %v8470, 4294901760
        %8472 = vmatpush1.msra.mxu0 %v8471
        %8473 = vmatprep.subr.mxu0 0.0
        %8474 = vmatpush1.msra.mxu0 0.0
        %8475 = vmatprep.subr.mxu0 0.0
        %8476 = vmatpush1.msra.mxu0 0.0
        %8477 = vmatprep.subr.mxu0 0.0
        %8478 = vmatpush1.msra.mxu0 0.0
        %8479 = vmatprep.subr.mxu0 0.0
        %8480 = vmatpush1.msra.mxu0 0.0
        %8481 = vmatprep.subr.mxu0 0.0
        %8482 = vmatpush1.msra.mxu0 0.0
        %8483 = vmatprep.subr.mxu0 0.0
        %8484 = vmatpush1.msra.mxu0 0.0
        %8485 = vmatprep.subr.mxu0 0.0
        %8486 = vmatpush1.msra.mxu0 0.0
        %8487 = vmatprep.subr.mxu0 0.0
        %8488 = vmatpush1.msra.mxu0 0.0
        %8489 = vmatprep.subr.mxu0 0.0
        %8490 = vmatpush1.msra.mxu0 0.0
        %8491 = vmatprep.subr.mxu0 0.0
        %8492 = vmatpush1.msra.mxu0 0.0
        %8493 = vmatprep.subr.mxu0 0.0
        %8494 = vmatpush1.msra.mxu0 0.0
        %8495 = vmatprep.subr.mxu0 0.0
        %8496 = vmatpush1.msra.mxu0 0.0
        %8497 = vmatprep.subr.mxu0 0.0
        %8498 = vmatpush1.msra.mxu0 0.0
        %8499 = vmatprep.subr.mxu0 0.0
        %8500 = vmatpush1.msra.mxu0 0.0
        %8501 = vmatprep.subr.mxu0 0.0
        %8502 = vmatpush1.msra.mxu0 0.0
        %8503 = vmatprep.subr.mxu0 0.0
        %8504 = vmatpush1.msra.mxu0 0.0
        %8505 = vmatprep.mubr.f32.mxu0 0.0
        %v8506 = vand.u32 %v6820, 4294901760
        %8507 = vmatmul.mubr.f32.gmra.mrb[0].mxu0 %v8506
        %v8508 = vpop.f32.mrb[0].mxu0
        %v8509 = vadd.f32 %v8341, %v8508
        %v8510 = vpop.f32.mrb[0].mxu0
        %v8511 = vadd.f32 %v8343, %v8510
        %8512 = vdwg.mxu0
        %v8513 = vand.u32 %v6824, 4294901760
        %8514 = vmatprep.subr.mxu0 %v8513
        %v8515 = vand.u32 %v6823, 4294901760
        %8516 = vmatpush1.msra.mxu0 %v8515
        %v8517 = vand.u32 %v6828, 4294901760
        %8518 = vmatprep.subr.mxu0 %v8517
        %v8519 = vand.u32 %v6827, 4294901760
        %8520 = vmatpush1.msra.mxu0 %v8519
        %v8521 = vand.u32 %v6832, 4294901760
        %8522 = vmatprep.subr.mxu0 %v8521
        %v8523 = vand.u32 %v6831, 4294901760
        %8524 = vmatpush1.msra.mxu0 %v8523
        %v8525 = vand.u32 %v6836, 4294901760
        %8526 = vmatprep.subr.mxu0 %v8525
        %v8527 = vand.u32 %v6835, 4294901760
        %8528 = vmatpush1.msra.mxu0 %v8527
        %v8529 = vand.u32 %v6840, 4294901760
        %8530 = vmatprep.subr.mxu0 %v8529
        %v8531 = vand.u32 %v6839, 4294901760
        %8532 = vmatpush1.msra.mxu0 %v8531
        %v8533 = vand.u32 %v6844, 4294901760
        %8534 = vmatprep.subr.mxu0 %v8533
        %v8535 = vand.u32 %v6843, 4294901760
        %8536 = vmatpush1.msra.mxu0 %v8535
        %v8537 = vand.u32 %v6848, 4294901760
        %8538 = vmatprep.subr.mxu0 %v8537
        %v8539 = vand.u32 %v6847, 4294901760
        %8540 = vmatpush1.msra.mxu0 %v8539
        %v8541 = vand.u32 %v6852, 4294901760
        %8542 = vmatprep.subr.mxu0 %v8541
        %v8543 = vand.u32 %v6851, 4294901760
        %8544 = vmatpush1.msra.mxu0 %v8543
        %v8545 = vand.u32 %v6856, 4294901760
        %8546 = vmatprep.subr.mxu0 %v8545
        %v8547 = vand.u32 %v6855, 4294901760
        %8548 = vmatpush1.msra.mxu0 %v8547
        %v8549 = vand.u32 %v6860, 4294901760
        %8550 = vmatprep.subr.mxu0 %v8549
        %v8551 = vand.u32 %v6859, 4294901760
        %8552 = vmatpush1.msra.mxu0 %v8551
        %v8553 = vand.u32 %v6864, 4294901760
        %8554 = vmatprep.subr.mxu0 %v8553
        %v8555 = vand.u32 %v6863, 4294901760
        %8556 = vmatpush1.msra.mxu0 %v8555
        %v8557 = vand.u32 %v6868, 4294901760
        %8558 = vmatprep.subr.mxu0 %v8557
        %v8559 = vand.u32 %v6867, 4294901760
        %8560 = vmatpush1.msra.mxu0 %v8559
        %v8561 = vand.u32 %v6872, 4294901760
        %8562 = vmatprep.subr.mxu0 %v8561
        %v8563 = vand.u32 %v6871, 4294901760
        %8564 = vmatpush1.msra.mxu0 %v8563
        %v8565 = vand.u32 %v6876, 4294901760
        %8566 = vmatprep.subr.mxu0 %v8565
        %v8567 = vand.u32 %v6875, 4294901760
        %8568 = vmatpush1.msra.mxu0 %v8567
        %v8569 = vand.u32 %v6880, 4294901760
        %8570 = vmatprep.subr.mxu0 %v8569
        %v8571 = vand.u32 %v6879, 4294901760
        %8572 = vmatpush1.msra.mxu0 %v8571
        %v8573 = vand.u32 %v6884, 4294901760
        %8574 = vmatprep.subr.mxu0 %v8573
        %v8575 = vand.u32 %v6883, 4294901760
        %8576 = vmatpush1.msra.mxu0 %v8575
        %8577 = vmatprep.subr.mxu0 0.0
        %8578 = vmatpush1.msra.mxu0 0.0
        %8579 = vmatprep.subr.mxu0 0.0
        %8580 = vmatpush1.msra.mxu0 0.0
        %8581 = vmatprep.subr.mxu0 0.0
        %8582 = vmatpush1.msra.mxu0 0.0
        %8583 = vmatprep.subr.mxu0 0.0
        %8584 = vmatpush1.msra.mxu0 0.0
        %8585 = vmatprep.subr.mxu0 0.0
        %8586 = vmatpush1.msra.mxu0 0.0
        %8587 = vmatprep.subr.mxu0 0.0
        %8588 = vmatpush1.msra.mxu0 0.0
        %8589 = vmatprep.subr.mxu0 0.0
        %8590 = vmatpush1.msra.mxu0 0.0
        %8591 = vmatprep.subr.mxu0 0.0
        %8592 = vmatpush1.msra.mxu0 0.0
        %8593 = vmatprep.subr.mxu0 0.0
        %8594 = vmatpush1.msra.mxu0 0.0
        %8595 = vmatprep.subr.mxu0 0.0
        %8596 = vmatpush1.msra.mxu0 0.0
        %8597 = vmatprep.subr.mxu0 0.0
        %8598 = vmatpush1.msra.mxu0 0.0
        %8599 = vmatprep.subr.mxu0 0.0
        %8600 = vmatpush1.msra.mxu0 0.0
        %8601 = vmatprep.subr.mxu0 0.0
        %8602 = vmatpush1.msra.mxu0 0.0
        %8603 = vmatprep.subr.mxu0 0.0
        %8604 = vmatpush1.msra.mxu0 0.0
        %8605 = vmatprep.subr.mxu0 0.0
        %8606 = vmatpush1.msra.mxu0 0.0
        %8607 = vmatprep.subr.mxu0 0.0
        %8608 = vmatpush1.msra.mxu0 0.0
        %8609 = vmatprep.mubr.f32.mxu0 0.0
        %v8610 = vand.u32 %v6820, 4294901760
        %8611 = vmatmul.mubr.f32.gmra.mrb[0].mxu0 %v8610
        %v8612 = vpop.f32.mrb[0].mxu0
        %v8613 = vadd.f32 %v8509, %v8612
        %v8614 = vpop.f32.mrb[0].mxu0
        %v8615 = vadd.f32 %v8511, %v8614
        %8616 = vdwg.mxu0
        %v8617 = vmax.f32 %v7758, 0.0
        %v8618 = vmax.f32 %v7760, 0.0
        %v8619 = vmax.f32 %v8613, 0.0
        %v8620 = vmax.f32 %v8615, 0.0
        %v8621 = vld [vmem:[#allocation13] sm:$0xff]
        %v8622 = vld [vmem:[#allocation13 + $0x8] sm:$0xff]
        %v8623 = vld [vmem:[#allocation13 + $0x10] sm:$0xff]
        %v8624 = vld [vmem:[#allocation13 + $0x18] sm:$0xff]
        %v8625 = vld [vmem:[#allocation13 + $0x20] sm:$0xff]
        %v8626 = vld [vmem:[#allocation13 + $0x28] sm:$0xff]
        %v8627 = vld [vmem:[#allocation13 + $0x30] sm:$0xff]
        %v8628 = vld [vmem:[#allocation13 + $0x38] sm:$0xff]
        %v8629 = vld [vmem:[#allocation13 + $0x40] sm:$0xff]
        %v8630 = vld [vmem:[#allocation13 + $0x48] sm:$0xff]
        %v8631 = vld [vmem:[#allocation13 + $0x50] sm:$0xff]
        %v8632 = vld [vmem:[#allocation13 + $0x58] sm:$0xff]
        %v8633 = vld [vmem:[#allocation13 + $0x60] sm:$0xff]
        %v8634 = vld [vmem:[#allocation13 + $0x68] sm:$0xff]
        %v8635 = vld [vmem:[#allocation13 + $0x70] sm:$0xff]
        %v8636 = vld [vmem:[#allocation13 + $0x78] sm:$0xff]
        %v8637 = vld [vmem:[#allocation13 + $0x80] sm:$0xff]
        %v8638 = vld [vmem:[#allocation13 + $0x88] sm:$0xff]
        %v8639 = vld [vmem:[#allocation13 + $0x90] sm:$0xff]
        %v8640 = vld [vmem:[#allocation13 + $0x98] sm:$0xff]
        %v8641 = vld [vmem:[#allocation13 + $0xa0] sm:$0xff]
        %v8642 = vld [vmem:[#allocation13 + $0xa8] sm:$0xff]
        %v8643 = vld [vmem:[#allocation13 + $0xb0] sm:$0xff]
        %v8644 = vld [vmem:[#allocation13 + $0xb8] sm:$0xff]
        %v8645 = vld [vmem:[#allocation13 + $0xc0] sm:$0xff]
        %v8646 = vld [vmem:[#allocation13 + $0xc8] sm:$0xff]
        %v8647 = vld [vmem:[#allocation13 + $0xd0] sm:$0xff]
        %v8648 = vld [vmem:[#allocation13 + $0xd8] sm:$0xff]
        %v8649 = vld [vmem:[#allocation13 + $0xe0] sm:$0xff]
        %v8650 = vld [vmem:[#allocation13 + $0xe8] sm:$0xff]
        %v8651 = vld [vmem:[#allocation13 + $0xf0] sm:$0xff]
        %v8652 = vld [vmem:[#allocation13 + $0xf8] sm:$0xff]
        %v8653 = vld [vmem:[#allocation13 + $0x100] sm:$0xff]
        %v8654 = vld [vmem:[#allocation13 + $0x108] sm:$0xff]
        %v8655 = vld [vmem:[#allocation13 + $0x110] sm:$0xff]
        %v8656 = vld [vmem:[#allocation13 + $0x118] sm:$0xff]
        %v8657 = vld [vmem:[#allocation13 + $0x120] sm:$0xff]
        %v8658 = vld [vmem:[#allocation13 + $0x128] sm:$0xff]
        %v8659 = vld [vmem:[#allocation13 + $0x130] sm:$0xff]
        %v8660 = vld [vmem:[#allocation13 + $0x138] sm:$0xff]
        %v8661 = vld [vmem:[#allocation13 + $0x140] sm:$0xff]
        %v8662 = vld [vmem:[#allocation13 + $0x148] sm:$0xff]
        %v8663 = vld [vmem:[#allocation13 + $0x150] sm:$0xff]
        %v8664 = vld [vmem:[#allocation13 + $0x158] sm:$0xff]
        %v8665 = vld [vmem:[#allocation13 + $0x160] sm:$0xff]
        %v8666 = vld [vmem:[#allocation13 + $0x168] sm:$0xff]
        %v8667 = vld [vmem:[#allocation13 + $0x170] sm:$0xff]
        %v8668 = vld [vmem:[#allocation13 + $0x178] sm:$0xff]
        %v8669 = vld [vmem:[#allocation13 + $0x180] sm:$0xff]
        %v8670 = vld [vmem:[#allocation13 + $0x188] sm:$0xff]
        %v8671 = vld [vmem:[#allocation13 + $0x190] sm:$0xff]
        %v8672 = vld [vmem:[#allocation13 + $0x198] sm:$0xff]
        %v8673 = vld [vmem:[#allocation13 + $0x1a0] sm:$0xff]
        %v8674 = vld [vmem:[#allocation13 + $0x1a8] sm:$0xff]
        %v8675 = vld [vmem:[#allocation13 + $0x1b0] sm:$0xff]
        %v8676 = vld [vmem:[#allocation13 + $0x1b8] sm:$0xff]
        %v8677 = vld [vmem:[#allocation13 + $0x1c0] sm:$0xff]
        %v8678 = vld [vmem:[#allocation13 + $0x1c8] sm:$0xff]
        %v8679 = vld [vmem:[#allocation13 + $0x1d0] sm:$0xff]
        %v8680 = vld [vmem:[#allocation13 + $0x1d8] sm:$0xff]
        %v8681 = vld [vmem:[#allocation13 + $0x1e0] sm:$0xff]
        %v8682 = vld [vmem:[#allocation13 + $0x1e8] sm:$0xff]
        %v8683 = vld [vmem:[#allocation13 + $0x1f0] sm:$0xff]
        %v8684 = vld [vmem:[#allocation13 + $0x1f8] sm:$0xff]
        %v8685 = vld [vmem:[%s9] sm:$0x1]
        %v8687 = vlaneseq
        %v8688 = vshrl.u32 %v8687, 7
        %v8689 = vsub.s32 0, %v8688
        %v8690 = vrot.slane %v8685, %v8689
        %8692 = vmatprep.subr.mxu0 0.0
        %v8693 = vand.u32 %v8621, 4294901760
        %8694 = vmatpush1.msra.mxu0 %v8693
        %8695 = vmatprep.subr.mxu0 0.0
        %v8696 = vand.u32 %v8622, 4294901760
        %8697 = vmatpush1.msra.mxu0 %v8696
        %8698 = vmatprep.subr.mxu0 0.0
        %v8699 = vand.u32 %v8623, 4294901760
        %8700 = vmatpush1.msra.mxu0 %v8699
        %8701 = vmatprep.subr.mxu0 0.0
        %v8702 = vand.u32 %v8624, 4294901760
        %8703 = vmatpush1.msra.mxu0 %v8702
        %8704 = vmatprep.subr.mxu0 0.0
        %v8705 = vand.u32 %v8625, 4294901760
        %8706 = vmatpush1.msra.mxu0 %v8705
        %8707 = vmatprep.subr.mxu0 0.0
        %v8708 = vand.u32 %v8626, 4294901760
        %8709 = vmatpush1.msra.mxu0 %v8708
        %8710 = vmatprep.subr.mxu0 0.0
        %v8711 = vand.u32 %v8627, 4294901760
        %8712 = vmatpush1.msra.mxu0 %v8711
        %8713 = vmatprep.subr.mxu0 0.0
        %v8714 = vand.u32 %v8628, 4294901760
        %8715 = vmatpush1.msra.mxu0 %v8714
        %8716 = vmatprep.subr.mxu0 0.0
        %v8717 = vand.u32 %v8629, 4294901760
        %8718 = vmatpush1.msra.mxu0 %v8717
        %8719 = vmatprep.subr.mxu0 0.0
        %v8720 = vand.u32 %v8630, 4294901760
        %8721 = vmatpush1.msra.mxu0 %v8720
        %8722 = vmatprep.subr.mxu0 0.0
        %v8723 = vand.u32 %v8631, 4294901760
        %8724 = vmatpush1.msra.mxu0 %v8723
        %8725 = vmatprep.subr.mxu0 0.0
        %v8726 = vand.u32 %v8632, 4294901760
        %8727 = vmatpush1.msra.mxu0 %v8726
        %8728 = vmatprep.subr.mxu0 0.0
        %v8729 = vand.u32 %v8633, 4294901760
        %8730 = vmatpush1.msra.mxu0 %v8729
        %8731 = vmatprep.subr.mxu0 0.0
        %v8732 = vand.u32 %v8634, 4294901760
        %8733 = vmatpush1.msra.mxu0 %v8732
        %8734 = vmatprep.subr.mxu0 0.0
        %v8735 = vand.u32 %v8635, 4294901760
        %8736 = vmatpush1.msra.mxu0 %v8735
        %8737 = vmatprep.subr.mxu0 0.0
        %v8738 = vand.u32 %v8636, 4294901760
        %8739 = vmatpush1.msra.mxu0 %v8738
        %8740 = vmatprep.subr.mxu0 0.0
        %v8741 = vand.u32 %v8637, 4294901760
        %8742 = vmatpush1.msra.mxu0 %v8741
        %8743 = vmatprep.subr.mxu0 0.0
        %v8744 = vand.u32 %v8638, 4294901760
        %8745 = vmatpush1.msra.mxu0 %v8744
        %8746 = vmatprep.subr.mxu0 0.0
        %v8747 = vand.u32 %v8639, 4294901760
        %8748 = vmatpush1.msra.mxu0 %v8747
        %8749 = vmatprep.subr.mxu0 0.0
        %v8750 = vand.u32 %v8640, 4294901760
        %8751 = vmatpush1.msra.mxu0 %v8750
        %8752 = vmatprep.subr.mxu0 0.0
        %v8753 = vand.u32 %v8641, 4294901760
        %8754 = vmatpush1.msra.mxu0 %v8753
        %8755 = vmatprep.subr.mxu0 0.0
        %v8756 = vand.u32 %v8642, 4294901760
        %8757 = vmatpush1.msra.mxu0 %v8756
        %8758 = vmatprep.subr.mxu0 0.0
        %v8759 = vand.u32 %v8643, 4294901760
        %8760 = vmatpush1.msra.mxu0 %v8759
        %8761 = vmatprep.subr.mxu0 0.0
        %v8762 = vand.u32 %v8644, 4294901760
        %8763 = vmatpush1.msra.mxu0 %v8762
        %8764 = vmatprep.subr.mxu0 0.0
        %v8765 = vand.u32 %v8645, 4294901760
        %8766 = vmatpush1.msra.mxu0 %v8765
        %8767 = vmatprep.subr.mxu0 0.0
        %v8768 = vand.u32 %v8646, 4294901760
        %8769 = vmatpush1.msra.mxu0 %v8768
        %8770 = vmatprep.subr.mxu0 0.0
        %v8771 = vand.u32 %v8647, 4294901760
        %8772 = vmatpush1.msra.mxu0 %v8771
        %8773 = vmatprep.subr.mxu0 0.0
        %v8774 = vand.u32 %v8648, 4294901760
        %8775 = vmatpush1.msra.mxu0 %v8774
        %8776 = vmatprep.subr.mxu0 0.0
        %v8777 = vand.u32 %v8649, 4294901760
        %8778 = vmatpush1.msra.mxu0 %v8777
        %8779 = vmatprep.subr.mxu0 0.0
        %v8780 = vand.u32 %v8650, 4294901760
        %8781 = vmatpush1.msra.mxu0 %v8780
        %8782 = vmatprep.subr.mxu0 0.0
        %v8783 = vand.u32 %v8651, 4294901760
        %8784 = vmatpush1.msra.mxu0 %v8783
        %8785 = vmatprep.subr.mxu0 0.0
        %v8786 = vand.u32 %v8652, 4294901760
        %8787 = vmatpush1.msra.mxu0 %v8786
        %v8788 = vand.u32 %v8618, 4294901760
        %v8789 = vsub.f32 %v8618, %v8788
        %v8790 = vand.u32 %v8789, 4294901760
        %v8791 = vsub.f32 %v8789, %v8790
        %v8792 = vand.u32 %v8791, 4294901760
        %8793 = vmatprep.mubr.f32.mxu0 %v8792
        %v8794 = vand.u32 %v8617, 4294901760
        %v8795 = vsub.f32 %v8617, %v8794
        %v8796 = vand.u32 %v8795, 4294901760
        %v8797 = vsub.f32 %v8795, %v8796
        %v8798 = vand.u32 %v8797, 4294901760
        %8799 = vmatmul.mubr.f32.gmra.mrb[0].mxu0 %v8798
        %v8800 = vpop.f32.mrb[0].mxu0
        %v8801 = vadd.f32 %v8690, %v8800
        %v8802 = vpop.f32.mrb[0].mxu0
        %8803 = vdwg.mxu0
        %8804 = vmatprep.subr.mxu0 0.0
        %v8805 = vand.u32 %v8621, 4294901760
        %v8806 = vsub.f32 %v8621, %v8805
        %v8807 = vand.u32 %v8806, 4294901760
        %v8808 = vsub.f32 %v8806, %v8807
        %v8809 = vand.u32 %v8808, 4294901760
        %8810 = vmatpush1.msra.mxu0 %v8809
        %8811 = vmatprep.subr.mxu0 0.0
        %v8812 = vand.u32 %v8622, 4294901760
        %v8813 = vsub.f32 %v8622, %v8812
        %v8814 = vand.u32 %v8813, 4294901760
        %v8815 = vsub.f32 %v8813, %v8814
        %v8816 = vand.u32 %v8815, 4294901760
        %8817 = vmatpush1.msra.mxu0 %v8816
        %8818 = vmatprep.subr.mxu0 0.0
        %v8819 = vand.u32 %v8623, 4294901760
        %v8820 = vsub.f32 %v8623, %v8819
        %v8821 = vand.u32 %v8820, 4294901760
        %v8822 = vsub.f32 %v8820, %v8821
        %v8823 = vand.u32 %v8822, 4294901760
        %8824 = vmatpush1.msra.mxu0 %v8823
        %8825 = vmatprep.subr.mxu0 0.0
        %v8826 = vand.u32 %v8624, 4294901760
        %v8827 = vsub.f32 %v8624, %v8826
        %v8828 = vand.u32 %v8827, 4294901760
        %v8829 = vsub.f32 %v8827, %v8828
        %v8830 = vand.u32 %v8829, 4294901760
        %8831 = vmatpush1.msra.mxu0 %v8830
        %8832 = vmatprep.subr.mxu0 0.0
        %v8833 = vand.u32 %v8625, 4294901760
        %v8834 = vsub.f32 %v8625, %v8833
        %v8835 = vand.u32 %v8834, 4294901760
        %v8836 = vsub.f32 %v8834, %v8835
        %v8837 = vand.u32 %v8836, 4294901760
        %8838 = vmatpush1.msra.mxu0 %v8837
        %8839 = vmatprep.subr.mxu0 0.0
        %v8840 = vand.u32 %v8626, 4294901760
        %v8841 = vsub.f32 %v8626, %v8840
        %v8842 = vand.u32 %v8841, 4294901760
        %v8843 = vsub.f32 %v8841, %v8842
        %v8844 = vand.u32 %v8843, 4294901760
        %8845 = vmatpush1.msra.mxu0 %v8844
        %8846 = vmatprep.subr.mxu0 0.0
        %v8847 = vand.u32 %v8627, 4294901760
        %v8848 = vsub.f32 %v8627, %v8847
        %v8849 = vand.u32 %v8848, 4294901760
        %v8850 = vsub.f32 %v8848, %v8849
        %v8851 = vand.u32 %v8850, 4294901760
        %8852 = vmatpush1.msra.mxu0 %v8851
        %8853 = vmatprep.subr.mxu0 0.0
        %v8854 = vand.u32 %v8628, 4294901760
        %v8855 = vsub.f32 %v8628, %v8854
        %v8856 = vand.u32 %v8855, 4294901760
        %v8857 = vsub.f32 %v8855, %v8856
        %v8858 = vand.u32 %v8857, 4294901760
        %8859 = vmatpush1.msra.mxu0 %v8858
        %8860 = vmatprep.subr.mxu0 0.0
        %v8861 = vand.u32 %v8629, 4294901760
        %v8862 = vsub.f32 %v8629, %v8861
        %v8863 = vand.u32 %v8862, 4294901760
        %v8864 = vsub.f32 %v8862, %v8863
        %v8865 = vand.u32 %v8864, 4294901760
        %8866 = vmatpush1.msra.mxu0 %v8865
        %8867 = vmatprep.subr.mxu0 0.0
        %v8868 = vand.u32 %v8630, 4294901760
        %v8869 = vsub.f32 %v8630, %v8868
        %v8870 = vand.u32 %v8869, 4294901760
        %v8871 = vsub.f32 %v8869, %v8870
        %v8872 = vand.u32 %v8871, 4294901760
        %8873 = vmatpush1.msra.mxu0 %v8872
        %8874 = vmatprep.subr.mxu0 0.0
        %v8875 = vand.u32 %v8631, 4294901760
        %v8876 = vsub.f32 %v8631, %v8875
        %v8877 = vand.u32 %v8876, 4294901760
        %v8878 = vsub.f32 %v8876, %v8877
        %v8879 = vand.u32 %v8878, 4294901760
        %8880 = vmatpush1.msra.mxu0 %v8879
        %8881 = vmatprep.subr.mxu0 0.0
        %v8882 = vand.u32 %v8632, 4294901760
        %v8883 = vsub.f32 %v8632, %v8882
        %v8884 = vand.u32 %v8883, 4294901760
        %v8885 = vsub.f32 %v8883, %v8884
        %v8886 = vand.u32 %v8885, 4294901760
        %8887 = vmatpush1.msra.mxu0 %v8886
        %8888 = vmatprep.subr.mxu0 0.0
        %v8889 = vand.u32 %v8633, 4294901760
        %v8890 = vsub.f32 %v8633, %v8889
        %v8891 = vand.u32 %v8890, 4294901760
        %v8892 = vsub.f32 %v8890, %v8891
        %v8893 = vand.u32 %v8892, 4294901760
        %8894 = vmatpush1.msra.mxu0 %v8893
        %8895 = vmatprep.subr.mxu0 0.0
        %v8896 = vand.u32 %v8634, 4294901760
        %v8897 = vsub.f32 %v8634, %v8896
        %v8898 = vand.u32 %v8897, 4294901760
        %v8899 = vsub.f32 %v8897, %v8898
        %v8900 = vand.u32 %v8899, 4294901760
        %8901 = vmatpush1.msra.mxu0 %v8900
        %8902 = vmatprep.subr.mxu0 0.0
        %v8903 = vand.u32 %v8635, 4294901760
        %v8904 = vsub.f32 %v8635, %v8903
        %v8905 = vand.u32 %v8904, 4294901760
        %v8906 = vsub.f32 %v8904, %v8905
        %v8907 = vand.u32 %v8906, 4294901760
        %8908 = vmatpush1.msra.mxu0 %v8907
        %8909 = vmatprep.subr.mxu0 0.0
        %v8910 = vand.u32 %v8636, 4294901760
        %v8911 = vsub.f32 %v8636, %v8910
        %v8912 = vand.u32 %v8911, 4294901760
        %v8913 = vsub.f32 %v8911, %v8912
        %v8914 = vand.u32 %v8913, 4294901760
        %8915 = vmatpush1.msra.mxu0 %v8914
        %8916 = vmatprep.subr.mxu0 0.0
        %v8917 = vand.u32 %v8637, 4294901760
        %v8918 = vsub.f32 %v8637, %v8917
        %v8919 = vand.u32 %v8918, 4294901760
        %v8920 = vsub.f32 %v8918, %v8919
        %v8921 = vand.u32 %v8920, 4294901760
        %8922 = vmatpush1.msra.mxu0 %v8921
        %8923 = vmatprep.subr.mxu0 0.0
        %v8924 = vand.u32 %v8638, 4294901760
        %v8925 = vsub.f32 %v8638, %v8924
        %v8926 = vand.u32 %v8925, 4294901760
        %v8927 = vsub.f32 %v8925, %v8926
        %v8928 = vand.u32 %v8927, 4294901760
        %8929 = vmatpush1.msra.mxu0 %v8928
        %8930 = vmatprep.subr.mxu0 0.0
        %v8931 = vand.u32 %v8639, 4294901760
        %v8932 = vsub.f32 %v8639, %v8931
        %v8933 = vand.u32 %v8932, 4294901760
        %v8934 = vsub.f32 %v8932, %v8933
        %v8935 = vand.u32 %v8934, 4294901760
        %8936 = vmatpush1.msra.mxu0 %v8935
        %8937 = vmatprep.subr.mxu0 0.0
        %v8938 = vand.u32 %v8640, 4294901760
        %v8939 = vsub.f32 %v8640, %v8938
        %v8940 = vand.u32 %v8939, 4294901760
        %v8941 = vsub.f32 %v8939, %v8940
        %v8942 = vand.u32 %v8941, 4294901760
        %8943 = vmatpush1.msra.mxu0 %v8942
        %8944 = vmatprep.subr.mxu0 0.0
        %v8945 = vand.u32 %v8641, 4294901760
        %v8946 = vsub.f32 %v8641, %v8945
        %v8947 = vand.u32 %v8946, 4294901760
        %v8948 = vsub.f32 %v8946, %v8947
        %v8949 = vand.u32 %v8948, 4294901760
        %8950 = vmatpush1.msra.mxu0 %v8949
        %8951 = vmatprep.subr.mxu0 0.0
        %v8952 = vand.u32 %v8642, 4294901760
        %v8953 = vsub.f32 %v8642, %v8952
        %v8954 = vand.u32 %v8953, 4294901760
        %v8955 = vsub.f32 %v8953, %v8954
        %v8956 = vand.u32 %v8955, 4294901760
        %8957 = vmatpush1.msra.mxu0 %v8956
        %8958 = vmatprep.subr.mxu0 0.0
        %v8959 = vand.u32 %v8643, 4294901760
        %v8960 = vsub.f32 %v8643, %v8959
        %v8961 = vand.u32 %v8960, 4294901760
        %v8962 = vsub.f32 %v8960, %v8961
        %v8963 = vand.u32 %v8962, 4294901760
        %8964 = vmatpush1.msra.mxu0 %v8963
        %8965 = vmatprep.subr.mxu0 0.0
        %v8966 = vand.u32 %v8644, 4294901760
        %v8967 = vsub.f32 %v8644, %v8966
        %v8968 = vand.u32 %v8967, 4294901760
        %v8969 = vsub.f32 %v8967, %v8968
        %v8970 = vand.u32 %v8969, 4294901760
        %8971 = vmatpush1.msra.mxu0 %v8970
        %8972 = vmatprep.subr.mxu0 0.0
        %v8973 = vand.u32 %v8645, 4294901760
        %v8974 = vsub.f32 %v8645, %v8973
        %v8975 = vand.u32 %v8974, 4294901760
        %v8976 = vsub.f32 %v8974, %v8975
        %v8977 = vand.u32 %v8976, 4294901760
        %8978 = vmatpush1.msra.mxu0 %v8977
        %8979 = vmatprep.subr.mxu0 0.0
        %v8980 = vand.u32 %v8646, 4294901760
        %v8981 = vsub.f32 %v8646, %v8980
        %v8982 = vand.u32 %v8981, 4294901760
        %v8983 = vsub.f32 %v8981, %v8982
        %v8984 = vand.u32 %v8983, 4294901760
        %8985 = vmatpush1.msra.mxu0 %v8984
        %8986 = vmatprep.subr.mxu0 0.0
        %v8987 = vand.u32 %v8647, 4294901760
        %v8988 = vsub.f32 %v8647, %v8987
        %v8989 = vand.u32 %v8988, 4294901760
        %v8990 = vsub.f32 %v8988, %v8989
        %v8991 = vand.u32 %v8990, 4294901760
        %8992 = vmatpush1.msra.mxu0 %v8991
        %8993 = vmatprep.subr.mxu0 0.0
        %v8994 = vand.u32 %v8648, 4294901760
        %v8995 = vsub.f32 %v8648, %v8994
        %v8996 = vand.u32 %v8995, 4294901760
        %v8997 = vsub.f32 %v8995, %v8996
        %v8998 = vand.u32 %v8997, 4294901760
        %8999 = vmatpush1.msra.mxu0 %v8998
        %9000 = vmatprep.subr.mxu0 0.0
        %v9001 = vand.u32 %v8649, 4294901760
        %v9002 = vsub.f32 %v8649, %v9001
        %v9003 = vand.u32 %v9002, 4294901760
        %v9004 = vsub.f32 %v9002, %v9003
        %v9005 = vand.u32 %v9004, 4294901760
        %9006 = vmatpush1.msra.mxu0 %v9005
        %9007 = vmatprep.subr.mxu0 0.0
        %v9008 = vand.u32 %v8650, 4294901760
        %v9009 = vsub.f32 %v8650, %v9008
        %v9010 = vand.u32 %v9009, 4294901760
        %v9011 = vsub.f32 %v9009, %v9010
        %v9012 = vand.u32 %v9011, 4294901760
        %9013 = vmatpush1.msra.mxu0 %v9012
        %9014 = vmatprep.subr.mxu0 0.0
        %v9015 = vand.u32 %v8651, 4294901760
        %v9016 = vsub.f32 %v8651, %v9015
        %v9017 = vand.u32 %v9016, 4294901760
        %v9018 = vsub.f32 %v9016, %v9017
        %v9019 = vand.u32 %v9018, 4294901760
        %9020 = vmatpush1.msra.mxu0 %v9019
        %9021 = vmatprep.subr.mxu0 0.0
        %v9022 = vand.u32 %v8652, 4294901760
        %v9023 = vsub.f32 %v8652, %v9022
        %v9024 = vand.u32 %v9023, 4294901760
        %v9025 = vsub.f32 %v9023, %v9024
        %v9026 = vand.u32 %v9025, 4294901760
        %9027 = vmatpush1.msra.mxu0 %v9026
        %v9028 = vand.u32 %v8618, 4294901760
        %9029 = vmatprep.mubr.f32.mxu0 %v9028
        %v9030 = vand.u32 %v8617, 4294901760
        %9031 = vmatmul.mubr.f32.gmra.mrb[0].mxu0 %v9030
        %v9032 = vpop.f32.mrb[0].mxu0
        %v9033 = vadd.f32 %v8801, %v9032
        %v9034 = vpop.f32.mrb[0].mxu0
        %9035 = vdwg.mxu0
        %9036 = vmatprep.subr.mxu0 0.0
        %v9037 = vand.u32 %v8621, 4294901760
        %v9038 = vsub.f32 %v8621, %v9037
        %9039 = vmatpush1.msra.mxu0 %v9038
        %9040 = vmatprep.subr.mxu0 0.0
        %v9041 = vand.u32 %v8622, 4294901760
        %v9042 = vsub.f32 %v8622, %v9041
        %9043 = vmatpush1.msra.mxu0 %v9042
        %9044 = vmatprep.subr.mxu0 0.0
        %v9045 = vand.u32 %v8623, 4294901760
        %v9046 = vsub.f32 %v8623, %v9045
        %9047 = vmatpush1.msra.mxu0 %v9046
        %9048 = vmatprep.subr.mxu0 0.0
        %v9049 = vand.u32 %v8624, 4294901760
        %v9050 = vsub.f32 %v8624, %v9049
        %9051 = vmatpush1.msra.mxu0 %v9050
        %9052 = vmatprep.subr.mxu0 0.0
        %v9053 = vand.u32 %v8625, 4294901760
        %v9054 = vsub.f32 %v8625, %v9053
        %9055 = vmatpush1.msra.mxu0 %v9054
        %9056 = vmatprep.subr.mxu0 0.0
        %v9057 = vand.u32 %v8626, 4294901760
        %v9058 = vsub.f32 %v8626, %v9057
        %9059 = vmatpush1.msra.mxu0 %v9058
        %9060 = vmatprep.subr.mxu0 0.0
        %v9061 = vand.u32 %v8627, 4294901760
        %v9062 = vsub.f32 %v8627, %v9061
        %9063 = vmatpush1.msra.mxu0 %v9062
        %9064 = vmatprep.subr.mxu0 0.0
        %v9065 = vand.u32 %v8628, 4294901760
        %v9066 = vsub.f32 %v8628, %v9065
        %9067 = vmatpush1.msra.mxu0 %v9066
        %9068 = vmatprep.subr.mxu0 0.0
        %v9069 = vand.u32 %v8629, 4294901760
        %v9070 = vsub.f32 %v8629, %v9069
        %9071 = vmatpush1.msra.mxu0 %v9070
        %9072 = vmatprep.subr.mxu0 0.0
        %v9073 = vand.u32 %v8630, 4294901760
        %v9074 = vsub.f32 %v8630, %v9073
        %9075 = vmatpush1.msra.mxu0 %v9074
        %9076 = vmatprep.subr.mxu0 0.0
        %v9077 = vand.u32 %v8631, 4294901760
        %v9078 = vsub.f32 %v8631, %v9077
        %9079 = vmatpush1.msra.mxu0 %v9078
        %9080 = vmatprep.subr.mxu0 0.0
        %v9081 = vand.u32 %v8632, 4294901760
        %v9082 = vsub.f32 %v8632, %v9081
        %9083 = vmatpush1.msra.mxu0 %v9082
        %9084 = vmatprep.subr.mxu0 0.0
        %v9085 = vand.u32 %v8633, 4294901760
        %v9086 = vsub.f32 %v8633, %v9085
        %9087 = vmatpush1.msra.mxu0 %v9086
        %9088 = vmatprep.subr.mxu0 0.0
        %v9089 = vand.u32 %v8634, 4294901760
        %v9090 = vsub.f32 %v8634, %v9089
        %9091 = vmatpush1.msra.mxu0 %v9090
        %9092 = vmatprep.subr.mxu0 0.0
        %v9093 = vand.u32 %v8635, 4294901760
        %v9094 = vsub.f32 %v8635, %v9093
        %9095 = vmatpush1.msra.mxu0 %v9094
        %9096 = vmatprep.subr.mxu0 0.0
        %v9097 = vand.u32 %v8636, 4294901760
        %v9098 = vsub.f32 %v8636, %v9097
        %9099 = vmatpush1.msra.mxu0 %v9098
        %9100 = vmatprep.subr.mxu0 0.0
        %v9101 = vand.u32 %v8637, 4294901760
        %v9102 = vsub.f32 %v8637, %v9101
        %9103 = vmatpush1.msra.mxu0 %v9102
        %9104 = vmatprep.subr.mxu0 0.0
        %v9105 = vand.u32 %v8638, 4294901760
        %v9106 = vsub.f32 %v8638, %v9105
        %9107 = vmatpush1.msra.mxu0 %v9106
        %9108 = vmatprep.subr.mxu0 0.0
        %v9109 = vand.u32 %v8639, 4294901760
        %v9110 = vsub.f32 %v8639, %v9109
        %9111 = vmatpush1.msra.mxu0 %v9110
        %9112 = vmatprep.subr.mxu0 0.0
        %v9113 = vand.u32 %v8640, 4294901760
        %v9114 = vsub.f32 %v8640, %v9113
        %9115 = vmatpush1.msra.mxu0 %v9114
        %9116 = vmatprep.subr.mxu0 0.0
        %v9117 = vand.u32 %v8641, 4294901760
        %v9118 = vsub.f32 %v8641, %v9117
        %9119 = vmatpush1.msra.mxu0 %v9118
        %9120 = vmatprep.subr.mxu0 0.0
        %v9121 = vand.u32 %v8642, 4294901760
        %v9122 = vsub.f32 %v8642, %v9121
        %9123 = vmatpush1.msra.mxu0 %v9122
        %9124 = vmatprep.subr.mxu0 0.0
        %v9125 = vand.u32 %v8643, 4294901760
        %v9126 = vsub.f32 %v8643, %v9125
        %9127 = vmatpush1.msra.mxu0 %v9126
        %9128 = vmatprep.subr.mxu0 0.0
        %v9129 = vand.u32 %v8644, 4294901760
        %v9130 = vsub.f32 %v8644, %v9129
        %9131 = vmatpush1.msra.mxu0 %v9130
        %9132 = vmatprep.subr.mxu0 0.0
        %v9133 = vand.u32 %v8645, 4294901760
        %v9134 = vsub.f32 %v8645, %v9133
        %9135 = vmatpush1.msra.mxu0 %v9134
        %9136 = vmatprep.subr.mxu0 0.0
        %v9137 = vand.u32 %v8646, 4294901760
        %v9138 = vsub.f32 %v8646, %v9137
        %9139 = vmatpush1.msra.mxu0 %v9138
        %9140 = vmatprep.subr.mxu0 0.0
        %v9141 = vand.u32 %v8647, 4294901760
        %v9142 = vsub.f32 %v8647, %v9141
        %9143 = vmatpush1.msra.mxu0 %v9142
        %9144 = vmatprep.subr.mxu0 0.0
        %v9145 = vand.u32 %v8648, 4294901760
        %v9146 = vsub.f32 %v8648, %v9145
        %9147 = vmatpush1.msra.mxu0 %v9146
        %9148 = vmatprep.subr.mxu0 0.0
        %v9149 = vand.u32 %v8649, 4294901760
        %v9150 = vsub.f32 %v8649, %v9149
        %9151 = vmatpush1.msra.mxu0 %v9150
        %9152 = vmatprep.subr.mxu0 0.0
        %v9153 = vand.u32 %v8650, 4294901760
        %v9154 = vsub.f32 %v8650, %v9153
        %9155 = vmatpush1.msra.mxu0 %v9154
        %9156 = vmatprep.subr.mxu0 0.0
        %v9157 = vand.u32 %v8651, 4294901760
        %v9158 = vsub.f32 %v8651, %v9157
        %9159 = vmatpush1.msra.mxu0 %v9158
        %9160 = vmatprep.subr.mxu0 0.0
        %v9161 = vand.u32 %v8652, 4294901760
        %v9162 = vsub.f32 %v8652, %v9161
        %9163 = vmatpush1.msra.mxu0 %v9162
        %v9164 = vand.u32 %v8618, 4294901760
        %v9165 = vsub.f32 %v8618, %v9164
        %9166 = vmatprep.mubr.f32.mxu0 %v9165
        %v9167 = vand.u32 %v8617, 4294901760
        %v9168 = vsub.f32 %v8617, %v9167
        %9169 = vmatmul.mubr.f32.gmra.mrb[0].mxu0 %v9168
        %v9170 = vpop.f32.mrb[0].mxu0
        %v9171 = vadd.f32 %v9033, %v9170
        %v9172 = vpop.f32.mrb[0].mxu0
        %9173 = vdwg.mxu0
        %9174 = vmatprep.subr.mxu0 0.0
        %v9175 = vand.u32 %v8621, 4294901760
        %9176 = vmatpush1.msra.mxu0 %v9175
        %9177 = vmatprep.subr.mxu0 0.0
        %v9178 = vand.u32 %v8622, 4294901760
        %9179 = vmatpush1.msra.mxu0 %v9178
        %9180 = vmatprep.subr.mxu0 0.0
        %v9181 = vand.u32 %v8623, 4294901760
        %9182 = vmatpush1.msra.mxu0 %v9181
        %9183 = vmatprep.subr.mxu0 0.0
        %v9184 = vand.u32 %v8624, 4294901760
        %9185 = vmatpush1.msra.mxu0 %v9184
        %9186 = vmatprep.subr.mxu0 0.0
        %v9187 = vand.u32 %v8625, 4294901760
        %9188 = vmatpush1.msra.mxu0 %v9187
        %9189 = vmatprep.subr.mxu0 0.0
        %v9190 = vand.u32 %v8626, 4294901760
        %9191 = vmatpush1.msra.mxu0 %v9190
        %9192 = vmatprep.subr.mxu0 0.0
        %v9193 = vand.u32 %v8627, 4294901760
        %9194 = vmatpush1.msra.mxu0 %v9193
        %9195 = vmatprep.subr.mxu0 0.0
        %v9196 = vand.u32 %v8628, 4294901760
        %9197 = vmatpush1.msra.mxu0 %v9196
        %9198 = vmatprep.subr.mxu0 0.0
        %v9199 = vand.u32 %v8629, 4294901760
        %9200 = vmatpush1.msra.mxu0 %v9199
        %9201 = vmatprep.subr.mxu0 0.0
        %v9202 = vand.u32 %v8630, 4294901760
        %9203 = vmatpush1.msra.mxu0 %v9202
        %9204 = vmatprep.subr.mxu0 0.0
        %v9205 = vand.u32 %v8631, 4294901760
        %9206 = vmatpush1.msra.mxu0 %v9205
        %9207 = vmatprep.subr.mxu0 0.0
        %v9208 = vand.u32 %v8632, 4294901760
        %9209 = vmatpush1.msra.mxu0 %v9208
        %9210 = vmatprep.subr.mxu0 0.0
        %v9211 = vand.u32 %v8633, 4294901760
        %9212 = vmatpush1.msra.mxu0 %v9211
        %9213 = vmatprep.subr.mxu0 0.0
        %v9214 = vand.u32 %v8634, 4294901760
        %9215 = vmatpush1.msra.mxu0 %v9214
        %9216 = vmatprep.subr.mxu0 0.0
        %v9217 = vand.u32 %v8635, 4294901760
        %9218 = vmatpush1.msra.mxu0 %v9217
        %9219 = vmatprep.subr.mxu0 0.0
        %v9220 = vand.u32 %v8636, 4294901760
        %9221 = vmatpush1.msra.mxu0 %v9220
        %9222 = vmatprep.subr.mxu0 0.0
        %v9223 = vand.u32 %v8637, 4294901760
        %9224 = vmatpush1.msra.mxu0 %v9223
        %9225 = vmatprep.subr.mxu0 0.0
        %v9226 = vand.u32 %v8638, 4294901760
        %9227 = vmatpush1.msra.mxu0 %v9226
        %9228 = vmatprep.subr.mxu0 0.0
        %v9229 = vand.u32 %v8639, 4294901760
        %9230 = vmatpush1.msra.mxu0 %v9229
        %9231 = vmatprep.subr.mxu0 0.0
        %v9232 = vand.u32 %v8640, 4294901760
        %9233 = vmatpush1.msra.mxu0 %v9232
        %9234 = vmatprep.subr.mxu0 0.0
        %v9235 = vand.u32 %v8641, 4294901760
        %9236 = vmatpush1.msra.mxu0 %v9235
        %9237 = vmatprep.subr.mxu0 0.0
        %v9238 = vand.u32 %v8642, 4294901760
        %9239 = vmatpush1.msra.mxu0 %v9238
        %9240 = vmatprep.subr.mxu0 0.0
        %v9241 = vand.u32 %v8643, 4294901760
        %9242 = vmatpush1.msra.mxu0 %v9241
        %9243 = vmatprep.subr.mxu0 0.0
        %v9244 = vand.u32 %v8644, 4294901760
        %9245 = vmatpush1.msra.mxu0 %v9244
        %9246 = vmatprep.subr.mxu0 0.0
        %v9247 = vand.u32 %v8645, 4294901760
        %9248 = vmatpush1.msra.mxu0 %v9247
        %9249 = vmatprep.subr.mxu0 0.0
        %v9250 = vand.u32 %v8646, 4294901760
        %9251 = vmatpush1.msra.mxu0 %v9250
        %9252 = vmatprep.subr.mxu0 0.0
        %v9253 = vand.u32 %v8647, 4294901760
        %9254 = vmatpush1.msra.mxu0 %v9253
        %9255 = vmatprep.subr.mxu0 0.0
        %v9256 = vand.u32 %v8648, 4294901760
        %9257 = vmatpush1.msra.mxu0 %v9256
        %9258 = vmatprep.subr.mxu0 0.0
        %v9259 = vand.u32 %v8649, 4294901760
        %9260 = vmatpush1.msra.mxu0 %v9259
        %9261 = vmatprep.subr.mxu0 0.0
        %v9262 = vand.u32 %v8650, 4294901760
        %9263 = vmatpush1.msra.mxu0 %v9262
        %9264 = vmatprep.subr.mxu0 0.0
        %v9265 = vand.u32 %v8651, 4294901760
        %9266 = vmatpush1.msra.mxu0 %v9265
        %9267 = vmatprep.subr.mxu0 0.0
        %v9268 = vand.u32 %v8652, 4294901760
        %9269 = vmatpush1.msra.mxu0 %v9268
        %v9270 = vand.u32 %v8618, 4294901760
        %v9271 = vsub.f32 %v8618, %v9270
        %v9272 = vand.u32 %v9271, 4294901760
        %9273 = vmatprep.mubr.f32.mxu0 %v9272
        %v9274 = vand.u32 %v8617, 4294901760
        %v9275 = vsub.f32 %v8617, %v9274
        %v9276 = vand.u32 %v9275, 4294901760
        %9277 = vmatmul.mubr.f32.gmra.mrb[0].mxu0 %v9276
        %v9278 = vpop.f32.mrb[0].mxu0
        %v9279 = vadd.f32 %v9171, %v9278
        %v9280 = vpop.f32.mrb[0].mxu0
        %9281 = vdwg.mxu0
        %9282 = vmatprep.subr.mxu0 0.0
        %v9283 = vand.u32 %v8621, 4294901760
        %v9284 = vsub.f32 %v8621, %v9283
        %v9285 = vand.u32 %v9284, 4294901760
        %9286 = vmatpush1.msra.mxu0 %v9285
        %9287 = vmatprep.subr.mxu0 0.0
        %v9288 = vand.u32 %v8622, 4294901760
        %v9289 = vsub.f32 %v8622, %v9288
        %v9290 = vand.u32 %v9289, 4294901760
        %9291 = vmatpush1.msra.mxu0 %v9290
        %9292 = vmatprep.subr.mxu0 0.0
        %v9293 = vand.u32 %v8623, 4294901760
        %v9294 = vsub.f32 %v8623, %v9293
        %v9295 = vand.u32 %v9294, 4294901760
        %9296 = vmatpush1.msra.mxu0 %v9295
        %9297 = vmatprep.subr.mxu0 0.0
        %v9298 = vand.u32 %v8624, 4294901760
        %v9299 = vsub.f32 %v8624, %v9298
        %v9300 = vand.u32 %v9299, 4294901760
        %9301 = vmatpush1.msra.mxu0 %v9300
        %9302 = vmatprep.subr.mxu0 0.0
        %v9303 = vand.u32 %v8625, 4294901760
        %v9304 = vsub.f32 %v8625, %v9303
        %v9305 = vand.u32 %v9304, 4294901760
        %9306 = vmatpush1.msra.mxu0 %v9305
        %9307 = vmatprep.subr.mxu0 0.0
        %v9308 = vand.u32 %v8626, 4294901760
        %v9309 = vsub.f32 %v8626, %v9308
        %v9310 = vand.u32 %v9309, 4294901760
        %9311 = vmatpush1.msra.mxu0 %v9310
        %9312 = vmatprep.subr.mxu0 0.0
        %v9313 = vand.u32 %v8627, 4294901760
        %v9314 = vsub.f32 %v8627, %v9313
        %v9315 = vand.u32 %v9314, 4294901760
        %9316 = vmatpush1.msra.mxu0 %v9315
        %9317 = vmatprep.subr.mxu0 0.0
        %v9318 = vand.u32 %v8628, 4294901760
        %v9319 = vsub.f32 %v8628, %v9318
        %v9320 = vand.u32 %v9319, 4294901760
        %9321 = vmatpush1.msra.mxu0 %v9320
        %9322 = vmatprep.subr.mxu0 0.0
        %v9323 = vand.u32 %v8629, 4294901760
        %v9324 = vsub.f32 %v8629, %v9323
        %v9325 = vand.u32 %v9324, 4294901760
        %9326 = vmatpush1.msra.mxu0 %v9325
        %9327 = vmatprep.subr.mxu0 0.0
        %v9328 = vand.u32 %v8630, 4294901760
        %v9329 = vsub.f32 %v8630, %v9328
        %v9330 = vand.u32 %v9329, 4294901760
        %9331 = vmatpush1.msra.mxu0 %v9330
        %9332 = vmatprep.subr.mxu0 0.0
        %v9333 = vand.u32 %v8631, 4294901760
        %v9334 = vsub.f32 %v8631, %v9333
        %v9335 = vand.u32 %v9334, 4294901760
        %9336 = vmatpush1.msra.mxu0 %v9335
        %9337 = vmatprep.subr.mxu0 0.0
        %v9338 = vand.u32 %v8632, 4294901760
        %v9339 = vsub.f32 %v8632, %v9338
        %v9340 = vand.u32 %v9339, 4294901760
        %9341 = vmatpush1.msra.mxu0 %v9340
        %9342 = vmatprep.subr.mxu0 0.0
        %v9343 = vand.u32 %v8633, 4294901760
        %v9344 = vsub.f32 %v8633, %v9343
        %v9345 = vand.u32 %v9344, 4294901760
        %9346 = vmatpush1.msra.mxu0 %v9345
        %9347 = vmatprep.subr.mxu0 0.0
        %v9348 = vand.u32 %v8634, 4294901760
        %v9349 = vsub.f32 %v8634, %v9348
        %v9350 = vand.u32 %v9349, 4294901760
        %9351 = vmatpush1.msra.mxu0 %v9350
        %9352 = vmatprep.subr.mxu0 0.0
        %v9353 = vand.u32 %v8635, 4294901760
        %v9354 = vsub.f32 %v8635, %v9353
        %v9355 = vand.u32 %v9354, 4294901760
        %9356 = vmatpush1.msra.mxu0 %v9355
        %9357 = vmatprep.subr.mxu0 0.0
        %v9358 = vand.u32 %v8636, 4294901760
        %v9359 = vsub.f32 %v8636, %v9358
        %v9360 = vand.u32 %v9359, 4294901760
        %9361 = vmatpush1.msra.mxu0 %v9360
        %9362 = vmatprep.subr.mxu0 0.0
        %v9363 = vand.u32 %v8637, 4294901760
        %v9364 = vsub.f32 %v8637, %v9363
        %v9365 = vand.u32 %v9364, 4294901760
        %9366 = vmatpush1.msra.mxu0 %v9365
        %9367 = vmatprep.subr.mxu0 0.0
        %v9368 = vand.u32 %v8638, 4294901760
        %v9369 = vsub.f32 %v8638, %v9368
        %v9370 = vand.u32 %v9369, 4294901760
        %9371 = vmatpush1.msra.mxu0 %v9370
        %9372 = vmatprep.subr.mxu0 0.0
        %v9373 = vand.u32 %v8639, 4294901760
        %v9374 = vsub.f32 %v8639, %v9373
        %v9375 = vand.u32 %v9374, 4294901760
        %9376 = vmatpush1.msra.mxu0 %v9375
        %9377 = vmatprep.subr.mxu0 0.0
        %v9378 = vand.u32 %v8640, 4294901760
        %v9379 = vsub.f32 %v8640, %v9378
        %v9380 = vand.u32 %v9379, 4294901760
        %9381 = vmatpush1.msra.mxu0 %v9380
        %9382 = vmatprep.subr.mxu0 0.0
        %v9383 = vand.u32 %v8641, 4294901760
        %v9384 = vsub.f32 %v8641, %v9383
        %v9385 = vand.u32 %v9384, 4294901760
        %9386 = vmatpush1.msra.mxu0 %v9385
        %9387 = vmatprep.subr.mxu0 0.0
        %v9388 = vand.u32 %v8642, 4294901760
        %v9389 = vsub.f32 %v8642, %v9388
        %v9390 = vand.u32 %v9389, 4294901760
        %9391 = vmatpush1.msra.mxu0 %v9390
        %9392 = vmatprep.subr.mxu0 0.0
        %v9393 = vand.u32 %v8643, 4294901760
        %v9394 = vsub.f32 %v8643, %v9393
        %v9395 = vand.u32 %v9394, 4294901760
        %9396 = vmatpush1.msra.mxu0 %v9395
        %9397 = vmatprep.subr.mxu0 0.0
        %v9398 = vand.u32 %v8644, 4294901760
        %v9399 = vsub.f32 %v8644, %v9398
        %v9400 = vand.u32 %v9399, 4294901760
        %9401 = vmatpush1.msra.mxu0 %v9400
        %9402 = vmatprep.subr.mxu0 0.0
        %v9403 = vand.u32 %v8645, 4294901760
        %v9404 = vsub.f32 %v8645, %v9403
        %v9405 = vand.u32 %v9404, 4294901760
        %9406 = vmatpush1.msra.mxu0 %v9405
        %9407 = vmatprep.subr.mxu0 0.0
        %v9408 = vand.u32 %v8646, 4294901760
        %v9409 = vsub.f32 %v8646, %v9408
        %v9410 = vand.u32 %v9409, 4294901760
        %9411 = vmatpush1.msra.mxu0 %v9410
        %9412 = vmatprep.subr.mxu0 0.0
        %v9413 = vand.u32 %v8647, 4294901760
        %v9414 = vsub.f32 %v8647, %v9413
        %v9415 = vand.u32 %v9414, 4294901760
        %9416 = vmatpush1.msra.mxu0 %v9415
        %9417 = vmatprep.subr.mxu0 0.0
        %v9418 = vand.u32 %v8648, 4294901760
        %v9419 = vsub.f32 %v8648, %v9418
        %v9420 = vand.u32 %v9419, 4294901760
        %9421 = vmatpush1.msra.mxu0 %v9420
        %9422 = vmatprep.subr.mxu0 0.0
        %v9423 = vand.u32 %v8649, 4294901760
        %v9424 = vsub.f32 %v8649, %v9423
        %v9425 = vand.u32 %v9424, 4294901760
        %9426 = vmatpush1.msra.mxu0 %v9425
        %9427 = vmatprep.subr.mxu0 0.0
        %v9428 = vand.u32 %v8650, 4294901760
        %v9429 = vsub.f32 %v8650, %v9428
        %v9430 = vand.u32 %v9429, 4294901760
        %9431 = vmatpush1.msra.mxu0 %v9430
        %9432 = vmatprep.subr.mxu0 0.0
        %v9433 = vand.u32 %v8651, 4294901760
        %v9434 = vsub.f32 %v8651, %v9433
        %v9435 = vand.u32 %v9434, 4294901760
        %9436 = vmatpush1.msra.mxu0 %v9435
        %9437 = vmatprep.subr.mxu0 0.0
        %v9438 = vand.u32 %v8652, 4294901760
        %v9439 = vsub.f32 %v8652, %v9438
        %v9440 = vand.u32 %v9439, 4294901760
        %9441 = vmatpush1.msra.mxu0 %v9440
        %v9442 = vand.u32 %v8618, 4294901760
        %9443 = vmatprep.mubr.f32.mxu0 %v9442
        %v9444 = vand.u32 %v8617, 4294901760
        %9445 = vmatmul.mubr.f32.gmra.mrb[0].mxu0 %v9444
        %v9446 = vpop.f32.mrb[0].mxu0
        %v9447 = vadd.f32 %v9279, %v9446
        %v9448 = vpop.f32.mrb[0].mxu0
        %9449 = vdwg.mxu0
        %9450 = vmatprep.subr.mxu0 0.0
        %v9451 = vand.u32 %v8621, 4294901760
        %9452 = vmatpush1.msra.mxu0 %v9451
        %9453 = vmatprep.subr.mxu0 0.0
        %v9454 = vand.u32 %v8622, 4294901760
        %9455 = vmatpush1.msra.mxu0 %v9454
        %9456 = vmatprep.subr.mxu0 0.0
        %v9457 = vand.u32 %v8623, 4294901760
        %9458 = vmatpush1.msra.mxu0 %v9457
        %9459 = vmatprep.subr.mxu0 0.0
        %v9460 = vand.u32 %v8624, 4294901760
        %9461 = vmatpush1.msra.mxu0 %v9460
        %9462 = vmatprep.subr.mxu0 0.0
        %v9463 = vand.u32 %v8625, 4294901760
        %9464 = vmatpush1.msra.mxu0 %v9463
        %9465 = vmatprep.subr.mxu0 0.0
        %v9466 = vand.u32 %v8626, 4294901760
        %9467 = vmatpush1.msra.mxu0 %v9466
        %9468 = vmatprep.subr.mxu0 0.0
        %v9469 = vand.u32 %v8627, 4294901760
        %9470 = vmatpush1.msra.mxu0 %v9469
        %9471 = vmatprep.subr.mxu0 0.0
        %v9472 = vand.u32 %v8628, 4294901760
        %9473 = vmatpush1.msra.mxu0 %v9472
        %9474 = vmatprep.subr.mxu0 0.0
        %v9475 = vand.u32 %v8629, 4294901760
        %9476 = vmatpush1.msra.mxu0 %v9475
        %9477 = vmatprep.subr.mxu0 0.0
        %v9478 = vand.u32 %v8630, 4294901760
        %9479 = vmatpush1.msra.mxu0 %v9478
        %9480 = vmatprep.subr.mxu0 0.0
        %v9481 = vand.u32 %v8631, 4294901760
        %9482 = vmatpush1.msra.mxu0 %v9481
        %9483 = vmatprep.subr.mxu0 0.0
        %v9484 = vand.u32 %v8632, 4294901760
        %9485 = vmatpush1.msra.mxu0 %v9484
        %9486 = vmatprep.subr.mxu0 0.0
        %v9487 = vand.u32 %v8633, 4294901760
        %9488 = vmatpush1.msra.mxu0 %v9487
        %9489 = vmatprep.subr.mxu0 0.0
        %v9490 = vand.u32 %v8634, 4294901760
        %9491 = vmatpush1.msra.mxu0 %v9490
        %9492 = vmatprep.subr.mxu0 0.0
        %v9493 = vand.u32 %v8635, 4294901760
        %9494 = vmatpush1.msra.mxu0 %v9493
        %9495 = vmatprep.subr.mxu0 0.0
        %v9496 = vand.u32 %v8636, 4294901760
        %9497 = vmatpush1.msra.mxu0 %v9496
        %9498 = vmatprep.subr.mxu0 0.0
        %v9499 = vand.u32 %v8637, 4294901760
        %9500 = vmatpush1.msra.mxu0 %v9499
        %9501 = vmatprep.subr.mxu0 0.0
        %v9502 = vand.u32 %v8638, 4294901760
        %9503 = vmatpush1.msra.mxu0 %v9502
        %9504 = vmatprep.subr.mxu0 0.0
        %v9505 = vand.u32 %v8639, 4294901760
        %9506 = vmatpush1.msra.mxu0 %v9505
        %9507 = vmatprep.subr.mxu0 0.0
        %v9508 = vand.u32 %v8640, 4294901760
        %9509 = vmatpush1.msra.mxu0 %v9508
        %9510 = vmatprep.subr.mxu0 0.0
        %v9511 = vand.u32 %v8641, 4294901760
        %9512 = vmatpush1.msra.mxu0 %v9511
        %9513 = vmatprep.subr.mxu0 0.0
        %v9514 = vand.u32 %v8642, 4294901760
        %9515 = vmatpush1.msra.mxu0 %v9514
        %9516 = vmatprep.subr.mxu0 0.0
        %v9517 = vand.u32 %v8643, 4294901760
        %9518 = vmatpush1.msra.mxu0 %v9517
        %9519 = vmatprep.subr.mxu0 0.0
        %v9520 = vand.u32 %v8644, 4294901760
        %9521 = vmatpush1.msra.mxu0 %v9520
        %9522 = vmatprep.subr.mxu0 0.0
        %v9523 = vand.u32 %v8645, 4294901760
        %9524 = vmatpush1.msra.mxu0 %v9523
        %9525 = vmatprep.subr.mxu0 0.0
        %v9526 = vand.u32 %v8646, 4294901760
        %9527 = vmatpush1.msra.mxu0 %v9526
        %9528 = vmatprep.subr.mxu0 0.0
        %v9529 = vand.u32 %v8647, 4294901760
        %9530 = vmatpush1.msra.mxu0 %v9529
        %9531 = vmatprep.subr.mxu0 0.0
        %v9532 = vand.u32 %v8648, 4294901760
        %9533 = vmatpush1.msra.mxu0 %v9532
        %9534 = vmatprep.subr.mxu0 0.0
        %v9535 = vand.u32 %v8649, 4294901760
        %9536 = vmatpush1.msra.mxu0 %v9535
        %9537 = vmatprep.subr.mxu0 0.0
        %v9538 = vand.u32 %v8650, 4294901760
        %9539 = vmatpush1.msra.mxu0 %v9538
        %9540 = vmatprep.subr.mxu0 0.0
        %v9541 = vand.u32 %v8651, 4294901760
        %9542 = vmatpush1.msra.mxu0 %v9541
        %9543 = vmatprep.subr.mxu0 0.0
        %v9544 = vand.u32 %v8652, 4294901760
        %9545 = vmatpush1.msra.mxu0 %v9544
        %v9546 = vand.u32 %v8618, 4294901760
        %9547 = vmatprep.mubr.f32.mxu0 %v9546
        %v9548 = vand.u32 %v8617, 4294901760
        %9549 = vmatmul.mubr.f32.gmra.mrb[0].mxu0 %v9548
        %v9550 = vpop.f32.mrb[0].mxu0
        %v9551 = vadd.f32 %v9447, %v9550
        %v9552 = vpop.f32.mrb[0].mxu0
        %9553 = vdwg.mxu0
        %9554 = vmatprep.subr.mxu0 0.0
        %v9555 = vand.u32 %v8653, 4294901760
        %9556 = vmatpush1.msra.mxu0 %v9555
        %9557 = vmatprep.subr.mxu0 0.0
        %v9558 = vand.u32 %v8654, 4294901760
        %9559 = vmatpush1.msra.mxu0 %v9558
        %9560 = vmatprep.subr.mxu0 0.0
        %v9561 = vand.u32 %v8655, 4294901760
        %9562 = vmatpush1.msra.mxu0 %v9561
        %9563 = vmatprep.subr.mxu0 0.0
        %v9564 = vand.u32 %v8656, 4294901760
        %9565 = vmatpush1.msra.mxu0 %v9564
        %9566 = vmatprep.subr.mxu0 0.0
        %v9567 = vand.u32 %v8657, 4294901760
        %9568 = vmatpush1.msra.mxu0 %v9567
        %9569 = vmatprep.subr.mxu0 0.0
        %v9570 = vand.u32 %v8658, 4294901760
        %9571 = vmatpush1.msra.mxu0 %v9570
        %9572 = vmatprep.subr.mxu0 0.0
        %v9573 = vand.u32 %v8659, 4294901760
        %9574 = vmatpush1.msra.mxu0 %v9573
        %9575 = vmatprep.subr.mxu0 0.0
        %v9576 = vand.u32 %v8660, 4294901760
        %9577 = vmatpush1.msra.mxu0 %v9576
        %9578 = vmatprep.subr.mxu0 0.0
        %v9579 = vand.u32 %v8661, 4294901760
        %9580 = vmatpush1.msra.mxu0 %v9579
        %9581 = vmatprep.subr.mxu0 0.0
        %v9582 = vand.u32 %v8662, 4294901760
        %9583 = vmatpush1.msra.mxu0 %v9582
        %9584 = vmatprep.subr.mxu0 0.0
        %v9585 = vand.u32 %v8663, 4294901760
        %9586 = vmatpush1.msra.mxu0 %v9585
        %9587 = vmatprep.subr.mxu0 0.0
        %v9588 = vand.u32 %v8664, 4294901760
        %9589 = vmatpush1.msra.mxu0 %v9588
        %9590 = vmatprep.subr.mxu0 0.0
        %v9591 = vand.u32 %v8665, 4294901760
        %9592 = vmatpush1.msra.mxu0 %v9591
        %9593 = vmatprep.subr.mxu0 0.0
        %v9594 = vand.u32 %v8666, 4294901760
        %9595 = vmatpush1.msra.mxu0 %v9594
        %9596 = vmatprep.subr.mxu0 0.0
        %v9597 = vand.u32 %v8667, 4294901760
        %9598 = vmatpush1.msra.mxu0 %v9597
        %9599 = vmatprep.subr.mxu0 0.0
        %v9600 = vand.u32 %v8668, 4294901760
        %9601 = vmatpush1.msra.mxu0 %v9600
        %9602 = vmatprep.subr.mxu0 0.0
        %v9603 = vand.u32 %v8669, 4294901760
        %9604 = vmatpush1.msra.mxu0 %v9603
        %9605 = vmatprep.subr.mxu0 0.0
        %v9606 = vand.u32 %v8670, 4294901760
        %9607 = vmatpush1.msra.mxu0 %v9606
        %9608 = vmatprep.subr.mxu0 0.0
        %v9609 = vand.u32 %v8671, 4294901760
        %9610 = vmatpush1.msra.mxu0 %v9609
        %9611 = vmatprep.subr.mxu0 0.0
        %v9612 = vand.u32 %v8672, 4294901760
        %9613 = vmatpush1.msra.mxu0 %v9612
        %9614 = vmatprep.subr.mxu0 0.0
        %v9615 = vand.u32 %v8673, 4294901760
        %9616 = vmatpush1.msra.mxu0 %v9615
        %9617 = vmatprep.subr.mxu0 0.0
        %v9618 = vand.u32 %v8674, 4294901760
        %9619 = vmatpush1.msra.mxu0 %v9618
        %9620 = vmatprep.subr.mxu0 0.0
        %v9621 = vand.u32 %v8675, 4294901760
        %9622 = vmatpush1.msra.mxu0 %v9621
        %9623 = vmatprep.subr.mxu0 0.0
        %v9624 = vand.u32 %v8676, 4294901760
        %9625 = vmatpush1.msra.mxu0 %v9624
        %9626 = vmatprep.subr.mxu0 0.0
        %v9627 = vand.u32 %v8677, 4294901760
        %9628 = vmatpush1.msra.mxu0 %v9627
        %9629 = vmatprep.subr.mxu0 0.0
        %v9630 = vand.u32 %v8678, 4294901760
        %9631 = vmatpush1.msra.mxu0 %v9630
        %9632 = vmatprep.subr.mxu0 0.0
        %v9633 = vand.u32 %v8679, 4294901760
        %9634 = vmatpush1.msra.mxu0 %v9633
        %9635 = vmatprep.subr.mxu0 0.0
        %v9636 = vand.u32 %v8680, 4294901760
        %9637 = vmatpush1.msra.mxu0 %v9636
        %9638 = vmatprep.subr.mxu0 0.0
        %v9639 = vand.u32 %v8681, 4294901760
        %9640 = vmatpush1.msra.mxu0 %v9639
        %9641 = vmatprep.subr.mxu0 0.0
        %v9642 = vand.u32 %v8682, 4294901760
        %9643 = vmatpush1.msra.mxu0 %v9642
        %9644 = vmatprep.subr.mxu0 0.0
        %v9645 = vand.u32 %v8683, 4294901760
        %9646 = vmatpush1.msra.mxu0 %v9645
        %9647 = vmatprep.subr.mxu0 0.0
        %v9648 = vand.u32 %v8684, 4294901760
        %9649 = vmatpush1.msra.mxu0 %v9648
        %v9650 = vand.u32 %v8620, 4294901760
        %v9651 = vsub.f32 %v8620, %v9650
        %v9652 = vand.u32 %v9651, 4294901760
        %v9653 = vsub.f32 %v9651, %v9652
        %v9654 = vand.u32 %v9653, 4294901760
        %9655 = vmatprep.mubr.f32.mxu0 %v9654
        %v9656 = vand.u32 %v8619, 4294901760
        %v9657 = vsub.f32 %v8619, %v9656
        %v9658 = vand.u32 %v9657, 4294901760
        %v9659 = vsub.f32 %v9657, %v9658
        %v9660 = vand.u32 %v9659, 4294901760
        %9661 = vmatmul.mubr.f32.gmra.mrb[0].mxu0 %v9660
        %v9662 = vpop.f32.mrb[0].mxu0
        %v9663 = vadd.f32 %v9551, %v9662
        %v9664 = vpop.f32.mrb[0].mxu0
        %9665 = vdwg.mxu0
        %9666 = vmatprep.subr.mxu0 0.0
        %v9667 = vand.u32 %v8653, 4294901760
        %v9668 = vsub.f32 %v8653, %v9667
        %v9669 = vand.u32 %v9668, 4294901760
        %v9670 = vsub.f32 %v9668, %v9669
        %v9671 = vand.u32 %v9670, 4294901760
        %9672 = vmatpush1.msra.mxu0 %v9671
        %9673 = vmatprep.subr.mxu0 0.0
        %v9674 = vand.u32 %v8654, 4294901760
        %v9675 = vsub.f32 %v8654, %v9674
        %v9676 = vand.u32 %v9675, 4294901760
        %v9677 = vsub.f32 %v9675, %v9676
        %v9678 = vand.u32 %v9677, 4294901760
        %9679 = vmatpush1.msra.mxu0 %v9678
        %9680 = vmatprep.subr.mxu0 0.0
        %v9681 = vand.u32 %v8655, 4294901760
        %v9682 = vsub.f32 %v8655, %v9681
        %v9683 = vand.u32 %v9682, 4294901760
        %v9684 = vsub.f32 %v9682, %v9683
        %v9685 = vand.u32 %v9684, 4294901760
        %9686 = vmatpush1.msra.mxu0 %v9685
        %9687 = vmatprep.subr.mxu0 0.0
        %v9688 = vand.u32 %v8656, 4294901760
        %v9689 = vsub.f32 %v8656, %v9688
        %v9690 = vand.u32 %v9689, 4294901760
        %v9691 = vsub.f32 %v9689, %v9690
        %v9692 = vand.u32 %v9691, 4294901760
        %9693 = vmatpush1.msra.mxu0 %v9692
        %9694 = vmatprep.subr.mxu0 0.0
        %v9695 = vand.u32 %v8657, 4294901760
        %v9696 = vsub.f32 %v8657, %v9695
        %v9697 = vand.u32 %v9696, 4294901760
        %v9698 = vsub.f32 %v9696, %v9697
        %v9699 = vand.u32 %v9698, 4294901760
        %9700 = vmatpush1.msra.mxu0 %v9699
        %9701 = vmatprep.subr.mxu0 0.0
        %v9702 = vand.u32 %v8658, 4294901760
        %v9703 = vsub.f32 %v8658, %v9702
        %v9704 = vand.u32 %v9703, 4294901760
        %v9705 = vsub.f32 %v9703, %v9704
        %v9706 = vand.u32 %v9705, 4294901760
        %9707 = vmatpush1.msra.mxu0 %v9706
        %9708 = vmatprep.subr.mxu0 0.0
        %v9709 = vand.u32 %v8659, 4294901760
        %v9710 = vsub.f32 %v8659, %v9709
        %v9711 = vand.u32 %v9710, 4294901760
        %v9712 = vsub.f32 %v9710, %v9711
        %v9713 = vand.u32 %v9712, 4294901760
        %9714 = vmatpush1.msra.mxu0 %v9713
        %9715 = vmatprep.subr.mxu0 0.0
        %v9716 = vand.u32 %v8660, 4294901760
        %v9717 = vsub.f32 %v8660, %v9716
        %v9718 = vand.u32 %v9717, 4294901760
        %v9719 = vsub.f32 %v9717, %v9718
        %v9720 = vand.u32 %v9719, 4294901760
        %9721 = vmatpush1.msra.mxu0 %v9720
        %9722 = vmatprep.subr.mxu0 0.0
        %v9723 = vand.u32 %v8661, 4294901760
        %v9724 = vsub.f32 %v8661, %v9723
        %v9725 = vand.u32 %v9724, 4294901760
        %v9726 = vsub.f32 %v9724, %v9725
        %v9727 = vand.u32 %v9726, 4294901760
        %9728 = vmatpush1.msra.mxu0 %v9727
        %9729 = vmatprep.subr.mxu0 0.0
        %v9730 = vand.u32 %v8662, 4294901760
        %v9731 = vsub.f32 %v8662, %v9730
        %v9732 = vand.u32 %v9731, 4294901760
        %v9733 = vsub.f32 %v9731, %v9732
        %v9734 = vand.u32 %v9733, 4294901760
        %9735 = vmatpush1.msra.mxu0 %v9734
        %9736 = vmatprep.subr.mxu0 0.0
        %v9737 = vand.u32 %v8663, 4294901760
        %v9738 = vsub.f32 %v8663, %v9737
        %v9739 = vand.u32 %v9738, 4294901760
        %v9740 = vsub.f32 %v9738, %v9739
        %v9741 = vand.u32 %v9740, 4294901760
        %9742 = vmatpush1.msra.mxu0 %v9741
        %9743 = vmatprep.subr.mxu0 0.0
        %v9744 = vand.u32 %v8664, 4294901760
        %v9745 = vsub.f32 %v8664, %v9744
        %v9746 = vand.u32 %v9745, 4294901760
        %v9747 = vsub.f32 %v9745, %v9746
        %v9748 = vand.u32 %v9747, 4294901760
        %9749 = vmatpush1.msra.mxu0 %v9748
        %9750 = vmatprep.subr.mxu0 0.0
        %v9751 = vand.u32 %v8665, 4294901760
        %v9752 = vsub.f32 %v8665, %v9751
        %v9753 = vand.u32 %v9752, 4294901760
        %v9754 = vsub.f32 %v9752, %v9753
        %v9755 = vand.u32 %v9754, 4294901760
        %9756 = vmatpush1.msra.mxu0 %v9755
        %9757 = vmatprep.subr.mxu0 0.0
        %v9758 = vand.u32 %v8666, 4294901760
        %v9759 = vsub.f32 %v8666, %v9758
        %v9760 = vand.u32 %v9759, 4294901760
        %v9761 = vsub.f32 %v9759, %v9760
        %v9762 = vand.u32 %v9761, 4294901760
        %9763 = vmatpush1.msra.mxu0 %v9762
        %9764 = vmatprep.subr.mxu0 0.0
        %v9765 = vand.u32 %v8667, 4294901760
        %v9766 = vsub.f32 %v8667, %v9765
        %v9767 = vand.u32 %v9766, 4294901760
        %v9768 = vsub.f32 %v9766, %v9767
        %v9769 = vand.u32 %v9768, 4294901760
        %9770 = vmatpush1.msra.mxu0 %v9769
        %9771 = vmatprep.subr.mxu0 0.0
        %v9772 = vand.u32 %v8668, 4294901760
        %v9773 = vsub.f32 %v8668, %v9772
        %v9774 = vand.u32 %v9773, 4294901760
        %v9775 = vsub.f32 %v9773, %v9774
        %v9776 = vand.u32 %v9775, 4294901760
        %9777 = vmatpush1.msra.mxu0 %v9776
        %9778 = vmatprep.subr.mxu0 0.0
        %v9779 = vand.u32 %v8669, 4294901760
        %v9780 = vsub.f32 %v8669, %v9779
        %v9781 = vand.u32 %v9780, 4294901760
        %v9782 = vsub.f32 %v9780, %v9781
        %v9783 = vand.u32 %v9782, 4294901760
        %9784 = vmatpush1.msra.mxu0 %v9783
        %9785 = vmatprep.subr.mxu0 0.0
        %v9786 = vand.u32 %v8670, 4294901760
        %v9787 = vsub.f32 %v8670, %v9786
        %v9788 = vand.u32 %v9787, 4294901760
        %v9789 = vsub.f32 %v9787, %v9788
        %v9790 = vand.u32 %v9789, 4294901760
        %9791 = vmatpush1.msra.mxu0 %v9790
        %9792 = vmatprep.subr.mxu0 0.0
        %v9793 = vand.u32 %v8671, 4294901760
        %v9794 = vsub.f32 %v8671, %v9793
        %v9795 = vand.u32 %v9794, 4294901760
        %v9796 = vsub.f32 %v9794, %v9795
        %v9797 = vand.u32 %v9796, 4294901760
        %9798 = vmatpush1.msra.mxu0 %v9797
        %9799 = vmatprep.subr.mxu0 0.0
        %v9800 = vand.u32 %v8672, 4294901760
        %v9801 = vsub.f32 %v8672, %v9800
        %v9802 = vand.u32 %v9801, 4294901760
        %v9803 = vsub.f32 %v9801, %v9802
        %v9804 = vand.u32 %v9803, 4294901760
        %9805 = vmatpush1.msra.mxu0 %v9804
        %9806 = vmatprep.subr.mxu0 0.0
        %v9807 = vand.u32 %v8673, 4294901760
        %v9808 = vsub.f32 %v8673, %v9807
        %v9809 = vand.u32 %v9808, 4294901760
        %v9810 = vsub.f32 %v9808, %v9809
        %v9811 = vand.u32 %v9810, 4294901760
        %9812 = vmatpush1.msra.mxu0 %v9811
        %9813 = vmatprep.subr.mxu0 0.0
        %v9814 = vand.u32 %v8674, 4294901760
        %v9815 = vsub.f32 %v8674, %v9814
        %v9816 = vand.u32 %v9815, 4294901760
        %v9817 = vsub.f32 %v9815, %v9816
        %v9818 = vand.u32 %v9817, 4294901760
        %9819 = vmatpush1.msra.mxu0 %v9818
        %9820 = vmatprep.subr.mxu0 0.0
        %v9821 = vand.u32 %v8675, 4294901760
        %v9822 = vsub.f32 %v8675, %v9821
        %v9823 = vand.u32 %v9822, 4294901760
        %v9824 = vsub.f32 %v9822, %v9823
        %v9825 = vand.u32 %v9824, 4294901760
        %9826 = vmatpush1.msra.mxu0 %v9825
        %9827 = vmatprep.subr.mxu0 0.0
        %v9828 = vand.u32 %v8676, 4294901760
        %v9829 = vsub.f32 %v8676, %v9828
        %v9830 = vand.u32 %v9829, 4294901760
        %v9831 = vsub.f32 %v9829, %v9830
        %v9832 = vand.u32 %v9831, 4294901760
        %9833 = vmatpush1.msra.mxu0 %v9832
        %9834 = vmatprep.subr.mxu0 0.0
        %v9835 = vand.u32 %v8677, 4294901760
        %v9836 = vsub.f32 %v8677, %v9835
        %v9837 = vand.u32 %v9836, 4294901760
        %v9838 = vsub.f32 %v9836, %v9837
        %v9839 = vand.u32 %v9838, 4294901760
        %9840 = vmatpush1.msra.mxu0 %v9839
        %9841 = vmatprep.subr.mxu0 0.0
        %v9842 = vand.u32 %v8678, 4294901760
        %v9843 = vsub.f32 %v8678, %v9842
        %v9844 = vand.u32 %v9843, 4294901760
        %v9845 = vsub.f32 %v9843, %v9844
        %v9846 = vand.u32 %v9845, 4294901760
        %9847 = vmatpush1.msra.mxu0 %v9846
        %9848 = vmatprep.subr.mxu0 0.0
        %v9849 = vand.u32 %v8679, 4294901760
        %v9850 = vsub.f32 %v8679, %v9849
        %v9851 = vand.u32 %v9850, 4294901760
        %v9852 = vsub.f32 %v9850, %v9851
        %v9853 = vand.u32 %v9852, 4294901760
        %9854 = vmatpush1.msra.mxu0 %v9853
        %9855 = vmatprep.subr.mxu0 0.0
        %v9856 = vand.u32 %v8680, 4294901760
        %v9857 = vsub.f32 %v8680, %v9856
        %v9858 = vand.u32 %v9857, 4294901760
        %v9859 = vsub.f32 %v9857, %v9858
        %v9860 = vand.u32 %v9859, 4294901760
        %9861 = vmatpush1.msra.mxu0 %v9860
        %9862 = vmatprep.subr.mxu0 0.0
        %v9863 = vand.u32 %v8681, 4294901760
        %v9864 = vsub.f32 %v8681, %v9863
        %v9865 = vand.u32 %v9864, 4294901760
        %v9866 = vsub.f32 %v9864, %v9865
        %v9867 = vand.u32 %v9866, 4294901760
        %9868 = vmatpush1.msra.mxu0 %v9867
        %9869 = vmatprep.subr.mxu0 0.0
        %v9870 = vand.u32 %v8682, 4294901760
        %v9871 = vsub.f32 %v8682, %v9870
        %v9872 = vand.u32 %v9871, 4294901760
        %v9873 = vsub.f32 %v9871, %v9872
        %v9874 = vand.u32 %v9873, 4294901760
        %9875 = vmatpush1.msra.mxu0 %v9874
        %9876 = vmatprep.subr.mxu0 0.0
        %v9877 = vand.u32 %v8683, 4294901760
        %v9878 = vsub.f32 %v8683, %v9877
        %v9879 = vand.u32 %v9878, 4294901760
        %v9880 = vsub.f32 %v9878, %v9879
        %v9881 = vand.u32 %v9880, 4294901760
        %9882 = vmatpush1.msra.mxu0 %v9881
        %9883 = vmatprep.subr.mxu0 0.0
        %v9884 = vand.u32 %v8684, 4294901760
        %v9885 = vsub.f32 %v8684, %v9884
        %v9886 = vand.u32 %v9885, 4294901760
        %v9887 = vsub.f32 %v9885, %v9886
        %v9888 = vand.u32 %v9887, 4294901760
        %9889 = vmatpush1.msra.mxu0 %v9888
        %v9890 = vand.u32 %v8620, 4294901760
        %9891 = vmatprep.mubr.f32.mxu0 %v9890
        %v9892 = vand.u32 %v8619, 4294901760
        %9893 = vmatmul.mubr.f32.gmra.mrb[0].mxu0 %v9892
        %v9894 = vpop.f32.mrb[0].mxu0
        %v9895 = vadd.f32 %v9663, %v9894
        %v9896 = vpop.f32.mrb[0].mxu0
        %9897 = vdwg.mxu0
        %9898 = vmatprep.subr.mxu0 0.0
        %v9899 = vand.u32 %v8653, 4294901760
        %v9900 = vsub.f32 %v8653, %v9899
        %9901 = vmatpush1.msra.mxu0 %v9900
        %9902 = vmatprep.subr.mxu0 0.0
        %v9903 = vand.u32 %v8654, 4294901760
        %v9904 = vsub.f32 %v8654, %v9903
        %9905 = vmatpush1.msra.mxu0 %v9904
        %9906 = vmatprep.subr.mxu0 0.0
        %v9907 = vand.u32 %v8655, 4294901760
        %v9908 = vsub.f32 %v8655, %v9907
        %9909 = vmatpush1.msra.mxu0 %v9908
        %9910 = vmatprep.subr.mxu0 0.0
        %v9911 = vand.u32 %v8656, 4294901760
        %v9912 = vsub.f32 %v8656, %v9911
        %9913 = vmatpush1.msra.mxu0 %v9912
        %9914 = vmatprep.subr.mxu0 0.0
        %v9915 = vand.u32 %v8657, 4294901760
        %v9916 = vsub.f32 %v8657, %v9915
        %9917 = vmatpush1.msra.mxu0 %v9916
        %9918 = vmatprep.subr.mxu0 0.0
        %v9919 = vand.u32 %v8658, 4294901760
        %v9920 = vsub.f32 %v8658, %v9919
        %9921 = vmatpush1.msra.mxu0 %v9920
        %9922 = vmatprep.subr.mxu0 0.0
        %v9923 = vand.u32 %v8659, 4294901760
        %v9924 = vsub.f32 %v8659, %v9923
        %9925 = vmatpush1.msra.mxu0 %v9924
        %9926 = vmatprep.subr.mxu0 0.0
        %v9927 = vand.u32 %v8660, 4294901760
        %v9928 = vsub.f32 %v8660, %v9927
        %9929 = vmatpush1.msra.mxu0 %v9928
        %9930 = vmatprep.subr.mxu0 0.0
        %v9931 = vand.u32 %v8661, 4294901760
        %v9932 = vsub.f32 %v8661, %v9931
        %9933 = vmatpush1.msra.mxu0 %v9932
        %9934 = vmatprep.subr.mxu0 0.0
        %v9935 = vand.u32 %v8662, 4294901760
        %v9936 = vsub.f32 %v8662, %v9935
        %9937 = vmatpush1.msra.mxu0 %v9936
        %9938 = vmatprep.subr.mxu0 0.0
        %v9939 = vand.u32 %v8663, 4294901760
        %v9940 = vsub.f32 %v8663, %v9939
        %9941 = vmatpush1.msra.mxu0 %v9940
        %9942 = vmatprep.subr.mxu0 0.0
        %v9943 = vand.u32 %v8664, 4294901760
        %v9944 = vsub.f32 %v8664, %v9943
        %9945 = vmatpush1.msra.mxu0 %v9944
        %9946 = vmatprep.subr.mxu0 0.0
        %v9947 = vand.u32 %v8665, 4294901760
        %v9948 = vsub.f32 %v8665, %v9947
        %9949 = vmatpush1.msra.mxu0 %v9948
        %9950 = vmatprep.subr.mxu0 0.0
        %v9951 = vand.u32 %v8666, 4294901760
        %v9952 = vsub.f32 %v8666, %v9951
        %9953 = vmatpush1.msra.mxu0 %v9952
        %9954 = vmatprep.subr.mxu0 0.0
        %v9955 = vand.u32 %v8667, 4294901760
        %v9956 = vsub.f32 %v8667, %v9955
        %9957 = vmatpush1.msra.mxu0 %v9956
        %9958 = vmatprep.subr.mxu0 0.0
        %v9959 = vand.u32 %v8668, 4294901760
        %v9960 = vsub.f32 %v8668, %v9959
        %9961 = vmatpush1.msra.mxu0 %v9960
        %9962 = vmatprep.subr.mxu0 0.0
        %v9963 = vand.u32 %v8669, 4294901760
        %v9964 = vsub.f32 %v8669, %v9963
        %9965 = vmatpush1.msra.mxu0 %v9964
        %9966 = vmatprep.subr.mxu0 0.0
        %v9967 = vand.u32 %v8670, 4294901760
        %v9968 = vsub.f32 %v8670, %v9967
        %9969 = vmatpush1.msra.mxu0 %v9968
        %9970 = vmatprep.subr.mxu0 0.0
        %v9971 = vand.u32 %v8671, 4294901760
        %v9972 = vsub.f32 %v8671, %v9971
        %9973 = vmatpush1.msra.mxu0 %v9972
        %9974 = vmatprep.subr.mxu0 0.0
        %v9975 = vand.u32 %v8672, 4294901760
        %v9976 = vsub.f32 %v8672, %v9975
        %9977 = vmatpush1.msra.mxu0 %v9976
        %9978 = vmatprep.subr.mxu0 0.0
        %v9979 = vand.u32 %v8673, 4294901760
        %v9980 = vsub.f32 %v8673, %v9979
        %9981 = vmatpush1.msra.mxu0 %v9980
        %9982 = vmatprep.subr.mxu0 0.0
        %v9983 = vand.u32 %v8674, 4294901760
        %v9984 = vsub.f32 %v8674, %v9983
        %9985 = vmatpush1.msra.mxu0 %v9984
        %9986 = vmatprep.subr.mxu0 0.0
        %v9987 = vand.u32 %v8675, 4294901760
        %v9988 = vsub.f32 %v8675, %v9987
        %9989 = vmatpush1.msra.mxu0 %v9988
        %9990 = vmatprep.subr.mxu0 0.0
        %v9991 = vand.u32 %v8676, 4294901760
        %v9992 = vsub.f32 %v8676, %v9991
        %9993 = vmatpush1.msra.mxu0 %v9992
        %9994 = vmatprep.subr.mxu0 0.0
        %v9995 = vand.u32 %v8677, 4294901760
        %v9996 = vsub.f32 %v8677, %v9995
        %9997 = vmatpush1.msra.mxu0 %v9996
        %9998 = vmatprep.subr.mxu0 0.0
        %v9999 = vand.u32 %v8678, 4294901760
        %v10000 = vsub.f32 %v8678, %v9999
        %10001 = vmatpush1.msra.mxu0 %v10000
        %10002 = vmatprep.subr.mxu0 0.0
        %v10003 = vand.u32 %v8679, 4294901760
        %v10004 = vsub.f32 %v8679, %v10003
        %10005 = vmatpush1.msra.mxu0 %v10004
        %10006 = vmatprep.subr.mxu0 0.0
        %v10007 = vand.u32 %v8680, 4294901760
        %v10008 = vsub.f32 %v8680, %v10007
        %10009 = vmatpush1.msra.mxu0 %v10008
        %10010 = vmatprep.subr.mxu0 0.0
        %v10011 = vand.u32 %v8681, 4294901760
        %v10012 = vsub.f32 %v8681, %v10011
        %10013 = vmatpush1.msra.mxu0 %v10012
        %10014 = vmatprep.subr.mxu0 0.0
        %v10015 = vand.u32 %v8682, 4294901760
        %v10016 = vsub.f32 %v8682, %v10015
        %10017 = vmatpush1.msra.mxu0 %v10016
        %10018 = vmatprep.subr.mxu0 0.0
        %v10019 = vand.u32 %v8683, 4294901760
        %v10020 = vsub.f32 %v8683, %v10019
        %10021 = vmatpush1.msra.mxu0 %v10020
        %10022 = vmatprep.subr.mxu0 0.0
        %v10023 = vand.u32 %v8684, 4294901760
        %v10024 = vsub.f32 %v8684, %v10023
        %10025 = vmatpush1.msra.mxu0 %v10024
        %v10026 = vand.u32 %v8620, 4294901760
        %v10027 = vsub.f32 %v8620, %v10026
        %10028 = vmatprep.mubr.f32.mxu0 %v10027
        %v10029 = vand.u32 %v8619, 4294901760
        %v10030 = vsub.f32 %v8619, %v10029
        %10031 = vmatmul.mubr.f32.gmra.mrb[0].mxu0 %v10030
        %v10032 = vpop.f32.mrb[0].mxu0
        %v10033 = vadd.f32 %v9895, %v10032
        %v10034 = vpop.f32.mrb[0].mxu0
        %10035 = vdwg.mxu0
        %10036 = vmatprep.subr.mxu0 0.0
        %v10037 = vand.u32 %v8653, 4294901760
        %10038 = vmatpush1.msra.mxu0 %v10037
        %10039 = vmatprep.subr.mxu0 0.0
        %v10040 = vand.u32 %v8654, 4294901760
        %10041 = vmatpush1.msra.mxu0 %v10040
        %10042 = vmatprep.subr.mxu0 0.0
        %v10043 = vand.u32 %v8655, 4294901760
        %10044 = vmatpush1.msra.mxu0 %v10043
        %10045 = vmatprep.subr.mxu0 0.0
        %v10046 = vand.u32 %v8656, 4294901760
        %10047 = vmatpush1.msra.mxu0 %v10046
        %10048 = vmatprep.subr.mxu0 0.0
        %v10049 = vand.u32 %v8657, 4294901760
        %10050 = vmatpush1.msra.mxu0 %v10049
        %10051 = vmatprep.subr.mxu0 0.0
        %v10052 = vand.u32 %v8658, 4294901760
        %10053 = vmatpush1.msra.mxu0 %v10052
        %10054 = vmatprep.subr.mxu0 0.0
        %v10055 = vand.u32 %v8659, 4294901760
        %10056 = vmatpush1.msra.mxu0 %v10055
        %10057 = vmatprep.subr.mxu0 0.0
        %v10058 = vand.u32 %v8660, 4294901760
        %10059 = vmatpush1.msra.mxu0 %v10058
        %10060 = vmatprep.subr.mxu0 0.0
        %v10061 = vand.u32 %v8661, 4294901760
        %10062 = vmatpush1.msra.mxu0 %v10061
        %10063 = vmatprep.subr.mxu0 0.0
        %v10064 = vand.u32 %v8662, 4294901760
        %10065 = vmatpush1.msra.mxu0 %v10064
        %10066 = vmatprep.subr.mxu0 0.0
        %v10067 = vand.u32 %v8663, 4294901760
        %10068 = vmatpush1.msra.mxu0 %v10067
        %10069 = vmatprep.subr.mxu0 0.0
        %v10070 = vand.u32 %v8664, 4294901760
        %10071 = vmatpush1.msra.mxu0 %v10070
        %10072 = vmatprep.subr.mxu0 0.0
        %v10073 = vand.u32 %v8665, 4294901760
        %10074 = vmatpush1.msra.mxu0 %v10073
        %10075 = vmatprep.subr.mxu0 0.0
        %v10076 = vand.u32 %v8666, 4294901760
        %10077 = vmatpush1.msra.mxu0 %v10076
        %10078 = vmatprep.subr.mxu0 0.0
        %v10079 = vand.u32 %v8667, 4294901760
        %10080 = vmatpush1.msra.mxu0 %v10079
        %10081 = vmatprep.subr.mxu0 0.0
        %v10082 = vand.u32 %v8668, 4294901760
        %10083 = vmatpush1.msra.mxu0 %v10082
        %10084 = vmatprep.subr.mxu0 0.0
        %v10085 = vand.u32 %v8669, 4294901760
        %10086 = vmatpush1.msra.mxu0 %v10085
        %10087 = vmatprep.subr.mxu0 0.0
        %v10088 = vand.u32 %v8670, 4294901760
        %10089 = vmatpush1.msra.mxu0 %v10088
        %10090 = vmatprep.subr.mxu0 0.0
        %v10091 = vand.u32 %v8671, 4294901760
        %10092 = vmatpush1.msra.mxu0 %v10091
        %10093 = vmatprep.subr.mxu0 0.0
        %v10094 = vand.u32 %v8672, 4294901760
        %10095 = vmatpush1.msra.mxu0 %v10094
        %10096 = vmatprep.subr.mxu0 0.0
        %v10097 = vand.u32 %v8673, 4294901760
        %10098 = vmatpush1.msra.mxu0 %v10097
        %10099 = vmatprep.subr.mxu0 0.0
        %v10100 = vand.u32 %v8674, 4294901760
        %10101 = vmatpush1.msra.mxu0 %v10100
        %10102 = vmatprep.subr.mxu0 0.0
        %v10103 = vand.u32 %v8675, 4294901760
        %10104 = vmatpush1.msra.mxu0 %v10103
        %10105 = vmatprep.subr.mxu0 0.0
        %v10106 = vand.u32 %v8676, 4294901760
        %10107 = vmatpush1.msra.mxu0 %v10106
        %10108 = vmatprep.subr.mxu0 0.0
        %v10109 = vand.u32 %v8677, 4294901760
        %10110 = vmatpush1.msra.mxu0 %v10109
        %10111 = vmatprep.subr.mxu0 0.0
        %v10112 = vand.u32 %v8678, 4294901760
        %10113 = vmatpush1.msra.mxu0 %v10112
        %10114 = vmatprep.subr.mxu0 0.0
        %v10115 = vand.u32 %v8679, 4294901760
        %10116 = vmatpush1.msra.mxu0 %v10115
        %10117 = vmatprep.subr.mxu0 0.0
        %v10118 = vand.u32 %v8680, 4294901760
        %10119 = vmatpush1.msra.mxu0 %v10118
        %10120 = vmatprep.subr.mxu0 0.0
        %v10121 = vand.u32 %v8681, 4294901760
        %10122 = vmatpush1.msra.mxu0 %v10121
        %10123 = vmatprep.subr.mxu0 0.0
        %v10124 = vand.u32 %v8682, 4294901760
        %10125 = vmatpush1.msra.mxu0 %v10124
        %10126 = vmatprep.subr.mxu0 0.0
        %v10127 = vand.u32 %v8683, 4294901760
        %10128 = vmatpush1.msra.mxu0 %v10127
        %10129 = vmatprep.subr.mxu0 0.0
        %v10130 = vand.u32 %v8684, 4294901760
        %10131 = vmatpush1.msra.mxu0 %v10130
        %v10132 = vand.u32 %v8620, 4294901760
        %v10133 = vsub.f32 %v8620, %v10132
        %v10134 = vand.u32 %v10133, 4294901760
        %10135 = vmatprep.mubr.f32.mxu0 %v10134
        %v10136 = vand.u32 %v8619, 4294901760
        %v10137 = vsub.f32 %v8619, %v10136
        %v10138 = vand.u32 %v10137, 4294901760
        %10139 = vmatmul.mubr.f32.gmra.mrb[0].mxu0 %v10138
        %v10140 = vpop.f32.mrb[0].mxu0
        %v10141 = vadd.f32 %v10033, %v10140
        %v10142 = vpop.f32.mrb[0].mxu0
        %10143 = vdwg.mxu0
        %10144 = vmatprep.subr.mxu0 0.0
        %v10145 = vand.u32 %v8653, 4294901760
        %v10146 = vsub.f32 %v8653, %v10145
        %v10147 = vand.u32 %v10146, 4294901760
        %10148 = vmatpush1.msra.mxu0 %v10147
        %10149 = vmatprep.subr.mxu0 0.0
        %v10150 = vand.u32 %v8654, 4294901760
        %v10151 = vsub.f32 %v8654, %v10150
        %v10152 = vand.u32 %v10151, 4294901760
        %10153 = vmatpush1.msra.mxu0 %v10152
        %10154 = vmatprep.subr.mxu0 0.0
        %v10155 = vand.u32 %v8655, 4294901760
        %v10156 = vsub.f32 %v8655, %v10155
        %v10157 = vand.u32 %v10156, 4294901760
        %10158 = vmatpush1.msra.mxu0 %v10157
        %10159 = vmatprep.subr.mxu0 0.0
        %v10160 = vand.u32 %v8656, 4294901760
        %v10161 = vsub.f32 %v8656, %v10160
        %v10162 = vand.u32 %v10161, 4294901760
        %10163 = vmatpush1.msra.mxu0 %v10162
        %10164 = vmatprep.subr.mxu0 0.0
        %v10165 = vand.u32 %v8657, 4294901760
        %v10166 = vsub.f32 %v8657, %v10165
        %v10167 = vand.u32 %v10166, 4294901760
        %10168 = vmatpush1.msra.mxu0 %v10167
        %10169 = vmatprep.subr.mxu0 0.0
        %v10170 = vand.u32 %v8658, 4294901760
        %v10171 = vsub.f32 %v8658, %v10170
        %v10172 = vand.u32 %v10171, 4294901760
        %10173 = vmatpush1.msra.mxu0 %v10172
        %10174 = vmatprep.subr.mxu0 0.0
        %v10175 = vand.u32 %v8659, 4294901760
        %v10176 = vsub.f32 %v8659, %v10175
        %v10177 = vand.u32 %v10176, 4294901760
        %10178 = vmatpush1.msra.mxu0 %v10177
        %10179 = vmatprep.subr.mxu0 0.0
        %v10180 = vand.u32 %v8660, 4294901760
        %v10181 = vsub.f32 %v8660, %v10180
        %v10182 = vand.u32 %v10181, 4294901760
        %10183 = vmatpush1.msra.mxu0 %v10182
        %10184 = vmatprep.subr.mxu0 0.0
        %v10185 = vand.u32 %v8661, 4294901760
        %v10186 = vsub.f32 %v8661, %v10185
        %v10187 = vand.u32 %v10186, 4294901760
        %10188 = vmatpush1.msra.mxu0 %v10187
        %10189 = vmatprep.subr.mxu0 0.0
        %v10190 = vand.u32 %v8662, 4294901760
        %v10191 = vsub.f32 %v8662, %v10190
        %v10192 = vand.u32 %v10191, 4294901760
        %10193 = vmatpush1.msra.mxu0 %v10192
        %10194 = vmatprep.subr.mxu0 0.0
        %v10195 = vand.u32 %v8663, 4294901760
        %v10196 = vsub.f32 %v8663, %v10195
        %v10197 = vand.u32 %v10196, 4294901760
        %10198 = vmatpush1.msra.mxu0 %v10197
        %10199 = vmatprep.subr.mxu0 0.0
        %v10200 = vand.u32 %v8664, 4294901760
        %v10201 = vsub.f32 %v8664, %v10200
        %v10202 = vand.u32 %v10201, 4294901760
        %10203 = vmatpush1.msra.mxu0 %v10202
        %10204 = vmatprep.subr.mxu0 0.0
        %v10205 = vand.u32 %v8665, 4294901760
        %v10206 = vsub.f32 %v8665, %v10205
        %v10207 = vand.u32 %v10206, 4294901760
        %10208 = vmatpush1.msra.mxu0 %v10207
        %10209 = vmatprep.subr.mxu0 0.0
        %v10210 = vand.u32 %v8666, 4294901760
        %v10211 = vsub.f32 %v8666, %v10210
        %v10212 = vand.u32 %v10211, 4294901760
        %10213 = vmatpush1.msra.mxu0 %v10212
        %10214 = vmatprep.subr.mxu0 0.0
        %v10215 = vand.u32 %v8667, 4294901760
        %v10216 = vsub.f32 %v8667, %v10215
        %v10217 = vand.u32 %v10216, 4294901760
        %10218 = vmatpush1.msra.mxu0 %v10217
        %10219 = vmatprep.subr.mxu0 0.0
        %v10220 = vand.u32 %v8668, 4294901760
        %v10221 = vsub.f32 %v8668, %v10220
        %v10222 = vand.u32 %v10221, 4294901760
        %10223 = vmatpush1.msra.mxu0 %v10222
        %10224 = vmatprep.subr.mxu0 0.0
        %v10225 = vand.u32 %v8669, 4294901760
        %v10226 = vsub.f32 %v8669, %v10225
        %v10227 = vand.u32 %v10226, 4294901760
        %10228 = vmatpush1.msra.mxu0 %v10227
        %10229 = vmatprep.subr.mxu0 0.0
        %v10230 = vand.u32 %v8670, 4294901760
        %v10231 = vsub.f32 %v8670, %v10230
        %v10232 = vand.u32 %v10231, 4294901760
        %10233 = vmatpush1.msra.mxu0 %v10232
        %10234 = vmatprep.subr.mxu0 0.0
        %v10235 = vand.u32 %v8671, 4294901760
        %v10236 = vsub.f32 %v8671, %v10235
        %v10237 = vand.u32 %v10236, 4294901760
        %10238 = vmatpush1.msra.mxu0 %v10237
        %10239 = vmatprep.subr.mxu0 0.0
        %v10240 = vand.u32 %v8672, 4294901760
        %v10241 = vsub.f32 %v8672, %v10240
        %v10242 = vand.u32 %v10241, 4294901760
        %10243 = vmatpush1.msra.mxu0 %v10242
        %10244 = vmatprep.subr.mxu0 0.0
        %v10245 = vand.u32 %v8673, 4294901760
        %v10246 = vsub.f32 %v8673, %v10245
        %v10247 = vand.u32 %v10246, 4294901760
        %10248 = vmatpush1.msra.mxu0 %v10247
        %10249 = vmatprep.subr.mxu0 0.0
        %v10250 = vand.u32 %v8674, 4294901760
        %v10251 = vsub.f32 %v8674, %v10250
        %v10252 = vand.u32 %v10251, 4294901760
        %10253 = vmatpush1.msra.mxu0 %v10252
        %10254 = vmatprep.subr.mxu0 0.0
        %v10255 = vand.u32 %v8675, 4294901760
        %v10256 = vsub.f32 %v8675, %v10255
        %v10257 = vand.u32 %v10256, 4294901760
        %10258 = vmatpush1.msra.mxu0 %v10257
        %10259 = vmatprep.subr.mxu0 0.0
        %v10260 = vand.u32 %v8676, 4294901760
        %v10261 = vsub.f32 %v8676, %v10260
        %v10262 = vand.u32 %v10261, 4294901760
        %10263 = vmatpush1.msra.mxu0 %v10262
        %10264 = vmatprep.subr.mxu0 0.0
        %v10265 = vand.u32 %v8677, 4294901760
        %v10266 = vsub.f32 %v8677, %v10265
        %v10267 = vand.u32 %v10266, 4294901760
        %10268 = vmatpush1.msra.mxu0 %v10267
        %10269 = vmatprep.subr.mxu0 0.0
        %v10270 = vand.u32 %v8678, 4294901760
        %v10271 = vsub.f32 %v8678, %v10270
        %v10272 = vand.u32 %v10271, 4294901760
        %10273 = vmatpush1.msra.mxu0 %v10272
        %10274 = vmatprep.subr.mxu0 0.0
        %v10275 = vand.u32 %v8679, 4294901760
        %v10276 = vsub.f32 %v8679, %v10275
        %v10277 = vand.u32 %v10276, 4294901760
        %10278 = vmatpush1.msra.mxu0 %v10277
        %10279 = vmatprep.subr.mxu0 0.0
        %v10280 = vand.u32 %v8680, 4294901760
        %v10281 = vsub.f32 %v8680, %v10280
        %v10282 = vand.u32 %v10281, 4294901760
        %10283 = vmatpush1.msra.mxu0 %v10282
        %10284 = vmatprep.subr.mxu0 0.0
        %v10285 = vand.u32 %v8681, 4294901760
        %v10286 = vsub.f32 %v8681, %v10285
        %v10287 = vand.u32 %v10286, 4294901760
        %10288 = vmatpush1.msra.mxu0 %v10287
        %10289 = vmatprep.subr.mxu0 0.0
        %v10290 = vand.u32 %v8682, 4294901760
        %v10291 = vsub.f32 %v8682, %v10290
        %v10292 = vand.u32 %v10291, 4294901760
        %10293 = vmatpush1.msra.mxu0 %v10292
        %10294 = vmatprep.subr.mxu0 0.0
        %v10295 = vand.u32 %v8683, 4294901760
        %v10296 = vsub.f32 %v8683, %v10295
        %v10297 = vand.u32 %v10296, 4294901760
        %10298 = vmatpush1.msra.mxu0 %v10297
        %10299 = vmatprep.subr.mxu0 0.0
        %v10300 = vand.u32 %v8684, 4294901760
        %v10301 = vsub.f32 %v8684, %v10300
        %v10302 = vand.u32 %v10301, 4294901760
        %10303 = vmatpush1.msra.mxu0 %v10302
        %v10304 = vand.u32 %v8620, 4294901760
        %10305 = vmatprep.mubr.f32.mxu0 %v10304
        %v10306 = vand.u32 %v8619, 4294901760
        %10307 = vmatmul.mubr.f32.gmra.mrb[0].mxu0 %v10306
        %v10308 = vpop.f32.mrb[0].mxu0
        %v10309 = vadd.f32 %v10141, %v10308
        %v10310 = vpop.f32.mrb[0].mxu0
        %10311 = vdwg.mxu0
        %10312 = vmatprep.subr.mxu0 0.0
        %v10313 = vand.u32 %v8653, 4294901760
        %10314 = vmatpush1.msra.mxu0 %v10313
        %10315 = vmatprep.subr.mxu0 0.0
        %v10316 = vand.u32 %v8654, 4294901760
        %10317 = vmatpush1.msra.mxu0 %v10316
        %10318 = vmatprep.subr.mxu0 0.0
        %v10319 = vand.u32 %v8655, 4294901760
        %10320 = vmatpush1.msra.mxu0 %v10319
        %10321 = vmatprep.subr.mxu0 0.0
        %v10322 = vand.u32 %v8656, 4294901760
        %10323 = vmatpush1.msra.mxu0 %v10322
        %10324 = vmatprep.subr.mxu0 0.0
        %v10325 = vand.u32 %v8657, 4294901760
        %10326 = vmatpush1.msra.mxu0 %v10325
        %10327 = vmatprep.subr.mxu0 0.0
        %v10328 = vand.u32 %v8658, 4294901760
        %10329 = vmatpush1.msra.mxu0 %v10328
        %10330 = vmatprep.subr.mxu0 0.0
        %v10331 = vand.u32 %v8659, 4294901760
        %10332 = vmatpush1.msra.mxu0 %v10331
        %10333 = vmatprep.subr.mxu0 0.0
        %v10334 = vand.u32 %v8660, 4294901760
        %10335 = vmatpush1.msra.mxu0 %v10334
        %10336 = vmatprep.subr.mxu0 0.0
        %v10337 = vand.u32 %v8661, 4294901760
        %10338 = vmatpush1.msra.mxu0 %v10337
        %10339 = vmatprep.subr.mxu0 0.0
        %v10340 = vand.u32 %v8662, 4294901760
        %10341 = vmatpush1.msra.mxu0 %v10340
        %10342 = vmatprep.subr.mxu0 0.0
        %v10343 = vand.u32 %v8663, 4294901760
        %10344 = vmatpush1.msra.mxu0 %v10343
        %10345 = vmatprep.subr.mxu0 0.0
        %v10346 = vand.u32 %v8664, 4294901760
        %10347 = vmatpush1.msra.mxu0 %v10346
        %10348 = vmatprep.subr.mxu0 0.0
        %v10349 = vand.u32 %v8665, 4294901760
        %10350 = vmatpush1.msra.mxu0 %v10349
        %10351 = vmatprep.subr.mxu0 0.0
        %v10352 = vand.u32 %v8666, 4294901760
        %10353 = vmatpush1.msra.mxu0 %v10352
        %10354 = vmatprep.subr.mxu0 0.0
        %v10355 = vand.u32 %v8667, 4294901760
        %10356 = vmatpush1.msra.mxu0 %v10355
        %10357 = vmatprep.subr.mxu0 0.0
        %v10358 = vand.u32 %v8668, 4294901760
        %10359 = vmatpush1.msra.mxu0 %v10358
        %10360 = vmatprep.subr.mxu0 0.0
        %v10361 = vand.u32 %v8669, 4294901760
        %10362 = vmatpush1.msra.mxu0 %v10361
        %10363 = vmatprep.subr.mxu0 0.0
        %v10364 = vand.u32 %v8670, 4294901760
        %10365 = vmatpush1.msra.mxu0 %v10364
        %10366 = vmatprep.subr.mxu0 0.0
        %v10367 = vand.u32 %v8671, 4294901760
        %10368 = vmatpush1.msra.mxu0 %v10367
        %10369 = vmatprep.subr.mxu0 0.0
        %v10370 = vand.u32 %v8672, 4294901760
        %10371 = vmatpush1.msra.mxu0 %v10370
        %10372 = vmatprep.subr.mxu0 0.0
        %v10373 = vand.u32 %v8673, 4294901760
        %10374 = vmatpush1.msra.mxu0 %v10373
        %10375 = vmatprep.subr.mxu0 0.0
        %v10376 = vand.u32 %v8674, 4294901760
        %10377 = vmatpush1.msra.mxu0 %v10376
        %10378 = vmatprep.subr.mxu0 0.0
        %v10379 = vand.u32 %v8675, 4294901760
        %10380 = vmatpush1.msra.mxu0 %v10379
        %10381 = vmatprep.subr.mxu0 0.0
        %v10382 = vand.u32 %v8676, 4294901760
        %10383 = vmatpush1.msra.mxu0 %v10382
        %10384 = vmatprep.subr.mxu0 0.0
        %v10385 = vand.u32 %v8677, 4294901760
        %10386 = vmatpush1.msra.mxu0 %v10385
        %10387 = vmatprep.subr.mxu0 0.0
        %v10388 = vand.u32 %v8678, 4294901760
        %10389 = vmatpush1.msra.mxu0 %v10388
        %10390 = vmatprep.subr.mxu0 0.0
        %v10391 = vand.u32 %v8679, 4294901760
        %10392 = vmatpush1.msra.mxu0 %v10391
        %10393 = vmatprep.subr.mxu0 0.0
        %v10394 = vand.u32 %v8680, 4294901760
        %10395 = vmatpush1.msra.mxu0 %v10394
        %10396 = vmatprep.subr.mxu0 0.0
        %v10397 = vand.u32 %v8681, 4294901760
        %10398 = vmatpush1.msra.mxu0 %v10397
        %10399 = vmatprep.subr.mxu0 0.0
        %v10400 = vand.u32 %v8682, 4294901760
        %10401 = vmatpush1.msra.mxu0 %v10400
        %10402 = vmatprep.subr.mxu0 0.0
        %v10403 = vand.u32 %v8683, 4294901760
        %10404 = vmatpush1.msra.mxu0 %v10403
        %10405 = vmatprep.subr.mxu0 0.0
        %v10406 = vand.u32 %v8684, 4294901760
        %10407 = vmatpush1.msra.mxu0 %v10406
        %v10408 = vand.u32 %v8620, 4294901760
        %10409 = vmatprep.mubr.f32.mxu0 %v10408
        %v10410 = vand.u32 %v8619, 4294901760
        %10411 = vmatmul.mubr.f32.gmra.mrb[0].mxu0 %v10410
        %v10412 = vpop.f32.mrb[0].mxu0
        %v10413 = vadd.f32 %v10309, %v10412
        %v10414 = vpop.f32.mrb[0].mxu0
        %10415 = vdwg.mxu0
        %v10416 = vadd.f32 %v6807, %v10413
        %10417 = vst [vmem:[%s461] sm:$0xff] %v10416
        %s10418 = sand.u32 %s253, 1
        %s10419 = scalar_lea.sflag [#allocation4], %s10418
        %s10420 = sand.u32 %s253, 1
        %s10421 = smul.addr %s10420, 8
        %s10422 = scalar_lea.vmem [#allocation14], %s10421
        // Predicated region
        $region89: #{block6_forward.1} parent=59 // pred_check
          %p10423 = pneg %p263
        $region90: #{block6_forward.1} parent=59 // pred_check_branch
          %10425 = sbr.rel (%p10423) target = $region92
        $region91: #{block6_forward.1} parent=59 // pred_region
          %s10427 = ssub.s32 128, 128
          %10428 = vsyncadd %s10419, %s10427
          %s10429 = smul.addr %s30, 128
          %s10430 = scalar_lea.hbm %s10, %s10429
          %s10432 = sshll.u32 %s10422, 4
          %s10433 = int_to_ptr.vmem [resolvable:$true] %s10432
          %10435 = dma.vmem_to_hbm [thread:$0]  %s10433, 128, %s10430, %s10419
        $region92: #{block6_forward.1} parent=59 // pred_fallthru
          _
      $region60: #{block6_forward.1} parent=5 // pred_fallthru
        _
      %p10436 = scmp.le.s32.totalorder 2, %s25
      // Predicated region
      $region93: #{block6_forward.1} parent=5 // pred_check
        %p10437 = pneg %p10436
      $region94: #{block6_forward.1} parent=5 // pred_check_branch
        %10439 = sbr.rel (%p10437) target = $region96
      $region95: #{block6_forward.1} parent=5 // pred_region
        %s10440 = ssub.s32 %s25, 2
        // Predicated region
        $region97: #{block6_forward.1} parent=95 // pred_check
          %p10441 = pneg %p269
        $region98: #{block6_forward.1} parent=95 // pred_check_branch
          %10443 = sbr.rel (%p10441) target = $region100
        $region99: #{block6_forward.1} parent=95 // pred_region
          %s10444 = sand.u32 %s254, 1
          %s10445 = scalar_lea.sflag [#allocation4], %s10444
          %s10446 = sand.u32 %s254, 1
          %s10447 = smul.addr %s10446, 8
          %s10448 = scalar_lea.vmem [#allocation14], %s10447
          %10449 = dma.done %s10445, 128
        $region100: #{block6_forward.1} parent=95 // pred_fallthru
          _
      $region96: #{block6_forward.1} parent=5 // pred_fallthru
        _
    $region6: #{block6_forward.1} parent=1 // loop_footer
      %s29 = sadd.s32 1, %s25
    $region7: #{block6_forward.1} parent=1 // loop_footer_branch
      %24 = sbr.rel target = $region3
    $region8: #{block6_forward.1} parent=1 // loop_exit
      _
    %10450 = vsyncpa [#allocation3], 1
    %s10451 = scalar_lea.sflag [#allocation3], 1
    %10452 = vsyncpa %s10451, 1
    %10453 = vsyncpa [#allocation6], 1
    %10454 = vsyncpa [#allocation9], 1
    %10455 = vsyncpa [#allocation12], 1
    %10456 = vsyncpa [#allocation4], 1
    %s10457 = scalar_lea.sflag [#allocation4], 1
    %10458 = vsyncpa %s10457, 1

</llo_original>
